<compile_context>
chip_gen: v5e
topology: v5e:2x2
jax: 0.10.0
libtpu: 0.0.40
codegen_flags: <defaults>
</compile_context>

<pallas_src>
import numpy as np
import jax
import jax.numpy as jnp
from jax.experimental import pallas as pl
from jax.experimental.pallas import tpu as pltpu

# ---------------- configuration (small, consistent with the module) ----------
B = 2
H = W = 16
C = 32                      # dim
NUM_HEADS = 4
WINDOW_SIZE = 8
SHIFT_SIZE = 4              # SW-MSA path (exercises the attention mask)
MLP_RATIO = 4.0
EPS = 1e-5

HEAD_DIM = C // NUM_HEADS
N = WINDOW_SIZE * WINDOW_SIZE                    # tokens per window (64)
NW = (H // WINDOW_SIZE) * (W // WINDOW_SIZE)     # windows per image (4)
T = NW * N                                       # tokens per image (256) == L
HIDDEN = int(C * MLP_RATIO)
SCALE = HEAD_DIM ** (-0.5)
L = H * W
INV_SQRT2 = 0.7071067811865476


# ------------------------------- fused kernel ---------------------------------
def _make_fused_kernel(ib, use_mask):
    """Fused LN1 -> W-MSA -> residual -> LN2 -> MLP -> residual, for `ib` images."""
    rt = ib * T            # tokens in this block
    wb = ib * NW           # windows in this block

    def kernel(*refs):
        if use_mask:
            (x_ref, bias_ref, mask_ref, g1_ref, b1_ref, qkvw_ref, qkvb_ref,
             pw_ref, pb_ref, g2_ref, b2_ref, w1_ref, fb1_ref, w2_ref, fb2_ref,
             o_ref) = refs
        else:
            (x_ref, bias_ref, g1_ref, b1_ref, qkvw_ref, qkvb_ref,
             pw_ref, pb_ref, g2_ref, b2_ref, w1_ref, fb1_ref, w2_ref, fb2_ref,
             o_ref) = refs
            mask_ref = None

        # x: (ib, T, C) f32, window-major tokens -> (rt, C)
        x = x_ref[...].reshape(rt, C).astype(jnp.float32)

        # ---- LayerNorm 1 (one-pass variance) ----
        mu = jnp.mean(x, axis=-1, keepdims=True)
        msq = jnp.mean(x * x, axis=-1, keepdims=True)
        xn = (x - mu) * jax.lax.rsqrt(msq - mu * mu + EPS)
        xn = xn * g1_ref[...] + b1_ref[...]

        # ---- fused QKV projection (bf16 MXU, f32 accumulation) ----
        qkv = jnp.dot(xn.astype(jnp.bfloat16), qkvw_ref[...],
                      preferred_element_type=jnp.float32) + qkvb_ref[...]   # (rt, 3C)

        q_all = qkv[:, 0:C] * SCALE                    # scale hoisted out of head loop
        mask = mask_ref[...] if use_mask else None     # (wb, N, N) f32, loaded once
        pw = pw_ref[...]                               # (C, C) bf16 full output proj

        # static 4-way head loop, all per-head math batched over the `wb` windows
        y = jnp.zeros((rt, C), jnp.float32)
        for h in range(NUM_HEADS):
            lo = h * HEAD_DIM
            qh = q_all[:, lo:lo + HEAD_DIM].reshape(wb, N, HEAD_DIM)
            kh = qkv[:, C + lo:C + lo + HEAD_DIM].reshape(wb, N, HEAD_DIM)
            vh = qkv[:, 2 * C + lo:2 * C + lo + HEAD_DIM].reshape(wb, N, HEAD_DIM)

            s = jnp.einsum('wqd,wkd->wqk', qh, kh,
                           preferred_element_type=jnp.float32)              # (wb,N,N)
            s = s + bias_ref[h][None, :, :]
            if use_mask:
                s = s + mask

            # manual softmax: exp on EUP, approx reciprocal on EUP (no VALU divide)
            m = jnp.max(s, axis=-1, keepdims=True)
            e = jnp.exp(s - m)
            den = jnp.sum(e, axis=-1, keepdims=True)
            p = e * pl.reciprocal(den, approx=True)

            ctx = jnp.einsum('wqk,wkd->wqd', p, vh,
                             preferred_element_type=jnp.float32)            # (wb,N,hd)
            # per-head row-slice of the full projection weight -> accumulate
            y = y + jnp.dot(ctx.reshape(rt, HEAD_DIM).astype(jnp.bfloat16),
                            pw[lo:lo + HEAD_DIM, :],
                            preferred_element_type=jnp.float32)
        y = y + pb_ref[...]

        # ---- first residual, kept in f32 ----
        h1 = x + y

        # ---- LayerNorm 2 (one-pass variance) ----
        mu2 = jnp.mean(h1, axis=-1, keepdims=True)
        msq2 = jnp.mean(h1 * h1, axis=-1, keepdims=True)
        xn2 = (h1 - mu2) * jax.lax.rsqrt(msq2 - mu2 * mu2 + EPS)
        xn2 = xn2 * g2_ref[...] + b2_ref[...]

        # ---- MLP: fc1 -> exact GELU -> fc2 (bf16 MXU, f32 accumulate) ----
        z = jnp.dot(xn2.astype(jnp.bfloat16), w1_ref[...],
                    preferred_element_type=jnp.float32) + fb1_ref[...]
        z = 0.5 * z * (1.0 + jax.lax.erf(z * INV_SQRT2))       # exact GELU (nn.GELU)
        y2 = jnp.dot(z.astype(jnp.bfloat16), w2_ref[...],
                     preferred_element_type=jnp.float32) + fb2_ref[...]

        # ---- second residual + store (window-major; permuted back in wrapper) ----
        out = h1 + y2
        o_ref[...] = out.reshape(ib, T, C).astype(o_ref.dtype)

    return kernel


def _images_per_block():
    """One image per grid step keeps both TensorCores of a v7x chip busy;
    single-TensorCore chips (v5e / v6e) take the whole batch in one step."""
    try:
        kind = jax.devices()[0].device_kind.lower()
    except Exception:
        return 1
    if any(t in kind for t in ("v5e", "v5 lite", "v6e", "v6 lite")):
        return B
    return 1


# ------------------------------ pallas wrapper ---------------------------------
def fused_swin_block_pallas(xw, params, attn_mask):
    """xw: (B, T, C) f32, window-major tokens of the (shifted) image.
    Returns (B, T, C) f32 in the same window-major order."""
    Bx = xw.shape[0]
    use_mask = SHIFT_SIZE > 0
    ib = _images_per_block()
    if Bx % ib != 0:
        ib = 1
    grid = (Bx // ib,)

    args = [xw, params["rel_bias"]]
    in_specs = [
        pl.BlockSpec((ib, T, C), lambda b: (b, 0, 0)),
        # rel-pos bias: constant index_map -> DMA'd once, grid-resident
        pl.BlockSpec((NUM_HEADS, N, N), lambda b: (0, 0, 0)),
    ]
    if use_mask:
        mask_t = jnp.tile(attn_mask, (ib, 1, 1)) if ib > 1 else attn_mask
        args.append(mask_t)
        in_specs.append(pl.BlockSpec((ib * NW, N, N), lambda b: (0, 0, 0)))

    args += [params["g1"], params["b1"],
             params["qkv_w"].astype(jnp.bfloat16), params["qkv_b"],
             params["proj_w"].astype(jnp.bfloat16), params["proj_b"],
             params["g2"], params["b2"],
             params["fc1_w"].astype(jnp.bfloat16), params["fc1_b"],
             params["fc2_w"].astype(jnp.bfloat16), params["fc2_b"]]
    in_specs += [
        pl.BlockSpec((1, C), lambda b: (0, 0)),
        pl.BlockSpec((1, C), lambda b: (0, 0)),
        pl.BlockSpec((C, 3 * C), lambda b: (0, 0)),
        pl.BlockSpec((1, 3 * C), lambda b: (0, 0)),
        pl.BlockSpec((C, C), lambda b: (0, 0)),
        pl.BlockSpec((1, C), lambda b: (0, 0)),
        pl.BlockSpec((1, C), lambda b: (0, 0)),
        pl.BlockSpec((1, C), lambda b: (0, 0)),
        pl.BlockSpec((C, HIDDEN), lambda b: (0, 0)),
        pl.BlockSpec((1, HIDDEN), lambda b: (0, 0)),
        pl.BlockSpec((HIDDEN, C), lambda b: (0, 0)),
        pl.BlockSpec((1, C), lambda b: (0, 0)),
    ]

    flops_per_img = (2 * T * C * 3 * C                            # qkv proj
                     + NUM_HEADS * NW * 2 * 2 * N * N * HEAD_DIM  # qk^T + pv
                     + 2 * T * C * C                              # out proj
                     + 2 * T * C * HIDDEN + 2 * T * HIDDEN * C)   # fc1 + fc2
    weight_bytes = 2 * (params["qkv_w"].size + params["proj_w"].size
                        + params["fc1_w"].size + params["fc2_w"].size)
    small_bytes = 4 * (params["qkv_b"].size + params["proj_b"].size
                       + params["fc1_b"].size + params["fc2_b"].size
                       + params["g1"].size + params["b1"].size
                       + params["g2"].size + params["b2"].size)
    cost = pl.CostEstimate(
        flops=Bx * flops_per_img,
        transcendentals=Bx * (NUM_HEADS * NW * N * N + T * HIDDEN),
        bytes_accessed=(xw.size * 4 * 2 + params["rel_bias"].size * 4
                        + (attn_mask.size * 4 if use_mask else 0)
                        + weight_bytes + small_bytes))

    return pl.pallas_call(
        _make_fused_kernel(ib, use_mask),
        out_shape=jax.ShapeDtypeStruct((Bx, T, C), jnp.float32),
        grid=grid,
        in_specs=in_specs,
        out_specs=pl.BlockSpec((ib, T, C), lambda b: (b, 0, 0)),
        compiler_params=pltpu.CompilerParams(dimension_semantics=("parallel",)),
        cost_estimate=cost,
    )(*args)


# ------------------------------ glue (pure JAX) --------------------------------
def _relative_position_index(ws):
    coords = np.stack(np.meshgrid(np.arange(ws), np.arange(ws), indexing="ij"))
    coords_flatten = coords.reshape(2, -1)
    rel = coords_flatten[:, :, None] - coords_flatten[:, None, :]
    rel = rel.transpose(1, 2, 0).astype(np.int64)
    rel[:, :, 0] += ws - 1
    rel[:, :, 1] += ws - 1
    rel[:, :, 0] *= 2 * ws - 1
    return rel.sum(-1)                                     # (ws*ws, ws*ws)


def compute_attn_mask(Hp, Wp, ws, shift):
    """Swin-style 0/-100 mask for shifted windows: shape (nW, N, N)."""
    img = np.zeros((1, Hp, Wp, 1), np.float32)
    cnt = 0
    for hs in (slice(0, -ws), slice(-ws, -shift), slice(-shift, None)):
        for wsl in (slice(0, -ws), slice(-ws, -shift), slice(-shift, None)):
            img[:, hs, wsl, :] = cnt
            cnt += 1
    mw = img.reshape(1, Hp // ws, ws, Wp // ws, ws, 1)
    mw = mw.transpose(0, 1, 3, 2, 4, 5).reshape(-1, ws * ws)
    am = mw[:, None, :] - mw[:, :, None]
    am = np.where(am != 0, -100.0, 0.0).astype(np.float32)
    return jnp.asarray(am)


def init_params(key):
    ks = jax.random.split(key, 7)
    table = 0.02 * jax.random.normal(
        ks[0], ((2 * WINDOW_SIZE - 1) * (2 * WINDOW_SIZE - 1), NUM_HEADS),
        jnp.float32)
    rpi = _relative_position_index(WINDOW_SIZE)            # (N, N) int
    rel_bias = table[jnp.asarray(rpi.reshape(-1))].reshape(N, N, NUM_HEADS)
    rel_bias = jnp.transpose(rel_bias, (2, 0, 1))          # (nH, N, N)

    def lin(k, fan_in, fan_out):
        return (0.05 * jax.random.normal(k, (fan_in, fan_out), jnp.float32),
                0.01 * jax.random.normal(jax.random.fold_in(k, 1),
                                         (1, fan_out), jnp.float32))

    qkv_w, qkv_b = lin(ks[1], C, 3 * C)
    proj_w, proj_b = lin(ks[2], C, C)
    fc1_w, fc1_b = lin(ks[3], C, HIDDEN)
    fc2_w, fc2_b = lin(ks[4], HIDDEN, C)
    return dict(
        rel_bias=rel_bias,
        g1=jnp.ones((1, C), jnp.float32), b1=jnp.zeros((1, C), jnp.float32),
        g2=jnp.ones((1, C), jnp.float32), b2=jnp.zeros((1, C), jnp.float32),
        qkv_w=qkv_w, qkv_b=qkv_b, proj_w=proj_w, proj_b=proj_b,
        fc1_w=fc1_w, fc1_b=fc1_b, fc2_w=fc2_w, fc2_b=fc2_b,
    )


def swin_block_forward(x, params, attn_mask):
    """x: (B, L, C) f32; attn_mask: (nW, N, N) f32 (or None if no shift).
    Returns (B, L, C) f32."""
    Bx, Lx, Cx = x.shape
    assert Lx == H * W and Cx == C

    # H, W divisible by window_size at these shapes -> F.pad is a no-op.
    # Cyclic shift + window partition is a pure token permutation P; the whole
    # block (LN1, attention, residual, LN2, MLP, residual) is computed in
    # window order inside ONE fused kernel and permuted back afterwards.
    xs = x.reshape(Bx, H, W, Cx)
    if SHIFT_SIZE > 0:
        xs = jnp.roll(xs, shift=(-SHIFT_SIZE, -SHIFT_SIZE), axis=(1, 2))
    xw = xs.reshape(Bx, H // WINDOW_SIZE, WINDOW_SIZE,
                    W // WINDOW_SIZE, WINDOW_SIZE, Cx)
    xw = xw.transpose(0, 1, 3, 2, 4, 5).reshape(Bx, T, Cx)   # (B, NW*N, C) f32

    ow = fused_swin_block_pallas(xw, params, attn_mask)      # (B, T, C) f32

    # window reverse + roll back (pure permutations)
    ow = ow.reshape(Bx, H // WINDOW_SIZE, W // WINDOW_SIZE,
                    WINDOW_SIZE, WINDOW_SIZE, Cx)
    ow = ow.transpose(0, 1, 3, 2, 4, 5).reshape(Bx, H, W, Cx)
    if SHIFT_SIZE > 0:
        ow = jnp.roll(ow, shift=(SHIFT_SIZE, SHIFT_SIZE), axis=(1, 2))
    return ow.reshape(Bx, Lx, Cx)


# ------------------------------ pure-JAX reference -----------------------------
def reference_forward(x, params, attn_mask):
    def ln(v, g, b):
        mu = v.mean(-1, keepdims=True)
        var = ((v - mu) ** 2).mean(-1, keepdims=True)
        return (v - mu) / jnp.sqrt(var + EPS) * g + b

    Bx, Lx, Cx = x.shape
    shortcut = x
    xn = ln(x, params["g1"][0], params["b1"][0])
    xs = xn.reshape(Bx, H, W, Cx)
    if SHIFT_SIZE > 0:
        xs = jnp.roll(xs, shift=(-SHIFT_SIZE, -SHIFT_SIZE), axis=(1, 2))
    xw = xs.reshape(Bx, H // WINDOW_SIZE, WINDOW_SIZE,
                    W // WINDOW_SIZE, WINDOW_SIZE, Cx)
    xw = xw.transpose(0, 1, 3, 2, 4, 5).reshape(-1, N, Cx)
    Bw = xw.shape[0]

    qkv = xw @ params["qkv_w"] + params["qkv_b"][0]
    qkv = qkv.reshape(Bw, N, 3, NUM_HEADS, HEAD_DIM).transpose(2, 0, 3, 1, 4)
    q, k, v = qkv[0] * SCALE, qkv[1], qkv[2]
    attn = q @ jnp.swapaxes(k, -2, -1)                     # (Bw, nH, N, N)
    attn = attn + params["rel_bias"][None]
    if SHIFT_SIZE > 0:
        attn = attn.reshape(Bw // NW, NW, NUM_HEADS, N, N)
        attn = attn + attn_mask[None, :, None, :, :]
        attn = attn.reshape(Bw, NUM_HEADS, N, N)
    attn = jax.nn.softmax(attn, axis=-1)
    ctx = (attn @ v).transpose(0, 2, 1, 3).reshape(Bw, N, Cx)
    y = ctx @ params["proj_w"] + params["proj_b"][0]

    aw = y.reshape(Bx, H // WINDOW_SIZE, W // WINDOW_SIZE,
                   WINDOW_SIZE, WINDOW_SIZE, Cx)
    aw = aw.transpose(0, 1, 3, 2, 4, 5).reshape(Bx, H, W, Cx)
    if SHIFT_SIZE > 0:
        aw = jnp.roll(aw, shift=(SHIFT_SIZE, SHIFT_SIZE), axis=(1, 2))
    xres = shortcut + aw.reshape(Bx, Lx, Cx)

    h2 = ln(xres, params["g2"][0], params["b2"][0])
    z = h2 @ params["fc1_w"] + params["fc1_b"][0]
    z = 0.5 * z * (1.0 + jax.lax.erf(z * INV_SQRT2))
    y2 = z @ params["fc2_w"] + params["fc2_b"][0]
    return xres + y2


# ----------------------------------- main --------------------------------------
if __name__ == "__main__":
    key = jax.random.PRNGKey(0)
    kx, _ = jax.random.split(key)
    x = jax.random.normal(kx, (B, L, C), jnp.float32)
    params = init_params(jax.random.PRNGKey(42))
    if SHIFT_SIZE > 0:
        attn_mask = compute_attn_mask(H, W, WINDOW_SIZE, SHIFT_SIZE)  # (nW, N, N)
    else:
        attn_mask = jnp.zeros((NW, N, N), jnp.float32)

    out = jax.jit(swin_block_forward)(x, params, attn_mask)
    out = jax.block_until_ready(out)

    ref = reference_forward(x, params, attn_mask)
    # bf16 MXU inputs + approx reciprocal (f32 accumulation, LN/softmax stats,
    # residuals all f32) vs the pure-f32 reference.
    np.testing.assert_allclose(np.asarray(out), np.asarray(ref),
                               rtol=2e-2, atol=2e-2)
    print("KERNEL_OK")
</pallas_src>

<mosaic_0001>
module attributes {stable_mosaic.version = 11 : i64} {
  func.func @kernel(%arg0: i32, %arg1: memref<1x256x32xf32, #tpu.memory_space<vmem>>, %arg2: memref<4x64x64xf32, #tpu.memory_space<vmem>>, %arg3: memref<4x64x64xf32, #tpu.memory_space<vmem>>, %arg4: memref<1x32xf32, #tpu.memory_space<vmem>>, %arg5: memref<1x32xf32, #tpu.memory_space<vmem>>, %arg6: memref<32x96xbf16, #tpu.memory_space<vmem>>, %arg7: memref<1x96xf32, #tpu.memory_space<vmem>>, %arg8: memref<32x32xbf16, #tpu.memory_space<vmem>>, %arg9: memref<1x32xf32, #tpu.memory_space<vmem>>, %arg10: memref<1x32xf32, #tpu.memory_space<vmem>>, %arg11: memref<1x32xf32, #tpu.memory_space<vmem>>, %arg12: memref<32x128xbf16, #tpu.memory_space<vmem>>, %arg13: memref<1x128xf32, #tpu.memory_space<vmem>>, %arg14: memref<128x32xbf16, #tpu.memory_space<vmem>>, %arg15: memref<1x32xf32, #tpu.memory_space<vmem>>, %arg16: memref<1x256x32xf32, #tpu.memory_space<vmem>>) attributes {dimension_semantics = [#tpu.dimension_semantics<parallel>], iteration_bounds = array<i64: 2>, scalar_prefetch = 0 : i64, scratch_operands = 0 : i64, tpu.core_type = #tpu.core_type<tc>, window_params = [{transform_indices = @transform_0, window_bounds = array<i64: 1, 256, 32>}, {pipeline_mode = #tpu.pipeline_mode<synchronous>, transform_indices = @transform_1, window_bounds = array<i64: 4, 64, 64>}, {pipeline_mode = #tpu.pipeline_mode<synchronous>, transform_indices = @transform_2, window_bounds = array<i64: 4, 64, 64>}, {pipeline_mode = #tpu.pipeline_mode<synchronous>, transform_indices = @transform_3, window_bounds = array<i64: 1, 32>}, {pipeline_mode = #tpu.pipeline_mode<synchronous>, transform_indices = @transform_4, window_bounds = array<i64: 1, 32>}, {pipeline_mode = #tpu.pipeline_mode<synchronous>, transform_indices = @transform_5, window_bounds = array<i64: 32, 96>}, {pipeline_mode = #tpu.pipeline_mode<synchronous>, transform_indices = @transform_6, window_bounds = array<i64: 1, 96>}, {pipeline_mode = #tpu.pipeline_mode<synchronous>, transform_indices = @transform_7, window_bounds = array<i64: 32, 32>}, {pipeline_mode = #tpu.pipeline_mode<synchronous>, transform_indices = @transform_8, window_bounds = array<i64: 1, 32>}, {pipeline_mode = #tpu.pipeline_mode<synchronous>, transform_indices = @transform_9, window_bounds = array<i64: 1, 32>}, {pipeline_mode = #tpu.pipeline_mode<synchronous>, transform_indices = @transform_10, window_bounds = array<i64: 1, 32>}, {pipeline_mode = #tpu.pipeline_mode<synchronous>, transform_indices = @transform_11, window_bounds = array<i64: 32, 128>}, {pipeline_mode = #tpu.pipeline_mode<synchronous>, transform_indices = @transform_12, window_bounds = array<i64: 1, 128>}, {pipeline_mode = #tpu.pipeline_mode<synchronous>, transform_indices = @transform_13, window_bounds = array<i64: 128, 32>}, {pipeline_mode = #tpu.pipeline_mode<synchronous>, transform_indices = @transform_14, window_bounds = array<i64: 1, 32>}, {transform_indices = @transform_15, window_bounds = array<i64: 1, 256, 32>}]} {
    %c0 = arith.constant 0 : index
    %c0_0 = arith.constant 0 : index
    %c0_1 = arith.constant 0 : index
    %0 = vector.load %arg1[%c0, %c0_0, %c0_1] : memref<1x256x32xf32, #tpu.memory_space<vmem>>, vector<1x256x32xf32>
    %1 = vector.shape_cast %0 : vector<1x256x32xf32> to vector<256x32xf32>
    %cst = arith.constant dense<0.000000e+00> : vector<256xf32>
    %2 = vector.multi_reduction <add>, %1, %cst [1] : vector<256x32xf32> to vector<256xf32>
    %3 = vector.shape_cast %2 : vector<256xf32> to vector<256x1xf32>
    %cst_2 = arith.constant 3.200000e+01 : f32
    %4 = vector.broadcast %cst_2 : f32 to vector<256x1xf32>
    %5 = arith.divf %3, %4 : vector<256x1xf32>
    %6 = arith.mulf %1, %1 : vector<256x32xf32>
    %cst_3 = arith.constant dense<0.000000e+00> : vector<256xf32>
    %7 = vector.multi_reduction <add>, %6, %cst_3 [1] : vector<256x32xf32> to vector<256xf32>
    %8 = vector.shape_cast %7 : vector<256xf32> to vector<256x1xf32>
    %cst_4 = arith.constant 3.200000e+01 : f32
    %9 = vector.broadcast %cst_4 : f32 to vector<256x1xf32>
    %10 = arith.divf %8, %9 : vector<256x1xf32>
    %11 = vector.broadcast %5 : vector<256x1xf32> to vector<256x32xf32>
    %12 = arith.subf %1, %11 : vector<256x32xf32>
    %13 = arith.mulf %5, %5 : vector<256x1xf32>
    %14 = arith.subf %10, %13 : vector<256x1xf32>
    %cst_5 = arith.constant 9.99999974E-6 : f32
    %15 = vector.broadcast %cst_5 : f32 to vector<256x1xf32>
    %16 = arith.addf %14, %15 : vector<256x1xf32>
    %17 = math.rsqrt %16 : vector<256x1xf32>
    %18 = vector.broadcast %17 : vector<256x1xf32> to vector<256x32xf32>
    %19 = arith.mulf %12, %18 : vector<256x32xf32>
    %c0_6 = arith.constant 0 : index
    %c0_7 = arith.constant 0 : index
    %20 = vector.load %arg4[%c0_6, %c0_7] : memref<1x32xf32, #tpu.memory_space<vmem>>, vector<1x32xf32>
    %21 = vector.broadcast %20 : vector<1x32xf32> to vector<256x32xf32>
    %22 = arith.mulf %19, %21 : vector<256x32xf32>
    %c0_8 = arith.constant 0 : index
    %c0_9 = arith.constant 0 : index
    %23 = vector.load %arg5[%c0_8, %c0_9] : memref<1x32xf32, #tpu.memory_space<vmem>>, vector<1x32xf32>
    %24 = vector.broadcast %23 : vector<1x32xf32> to vector<256x32xf32>
    %25 = arith.addf %22, %24 : vector<256x32xf32>
    %26 = arith.truncf %25 : vector<256x32xf32> to vector<256x32xbf16>
    %c0_10 = arith.constant 0 : index
    %c0_11 = arith.constant 0 : index
    %27 = vector.load %arg6[%c0_10, %c0_11] : memref<32x96xbf16, #tpu.memory_space<vmem>>, vector<32x96xbf16>
    %cst_12 = arith.constant dense<0.000000e+00> : vector<256x96xf32>
    %28 = tpu.matmul %26, %27, %cst_12 {dimension_numbers = #tpu.dot_dimension_numbers<[1], [0], [0], [1], [0, 0, 1, 1], [], []>} : vector<256x32xbf16>, vector<32x96xbf16>, vector<256x96xf32> -> vector<256x96xf32>
    %c0_13 = arith.constant 0 : index
    %c0_14 = arith.constant 0 : index
    %29 = vector.load %arg7[%c0_13, %c0_14] : memref<1x96xf32, #tpu.memory_space<vmem>>, vector<1x96xf32>
    %30 = vector.broadcast %29 : vector<1x96xf32> to vector<256x96xf32>
    %31 = arith.addf %28, %30 : vector<256x96xf32>
    %32 = vector.extract_strided_slice %31 {offsets = [0, 0], sizes = [256, 32], strides = [1, 1]} : vector<256x96xf32> to vector<256x32xf32>
    %cst_15 = arith.constant 0.353553385 : f32
    %33 = vector.broadcast %cst_15 : f32 to vector<256x32xf32>
    %34 = arith.mulf %32, %33 : vector<256x32xf32>
    %c0_16 = arith.constant 0 : index
    %c0_17 = arith.constant 0 : index
    %c0_18 = arith.constant 0 : index
    %35 = vector.load %arg3[%c0_16, %c0_17, %c0_18] : memref<4x64x64xf32, #tpu.memory_space<vmem>>, vector<4x64x64xf32>
    %c0_19 = arith.constant 0 : index
    %c0_20 = arith.constant 0 : index
    %36 = vector.load %arg8[%c0_19, %c0_20] : memref<32x32xbf16, #tpu.memory_space<vmem>>, vector<32x32xbf16>
    %cst_21 = arith.constant 0.000000e+00 : f32
    %37 = vector.broadcast %cst_21 : f32 to vector<256x32xf32>
    %38 = vector.extract_strided_slice %34 {offsets = [0, 0], sizes = [256, 8], strides = [1, 1]} : vector<256x32xf32> to vector<256x8xf32>
    %39 = vector.shape_cast %38 : vector<256x8xf32> to vector<4x64x8xf32>
    %40 = vector.extract_strided_slice %31 {offsets = [0, 32], sizes = [256, 8], strides = [1, 1]} : vector<256x96xf32> to vector<256x8xf32>
    %41 = vector.shape_cast %40 : vector<256x8xf32> to vector<4x64x8xf32>
    %42 = vector.extract_strided_slice %31 {offsets = [0, 64], sizes = [256, 8], strides = [1, 1]} : vector<256x96xf32> to vector<256x8xf32>
    %43 = vector.shape_cast %42 : vector<256x8xf32> to vector<4x64x8xf32>
    "tpu.trace_start"() <{level = 10 : i32, message = "wqd,wkd->wqk"}> : () -> ()
    %cst_22 = arith.constant dense<0.000000e+00> : vector<4x64x64xf32>
    %44 = tpu.matmul %39, %41, %cst_22 {dimension_numbers = #tpu.dot_dimension_numbers<[2], [2], [1], [1], [0, 0, 0, 1, 1, 1], [0], [0]>} : vector<4x64x8xf32>, vector<4x64x8xf32>, vector<4x64x64xf32> -> vector<4x64x64xf32>
    "tpu.trace_stop"() : () -> ()
    %c0_23 = arith.constant 0 : index
    %c0_24 = arith.constant 0 : index
    %c0_25 = arith.constant 0 : index
    %45 = vector.load %arg2[%c0_23, %c0_24, %c0_25] : memref<4x64x64xf32, #tpu.memory_space<vmem>>, vector<1x64x64xf32>
    %46 = vector.shape_cast %45 : vector<1x64x64xf32> to vector<64x64xf32>
    %47 = vector.shape_cast %46 : vector<64x64xf32> to vector<1x64x64xf32>
    %48 = vector.broadcast %47 : vector<1x64x64xf32> to vector<4x64x64xf32>
    %49 = arith.addf %44, %48 : vector<4x64x64xf32>
    %50 = arith.addf %49, %35 : vector<4x64x64xf32>
    %cst_26 = arith.constant dense<0xFF800000> : vector<4x64xf32>
    %51 = vector.multi_reduction <maximumf>, %50, %cst_26 [2] : vector<4x64x64xf32> to vector<4x64xf32>
    %52 = vector.shape_cast %51 : vector<4x64xf32> to vector<4x64x1xf32>
    %53 = vector.broadcast %52 : vector<4x64x1xf32> to vector<4x64x64xf32>
    %54 = arith.subf %50, %53 : vector<4x64x64xf32>
    %55 = math.exp %54 : vector<4x64x64xf32>
    %cst_27 = arith.constant dense<0.000000e+00> : vector<4x64xf32>
    %56 = vector.multi_reduction <add>, %55, %cst_27 [2] : vector<4x64x64xf32> to vector<4x64xf32>
    %57 = vector.shape_cast %56 : vector<4x64xf32> to vector<4x64x1xf32>
    %58 = tpu.reciprocal %57 {approx = true} : vector<4x64x1xf32> -> vector<4x64x1xf32>
    %59 = vector.broadcast %58 : vector<4x64x1xf32> to vector<4x64x64xf32>
    %60 = arith.mulf %55, %59 : vector<4x64x64xf32>
    "tpu.trace_start"() <{level = 10 : i32, message = "wqk,wkd->wqd"}> : () -> ()
    %cst_28 = arith.constant dense<0.000000e+00> : vector<4x64x8xf32>
    %61 = tpu.matmul %60, %43, %cst_28 {dimension_numbers = #tpu.dot_dimension_numbers<[2], [1], [1], [2], [0, 0, 0, 1, 1, 2], [0], [0]>} : vector<4x64x64xf32>, vector<4x64x8xf32>, vector<4x64x8xf32> -> vector<4x64x8xf32>
    "tpu.trace_stop"() : () -> ()
    %62 = vector.shape_cast %61 : vector<4x64x8xf32> to vector<256x8xf32>
    %63 = arith.truncf %62 : vector<256x8xf32> to vector<256x8xbf16>
    %64 = vector.extract_strided_slice %36 {offsets = [0, 0], sizes = [8, 32], strides = [1, 1]} : vector<32x32xbf16> to vector<8x32xbf16>
    %cst_29 = arith.constant dense<0.000000e+00> : vector<256x32xf32>
    %65 = tpu.matmul %63, %64, %cst_29 {dimension_numbers = #tpu.dot_dimension_numbers<[1], [0], [0], [1], [0, 0, 1, 1], [], []>} : vector<256x8xbf16>, vector<8x32xbf16>, vector<256x32xf32> -> vector<256x32xf32>
    %66 = arith.addf %37, %65 : vector<256x32xf32>
    %67 = vector.extract_strided_slice %34 {offsets = [0, 8], sizes = [256, 8], strides = [1, 1]} : vector<256x32xf32> to vector<256x8xf32>
    %68 = vector.shape_cast %67 : vector<256x8xf32> to vector<4x64x8xf32>
    %69 = vector.extract_strided_slice %31 {offsets = [0, 40], sizes = [256, 8], strides = [1, 1]} : vector<256x96xf32> to vector<256x8xf32>
    %70 = vector.shape_cast %69 : vector<256x8xf32> to vector<4x64x8xf32>
    %71 = vector.extract_strided_slice %31 {offsets = [0, 72], sizes = [256, 8], strides = [1, 1]} : vector<256x96xf32> to vector<256x8xf32>
    %72 = vector.shape_cast %71 : vector<256x8xf32> to vector<4x64x8xf32>
    "tpu.trace_start"() <{level = 10 : i32, message = "wqd,wkd->wqk"}> : () -> ()
    %cst_30 = arith.constant dense<0.000000e+00> : vector<4x64x64xf32>
    %73 = tpu.matmul %68, %70, %cst_30 {dimension_numbers = #tpu.dot_dimension_numbers<[2], [2], [1], [1], [0, 0, 0, 1, 1, 1], [0], [0]>} : vector<4x64x8xf32>, vector<4x64x8xf32>, vector<4x64x64xf32> -> vector<4x64x64xf32>
    "tpu.trace_stop"() : () -> ()
    %c1 = arith.constant 1 : index
    %c0_31 = arith.constant 0 : index
    %c0_32 = arith.constant 0 : index
    %74 = vector.load %arg2[%c1, %c0_31, %c0_32] : memref<4x64x64xf32, #tpu.memory_space<vmem>>, vector<1x64x64xf32>
    %75 = vector.shape_cast %74 : vector<1x64x64xf32> to vector<64x64xf32>
    %76 = vector.shape_cast %75 : vector<64x64xf32> to vector<1x64x64xf32>
    %77 = vector.broadcast %76 : vector<1x64x64xf32> to vector<4x64x64xf32>
    %78 = arith.addf %73, %77 : vector<4x64x64xf32>
    %79 = arith.addf %78, %35 : vector<4x64x64xf32>
    %cst_33 = arith.constant dense<0xFF800000> : vector<4x64xf32>
    %80 = vector.multi_reduction <maximumf>, %79, %cst_33 [2] : vector<4x64x64xf32> to vector<4x64xf32>
    %81 = vector.shape_cast %80 : vector<4x64xf32> to vector<4x64x1xf32>
    %82 = vector.broadcast %81 : vector<4x64x1xf32> to vector<4x64x64xf32>
    %83 = arith.subf %79, %82 : vector<4x64x64xf32>
    %84 = math.exp %83 : vector<4x64x64xf32>
    %cst_34 = arith.constant dense<0.000000e+00> : vector<4x64xf32>
    %85 = vector.multi_reduction <add>, %84, %cst_34 [2] : vector<4x64x64xf32> to vector<4x64xf32>
    %86 = vector.shape_cast %85 : vector<4x64xf32> to vector<4x64x1xf32>
    %87 = tpu.reciprocal %86 {approx = true} : vector<4x64x1xf32> -> vector<4x64x1xf32>
    %88 = vector.broadcast %87 : vector<4x64x1xf32> to vector<4x64x64xf32>
    %89 = arith.mulf %84, %88 : vector<4x64x64xf32>
    "tpu.trace_start"() <{level = 10 : i32, message = "wqk,wkd->wqd"}> : () -> ()
    %cst_35 = arith.constant dense<0.000000e+00> : vector<4x64x8xf32>
    %90 = tpu.matmul %89, %72, %cst_35 {dimension_numbers = #tpu.dot_dimension_numbers<[2], [1], [1], [2], [0, 0, 0, 1, 1, 2], [0], [0]>} : vector<4x64x64xf32>, vector<4x64x8xf32>, vector<4x64x8xf32> -> vector<4x64x8xf32>
    "tpu.trace_stop"() : () -> ()
    %91 = vector.shape_cast %90 : vector<4x64x8xf32> to vector<256x8xf32>
    %92 = arith.truncf %91 : vector<256x8xf32> to vector<256x8xbf16>
    %93 = vector.extract_strided_slice %36 {offsets = [8, 0], sizes = [8, 32], strides = [1, 1]} : vector<32x32xbf16> to vector<8x32xbf16>
    %cst_36 = arith.constant dense<0.000000e+00> : vector<256x32xf32>
    %94 = tpu.matmul %92, %93, %cst_36 {dimension_numbers = #tpu.dot_dimension_numbers<[1], [0], [0], [1], [0, 0, 1, 1], [], []>} : vector<256x8xbf16>, vector<8x32xbf16>, vector<256x32xf32> -> vector<256x32xf32>
    %95 = arith.addf %66, %94 : vector<256x32xf32>
    %96 = vector.extract_strided_slice %34 {offsets = [0, 16], sizes = [256, 8], strides = [1, 1]} : vector<256x32xf32> to vector<256x8xf32>
    %97 = vector.shape_cast %96 : vector<256x8xf32> to vector<4x64x8xf32>
    %98 = vector.extract_strided_slice %31 {offsets = [0, 48], sizes = [256, 8], strides = [1, 1]} : vector<256x96xf32> to vector<256x8xf32>
    %99 = vector.shape_cast %98 : vector<256x8xf32> to vector<4x64x8xf32>
    %100 = vector.extract_strided_slice %31 {offsets = [0, 80], sizes = [256, 8], strides = [1, 1]} : vector<256x96xf32> to vector<256x8xf32>
    %101 = vector.shape_cast %100 : vector<256x8xf32> to vector<4x64x8xf32>
    "tpu.trace_start"() <{level = 10 : i32, message = "wqd,wkd->wqk"}> : () -> ()
    %cst_37 = arith.constant dense<0.000000e+00> : vector<4x64x64xf32>
    %102 = tpu.matmul %97, %99, %cst_37 {dimension_numbers = #tpu.dot_dimension_numbers<[2], [2], [1], [1], [0, 0, 0, 1, 1, 1], [0], [0]>} : vector<4x64x8xf32>, vector<4x64x8xf32>, vector<4x64x64xf32> -> vector<4x64x64xf32>
    "tpu.trace_stop"() : () -> ()
    %c2 = arith.constant 2 : index
    %c0_38 = arith.constant 0 : index
    %c0_39 = arith.constant 0 : index
    %103 = vector.load %arg2[%c2, %c0_38, %c0_39] : memref<4x64x64xf32, #tpu.memory_space<vmem>>, vector<1x64x64xf32>
    %104 = vector.shape_cast %103 : vector<1x64x64xf32> to vector<64x64xf32>
    %105 = vector.shape_cast %104 : vector<64x64xf32> to vector<1x64x64xf32>
    %106 = vector.broadcast %105 : vector<1x64x64xf32> to vector<4x64x64xf32>
    %107 = arith.addf %102, %106 : vector<4x64x64xf32>
    %108 = arith.addf %107, %35 : vector<4x64x64xf32>
    %cst_40 = arith.constant dense<0xFF800000> : vector<4x64xf32>
    %109 = vector.multi_reduction <maximumf>, %108, %cst_40 [2] : vector<4x64x64xf32> to vector<4x64xf32>
    %110 = vector.shape_cast %109 : vector<4x64xf32> to vector<4x64x1xf32>
    %111 = vector.broadcast %110 : vector<4x64x1xf32> to vector<4x64x64xf32>
    %112 = arith.subf %108, %111 : vector<4x64x64xf32>
    %113 = math.exp %112 : vector<4x64x64xf32>
    %cst_41 = arith.constant dense<0.000000e+00> : vector<4x64xf32>
    %114 = vector.multi_reduction <add>, %113, %cst_41 [2] : vector<4x64x64xf32> to vector<4x64xf32>
    %115 = vector.shape_cast %114 : vector<4x64xf32> to vector<4x64x1xf32>
    %116 = tpu.reciprocal %115 {approx = true} : vector<4x64x1xf32> -> vector<4x64x1xf32>
    %117 = vector.broadcast %116 : vector<4x64x1xf32> to vector<4x64x64xf32>
    %118 = arith.mulf %113, %117 : vector<4x64x64xf32>
    "tpu.trace_start"() <{level = 10 : i32, message = "wqk,wkd->wqd"}> : () -> ()
    %cst_42 = arith.constant dense<0.000000e+00> : vector<4x64x8xf32>
    %119 = tpu.matmul %118, %101, %cst_42 {dimension_numbers = #tpu.dot_dimension_numbers<[2], [1], [1], [2], [0, 0, 0, 1, 1, 2], [0], [0]>} : vector<4x64x64xf32>, vector<4x64x8xf32>, vector<4x64x8xf32> -> vector<4x64x8xf32>
    "tpu.trace_stop"() : () -> ()
    %120 = vector.shape_cast %119 : vector<4x64x8xf32> to vector<256x8xf32>
    %121 = arith.truncf %120 : vector<256x8xf32> to vector<256x8xbf16>
    %122 = vector.extract_strided_slice %36 {offsets = [16, 0], sizes = [8, 32], strides = [1, 1]} : vector<32x32xbf16> to vector<8x32xbf16>
    %cst_43 = arith.constant dense<0.000000e+00> : vector<256x32xf32>
    %123 = tpu.matmul %121, %122, %cst_43 {dimension_numbers = #tpu.dot_dimension_numbers<[1], [0], [0], [1], [0, 0, 1, 1], [], []>} : vector<256x8xbf16>, vector<8x32xbf16>, vector<256x32xf32> -> vector<256x32xf32>
    %124 = arith.addf %95, %123 : vector<256x32xf32>
    %125 = vector.extract_strided_slice %34 {offsets = [0, 24], sizes = [256, 8], strides = [1, 1]} : vector<256x32xf32> to vector<256x8xf32>
    %126 = vector.shape_cast %125 : vector<256x8xf32> to vector<4x64x8xf32>
    %127 = vector.extract_strided_slice %31 {offsets = [0, 56], sizes = [256, 8], strides = [1, 1]} : vector<256x96xf32> to vector<256x8xf32>
    %128 = vector.shape_cast %127 : vector<256x8xf32> to vector<4x64x8xf32>
    %129 = vector.extract_strided_slice %31 {offsets = [0, 88], sizes = [256, 8], strides = [1, 1]} : vector<256x96xf32> to vector<256x8xf32>
    %130 = vector.shape_cast %129 : vector<256x8xf32> to vector<4x64x8xf32>
    "tpu.trace_start"() <{level = 10 : i32, message = "wqd,wkd->wqk"}> : () -> ()
    %cst_44 = arith.constant dense<0.000000e+00> : vector<4x64x64xf32>
    %131 = tpu.matmul %126, %128, %cst_44 {dimension_numbers = #tpu.dot_dimension_numbers<[2], [2], [1], [1], [0, 0, 0, 1, 1, 1], [0], [0]>} : vector<4x64x8xf32>, vector<4x64x8xf32>, vector<4x64x64xf32> -> vector<4x64x64xf32>
    "tpu.trace_stop"() : () -> ()
    %c3 = arith.constant 3 : index
    %c0_45 = arith.constant 0 : index
    %c0_46 = arith.constant 0 : index
    %132 = vector.load %arg2[%c3, %c0_45, %c0_46] : memref<4x64x64xf32, #tpu.memory_space<vmem>>, vector<1x64x64xf32>
    %133 = vector.shape_cast %132 : vector<1x64x64xf32> to vector<64x64xf32>
    %134 = vector.shape_cast %133 : vector<64x64xf32> to vector<1x64x64xf32>
    %135 = vector.broadcast %134 : vector<1x64x64xf32> to vector<4x64x64xf32>
    %136 = arith.addf %131, %135 : vector<4x64x64xf32>
    %137 = arith.addf %136, %35 : vector<4x64x64xf32>
    %cst_47 = arith.constant dense<0xFF800000> : vector<4x64xf32>
    %138 = vector.multi_reduction <maximumf>, %137, %cst_47 [2] : vector<4x64x64xf32> to vector<4x64xf32>
    %139 = vector.shape_cast %138 : vector<4x64xf32> to vector<4x64x1xf32>
    %140 = vector.broadcast %139 : vector<4x64x1xf32> to vector<4x64x64xf32>
    %141 = arith.subf %137, %140 : vector<4x64x64xf32>
    %142 = math.exp %141 : vector<4x64x64xf32>
    %cst_48 = arith.constant dense<0.000000e+00> : vector<4x64xf32>
    %143 = vector.multi_reduction <add>, %142, %cst_48 [2] : vector<4x64x64xf32> to vector<4x64xf32>
    %144 = vector.shape_cast %143 : vector<4x64xf32> to vector<4x64x1xf32>
    %145 = tpu.reciprocal %144 {approx = true} : vector<4x64x1xf32> -> vector<4x64x1xf32>
    %146 = vector.broadcast %145 : vector<4x64x1xf32> to vector<4x64x64xf32>
    %147 = arith.mulf %142, %146 : vector<4x64x64xf32>
    "tpu.trace_start"() <{level = 10 : i32, message = "wqk,wkd->wqd"}> : () -> ()
    %cst_49 = arith.constant dense<0.000000e+00> : vector<4x64x8xf32>
    %148 = tpu.matmul %147, %130, %cst_49 {dimension_numbers = #tpu.dot_dimension_numbers<[2], [1], [1], [2], [0, 0, 0, 1, 1, 2], [0], [0]>} : vector<4x64x64xf32>, vector<4x64x8xf32>, vector<4x64x8xf32> -> vector<4x64x8xf32>
    "tpu.trace_stop"() : () -> ()
    %149 = vector.shape_cast %148 : vector<4x64x8xf32> to vector<256x8xf32>
    %150 = arith.truncf %149 : vector<256x8xf32> to vector<256x8xbf16>
    %151 = vector.extract_strided_slice %36 {offsets = [24, 0], sizes = [8, 32], strides = [1, 1]} : vector<32x32xbf16> to vector<8x32xbf16>
    %cst_50 = arith.constant dense<0.000000e+00> : vector<256x32xf32>
    %152 = tpu.matmul %150, %151, %cst_50 {dimension_numbers = #tpu.dot_dimension_numbers<[1], [0], [0], [1], [0, 0, 1, 1], [], []>} : vector<256x8xbf16>, vector<8x32xbf16>, vector<256x32xf32> -> vector<256x32xf32>
    %153 = arith.addf %124, %152 : vector<256x32xf32>
    %c0_51 = arith.constant 0 : index
    %c0_52 = arith.constant 0 : index
    %154 = vector.load %arg9[%c0_51, %c0_52] : memref<1x32xf32, #tpu.memory_space<vmem>>, vector<1x32xf32>
    %155 = vector.broadcast %154 : vector<1x32xf32> to vector<256x32xf32>
    %156 = arith.addf %153, %155 : vector<256x32xf32>
    %157 = arith.addf %1, %156 : vector<256x32xf32>
    %cst_53 = arith.constant dense<0.000000e+00> : vector<256xf32>
    %158 = vector.multi_reduction <add>, %157, %cst_53 [1] : vector<256x32xf32> to vector<256xf32>
    %159 = vector.shape_cast %158 : vector<256xf32> to vector<256x1xf32>
    %cst_54 = arith.constant 3.200000e+01 : f32
    %160 = vector.broadcast %cst_54 : f32 to vector<256x1xf32>
    %161 = arith.divf %159, %160 : vector<256x1xf32>
    %162 = arith.mulf %157, %157 : vector<256x32xf32>
    %cst_55 = arith.constant dense<0.000000e+00> : vector<256xf32>
    %163 = vector.multi_reduction <add>, %162, %cst_55 [1] : vector<256x32xf32> to vector<256xf32>
    %164 = vector.shape_cast %163 : vector<256xf32> to vector<256x1xf32>
    %cst_56 = arith.constant 3.200000e+01 : f32
    %165 = vector.broadcast %cst_56 : f32 to vector<256x1xf32>
    %166 = arith.divf %164, %165 : vector<256x1xf32>
    %167 = vector.broadcast %161 : vector<256x1xf32> to vector<256x32xf32>
    %168 = arith.subf %157, %167 : vector<256x32xf32>
    %169 = arith.mulf %161, %161 : vector<256x1xf32>
    %170 = arith.subf %166, %169 : vector<256x1xf32>
    %cst_57 = arith.constant 9.99999974E-6 : f32
    %171 = vector.broadcast %cst_57 : f32 to vector<256x1xf32>
    %172 = arith.addf %170, %171 : vector<256x1xf32>
    %173 = math.rsqrt %172 : vector<256x1xf32>
    %174 = vector.broadcast %173 : vector<256x1xf32> to vector<256x32xf32>
    %175 = arith.mulf %168, %174 : vector<256x32xf32>
    %c0_58 = arith.constant 0 : index
    %c0_59 = arith.constant 0 : index
    %176 = vector.load %arg10[%c0_58, %c0_59] : memref<1x32xf32, #tpu.memory_space<vmem>>, vector<1x32xf32>
    %177 = vector.broadcast %176 : vector<1x32xf32> to vector<256x32xf32>
    %178 = arith.mulf %175, %177 : vector<256x32xf32>
    %c0_60 = arith.constant 0 : index
    %c0_61 = arith.constant 0 : index
    %179 = vector.load %arg11[%c0_60, %c0_61] : memref<1x32xf32, #tpu.memory_space<vmem>>, vector<1x32xf32>
    %180 = vector.broadcast %179 : vector<1x32xf32> to vector<256x32xf32>
    %181 = arith.addf %178, %180 : vector<256x32xf32>
    %182 = arith.truncf %181 : vector<256x32xf32> to vector<256x32xbf16>
    %c0_62 = arith.constant 0 : index
    %c0_63 = arith.constant 0 : index
    %183 = vector.load %arg12[%c0_62, %c0_63] : memref<32x128xbf16, #tpu.memory_space<vmem>>, vector<32x128xbf16>
    %cst_64 = arith.constant dense<0.000000e+00> : vector<256x128xf32>
    %184 = tpu.matmul %182, %183, %cst_64 {dimension_numbers = #tpu.dot_dimension_numbers<[1], [0], [0], [1], [0, 0, 1, 1], [], []>} : vector<256x32xbf16>, vector<32x128xbf16>, vector<256x128xf32> -> vector<256x128xf32>
    %c0_65 = arith.constant 0 : index
    %c0_66 = arith.constant 0 : index
    %185 = vector.load %arg13[%c0_65, %c0_66] : memref<1x128xf32, #tpu.memory_space<vmem>>, vector<1x128xf32>
    %186 = vector.broadcast %185 : vector<1x128xf32> to vector<256x128xf32>
    %187 = arith.addf %184, %186 : vector<256x128xf32>
    %cst_67 = arith.constant 5.000000e-01 : f32
    %188 = vector.broadcast %cst_67 : f32 to vector<256x128xf32>
    %189 = arith.mulf %188, %187 : vector<256x128xf32>
    %cst_68 = arith.constant 0.707106769 : f32
    %190 = vector.broadcast %cst_68 : f32 to vector<256x128xf32>
    %191 = arith.mulf %187, %190 : vector<256x128xf32>
    %192 = math.erf %191 : vector<256x128xf32>
    %cst_69 = arith.constant 1.000000e+00 : f32
    %193 = vector.broadcast %cst_69 : f32 to vector<256x128xf32>
    %194 = arith.addf %193, %192 : vector<256x128xf32>
    %195 = arith.mulf %189, %194 : vector<256x128xf32>
    %196 = arith.truncf %195 : vector<256x128xf32> to vector<256x128xbf16>
    %c0_70 = arith.constant 0 : index
    %c0_71 = arith.constant 0 : index
    %197 = vector.load %arg14[%c0_70, %c0_71] : memref<128x32xbf16, #tpu.memory_space<vmem>>, vector<128x32xbf16>
    %cst_72 = arith.constant dense<0.000000e+00> : vector<256x32xf32>
    %198 = tpu.matmul %196, %197, %cst_72 {dimension_numbers = #tpu.dot_dimension_numbers<[1], [0], [0], [1], [0, 0, 1, 1], [], []>} : vector<256x128xbf16>, vector<128x32xbf16>, vector<256x32xf32> -> vector<256x32xf32>
    %c0_73 = arith.constant 0 : index
    %c0_74 = arith.constant 0 : index
    %199 = vector.load %arg15[%c0_73, %c0_74] : memref<1x32xf32, #tpu.memory_space<vmem>>, vector<1x32xf32>
    %200 = vector.broadcast %199 : vector<1x32xf32> to vector<256x32xf32>
    %201 = arith.addf %198, %200 : vector<256x32xf32>
    %202 = arith.addf %157, %201 : vector<256x32xf32>
    %203 = vector.shape_cast %202 : vector<256x32xf32> to vector<1x256x32xf32>
    %c0_75 = arith.constant 0 : index
    %c0_76 = arith.constant 0 : index
    %c0_77 = arith.constant 0 : index
    %204 = vector.load %arg16[%c0_75, %c0_76, %c0_77] : memref<1x256x32xf32, #tpu.memory_space<vmem>>, vector<1x256x32xf32>
    tpu.vector_store %arg16[%c0_75, %c0_76, %c0_77], %203 {strides = array<i32>} : memref<1x256x32xf32, #tpu.memory_space<vmem>>, vector<1x256x32xf32>,
    return
  }
  func.func @transform_0(%arg0: i32) -> (i32, i32, i32) {
    %c0_i32 = arith.constant 0 : i32
    %c0_i32_0 = arith.constant 0 : i32
    %c0_i32_1 = arith.constant 0 : i32
    return %arg0, %c0_i32, %c0_i32_0 : i32, i32, i32
  }
  func.func @transform_1(%arg0: i32) -> (i32, i32, i32) {
    %c0_i32 = arith.constant 0 : i32
    %c0_i32_0 = arith.constant 0 : i32
    %c0_i32_1 = arith.constant 0 : i32
    %c0_i32_2 = arith.constant 0 : i32
    return %c0_i32, %c0_i32_0, %c0_i32_1 : i32, i32, i32
  }
  func.func @transform_2(%arg0: i32) -> (i32, i32, i32) {
    %c0_i32 = arith.constant 0 : i32
    %c0_i32_0 = arith.constant 0 : i32
    %c0_i32_1 = arith.constant 0 : i32
    %c0_i32_2 = arith.constant 0 : i32
    return %c0_i32, %c0_i32_0, %c0_i32_1 : i32, i32, i32
  }
  func.func @transform_3(%arg0: i32) -> (i32, i32) {
    %c0_i32 = arith.constant 0 : i32
    %c0_i32_0 = arith.constant 0 : i32
    %c0_i32_1 = arith.constant 0 : i32
    return %c0_i32, %c0_i32_0 : i32, i32
  }
  func.func @transform_4(%arg0: i32) -> (i32, i32) {
    %c0_i32 = arith.constant 0 : i32
    %c0_i32_0 = arith.constant 0 : i32
    %c0_i32_1 = arith.constant 0 : i32
    return %c0_i32, %c0_i32_0 : i32, i32
  }
  func.func @transform_5(%arg0: i32) -> (i32, i32) {
    %c0_i32 = arith.constant 0 : i32
    %c0_i32_0 = arith.constant 0 : i32
    %c0_i32_1 = arith.constant 0 : i32
    return %c0_i32, %c0_i32_0 : i32, i32
  }
  func.func @transform_6(%arg0: i32) -> (i32, i32) {
    %c0_i32 = arith.constant 0 : i32
    %c0_i32_0 = arith.constant 0 : i32
    %c0_i32_1 = arith.constant 0 : i32
    return %c0_i32, %c0_i32_0 : i32, i32
  }
  func.func @transform_7(%arg0: i32) -> (i32, i32) {
    %c0_i32 = arith.constant 0 : i32
    %c0_i32_0 = arith.constant 0 : i32
    %c0_i32_1 = arith.constant 0 : i32
    return %c0_i32, %c0_i32_0 : i32, i32
  }
  func.func @transform_8(%arg0: i32) -> (i32, i32) {
    %c0_i32 = arith.constant 0 : i32
    %c0_i32_0 = arith.constant 0 : i32
    %c0_i32_1 = arith.constant 0 : i32
    return %c0_i32, %c0_i32_0 : i32, i32
  }
  func.func @transform_9(%arg0: i32) -> (i32, i32) {
    %c0_i32 = arith.constant 0 : i32
    %c0_i32_0 = arith.constant 0 : i32
    %c0_i32_1 = arith.constant 0 : i32
    return %c0_i32, %c0_i32_0 : i32, i32
  }
  func.func @transform_10(%arg0: i32) -> (i32, i32) {
    %c0_i32 = arith.constant 0 : i32
    %c0_i32_0 = arith.constant 0 : i32
    %c0_i32_1 = arith.constant 0 : i32
    return %c0_i32, %c0_i32_0 : i32, i32
  }
  func.func @transform_11(%arg0: i32) -> (i32, i32) {
    %c0_i32 = arith.constant 0 : i32
    %c0_i32_0 = arith.constant 0 : i32
    %c0_i32_1 = arith.constant 0 : i32
    return %c0_i32, %c0_i32_0 : i32, i32
  }
  func.func @transform_12(%arg0: i32) -> (i32, i32) {
    %c0_i32 = arith.constant 0 : i32
    %c0_i32_0 = arith.constant 0 : i32
    %c0_i32_1 = arith.constant 0 : i32
    return %c0_i32, %c0_i32_0 : i32, i32
  }
  func.func @transform_13(%arg0: i32) -> (i32, i32) {
    %c0_i32 = arith.constant 0 : i32
    %c0_i32_0 = arith.constant 0 : i32
    %c0_i32_1 = arith.constant 0 : i32
    return %c0_i32, %c0_i32_0 : i32, i32
  }
  func.func @transform_14(%arg0: i32) -> (i32, i32) {
    %c0_i32 = arith.constant 0 : i32
    %c0_i32_0 = arith.constant 0 : i32
    %c0_i32_1 = arith.constant 0 : i32
    return %c0_i32, %c0_i32_0 : i32, i32
  }
  func.func @transform_15(%arg0: i32) -> (i32, i32, i32) {
    %c0_i32 = arith.constant 0 : i32
    %c0_i32_0 = arith.constant 0 : i32
    %c0_i32_1 = arith.constant 0 : i32
    return %arg0, %c0_i32, %c0_i32_0 : i32, i32, i32
  }
}

</mosaic_0001>

<llo_original>
// kernel: swin_block_forward.1
$region0: #{swin_block_forward.1}
  #allocation0 [shape = 'u32[]', space=smem, size = 0x4, offset = 0x4, fixed_abs, tag = 'smem constant byte address 0x4 - core index']
  #allocation1 [shape = 'u32[72,128]{1,0:T(1,128)}', space=vmem, size = 0x9000, scoped, tag = 'internal scratch']
  %s0 = inlined_call_operand.vmem [shape: f32[2,256,32], index: 0, kind: input, shape index: {}]
  %s1 = inlined_call_operand.vmem [shape: f32[4,64,64], index: 1, kind: input, shape index: {}]
  %s2 = inlined_call_operand.vmem [shape: f32[4,64,64], index: 2, kind: input, shape index: {}]
  %s3 = inlined_call_operand.vmem [shape: f32[1,32], index: 3, kind: input, shape index: {}]
  %s4 = inlined_call_operand.vmem [shape: f32[1,32], index: 4, kind: input, shape index: {}]
  %s5 = inlined_call_operand.vmem [shape: bf16[32,96], index: 5, kind: input, shape index: {}]
  %s6 = inlined_call_operand.vmem [shape: f32[1,96], index: 6, kind: input, shape index: {}]
  %s7 = inlined_call_operand.vmem [shape: bf16[32,32], index: 7, kind: input, shape index: {}]
  %s8 = inlined_call_operand.vmem [shape: f32[1,32], index: 8, kind: input, shape index: {}]
  %s9 = inlined_call_operand.vmem [shape: f32[1,32], index: 9, kind: input, shape index: {}]
  %s10 = inlined_call_operand.vmem [shape: f32[1,32], index: 10, kind: input, shape index: {}]
  %s11 = inlined_call_operand.vmem [shape: bf16[32,128], index: 11, kind: input, shape index: {}]
  %s12 = inlined_call_operand.vmem [shape: f32[1,128], index: 12, kind: input, shape index: {}]
  %s13 = inlined_call_operand.vmem [shape: bf16[128,32], index: 13, kind: input, shape index: {}]
  %s14 = inlined_call_operand.vmem [shape: f32[1,32], index: 14, kind: input, shape index: {}]
  %s15 = inlined_call_operand.vmem [shape: f32[2,256,32], index: 15, kind: output, shape index: {}]
  %s16 = sld [smem:[#allocation0]]
  $region93: #{swin_block_forward.1} parent=0
    _
  %s18 = ssub.s32 1, %s16
  %s19 = scalar_select 0, %s18, %s16
  loop: start=0, step=1, limit=4
  $region2: #{swin_block_forward.1} parent=0 // loop_pre_header
    _
  $region3: #{swin_block_forward.1} parent=0 // loop_header
    %s21 = sphi 0, %s25
    %p22 = scmp.ge.s32.totalorder %s21, 4
    %s31 = sphi 0, %s33
    %s34 = sphi 0, %s31
    %s35 = sphi 0, %s34
    %s51 = sphi 0, %s35
    %s55 = sphi 0, %s55
    %s57 = sphi 0, %s55
    %s58 = sphi 0, %s57
    %s72 = sphi 0, %s58
    %s76 = sphi 0, %s76
    %s78 = sphi 0, %s76
    %s79 = sphi 0, %s78
    %s93 = sphi 0, %s79
    %s97 = sphi 0, %s97
    %s99 = sphi 0, %s97
    %s100 = sphi 0, %s99
    %s114 = sphi 0, %s100
    %s118 = sphi 0, %s118
    %s120 = sphi 0, %s118
    %s121 = sphi 0, %s120
    %s135 = sphi 0, %s121
    %s139 = sphi 0, %s139
    %s141 = sphi 0, %s139
    %s142 = sphi 0, %s141
    %s156 = sphi 0, %s142
    %s160 = sphi 0, %s160
    %s162 = sphi 0, %s160
    %s163 = sphi 0, %s162
    %s177 = sphi 0, %s163
    %s181 = sphi 0, %s181
    %s183 = sphi 0, %s181
    %s184 = sphi 0, %s183
    %s198 = sphi 0, %s184
    %s202 = sphi 0, %s202
    %s204 = sphi 0, %s202
    %s205 = sphi 0, %s204
    %s219 = sphi 0, %s205
    %s223 = sphi 0, %s223
    %s225 = sphi 0, %s223
    %s226 = sphi 0, %s225
    %s240 = sphi 0, %s226
    %s244 = sphi 0, %s244
    %s246 = sphi 0, %s244
    %s247 = sphi 0, %s246
    %s261 = sphi 0, %s247
    %s265 = sphi 0, %s265
    %s267 = sphi 0, %s265
    %s268 = sphi 0, %s267
    %s282 = sphi 0, %s268
    %s286 = sphi 0, %s286
    %s288 = sphi 0, %s286
    %s289 = sphi 0, %s288
    %s303 = sphi 0, %s289
    %s307 = sphi 0, %s307
    %s309 = sphi 0, %s307
    %s310 = sphi 0, %s309
    %s324 = sphi 0, %s310
    %s328 = sphi 0, %s328
    %s330 = sphi 0, %s328
    %s331 = sphi 0, %s330
    %s345 = sphi 0, %s331
    %s351 = sphi 0, %s353
    %s354 = sphi 0, %s351
    %s355 = sphi 0, %s354
    %s371 = sphi 0, %s355
  $region4: #{swin_block_forward.1} parent=0 // loop_header_branch
    %24 = sbr.rel (%p22) target = $region8
  $region5: #{swin_block_forward.1} parent=0 // loop_body
    %s26 = ssub.s32 %s21, 1
    %s27 = ssub.s32 %s21, 2
    %s28 = sadd.s32 %s21, 1
    %s29 = ssub.s32 %s21, %s28
    %p30 = scmp.eq.s32.totalorder %s29, 0
    %s32 = sadd.s32 %s31, 1
    %s33 = scalar_select %p30, %s31, %s32
    %p36 = pneg %p30
    %p37 = scmp.eq.s32.totalorder %s21, 1
    %p38 = por %p36, %p37
    %p39 = scmp.ne.s32.totalorder %s31, %s34
    %p40 = scmp.eq.s32.totalorder %s21, 0
    %p41 = por %p39, %p40
    %p42 = scmp.ne.s32.totalorder %s31, %s34
    %p43 = scmp.eq.s32.totalorder %s26, 1
    %p44 = por %p42, %p43
    %p45 = scmp.ne.s32.totalorder %s34, %s35
    %p46 = scmp.eq.s32.totalorder %s26, 0
    %p47 = por %p45, %p46
    %p48 = scmp.ne.s32.totalorder %s34, %s35
    %p49 = scmp.eq.s32.totalorder %s27, 1
    %p50 = por %p48, %p49
    %p52 = scmp.ne.s32.totalorder %s35, %s51
    %p53 = scmp.eq.s32.totalorder %s27, 0
    %p54 = por %p52, %p53
    %s56 = sadd.s32 %s55, 1
    %p59 = scmp.eq.s32.totalorder %s21, 1
    %p60 = scmp.ne.s32.totalorder %s55, %s57
    %p61 = scmp.eq.s32.totalorder %s21, 0
    %p62 = por %p60, %p61
    %p63 = scmp.ne.s32.totalorder %s55, %s57
    %p64 = scmp.eq.s32.totalorder %s26, 1
    %p65 = por %p63, %p64
    %p66 = scmp.ne.s32.totalorder %s57, %s58
    %p67 = scmp.eq.s32.totalorder %s26, 0
    %p68 = por %p66, %p67
    %p69 = scmp.ne.s32.totalorder %s57, %s58
    %p70 = scmp.eq.s32.totalorder %s27, 1
    %p71 = por %p69, %p70
    %p73 = scmp.ne.s32.totalorder %s58, %s72
    %p74 = scmp.eq.s32.totalorder %s27, 0
    %p75 = por %p73, %p74
    %s77 = sadd.s32 %s76, 1
    %p80 = scmp.eq.s32.totalorder %s21, 1
    %p81 = scmp.ne.s32.totalorder %s76, %s78
    %p82 = scmp.eq.s32.totalorder %s21, 0
    %p83 = por %p81, %p82
    %p84 = scmp.ne.s32.totalorder %s76, %s78
    %p85 = scmp.eq.s32.totalorder %s26, 1
    %p86 = por %p84, %p85
    %p87 = scmp.ne.s32.totalorder %s78, %s79
    %p88 = scmp.eq.s32.totalorder %s26, 0
    %p89 = por %p87, %p88
    %p90 = scmp.ne.s32.totalorder %s78, %s79
    %p91 = scmp.eq.s32.totalorder %s27, 1
    %p92 = por %p90, %p91
    %p94 = scmp.ne.s32.totalorder %s79, %s93
    %p95 = scmp.eq.s32.totalorder %s27, 0
    %p96 = por %p94, %p95
    %s98 = sadd.s32 %s97, 1
    %p101 = scmp.eq.s32.totalorder %s21, 1
    %p102 = scmp.ne.s32.totalorder %s97, %s99
    %p103 = scmp.eq.s32.totalorder %s21, 0
    %p104 = por %p102, %p103
    %p105 = scmp.ne.s32.totalorder %s97, %s99
    %p106 = scmp.eq.s32.totalorder %s26, 1
    %p107 = por %p105, %p106
    %p108 = scmp.ne.s32.totalorder %s99, %s100
    %p109 = scmp.eq.s32.totalorder %s26, 0
    %p110 = por %p108, %p109
    %p111 = scmp.ne.s32.totalorder %s99, %s100
    %p112 = scmp.eq.s32.totalorder %s27, 1
    %p113 = por %p111, %p112
    %p115 = scmp.ne.s32.totalorder %s100, %s114
    %p116 = scmp.eq.s32.totalorder %s27, 0
    %p117 = por %p115, %p116
    %s119 = sadd.s32 %s118, 1
    %p122 = scmp.eq.s32.totalorder %s21, 1
    %p123 = scmp.ne.s32.totalorder %s118, %s120
    %p124 = scmp.eq.s32.totalorder %s21, 0
    %p125 = por %p123, %p124
    %p126 = scmp.ne.s32.totalorder %s118, %s120
    %p127 = scmp.eq.s32.totalorder %s26, 1
    %p128 = por %p126, %p127
    %p129 = scmp.ne.s32.totalorder %s120, %s121
    %p130 = scmp.eq.s32.totalorder %s26, 0
    %p131 = por %p129, %p130
    %p132 = scmp.ne.s32.totalorder %s120, %s121
    %p133 = scmp.eq.s32.totalorder %s27, 1
    %p134 = por %p132, %p133
    %p136 = scmp.ne.s32.totalorder %s121, %s135
    %p137 = scmp.eq.s32.totalorder %s27, 0
    %p138 = por %p136, %p137
    %s140 = sadd.s32 %s139, 1
    %p143 = scmp.eq.s32.totalorder %s21, 1
    %p144 = scmp.ne.s32.totalorder %s139, %s141
    %p145 = scmp.eq.s32.totalorder %s21, 0
    %p146 = por %p144, %p145
    %p147 = scmp.ne.s32.totalorder %s139, %s141
    %p148 = scmp.eq.s32.totalorder %s26, 1
    %p149 = por %p147, %p148
    %p150 = scmp.ne.s32.totalorder %s141, %s142
    %p151 = scmp.eq.s32.totalorder %s26, 0
    %p152 = por %p150, %p151
    %p153 = scmp.ne.s32.totalorder %s141, %s142
    %p154 = scmp.eq.s32.totalorder %s27, 1
    %p155 = por %p153, %p154
    %p157 = scmp.ne.s32.totalorder %s142, %s156
    %p158 = scmp.eq.s32.totalorder %s27, 0
    %p159 = por %p157, %p158
    %s161 = sadd.s32 %s160, 1
    %p164 = scmp.eq.s32.totalorder %s21, 1
    %p165 = scmp.ne.s32.totalorder %s160, %s162
    %p166 = scmp.eq.s32.totalorder %s21, 0
    %p167 = por %p165, %p166
    %p168 = scmp.ne.s32.totalorder %s160, %s162
    %p169 = scmp.eq.s32.totalorder %s26, 1
    %p170 = por %p168, %p169
    %p171 = scmp.ne.s32.totalorder %s162, %s163
    %p172 = scmp.eq.s32.totalorder %s26, 0
    %p173 = por %p171, %p172
    %p174 = scmp.ne.s32.totalorder %s162, %s163
    %p175 = scmp.eq.s32.totalorder %s27, 1
    %p176 = por %p174, %p175
    %p178 = scmp.ne.s32.totalorder %s163, %s177
    %p179 = scmp.eq.s32.totalorder %s27, 0
    %p180 = por %p178, %p179
    %s182 = sadd.s32 %s181, 1
    %p185 = scmp.eq.s32.totalorder %s21, 1
    %p186 = scmp.ne.s32.totalorder %s181, %s183
    %p187 = scmp.eq.s32.totalorder %s21, 0
    %p188 = por %p186, %p187
    %p189 = scmp.ne.s32.totalorder %s181, %s183
    %p190 = scmp.eq.s32.totalorder %s26, 1
    %p191 = por %p189, %p190
    %p192 = scmp.ne.s32.totalorder %s183, %s184
    %p193 = scmp.eq.s32.totalorder %s26, 0
    %p194 = por %p192, %p193
    %p195 = scmp.ne.s32.totalorder %s183, %s184
    %p196 = scmp.eq.s32.totalorder %s27, 1
    %p197 = por %p195, %p196
    %p199 = scmp.ne.s32.totalorder %s184, %s198
    %p200 = scmp.eq.s32.totalorder %s27, 0
    %p201 = por %p199, %p200
    %s203 = sadd.s32 %s202, 1
    %p206 = scmp.eq.s32.totalorder %s21, 1
    %p207 = scmp.ne.s32.totalorder %s202, %s204
    %p208 = scmp.eq.s32.totalorder %s21, 0
    %p209 = por %p207, %p208
    %p210 = scmp.ne.s32.totalorder %s202, %s204
    %p211 = scmp.eq.s32.totalorder %s26, 1
    %p212 = por %p210, %p211
    %p213 = scmp.ne.s32.totalorder %s204, %s205
    %p214 = scmp.eq.s32.totalorder %s26, 0
    %p215 = por %p213, %p214
    %p216 = scmp.ne.s32.totalorder %s204, %s205
    %p217 = scmp.eq.s32.totalorder %s27, 1
    %p218 = por %p216, %p217
    %p220 = scmp.ne.s32.totalorder %s205, %s219
    %p221 = scmp.eq.s32.totalorder %s27, 0
    %p222 = por %p220, %p221
    %s224 = sadd.s32 %s223, 1
    %p227 = scmp.eq.s32.totalorder %s21, 1
    %p228 = scmp.ne.s32.totalorder %s223, %s225
    %p229 = scmp.eq.s32.totalorder %s21, 0
    %p230 = por %p228, %p229
    %p231 = scmp.ne.s32.totalorder %s223, %s225
    %p232 = scmp.eq.s32.totalorder %s26, 1
    %p233 = por %p231, %p232
    %p234 = scmp.ne.s32.totalorder %s225, %s226
    %p235 = scmp.eq.s32.totalorder %s26, 0
    %p236 = por %p234, %p235
    %p237 = scmp.ne.s32.totalorder %s225, %s226
    %p238 = scmp.eq.s32.totalorder %s27, 1
    %p239 = por %p237, %p238
    %p241 = scmp.ne.s32.totalorder %s226, %s240
    %p242 = scmp.eq.s32.totalorder %s27, 0
    %p243 = por %p241, %p242
    %s245 = sadd.s32 %s244, 1
    %p248 = scmp.eq.s32.totalorder %s21, 1
    %p249 = scmp.ne.s32.totalorder %s244, %s246
    %p250 = scmp.eq.s32.totalorder %s21, 0
    %p251 = por %p249, %p250
    %p252 = scmp.ne.s32.totalorder %s244, %s246
    %p253 = scmp.eq.s32.totalorder %s26, 1
    %p254 = por %p252, %p253
    %p255 = scmp.ne.s32.totalorder %s246, %s247
    %p256 = scmp.eq.s32.totalorder %s26, 0
    %p257 = por %p255, %p256
    %p258 = scmp.ne.s32.totalorder %s246, %s247
    %p259 = scmp.eq.s32.totalorder %s27, 1
    %p260 = por %p258, %p259
    %p262 = scmp.ne.s32.totalorder %s247, %s261
    %p263 = scmp.eq.s32.totalorder %s27, 0
    %p264 = por %p262, %p263
    %s266 = sadd.s32 %s265, 1
    %p269 = scmp.eq.s32.totalorder %s21, 1
    %p270 = scmp.ne.s32.totalorder %s265, %s267
    %p271 = scmp.eq.s32.totalorder %s21, 0
    %p272 = por %p270, %p271
    %p273 = scmp.ne.s32.totalorder %s265, %s267
    %p274 = scmp.eq.s32.totalorder %s26, 1
    %p275 = por %p273, %p274
    %p276 = scmp.ne.s32.totalorder %s267, %s268
    %p277 = scmp.eq.s32.totalorder %s26, 0
    %p278 = por %p276, %p277
    %p279 = scmp.ne.s32.totalorder %s267, %s268
    %p280 = scmp.eq.s32.totalorder %s27, 1
    %p281 = por %p279, %p280
    %p283 = scmp.ne.s32.totalorder %s268, %s282
    %p284 = scmp.eq.s32.totalorder %s27, 0
    %p285 = por %p283, %p284
    %s287 = sadd.s32 %s286, 1
    %p290 = scmp.eq.s32.totalorder %s21, 1
    %p291 = scmp.ne.s32.totalorder %s286, %s288
    %p292 = scmp.eq.s32.totalorder %s21, 0
    %p293 = por %p291, %p292
    %p294 = scmp.ne.s32.totalorder %s286, %s288
    %p295 = scmp.eq.s32.totalorder %s26, 1
    %p296 = por %p294, %p295
    %p297 = scmp.ne.s32.totalorder %s288, %s289
    %p298 = scmp.eq.s32.totalorder %s26, 0
    %p299 = por %p297, %p298
    %p300 = scmp.ne.s32.totalorder %s288, %s289
    %p301 = scmp.eq.s32.totalorder %s27, 1
    %p302 = por %p300, %p301
    %p304 = scmp.ne.s32.totalorder %s289, %s303
    %p305 = scmp.eq.s32.totalorder %s27, 0
    %p306 = por %p304, %p305
    %s308 = sadd.s32 %s307, 1
    %p311 = scmp.eq.s32.totalorder %s21, 1
    %p312 = scmp.ne.s32.totalorder %s307, %s309
    %p313 = scmp.eq.s32.totalorder %s21, 0
    %p314 = por %p312, %p313
    %p315 = scmp.ne.s32.totalorder %s307, %s309
    %p316 = scmp.eq.s32.totalorder %s26, 1
    %p317 = por %p315, %p316
    %p318 = scmp.ne.s32.totalorder %s309, %s310
    %p319 = scmp.eq.s32.totalorder %s26, 0
    %p320 = por %p318, %p319
    %p321 = scmp.ne.s32.totalorder %s309, %s310
    %p322 = scmp.eq.s32.totalorder %s27, 1
    %p323 = por %p321, %p322
    %p325 = scmp.ne.s32.totalorder %s310, %s324
    %p326 = scmp.eq.s32.totalorder %s27, 0
    %p327 = por %p325, %p326
    %s329 = sadd.s32 %s328, 1
    %p332 = scmp.eq.s32.totalorder %s21, 1
    %p333 = scmp.ne.s32.totalorder %s328, %s330
    %p334 = scmp.eq.s32.totalorder %s21, 0
    %p335 = por %p333, %p334
    %p336 = scmp.ne.s32.totalorder %s328, %s330
    %p337 = scmp.eq.s32.totalorder %s26, 1
    %p338 = por %p336, %p337
    %p339 = scmp.ne.s32.totalorder %s330, %s331
    %p340 = scmp.eq.s32.totalorder %s26, 0
    %p341 = por %p339, %p340
    %p342 = scmp.ne.s32.totalorder %s330, %s331
    %p343 = scmp.eq.s32.totalorder %s27, 1
    %p344 = por %p342, %p343
    %p346 = scmp.ne.s32.totalorder %s331, %s345
    %p347 = scmp.eq.s32.totalorder %s27, 0
    %p348 = por %p346, %p347
    %s349 = ssub.s32 %s21, %s28
    %p350 = scmp.eq.s32.totalorder %s349, 0
    %s352 = sadd.s32 %s351, 1
    %s353 = scalar_select %p350, %s351, %s352
    %p356 = pneg %p350
    %p357 = scmp.eq.s32.totalorder %s21, 1
    %p358 = por %p356, %p357
    %p359 = scmp.ne.s32.totalorder %s351, %s354
    %p360 = scmp.eq.s32.totalorder %s21, 0
    %p361 = por %p359, %p360
    %p362 = scmp.ne.s32.totalorder %s351, %s354
    %p363 = scmp.eq.s32.totalorder %s26, 1
    %p364 = por %p362, %p363
    %p365 = scmp.ne.s32.totalorder %s354, %s355
    %p366 = scmp.eq.s32.totalorder %s26, 0
    %p367 = por %p365, %p366
    %p368 = scmp.ne.s32.totalorder %s354, %s355
    %p369 = scmp.eq.s32.totalorder %s27, 1
    %p370 = por %p368, %p369
    %p372 = scmp.ne.s32.totalorder %s355, %s371
    %p373 = scmp.eq.s32.totalorder %s27, 0
    %p374 = por %p372, %p373
    %p375 = scmp.le.s32.totalorder 1, %s21
    %p376 = scmp.lt.s32.totalorder %s21, 3
    %p377 = pnand %p375, %p376
    %p378 = pneg %p377
    // Predicated region
    $region9: #{swin_block_forward.1} parent=5 // pred_check
      _
    $region10: #{swin_block_forward.1} parent=5 // pred_check_branch
      %380 = sbr.rel (%p377) target = $region12
    $region11: #{swin_block_forward.1} parent=5 // pred_region
      %s381 = ssub.s32 %s21, 1
      // Predicated region
      $region13: #{swin_block_forward.1} parent=11 // pred_check
        %p382 = pneg %p68
      $region14: #{swin_block_forward.1} parent=11 // pred_check_branch
        %384 = sbr.rel (%p382) target = $region16
      $region15: #{swin_block_forward.1} parent=11 // pred_region
        _
      $region16: #{swin_block_forward.1} parent=11 // pred_fallthru
        _
      // Predicated region
      $region17: #{swin_block_forward.1} parent=11 // pred_check
        %p385 = pneg %p89
      $region18: #{swin_block_forward.1} parent=11 // pred_check_branch
        %387 = sbr.rel (%p385) target = $region20
      $region19: #{swin_block_forward.1} parent=11 // pred_region
        _
      $region20: #{swin_block_forward.1} parent=11 // pred_fallthru
        _
      // Predicated region
      $region21: #{swin_block_forward.1} parent=11 // pred_check
        %p388 = pneg %p110
      $region22: #{swin_block_forward.1} parent=11 // pred_check_branch
        %390 = sbr.rel (%p388) target = $region24
      $region23: #{swin_block_forward.1} parent=11 // pred_region
        _
      $region24: #{swin_block_forward.1} parent=11 // pred_fallthru
        _
      // Predicated region
      $region25: #{swin_block_forward.1} parent=11 // pred_check
        %p391 = pneg %p131
      $region26: #{swin_block_forward.1} parent=11 // pred_check_branch
        %393 = sbr.rel (%p391) target = $region28
      $region27: #{swin_block_forward.1} parent=11 // pred_region
        _
      $region28: #{swin_block_forward.1} parent=11 // pred_fallthru
        _
      // Predicated region
      $region29: #{swin_block_forward.1} parent=11 // pred_check
        %p394 = pneg %p152
      $region30: #{swin_block_forward.1} parent=11 // pred_check_branch
        %396 = sbr.rel (%p394) target = $region32
      $region31: #{swin_block_forward.1} parent=11 // pred_region
        _
      $region32: #{swin_block_forward.1} parent=11 // pred_fallthru
        _
      // Predicated region
      $region33: #{swin_block_forward.1} parent=11 // pred_check
        %p397 = pneg %p173
      $region34: #{swin_block_forward.1} parent=11 // pred_check_branch
        %399 = sbr.rel (%p397) target = $region36
      $region35: #{swin_block_forward.1} parent=11 // pred_region
        _
      $region36: #{swin_block_forward.1} parent=11 // pred_fallthru
        _
      // Predicated region
      $region37: #{swin_block_forward.1} parent=11 // pred_check
        %p400 = pneg %p194
      $region38: #{swin_block_forward.1} parent=11 // pred_check_branch
        %402 = sbr.rel (%p400) target = $region40
      $region39: #{swin_block_forward.1} parent=11 // pred_region
        _
      $region40: #{swin_block_forward.1} parent=11 // pred_fallthru
        _
      // Predicated region
      $region41: #{swin_block_forward.1} parent=11 // pred_check
        %p403 = pneg %p215
      $region42: #{swin_block_forward.1} parent=11 // pred_check_branch
        %405 = sbr.rel (%p403) target = $region44
      $region43: #{swin_block_forward.1} parent=11 // pred_region
        _
      $region44: #{swin_block_forward.1} parent=11 // pred_fallthru
        _
      // Predicated region
      $region45: #{swin_block_forward.1} parent=11 // pred_check
        %p406 = pneg %p236
      $region46: #{swin_block_forward.1} parent=11 // pred_check_branch
        %408 = sbr.rel (%p406) target = $region48
      $region47: #{swin_block_forward.1} parent=11 // pred_region
        _
      $region48: #{swin_block_forward.1} parent=11 // pred_fallthru
        _
      // Predicated region
      $region49: #{swin_block_forward.1} parent=11 // pred_check
        %p409 = pneg %p257
      $region50: #{swin_block_forward.1} parent=11 // pred_check_branch
        %411 = sbr.rel (%p409) target = $region52
      $region51: #{swin_block_forward.1} parent=11 // pred_region
        _
      $region52: #{swin_block_forward.1} parent=11 // pred_fallthru
        _
      // Predicated region
      $region53: #{swin_block_forward.1} parent=11 // pred_check
        %p412 = pneg %p278
      $region54: #{swin_block_forward.1} parent=11 // pred_check_branch
        %414 = sbr.rel (%p412) target = $region56
      $region55: #{swin_block_forward.1} parent=11 // pred_region
        _
      $region56: #{swin_block_forward.1} parent=11 // pred_fallthru
        _
      // Predicated region
      $region57: #{swin_block_forward.1} parent=11 // pred_check
        %p415 = pneg %p299
      $region58: #{swin_block_forward.1} parent=11 // pred_check_branch
        %417 = sbr.rel (%p415) target = $region60
      $region59: #{swin_block_forward.1} parent=11 // pred_region
        _
      $region60: #{swin_block_forward.1} parent=11 // pred_fallthru
        _
      // Predicated region
      $region61: #{swin_block_forward.1} parent=11 // pred_check
        %p418 = pneg %p320
      $region62: #{swin_block_forward.1} parent=11 // pred_check_branch
        %420 = sbr.rel (%p418) target = $region64
      $region63: #{swin_block_forward.1} parent=11 // pred_region
        _
      $region64: #{swin_block_forward.1} parent=11 // pred_fallthru
        _
      // Predicated region
      $region65: #{swin_block_forward.1} parent=11 // pred_check
        %p421 = pneg %p341
      $region66: #{swin_block_forward.1} parent=11 // pred_check_branch
        %423 = sbr.rel (%p421) target = $region68
      $region67: #{swin_block_forward.1} parent=11 // pred_region
        _
      $region68: #{swin_block_forward.1} parent=11 // pred_fallthru
        _
    $region12: #{swin_block_forward.1} parent=5 // pred_fallthru
      _
    %p424 = scmp.lt.s32.totalorder %s21, 2
    // Predicated region
    $region69: #{swin_block_forward.1} parent=5 // pred_check
      %p425 = pneg %p424
    $region70: #{swin_block_forward.1} parent=5 // pred_check_branch
      %427 = sbr.rel (%p425) target = $region72
    $region71: #{swin_block_forward.1} parent=5 // pred_region
      // Predicated region
      $region73: #{swin_block_forward.1} parent=71 // pred_check
        %p428 = pneg %p41
      $region74: #{swin_block_forward.1} parent=71 // pred_check_branch
        %430 = sbr.rel (%p428) target = $region76
      $region75: #{swin_block_forward.1} parent=71 // pred_region
        %p431 = scmp.lt.s32.totalorder %s21, 1
        %s432 = scalar_select %p431, %s21, 1
        %s433 = smul.addr %s432, 32
        %s434 = smul.addr %s433, 8
        %s435 = scalar_lea.vmem %s0, %s434
      $region76: #{swin_block_forward.1} parent=71 // pred_fallthru
        _
    $region72: #{swin_block_forward.1} parent=5 // pred_fallthru
      _
    %p436 = scmp.le.s32.totalorder 1, %s21
    %p437 = scmp.lt.s32.totalorder %s21, 3
    %p438 = pnand %p436, %p437
    %p439 = pneg %p438
    // Predicated region
    $region77: #{swin_block_forward.1} parent=5 // pred_check
      _
    $region78: #{swin_block_forward.1} parent=5 // pred_check_branch
      %441 = sbr.rel (%p438) target = $region80
    $region79: #{swin_block_forward.1} parent=5 // pred_region
      %s442 = ssub.s32 %s21, 1
      %p443 = scmp.lt.s32.totalorder %s26, 1
      %s444 = scalar_select %p443, %s26, 1
      %s445 = smul.addr %s444, 32
      %s446 = smul.addr %s445, 8
      %s447 = scalar_lea.vmem %s0, %s446
      %p448 = pneg %p47
      %p449 = pneg %p44
      %p450 = pneg %p68
      %p451 = pneg %p65
      %p452 = pneg %p89
      %p453 = pneg %p86
      %p454 = pneg %p110
      %p455 = pneg %p107
      %p456 = pneg %p131
      %p457 = pneg %p128
      %p458 = pneg %p152
      %p459 = pneg %p149
      %p460 = pneg %p173
      %p461 = pneg %p170
      %p462 = pneg %p194
      %p463 = pneg %p191
      %p464 = pneg %p215
      %p465 = pneg %p212
      %p466 = pneg %p236
      %p467 = pneg %p233
      %p468 = pneg %p257
      %p469 = pneg %p254
      %p470 = pneg %p278
      %p471 = pneg %p275
      %p472 = pneg %p299
      %p473 = pneg %p296
      %p474 = pneg %p320
      %p475 = pneg %p317
      %p476 = pneg %p341
      %p477 = pneg %p338
      %p478 = pneg %p367
      %p479 = pneg %p364
      %p480 = scmp.lt.s32.totalorder %s26, 1
      %s481 = scalar_select %p480, %s26, 1
      %s482 = smul.addr %s481, 32
      %s483 = smul.addr %s482, 8
      %s484 = scalar_lea.vmem %s15, %s483
      %p485 = scmp.lt.s32.totalorder %s26, 1
      %s486 = scalar_select %p485, %s26, 1
      %s487 = smul.addr %s486, 32
      %s488 = smul.addr %s487, 8
      %s489 = scalar_lea.vmem %s0, %s488
      %p490 = scmp.lt.s32.totalorder %s26, 1
      %s491 = scalar_select %p490, %s26, 1
      %s492 = smul.addr %s491, 32
      %s493 = smul.addr %s492, 8
      %s494 = scalar_lea.vmem %s15, %s493
      %v496 = vld [vmem:[%s489] sm:$0xff]
      %v497 = vld [vmem:[%s489 + $0x8] sm:$0xff]
      %v498 = vld [vmem:[%s489 + $0x10] sm:$0xff]
      %v499 = vld [vmem:[%s489 + $0x18] sm:$0xff]
      %v500 = vld [vmem:[%s489 + $0x20] sm:$0xff]
      %v501 = vld [vmem:[%s489 + $0x28] sm:$0xff]
      %v502 = vld [vmem:[%s489 + $0x30] sm:$0xff]
      %v503 = vld [vmem:[%s489 + $0x38] sm:$0xff]
      %v504 = vld [vmem:[%s489 + $0x40] sm:$0xff]
      %v505 = vld [vmem:[%s489 + $0x48] sm:$0xff]
      %v506 = vld [vmem:[%s489 + $0x50] sm:$0xff]
      %v507 = vld [vmem:[%s489 + $0x58] sm:$0xff]
      %v508 = vld [vmem:[%s489 + $0x60] sm:$0xff]
      %v509 = vld [vmem:[%s489 + $0x68] sm:$0xff]
      %v510 = vld [vmem:[%s489 + $0x70] sm:$0xff]
      %v511 = vld [vmem:[%s489 + $0x78] sm:$0xff]
      %v512 = vld [vmem:[%s489 + $0x80] sm:$0xff]
      %v513 = vld [vmem:[%s489 + $0x88] sm:$0xff]
      %v514 = vld [vmem:[%s489 + $0x90] sm:$0xff]
      %v515 = vld [vmem:[%s489 + $0x98] sm:$0xff]
      %v516 = vld [vmem:[%s489 + $0xa0] sm:$0xff]
      %v517 = vld [vmem:[%s489 + $0xa8] sm:$0xff]
      %v518 = vld [vmem:[%s489 + $0xb0] sm:$0xff]
      %v519 = vld [vmem:[%s489 + $0xb8] sm:$0xff]
      %v520 = vld [vmem:[%s489 + $0xc0] sm:$0xff]
      %v521 = vld [vmem:[%s489 + $0xc8] sm:$0xff]
      %v522 = vld [vmem:[%s489 + $0xd0] sm:$0xff]
      %v523 = vld [vmem:[%s489 + $0xd8] sm:$0xff]
      %v524 = vld [vmem:[%s489 + $0xe0] sm:$0xff]
      %v525 = vld [vmem:[%s489 + $0xe8] sm:$0xff]
      %v526 = vld [vmem:[%s489 + $0xf0] sm:$0xff]
      %v527 = vld [vmem:[%s489 + $0xf8] sm:$0xff]
      %vm528 = vcmask 261120
      %v529 = vsel %vm528, %v496, 0.0
      %530 = vadd.xlane.f32.xlu0 %v529
      %v531 = vpop.xlane.xlu0 %530
      %v532 = vsel %vm528, %v497, 0.0
      %533 = vadd.xlane.f32.xlu0 %v532
      %v534 = vpop.xlane.xlu0 %533
      %v535 = vsel %vm528, %v498, 0.0
      %536 = vadd.xlane.f32.xlu0 %v535
      %v537 = vpop.xlane.xlu0 %536
      %v538 = vsel %vm528, %v499, 0.0
      %539 = vadd.xlane.f32.xlu0 %v538
      %v540 = vpop.xlane.xlu0 %539
      %v541 = vsel %vm528, %v500, 0.0
      %542 = vadd.xlane.f32.xlu0 %v541
      %v543 = vpop.xlane.xlu0 %542
      %v544 = vsel %vm528, %v501, 0.0
      %545 = vadd.xlane.f32.xlu0 %v544
      %v546 = vpop.xlane.xlu0 %545
      %v547 = vsel %vm528, %v502, 0.0
      %548 = vadd.xlane.f32.xlu0 %v547
      %v549 = vpop.xlane.xlu0 %548
      %v550 = vsel %vm528, %v503, 0.0
      %551 = vadd.xlane.f32.xlu0 %v550
      %v552 = vpop.xlane.xlu0 %551
      %v553 = vsel %vm528, %v504, 0.0
      %554 = vadd.xlane.f32.xlu0 %v553
      %v555 = vpop.xlane.xlu0 %554
      %v556 = vsel %vm528, %v505, 0.0
      %557 = vadd.xlane.f32.xlu0 %v556
      %v558 = vpop.xlane.xlu0 %557
      %v559 = vsel %vm528, %v506, 0.0
      %560 = vadd.xlane.f32.xlu0 %v559
      %v561 = vpop.xlane.xlu0 %560
      %v562 = vsel %vm528, %v507, 0.0
      %563 = vadd.xlane.f32.xlu0 %v562
      %v564 = vpop.xlane.xlu0 %563
      %v565 = vsel %vm528, %v508, 0.0
      %566 = vadd.xlane.f32.xlu0 %v565
      %v567 = vpop.xlane.xlu0 %566
      %v568 = vsel %vm528, %v509, 0.0
      %569 = vadd.xlane.f32.xlu0 %v568
      %v570 = vpop.xlane.xlu0 %569
      %v571 = vsel %vm528, %v510, 0.0
      %572 = vadd.xlane.f32.xlu0 %v571
      %v573 = vpop.xlane.xlu0 %572
      %v574 = vsel %vm528, %v511, 0.0
      %575 = vadd.xlane.f32.xlu0 %v574
      %v576 = vpop.xlane.xlu0 %575
      %v577 = vsel %vm528, %v512, 0.0
      %578 = vadd.xlane.f32.xlu0 %v577
      %v579 = vpop.xlane.xlu0 %578
      %v580 = vsel %vm528, %v513, 0.0
      %581 = vadd.xlane.f32.xlu0 %v580
      %v582 = vpop.xlane.xlu0 %581
      %v583 = vsel %vm528, %v514, 0.0
      %584 = vadd.xlane.f32.xlu0 %v583
      %v585 = vpop.xlane.xlu0 %584
      %v586 = vsel %vm528, %v515, 0.0
      %587 = vadd.xlane.f32.xlu0 %v586
      %v588 = vpop.xlane.xlu0 %587
      %v589 = vsel %vm528, %v516, 0.0
      %590 = vadd.xlane.f32.xlu0 %v589
      %v591 = vpop.xlane.xlu0 %590
      %v592 = vsel %vm528, %v517, 0.0
      %593 = vadd.xlane.f32.xlu0 %v592
      %v594 = vpop.xlane.xlu0 %593
      %v595 = vsel %vm528, %v518, 0.0
      %596 = vadd.xlane.f32.xlu0 %v595
      %v597 = vpop.xlane.xlu0 %596
      %v598 = vsel %vm528, %v519, 0.0
      %599 = vadd.xlane.f32.xlu0 %v598
      %v600 = vpop.xlane.xlu0 %599
      %v601 = vsel %vm528, %v520, 0.0
      %602 = vadd.xlane.f32.xlu0 %v601
      %v603 = vpop.xlane.xlu0 %602
      %v604 = vsel %vm528, %v521, 0.0
      %605 = vadd.xlane.f32.xlu0 %v604
      %v606 = vpop.xlane.xlu0 %605
      %v607 = vsel %vm528, %v522, 0.0
      %608 = vadd.xlane.f32.xlu0 %v607
      %v609 = vpop.xlane.xlu0 %608
      %v610 = vsel %vm528, %v523, 0.0
      %611 = vadd.xlane.f32.xlu0 %v610
      %v612 = vpop.xlane.xlu0 %611
      %v613 = vsel %vm528, %v524, 0.0
      %614 = vadd.xlane.f32.xlu0 %v613
      %v615 = vpop.xlane.xlu0 %614
      %v616 = vsel %vm528, %v525, 0.0
      %617 = vadd.xlane.f32.xlu0 %v616
      %v618 = vpop.xlane.xlu0 %617
      %v619 = vsel %vm528, %v526, 0.0
      %620 = vadd.xlane.f32.xlu0 %v619
      %v621 = vpop.xlane.xlu0 %620
      %v622 = vsel %vm528, %v527, 0.0
      %623 = vadd.xlane.f32.xlu0 %v622
      %v624 = vpop.xlane.xlu0 %623
      %v625 = vrcp.pop 32.0
      %v626 = vmul.f32 32.0, %v625
      %v627 = vsub.f32 1.0, %v626
      %v628 = vmul.f32 %v625, %v627
      %v629 = vadd.f32 %v625, %v628
      %vm630 = vweird.f32 %v625
      %v631 = vsel %vm630, %v625, %v629
      %v632 = vmul.f32 %v531, %v631
      %v633 = vmul.f32 %v534, %v631
      %v634 = vmul.f32 %v537, %v631
      %v635 = vmul.f32 %v540, %v631
      %v636 = vmul.f32 %v543, %v631
      %v637 = vmul.f32 %v546, %v631
      %v638 = vmul.f32 %v549, %v631
      %v639 = vmul.f32 %v552, %v631
      %v640 = vmul.f32 %v555, %v631
      %v641 = vmul.f32 %v558, %v631
      %v642 = vmul.f32 %v561, %v631
      %v643 = vmul.f32 %v564, %v631
      %v644 = vmul.f32 %v567, %v631
      %v645 = vmul.f32 %v570, %v631
      %v646 = vmul.f32 %v573, %v631
      %v647 = vmul.f32 %v576, %v631
      %v648 = vmul.f32 %v579, %v631
      %v649 = vmul.f32 %v582, %v631
      %v650 = vmul.f32 %v585, %v631
      %v651 = vmul.f32 %v588, %v631
      %v652 = vmul.f32 %v591, %v631
      %v653 = vmul.f32 %v594, %v631
      %v654 = vmul.f32 %v597, %v631
      %v655 = vmul.f32 %v600, %v631
      %v656 = vmul.f32 %v603, %v631
      %v657 = vmul.f32 %v606, %v631
      %v658 = vmul.f32 %v609, %v631
      %v659 = vmul.f32 %v612, %v631
      %v660 = vmul.f32 %v615, %v631
      %v661 = vmul.f32 %v618, %v631
      %v662 = vmul.f32 %v621, %v631
      %v663 = vmul.f32 %v624, %v631
      %v664 = vmul.f32 %v496, %v496
      %v665 = vmul.f32 %v497, %v497
      %v666 = vmul.f32 %v498, %v498
      %v667 = vmul.f32 %v499, %v499
      %v668 = vmul.f32 %v500, %v500
      %v669 = vmul.f32 %v501, %v501
      %v670 = vmul.f32 %v502, %v502
      %v671 = vmul.f32 %v503, %v503
      %v672 = vmul.f32 %v504, %v504
      %v673 = vmul.f32 %v505, %v505
      %v674 = vmul.f32 %v506, %v506
      %v675 = vmul.f32 %v507, %v507
      %v676 = vmul.f32 %v508, %v508
      %v677 = vmul.f32 %v509, %v509
      %v678 = vmul.f32 %v510, %v510
      %v679 = vmul.f32 %v511, %v511
      %v680 = vmul.f32 %v512, %v512
      %v681 = vmul.f32 %v513, %v513
      %v682 = vmul.f32 %v514, %v514
      %v683 = vmul.f32 %v515, %v515
      %v684 = vmul.f32 %v516, %v516
      %v685 = vmul.f32 %v517, %v517
      %v686 = vmul.f32 %v518, %v518
      %v687 = vmul.f32 %v519, %v519
      %v688 = vmul.f32 %v520, %v520
      %v689 = vmul.f32 %v521, %v521
      %v690 = vmul.f32 %v522, %v522
      %v691 = vmul.f32 %v523, %v523
      %v692 = vmul.f32 %v524, %v524
      %v693 = vmul.f32 %v525, %v525
      %v694 = vmul.f32 %v526, %v526
      %v695 = vmul.f32 %v527, %v527
      %v696 = vsel %vm528, %v664, 0.0
      %697 = vadd.xlane.f32.xlu0 %v696
      %v698 = vpop.xlane.xlu0 %697
      %v699 = vsel %vm528, %v665, 0.0
      %700 = vadd.xlane.f32.xlu0 %v699
      %v701 = vpop.xlane.xlu0 %700
      %v702 = vsel %vm528, %v666, 0.0
      %703 = vadd.xlane.f32.xlu0 %v702
      %v704 = vpop.xlane.xlu0 %703
      %v705 = vsel %vm528, %v667, 0.0
      %706 = vadd.xlane.f32.xlu0 %v705
      %v707 = vpop.xlane.xlu0 %706
      %v708 = vsel %vm528, %v668, 0.0
      %709 = vadd.xlane.f32.xlu0 %v708
      %v710 = vpop.xlane.xlu0 %709
      %v711 = vsel %vm528, %v669, 0.0
      %712 = vadd.xlane.f32.xlu0 %v711
      %v713 = vpop.xlane.xlu0 %712
      %v714 = vsel %vm528, %v670, 0.0
      %715 = vadd.xlane.f32.xlu0 %v714
      %v716 = vpop.xlane.xlu0 %715
      %v717 = vsel %vm528, %v671, 0.0
      %718 = vadd.xlane.f32.xlu0 %v717
      %v719 = vpop.xlane.xlu0 %718
      %v720 = vsel %vm528, %v672, 0.0
      %721 = vadd.xlane.f32.xlu0 %v720
      %v722 = vpop.xlane.xlu0 %721
      %v723 = vsel %vm528, %v673, 0.0
      %724 = vadd.xlane.f32.xlu0 %v723
      %v725 = vpop.xlane.xlu0 %724
      %v726 = vsel %vm528, %v674, 0.0
      %727 = vadd.xlane.f32.xlu0 %v726
      %v728 = vpop.xlane.xlu0 %727
      %v729 = vsel %vm528, %v675, 0.0
      %730 = vadd.xlane.f32.xlu0 %v729
      %v731 = vpop.xlane.xlu0 %730
      %v732 = vsel %vm528, %v676, 0.0
      %733 = vadd.xlane.f32.xlu0 %v732
      %v734 = vpop.xlane.xlu0 %733
      %v735 = vsel %vm528, %v677, 0.0
      %736 = vadd.xlane.f32.xlu0 %v735
      %v737 = vpop.xlane.xlu0 %736
      %v738 = vsel %vm528, %v678, 0.0
      %739 = vadd.xlane.f32.xlu0 %v738
      %v740 = vpop.xlane.xlu0 %739
      %v741 = vsel %vm528, %v679, 0.0
      %742 = vadd.xlane.f32.xlu0 %v741
      %v743 = vpop.xlane.xlu0 %742
      %v744 = vsel %vm528, %v680, 0.0
      %745 = vadd.xlane.f32.xlu0 %v744
      %v746 = vpop.xlane.xlu0 %745
      %v747 = vsel %vm528, %v681, 0.0
      %748 = vadd.xlane.f32.xlu0 %v747
      %v749 = vpop.xlane.xlu0 %748
      %v750 = vsel %vm528, %v682, 0.0
      %751 = vadd.xlane.f32.xlu0 %v750
      %v752 = vpop.xlane.xlu0 %751
      %v753 = vsel %vm528, %v683, 0.0
      %754 = vadd.xlane.f32.xlu0 %v753
      %v755 = vpop.xlane.xlu0 %754
      %v756 = vsel %vm528, %v684, 0.0
      %757 = vadd.xlane.f32.xlu0 %v756
      %v758 = vpop.xlane.xlu0 %757
      %v759 = vsel %vm528, %v685, 0.0
      %760 = vadd.xlane.f32.xlu0 %v759
      %v761 = vpop.xlane.xlu0 %760
      %v762 = vsel %vm528, %v686, 0.0
      %763 = vadd.xlane.f32.xlu0 %v762
      %v764 = vpop.xlane.xlu0 %763
      %v765 = vsel %vm528, %v687, 0.0
      %766 = vadd.xlane.f32.xlu0 %v765
      %v767 = vpop.xlane.xlu0 %766
      %v768 = vsel %vm528, %v688, 0.0
      %769 = vadd.xlane.f32.xlu0 %v768
      %v770 = vpop.xlane.xlu0 %769
      %v771 = vsel %vm528, %v689, 0.0
      %772 = vadd.xlane.f32.xlu0 %v771
      %v773 = vpop.xlane.xlu0 %772
      %v774 = vsel %vm528, %v690, 0.0
      %775 = vadd.xlane.f32.xlu0 %v774
      %v776 = vpop.xlane.xlu0 %775
      %v777 = vsel %vm528, %v691, 0.0
      %778 = vadd.xlane.f32.xlu0 %v777
      %v779 = vpop.xlane.xlu0 %778
      %v780 = vsel %vm528, %v692, 0.0
      %781 = vadd.xlane.f32.xlu0 %v780
      %v782 = vpop.xlane.xlu0 %781
      %v783 = vsel %vm528, %v693, 0.0
      %784 = vadd.xlane.f32.xlu0 %v783
      %v785 = vpop.xlane.xlu0 %784
      %v786 = vsel %vm528, %v694, 0.0
      %787 = vadd.xlane.f32.xlu0 %v786
      %v788 = vpop.xlane.xlu0 %787
      %v789 = vsel %vm528, %v695, 0.0
      %790 = vadd.xlane.f32.xlu0 %v789
      %v791 = vpop.xlane.xlu0 %790
      %v792 = vmul.f32 %v698, %v631
      %v793 = vmul.f32 %v701, %v631
      %v794 = vmul.f32 %v704, %v631
      %v795 = vmul.f32 %v707, %v631
      %v796 = vmul.f32 %v710, %v631
      %v797 = vmul.f32 %v713, %v631
      %v798 = vmul.f32 %v716, %v631
      %v799 = vmul.f32 %v719, %v631
      %v800 = vmul.f32 %v722, %v631
      %v801 = vmul.f32 %v725, %v631
      %v802 = vmul.f32 %v728, %v631
      %v803 = vmul.f32 %v731, %v631
      %v804 = vmul.f32 %v734, %v631
      %v805 = vmul.f32 %v737, %v631
      %v806 = vmul.f32 %v740, %v631
      %v807 = vmul.f32 %v743, %v631
      %v808 = vmul.f32 %v746, %v631
      %v809 = vmul.f32 %v749, %v631
      %v810 = vmul.f32 %v752, %v631
      %v811 = vmul.f32 %v755, %v631
      %v812 = vmul.f32 %v758, %v631
      %v813 = vmul.f32 %v761, %v631
      %v814 = vmul.f32 %v764, %v631
      %v815 = vmul.f32 %v767, %v631
      %v816 = vmul.f32 %v770, %v631
      %v817 = vmul.f32 %v773, %v631
      %v818 = vmul.f32 %v776, %v631
      %v819 = vmul.f32 %v779, %v631
      %v820 = vmul.f32 %v782, %v631
      %v821 = vmul.f32 %v785, %v631
      %v822 = vmul.f32 %v788, %v631
      %v823 = vmul.f32 %v791, %v631
      %v824 = vsub.f32 %v496, %v632
      %v825 = vsub.f32 %v497, %v633
      %v826 = vsub.f32 %v498, %v634
      %v827 = vsub.f32 %v499, %v635
      %v828 = vsub.f32 %v500, %v636
      %v829 = vsub.f32 %v501, %v637
      %v830 = vsub.f32 %v502, %v638
      %v831 = vsub.f32 %v503, %v639
      %v832 = vsub.f32 %v504, %v640
      %v833 = vsub.f32 %v505, %v641
      %v834 = vsub.f32 %v506, %v642
      %v835 = vsub.f32 %v507, %v643
      %v836 = vsub.f32 %v508, %v644
      %v837 = vsub.f32 %v509, %v645
      %v838 = vsub.f32 %v510, %v646
      %v839 = vsub.f32 %v511, %v647
      %v840 = vsub.f32 %v512, %v648
      %v841 = vsub.f32 %v513, %v649
      %v842 = vsub.f32 %v514, %v650
      %v843 = vsub.f32 %v515, %v651
      %v844 = vsub.f32 %v516, %v652
      %v845 = vsub.f32 %v517, %v653
      %v846 = vsub.f32 %v518, %v654
      %v847 = vsub.f32 %v519, %v655
      %v848 = vsub.f32 %v520, %v656
      %v849 = vsub.f32 %v521, %v657
      %v850 = vsub.f32 %v522, %v658
      %v851 = vsub.f32 %v523, %v659
      %v852 = vsub.f32 %v524, %v660
      %v853 = vsub.f32 %v525, %v661
      %v854 = vsub.f32 %v526, %v662
      %v855 = vsub.f32 %v527, %v663
      %v856 = vmul.f32 %v632, %v632
      %v857 = vmul.f32 %v633, %v633
      %v858 = vmul.f32 %v634, %v634
      %v859 = vmul.f32 %v635, %v635
      %v860 = vmul.f32 %v636, %v636
      %v861 = vmul.f32 %v637, %v637
      %v862 = vmul.f32 %v638, %v638
      %v863 = vmul.f32 %v639, %v639
      %v864 = vmul.f32 %v640, %v640
      %v865 = vmul.f32 %v641, %v641
      %v866 = vmul.f32 %v642, %v642
      %v867 = vmul.f32 %v643, %v643
      %v868 = vmul.f32 %v644, %v644
      %v869 = vmul.f32 %v645, %v645
      %v870 = vmul.f32 %v646, %v646
      %v871 = vmul.f32 %v647, %v647
      %v872 = vmul.f32 %v648, %v648
      %v873 = vmul.f32 %v649, %v649
      %v874 = vmul.f32 %v650, %v650
      %v875 = vmul.f32 %v651, %v651
      %v876 = vmul.f32 %v652, %v652
      %v877 = vmul.f32 %v653, %v653
      %v878 = vmul.f32 %v654, %v654
      %v879 = vmul.f32 %v655, %v655
      %v880 = vmul.f32 %v656, %v656
      %v881 = vmul.f32 %v657, %v657
      %v882 = vmul.f32 %v658, %v658
      %v883 = vmul.f32 %v659, %v659
      %v884 = vmul.f32 %v660, %v660
      %v885 = vmul.f32 %v661, %v661
      %v886 = vmul.f32 %v662, %v662
      %v887 = vmul.f32 %v663, %v663
      %v888 = vsub.f32 %v792, %v856
      %v889 = vsub.f32 %v793, %v857
      %v890 = vsub.f32 %v794, %v858
      %v891 = vsub.f32 %v795, %v859
      %v892 = vsub.f32 %v796, %v860
      %v893 = vsub.f32 %v797, %v861
      %v894 = vsub.f32 %v798, %v862
      %v895 = vsub.f32 %v799, %v863
      %v896 = vsub.f32 %v800, %v864
      %v897 = vsub.f32 %v801, %v865
      %v898 = vsub.f32 %v802, %v866
      %v899 = vsub.f32 %v803, %v867
      %v900 = vsub.f32 %v804, %v868
      %v901 = vsub.f32 %v805, %v869
      %v902 = vsub.f32 %v806, %v870
      %v903 = vsub.f32 %v807, %v871
      %v904 = vsub.f32 %v808, %v872
      %v905 = vsub.f32 %v809, %v873
      %v906 = vsub.f32 %v810, %v874
      %v907 = vsub.f32 %v811, %v875
      %v908 = vsub.f32 %v812, %v876
      %v909 = vsub.f32 %v813, %v877
      %v910 = vsub.f32 %v814, %v878
      %v911 = vsub.f32 %v815, %v879
      %v912 = vsub.f32 %v816, %v880
      %v913 = vsub.f32 %v817, %v881
      %v914 = vsub.f32 %v818, %v882
      %v915 = vsub.f32 %v819, %v883
      %v916 = vsub.f32 %v820, %v884
      %v917 = vsub.f32 %v821, %v885
      %v918 = vsub.f32 %v822, %v886
      %v919 = vsub.f32 %v823, %v887
      %v920 = vadd.f32 %v888, 1e-05
      %v921 = vadd.f32 %v889, 1e-05
      %v922 = vadd.f32 %v890, 1e-05
      %v923 = vadd.f32 %v891, 1e-05
      %v924 = vadd.f32 %v892, 1e-05
      %v925 = vadd.f32 %v893, 1e-05
      %v926 = vadd.f32 %v894, 1e-05
      %v927 = vadd.f32 %v895, 1e-05
      %v928 = vadd.f32 %v896, 1e-05
      %v929 = vadd.f32 %v897, 1e-05
      %v930 = vadd.f32 %v898, 1e-05
      %v931 = vadd.f32 %v899, 1e-05
      %v932 = vadd.f32 %v900, 1e-05
      %v933 = vadd.f32 %v901, 1e-05
      %v934 = vadd.f32 %v902, 1e-05
      %v935 = vadd.f32 %v903, 1e-05
      %v936 = vadd.f32 %v904, 1e-05
      %v937 = vadd.f32 %v905, 1e-05
      %v938 = vadd.f32 %v906, 1e-05
      %v939 = vadd.f32 %v907, 1e-05
      %v940 = vadd.f32 %v908, 1e-05
      %v941 = vadd.f32 %v909, 1e-05
      %v942 = vadd.f32 %v910, 1e-05
      %v943 = vadd.f32 %v911, 1e-05
      %v944 = vadd.f32 %v912, 1e-05
      %v945 = vadd.f32 %v913, 1e-05
      %v946 = vadd.f32 %v914, 1e-05
      %v947 = vadd.f32 %v915, 1e-05
      %v948 = vadd.f32 %v916, 1e-05
      %v949 = vadd.f32 %v917, 1e-05
      %v950 = vadd.f32 %v918, 1e-05
      %v951 = vadd.f32 %v919, 1e-05
      %v952 = vrsqrt.pop %v920
      %v953 = vmul.f32 %v952, %v920
      %v954 = vmul.f32 %v953, %v952
      %v955 = vmul.f32 0.5, %v954
      %v956 = vsub.f32 1.5, %v955
      %v957 = vmul.f32 %v952, %v956
      %vm958 = vweird.f32 %v920
      %vm959 = vweird.f32 %v952
      %vm960 = vmor %vm958, %vm959
      %v961 = vsel %vm960, %v952, %v957
      %v962 = vrsqrt.pop %v921
      %v963 = vmul.f32 %v962, %v921
      %v964 = vmul.f32 %v963, %v962
      %v965 = vmul.f32 0.5, %v964
      %v966 = vsub.f32 1.5, %v965
      %v967 = vmul.f32 %v962, %v966
      %vm968 = vweird.f32 %v921
      %vm969 = vweird.f32 %v962
      %vm970 = vmor %vm968, %vm969
      %v971 = vsel %vm970, %v962, %v967
      %v972 = vrsqrt.pop %v922
      %v973 = vmul.f32 %v972, %v922
      %v974 = vmul.f32 %v973, %v972
      %v975 = vmul.f32 0.5, %v974
      %v976 = vsub.f32 1.5, %v975
      %v977 = vmul.f32 %v972, %v976
      %vm978 = vweird.f32 %v922
      %vm979 = vweird.f32 %v972
      %vm980 = vmor %vm978, %vm979
      %v981 = vsel %vm980, %v972, %v977
      %v982 = vrsqrt.pop %v923
      %v983 = vmul.f32 %v982, %v923
      %v984 = vmul.f32 %v983, %v982
      %v985 = vmul.f32 0.5, %v984
      %v986 = vsub.f32 1.5, %v985
      %v987 = vmul.f32 %v982, %v986
      %vm988 = vweird.f32 %v923
      %vm989 = vweird.f32 %v982
      %vm990 = vmor %vm988, %vm989
      %v991 = vsel %vm990, %v982, %v987
      %v992 = vrsqrt.pop %v924
      %v993 = vmul.f32 %v992, %v924
      %v994 = vmul.f32 %v993, %v992
      %v995 = vmul.f32 0.5, %v994
      %v996 = vsub.f32 1.5, %v995
      %v997 = vmul.f32 %v992, %v996
      %vm998 = vweird.f32 %v924
      %vm999 = vweird.f32 %v992
      %vm1000 = vmor %vm998, %vm999
      %v1001 = vsel %vm1000, %v992, %v997
      %v1002 = vrsqrt.pop %v925
      %v1003 = vmul.f32 %v1002, %v925
      %v1004 = vmul.f32 %v1003, %v1002
      %v1005 = vmul.f32 0.5, %v1004
      %v1006 = vsub.f32 1.5, %v1005
      %v1007 = vmul.f32 %v1002, %v1006
      %vm1008 = vweird.f32 %v925
      %vm1009 = vweird.f32 %v1002
      %vm1010 = vmor %vm1008, %vm1009
      %v1011 = vsel %vm1010, %v1002, %v1007
      %v1012 = vrsqrt.pop %v926
      %v1013 = vmul.f32 %v1012, %v926
      %v1014 = vmul.f32 %v1013, %v1012
      %v1015 = vmul.f32 0.5, %v1014
      %v1016 = vsub.f32 1.5, %v1015
      %v1017 = vmul.f32 %v1012, %v1016
      %vm1018 = vweird.f32 %v926
      %vm1019 = vweird.f32 %v1012
      %vm1020 = vmor %vm1018, %vm1019
      %v1021 = vsel %vm1020, %v1012, %v1017
      %v1022 = vrsqrt.pop %v927
      %v1023 = vmul.f32 %v1022, %v927
      %v1024 = vmul.f32 %v1023, %v1022
      %v1025 = vmul.f32 0.5, %v1024
      %v1026 = vsub.f32 1.5, %v1025
      %v1027 = vmul.f32 %v1022, %v1026
      %vm1028 = vweird.f32 %v927
      %vm1029 = vweird.f32 %v1022
      %vm1030 = vmor %vm1028, %vm1029
      %v1031 = vsel %vm1030, %v1022, %v1027
      %v1032 = vrsqrt.pop %v928
      %v1033 = vmul.f32 %v1032, %v928
      %v1034 = vmul.f32 %v1033, %v1032
      %v1035 = vmul.f32 0.5, %v1034
      %v1036 = vsub.f32 1.5, %v1035
      %v1037 = vmul.f32 %v1032, %v1036
      %vm1038 = vweird.f32 %v928
      %vm1039 = vweird.f32 %v1032
      %vm1040 = vmor %vm1038, %vm1039
      %v1041 = vsel %vm1040, %v1032, %v1037
      %v1042 = vrsqrt.pop %v929
      %v1043 = vmul.f32 %v1042, %v929
      %v1044 = vmul.f32 %v1043, %v1042
      %v1045 = vmul.f32 0.5, %v1044
      %v1046 = vsub.f32 1.5, %v1045
      %v1047 = vmul.f32 %v1042, %v1046
      %vm1048 = vweird.f32 %v929
      %vm1049 = vweird.f32 %v1042
      %vm1050 = vmor %vm1048, %vm1049
      %v1051 = vsel %vm1050, %v1042, %v1047
      %v1052 = vrsqrt.pop %v930
      %v1053 = vmul.f32 %v1052, %v930
      %v1054 = vmul.f32 %v1053, %v1052
      %v1055 = vmul.f32 0.5, %v1054
      %v1056 = vsub.f32 1.5, %v1055
      %v1057 = vmul.f32 %v1052, %v1056
      %vm1058 = vweird.f32 %v930
      %vm1059 = vweird.f32 %v1052
      %vm1060 = vmor %vm1058, %vm1059
      %v1061 = vsel %vm1060, %v1052, %v1057
      %v1062 = vrsqrt.pop %v931
      %v1063 = vmul.f32 %v1062, %v931
      %v1064 = vmul.f32 %v1063, %v1062
      %v1065 = vmul.f32 0.5, %v1064
      %v1066 = vsub.f32 1.5, %v1065
      %v1067 = vmul.f32 %v1062, %v1066
      %vm1068 = vweird.f32 %v931
      %vm1069 = vweird.f32 %v1062
      %vm1070 = vmor %vm1068, %vm1069
      %v1071 = vsel %vm1070, %v1062, %v1067
      %v1072 = vrsqrt.pop %v932
      %v1073 = vmul.f32 %v1072, %v932
      %v1074 = vmul.f32 %v1073, %v1072
      %v1075 = vmul.f32 0.5, %v1074
      %v1076 = vsub.f32 1.5, %v1075
      %v1077 = vmul.f32 %v1072, %v1076
      %vm1078 = vweird.f32 %v932
      %vm1079 = vweird.f32 %v1072
      %vm1080 = vmor %vm1078, %vm1079
      %v1081 = vsel %vm1080, %v1072, %v1077
      %v1082 = vrsqrt.pop %v933
      %v1083 = vmul.f32 %v1082, %v933
      %v1084 = vmul.f32 %v1083, %v1082
      %v1085 = vmul.f32 0.5, %v1084
      %v1086 = vsub.f32 1.5, %v1085
      %v1087 = vmul.f32 %v1082, %v1086
      %vm1088 = vweird.f32 %v933
      %vm1089 = vweird.f32 %v1082
      %vm1090 = vmor %vm1088, %vm1089
      %v1091 = vsel %vm1090, %v1082, %v1087
      %v1092 = vrsqrt.pop %v934
      %v1093 = vmul.f32 %v1092, %v934
      %v1094 = vmul.f32 %v1093, %v1092
      %v1095 = vmul.f32 0.5, %v1094
      %v1096 = vsub.f32 1.5, %v1095
      %v1097 = vmul.f32 %v1092, %v1096
      %vm1098 = vweird.f32 %v934
      %vm1099 = vweird.f32 %v1092
      %vm1100 = vmor %vm1098, %vm1099
      %v1101 = vsel %vm1100, %v1092, %v1097
      %v1102 = vrsqrt.pop %v935
      %v1103 = vmul.f32 %v1102, %v935
      %v1104 = vmul.f32 %v1103, %v1102
      %v1105 = vmul.f32 0.5, %v1104
      %v1106 = vsub.f32 1.5, %v1105
      %v1107 = vmul.f32 %v1102, %v1106
      %vm1108 = vweird.f32 %v935
      %vm1109 = vweird.f32 %v1102
      %vm1110 = vmor %vm1108, %vm1109
      %v1111 = vsel %vm1110, %v1102, %v1107
      %v1112 = vrsqrt.pop %v936
      %v1113 = vmul.f32 %v1112, %v936
      %v1114 = vmul.f32 %v1113, %v1112
      %v1115 = vmul.f32 0.5, %v1114
      %v1116 = vsub.f32 1.5, %v1115
      %v1117 = vmul.f32 %v1112, %v1116
      %vm1118 = vweird.f32 %v936
      %vm1119 = vweird.f32 %v1112
      %vm1120 = vmor %vm1118, %vm1119
      %v1121 = vsel %vm1120, %v1112, %v1117
      %v1122 = vrsqrt.pop %v937
      %v1123 = vmul.f32 %v1122, %v937
      %v1124 = vmul.f32 %v1123, %v1122
      %v1125 = vmul.f32 0.5, %v1124
      %v1126 = vsub.f32 1.5, %v1125
      %v1127 = vmul.f32 %v1122, %v1126
      %vm1128 = vweird.f32 %v937
      %vm1129 = vweird.f32 %v1122
      %vm1130 = vmor %vm1128, %vm1129
      %v1131 = vsel %vm1130, %v1122, %v1127
      %v1132 = vrsqrt.pop %v938
      %v1133 = vmul.f32 %v1132, %v938
      %v1134 = vmul.f32 %v1133, %v1132
      %v1135 = vmul.f32 0.5, %v1134
      %v1136 = vsub.f32 1.5, %v1135
      %v1137 = vmul.f32 %v1132, %v1136
      %vm1138 = vweird.f32 %v938
      %vm1139 = vweird.f32 %v1132
      %vm1140 = vmor %vm1138, %vm1139
      %v1141 = vsel %vm1140, %v1132, %v1137
      %v1142 = vrsqrt.pop %v939
      %v1143 = vmul.f32 %v1142, %v939
      %v1144 = vmul.f32 %v1143, %v1142
      %v1145 = vmul.f32 0.5, %v1144
      %v1146 = vsub.f32 1.5, %v1145
      %v1147 = vmul.f32 %v1142, %v1146
      %vm1148 = vweird.f32 %v939
      %vm1149 = vweird.f32 %v1142
      %vm1150 = vmor %vm1148, %vm1149
      %v1151 = vsel %vm1150, %v1142, %v1147
      %v1152 = vrsqrt.pop %v940
      %v1153 = vmul.f32 %v1152, %v940
      %v1154 = vmul.f32 %v1153, %v1152
      %v1155 = vmul.f32 0.5, %v1154
      %v1156 = vsub.f32 1.5, %v1155
      %v1157 = vmul.f32 %v1152, %v1156
      %vm1158 = vweird.f32 %v940
      %vm1159 = vweird.f32 %v1152
      %vm1160 = vmor %vm1158, %vm1159
      %v1161 = vsel %vm1160, %v1152, %v1157
      %v1162 = vrsqrt.pop %v941
      %v1163 = vmul.f32 %v1162, %v941
      %v1164 = vmul.f32 %v1163, %v1162
      %v1165 = vmul.f32 0.5, %v1164
      %v1166 = vsub.f32 1.5, %v1165
      %v1167 = vmul.f32 %v1162, %v1166
      %vm1168 = vweird.f32 %v941
      %vm1169 = vweird.f32 %v1162
      %vm1170 = vmor %vm1168, %vm1169
      %v1171 = vsel %vm1170, %v1162, %v1167
      %v1172 = vrsqrt.pop %v942
      %v1173 = vmul.f32 %v1172, %v942
      %v1174 = vmul.f32 %v1173, %v1172
      %v1175 = vmul.f32 0.5, %v1174
      %v1176 = vsub.f32 1.5, %v1175
      %v1177 = vmul.f32 %v1172, %v1176
      %vm1178 = vweird.f32 %v942
      %vm1179 = vweird.f32 %v1172
      %vm1180 = vmor %vm1178, %vm1179
      %v1181 = vsel %vm1180, %v1172, %v1177
      %v1182 = vrsqrt.pop %v943
      %v1183 = vmul.f32 %v1182, %v943
      %v1184 = vmul.f32 %v1183, %v1182
      %v1185 = vmul.f32 0.5, %v1184
      %v1186 = vsub.f32 1.5, %v1185
      %v1187 = vmul.f32 %v1182, %v1186
      %vm1188 = vweird.f32 %v943
      %vm1189 = vweird.f32 %v1182
      %vm1190 = vmor %vm1188, %vm1189
      %v1191 = vsel %vm1190, %v1182, %v1187
      %v1192 = vrsqrt.pop %v944
      %v1193 = vmul.f32 %v1192, %v944
      %v1194 = vmul.f32 %v1193, %v1192
      %v1195 = vmul.f32 0.5, %v1194
      %v1196 = vsub.f32 1.5, %v1195
      %v1197 = vmul.f32 %v1192, %v1196
      %vm1198 = vweird.f32 %v944
      %vm1199 = vweird.f32 %v1192
      %vm1200 = vmor %vm1198, %vm1199
      %v1201 = vsel %vm1200, %v1192, %v1197
      %v1202 = vrsqrt.pop %v945
      %v1203 = vmul.f32 %v1202, %v945
      %v1204 = vmul.f32 %v1203, %v1202
      %v1205 = vmul.f32 0.5, %v1204
      %v1206 = vsub.f32 1.5, %v1205
      %v1207 = vmul.f32 %v1202, %v1206
      %vm1208 = vweird.f32 %v945
      %vm1209 = vweird.f32 %v1202
      %vm1210 = vmor %vm1208, %vm1209
      %v1211 = vsel %vm1210, %v1202, %v1207
      %v1212 = vrsqrt.pop %v946
      %v1213 = vmul.f32 %v1212, %v946
      %v1214 = vmul.f32 %v1213, %v1212
      %v1215 = vmul.f32 0.5, %v1214
      %v1216 = vsub.f32 1.5, %v1215
      %v1217 = vmul.f32 %v1212, %v1216
      %vm1218 = vweird.f32 %v946
      %vm1219 = vweird.f32 %v1212
      %vm1220 = vmor %vm1218, %vm1219
      %v1221 = vsel %vm1220, %v1212, %v1217
      %v1222 = vrsqrt.pop %v947
      %v1223 = vmul.f32 %v1222, %v947
      %v1224 = vmul.f32 %v1223, %v1222
      %v1225 = vmul.f32 0.5, %v1224
      %v1226 = vsub.f32 1.5, %v1225
      %v1227 = vmul.f32 %v1222, %v1226
      %vm1228 = vweird.f32 %v947
      %vm1229 = vweird.f32 %v1222
      %vm1230 = vmor %vm1228, %vm1229
      %v1231 = vsel %vm1230, %v1222, %v1227
      %v1232 = vrsqrt.pop %v948
      %v1233 = vmul.f32 %v1232, %v948
      %v1234 = vmul.f32 %v1233, %v1232
      %v1235 = vmul.f32 0.5, %v1234
      %v1236 = vsub.f32 1.5, %v1235
      %v1237 = vmul.f32 %v1232, %v1236
      %vm1238 = vweird.f32 %v948
      %vm1239 = vweird.f32 %v1232
      %vm1240 = vmor %vm1238, %vm1239
      %v1241 = vsel %vm1240, %v1232, %v1237
      %v1242 = vrsqrt.pop %v949
      %v1243 = vmul.f32 %v1242, %v949
      %v1244 = vmul.f32 %v1243, %v1242
      %v1245 = vmul.f32 0.5, %v1244
      %v1246 = vsub.f32 1.5, %v1245
      %v1247 = vmul.f32 %v1242, %v1246
      %vm1248 = vweird.f32 %v949
      %vm1249 = vweird.f32 %v1242
      %vm1250 = vmor %vm1248, %vm1249
      %v1251 = vsel %vm1250, %v1242, %v1247
      %v1252 = vrsqrt.pop %v950
      %v1253 = vmul.f32 %v1252, %v950
      %v1254 = vmul.f32 %v1253, %v1252
      %v1255 = vmul.f32 0.5, %v1254
      %v1256 = vsub.f32 1.5, %v1255
      %v1257 = vmul.f32 %v1252, %v1256
      %vm1258 = vweird.f32 %v950
      %vm1259 = vweird.f32 %v1252
      %vm1260 = vmor %vm1258, %vm1259
      %v1261 = vsel %vm1260, %v1252, %v1257
      %v1262 = vrsqrt.pop %v951
      %v1263 = vmul.f32 %v1262, %v951
      %v1264 = vmul.f32 %v1263, %v1262
      %v1265 = vmul.f32 0.5, %v1264
      %v1266 = vsub.f32 1.5, %v1265
      %v1267 = vmul.f32 %v1262, %v1266
      %vm1268 = vweird.f32 %v951
      %vm1269 = vweird.f32 %v1262
      %vm1270 = vmor %vm1268, %vm1269
      %v1271 = vsel %vm1270, %v1262, %v1267
      %v1272 = vmul.f32 %v824, %v961
      %v1273 = vmul.f32 %v825, %v971
      %v1274 = vmul.f32 %v826, %v981
      %v1275 = vmul.f32 %v827, %v991
      %v1276 = vmul.f32 %v828, %v1001
      %v1277 = vmul.f32 %v829, %v1011
      %v1278 = vmul.f32 %v830, %v1021
      %v1279 = vmul.f32 %v831, %v1031
      %v1280 = vmul.f32 %v832, %v1041
      %v1281 = vmul.f32 %v833, %v1051
      %v1282 = vmul.f32 %v834, %v1061
      %v1283 = vmul.f32 %v835, %v1071
      %v1284 = vmul.f32 %v836, %v1081
      %v1285 = vmul.f32 %v837, %v1091
      %v1286 = vmul.f32 %v838, %v1101
      %v1287 = vmul.f32 %v839, %v1111
      %v1288 = vmul.f32 %v840, %v1121
      %v1289 = vmul.f32 %v841, %v1131
      %v1290 = vmul.f32 %v842, %v1141
      %v1291 = vmul.f32 %v843, %v1151
      %v1292 = vmul.f32 %v844, %v1161
      %v1293 = vmul.f32 %v845, %v1171
      %v1294 = vmul.f32 %v846, %v1181
      %v1295 = vmul.f32 %v847, %v1191
      %v1296 = vmul.f32 %v848, %v1201
      %v1297 = vmul.f32 %v849, %v1211
      %v1298 = vmul.f32 %v850, %v1221
      %v1299 = vmul.f32 %v851, %v1231
      %v1300 = vmul.f32 %v852, %v1241
      %v1301 = vmul.f32 %v853, %v1251
      %v1302 = vmul.f32 %v854, %v1261
      %v1303 = vmul.f32 %v855, %v1271
      %v1304 = vld [vmem:[%s3] sm:$0x1]
      %v1306 = vperm.slane %v1304, 0
      %v1308 = vmul.f32 %v1272, %v1306
      %v1309 = vmul.f32 %v1273, %v1306
      %v1310 = vmul.f32 %v1274, %v1306
      %v1311 = vmul.f32 %v1275, %v1306
      %v1312 = vmul.f32 %v1276, %v1306
      %v1313 = vmul.f32 %v1277, %v1306
      %v1314 = vmul.f32 %v1278, %v1306
      %v1315 = vmul.f32 %v1279, %v1306
      %v1316 = vmul.f32 %v1280, %v1306
      %v1317 = vmul.f32 %v1281, %v1306
      %v1318 = vmul.f32 %v1282, %v1306
      %v1319 = vmul.f32 %v1283, %v1306
      %v1320 = vmul.f32 %v1284, %v1306
      %v1321 = vmul.f32 %v1285, %v1306
      %v1322 = vmul.f32 %v1286, %v1306
      %v1323 = vmul.f32 %v1287, %v1306
      %v1324 = vmul.f32 %v1288, %v1306
      %v1325 = vmul.f32 %v1289, %v1306
      %v1326 = vmul.f32 %v1290, %v1306
      %v1327 = vmul.f32 %v1291, %v1306
      %v1328 = vmul.f32 %v1292, %v1306
      %v1329 = vmul.f32 %v1293, %v1306
      %v1330 = vmul.f32 %v1294, %v1306
      %v1331 = vmul.f32 %v1295, %v1306
      %v1332 = vmul.f32 %v1296, %v1306
      %v1333 = vmul.f32 %v1297, %v1306
      %v1334 = vmul.f32 %v1298, %v1306
      %v1335 = vmul.f32 %v1299, %v1306
      %v1336 = vmul.f32 %v1300, %v1306
      %v1337 = vmul.f32 %v1301, %v1306
      %v1338 = vmul.f32 %v1302, %v1306
      %v1339 = vmul.f32 %v1303, %v1306
      %v1340 = vld [vmem:[%s4] sm:$0x1]
      %v1342 = vperm.slane %v1340, 0
      %v1344 = vadd.f32 %v1308, %v1342
      %v1345 = vadd.f32 %v1309, %v1342
      %v1346 = vadd.f32 %v1310, %v1342
      %v1347 = vadd.f32 %v1311, %v1342
      %v1348 = vadd.f32 %v1312, %v1342
      %v1349 = vadd.f32 %v1313, %v1342
      %v1350 = vadd.f32 %v1314, %v1342
      %v1351 = vadd.f32 %v1315, %v1342
      %v1352 = vadd.f32 %v1316, %v1342
      %v1353 = vadd.f32 %v1317, %v1342
      %v1354 = vadd.f32 %v1318, %v1342
      %v1355 = vadd.f32 %v1319, %v1342
      %v1356 = vadd.f32 %v1320, %v1342
      %v1357 = vadd.f32 %v1321, %v1342
      %v1358 = vadd.f32 %v1322, %v1342
      %v1359 = vadd.f32 %v1323, %v1342
      %v1360 = vadd.f32 %v1324, %v1342
      %v1361 = vadd.f32 %v1325, %v1342
      %v1362 = vadd.f32 %v1326, %v1342
      %v1363 = vadd.f32 %v1327, %v1342
      %v1364 = vadd.f32 %v1328, %v1342
      %v1365 = vadd.f32 %v1329, %v1342
      %v1366 = vadd.f32 %v1330, %v1342
      %v1367 = vadd.f32 %v1331, %v1342
      %v1368 = vadd.f32 %v1332, %v1342
      %v1369 = vadd.f32 %v1333, %v1342
      %v1370 = vadd.f32 %v1334, %v1342
      %v1371 = vadd.f32 %v1335, %v1342
      %v1372 = vadd.f32 %v1336, %v1342
      %v1373 = vadd.f32 %v1337, %v1342
      %v1374 = vadd.f32 %v1338, %v1342
      %v1375 = vadd.f32 %v1339, %v1342
      %v1376 = vpack.c.bf16 %v1345, %v1344
      %v1377 = vpack.c.bf16 %v1347, %v1346
      %v1378 = vpack.c.bf16 %v1349, %v1348
      %v1379 = vpack.c.bf16 %v1351, %v1350
      %v1380 = vpack.c.bf16 %v1353, %v1352
      %v1381 = vpack.c.bf16 %v1355, %v1354
      %v1382 = vpack.c.bf16 %v1357, %v1356
      %v1383 = vpack.c.bf16 %v1359, %v1358
      %v1384 = vpack.c.bf16 %v1361, %v1360
      %v1385 = vpack.c.bf16 %v1363, %v1362
      %v1386 = vpack.c.bf16 %v1365, %v1364
      %v1387 = vpack.c.bf16 %v1367, %v1366
      %v1388 = vpack.c.bf16 %v1369, %v1368
      %v1389 = vpack.c.bf16 %v1371, %v1370
      %v1390 = vpack.c.bf16 %v1373, %v1372
      %v1391 = vpack.c.bf16 %v1375, %v1374
      %v1392 = vld [vmem:[%s5] sm:$0xf]
      %v1393 = vld [vmem:[%s5 + $0x4] sm:$0xf]
      %v1394 = vld [vmem:[%s5 + $0x8] sm:$0xf]
      %v1395 = vld [vmem:[%s5 + $0xc] sm:$0xf]
      %v1396 = vld [vmem:[%s6] sm:$0x1]
      %v1398 = vperm.slane %v1396, 0
      %v1404 = vunpack.c.l.b16 %v1392
      %v1405 = vunpack.c.l.b16 %v1393
      %v1406 = vunpack.c.l.b16 %v1394
      %v1407 = vunpack.c.l.b16 %v1395
      %v1408 = vpack.c.b16 %v1405, %v1404
      %v1409 = vpack.c.b16 %v1407, %v1406
      %v1413 = vsel %vm528, %v1376, 0
      %v1416 = vsel %vm528, %v1377, 0
      %v1419 = vsel %vm528, %v1378, 0
      %v1422 = vsel %vm528, %v1379, 0
      %v1425 = vsel %vm528, %v1380, 0
      %v1428 = vsel %vm528, %v1381, 0
      %v1431 = vsel %vm528, %v1382, 0
      %v1434 = vsel %vm528, %v1383, 0
      %v1437 = vsel %vm528, %v1384, 0
      %v1440 = vsel %vm528, %v1385, 0
      %v1443 = vsel %vm528, %v1386, 0
      %v1446 = vsel %vm528, %v1387, 0
      %v1449 = vsel %vm528, %v1388, 0
      %v1452 = vsel %vm528, %v1389, 0
      %v1455 = vsel %vm528, %v1390, 0
      %v1458 = vsel %vm528, %v1391, 0
      %1460 = vmatpush.bf16.msra.mxu0 0
      %1461 = vmatpush.bf16.msra.mxu0 0
      %1462 = vmatpush.bf16.msra.mxu0 0
      %1463 = vmatpush.bf16.msra.mxu0 0
      %1464 = vmatpush.bf16.msra.mxu0 0
      %1465 = vmatpush.bf16.msra.mxu0 0
      %1466 = vmatpush.bf16.msra.mxu0 %v1409
      %1467 = vmatpush.bf16.msra.mxu0 %v1408
      %1468 = vmatmul.bf16.gmra.mxu0 %v1413
      %v1469 = vpop.f32.mrf.mxu0
      %v1470 = vadd.f32 %v1398, %v1469
      %v1471 = vpop.f32.mrf.mxu0
      %v1472 = vadd.f32 %v1398, %v1471
      %1473 = vmatmul.bf16.gmra.mxu0 %v1416
      %v1474 = vpop.f32.mrf.mxu0
      %v1475 = vadd.f32 %v1398, %v1474
      %v1476 = vpop.f32.mrf.mxu0
      %v1477 = vadd.f32 %v1398, %v1476
      %1478 = vmatmul.bf16.gmra.mxu0 %v1419
      %v1479 = vpop.f32.mrf.mxu0
      %v1480 = vadd.f32 %v1398, %v1479
      %v1481 = vpop.f32.mrf.mxu0
      %v1482 = vadd.f32 %v1398, %v1481
      %1483 = vmatmul.bf16.gmra.mxu0 %v1422
      %v1484 = vpop.f32.mrf.mxu0
      %v1485 = vadd.f32 %v1398, %v1484
      %v1486 = vpop.f32.mrf.mxu0
      %v1487 = vadd.f32 %v1398, %v1486
      %1488 = vmatmul.bf16.gmra.mxu0 %v1425
      %v1489 = vpop.f32.mrf.mxu0
      %v1490 = vadd.f32 %v1398, %v1489
      %v1491 = vpop.f32.mrf.mxu0
      %v1492 = vadd.f32 %v1398, %v1491
      %1493 = vmatmul.bf16.gmra.mxu0 %v1428
      %v1494 = vpop.f32.mrf.mxu0
      %v1495 = vadd.f32 %v1398, %v1494
      %v1496 = vpop.f32.mrf.mxu0
      %v1497 = vadd.f32 %v1398, %v1496
      %1498 = vmatmul.bf16.gmra.mxu0 %v1431
      %v1499 = vpop.f32.mrf.mxu0
      %v1500 = vadd.f32 %v1398, %v1499
      %v1501 = vpop.f32.mrf.mxu0
      %v1502 = vadd.f32 %v1398, %v1501
      %1503 = vmatmul.bf16.gmra.mxu0 %v1434
      %v1504 = vpop.f32.mrf.mxu0
      %v1505 = vadd.f32 %v1398, %v1504
      %v1506 = vpop.f32.mrf.mxu0
      %v1507 = vadd.f32 %v1398, %v1506
      %1508 = vmatmul.bf16.gmra.mxu0 %v1437
      %v1509 = vpop.f32.mrf.mxu0
      %v1510 = vadd.f32 %v1398, %v1509
      %v1511 = vpop.f32.mrf.mxu0
      %v1512 = vadd.f32 %v1398, %v1511
      %1513 = vmatmul.bf16.gmra.mxu0 %v1440
      %v1514 = vpop.f32.mrf.mxu0
      %v1515 = vadd.f32 %v1398, %v1514
      %v1516 = vpop.f32.mrf.mxu0
      %v1517 = vadd.f32 %v1398, %v1516
      %1518 = vmatmul.bf16.gmra.mxu0 %v1443
      %v1519 = vpop.f32.mrf.mxu0
      %v1520 = vadd.f32 %v1398, %v1519
      %v1521 = vpop.f32.mrf.mxu0
      %v1522 = vadd.f32 %v1398, %v1521
      %1523 = vmatmul.bf16.gmra.mxu0 %v1446
      %v1524 = vpop.f32.mrf.mxu0
      %v1525 = vadd.f32 %v1398, %v1524
      %v1526 = vpop.f32.mrf.mxu0
      %v1527 = vadd.f32 %v1398, %v1526
      %1528 = vmatmul.bf16.gmra.mxu0 %v1449
      %v1529 = vpop.f32.mrf.mxu0
      %v1530 = vadd.f32 %v1398, %v1529
      %v1531 = vpop.f32.mrf.mxu0
      %v1532 = vadd.f32 %v1398, %v1531
      %1533 = vmatmul.bf16.gmra.mxu0 %v1452
      %v1534 = vpop.f32.mrf.mxu0
      %v1535 = vadd.f32 %v1398, %v1534
      %v1536 = vpop.f32.mrf.mxu0
      %v1537 = vadd.f32 %v1398, %v1536
      %1538 = vmatmul.bf16.gmra.mxu0 %v1455
      %v1539 = vpop.f32.mrf.mxu0
      %v1540 = vadd.f32 %v1398, %v1539
      %v1541 = vpop.f32.mrf.mxu0
      %v1542 = vadd.f32 %v1398, %v1541
      %1543 = vmatmul.bf16.gmra.mxu0 %v1458
      %v1544 = vpop.f32.mrf.mxu0
      %v1545 = vadd.f32 %v1398, %v1544
      %v1546 = vpop.f32.mrf.mxu0
      %v1547 = vadd.f32 %v1398, %v1546
      %1548 = vdwg.mxu0
      %v1549 = vmul.f32 %v1470, 0.35355338
      %v1550 = vmul.f32 %v1472, 0.35355338
      %v1551 = vmul.f32 %v1475, 0.35355338
      %v1552 = vmul.f32 %v1477, 0.35355338
      %v1553 = vmul.f32 %v1480, 0.35355338
      %v1554 = vmul.f32 %v1482, 0.35355338
      %v1555 = vmul.f32 %v1485, 0.35355338
      %v1556 = vmul.f32 %v1487, 0.35355338
      %v1557 = vmul.f32 %v1490, 0.35355338
      %v1558 = vmul.f32 %v1492, 0.35355338
      %v1559 = vmul.f32 %v1495, 0.35355338
      %v1560 = vmul.f32 %v1497, 0.35355338
      %v1561 = vmul.f32 %v1500, 0.35355338
      %v1562 = vmul.f32 %v1502, 0.35355338
      %v1563 = vmul.f32 %v1505, 0.35355338
      %v1564 = vmul.f32 %v1507, 0.35355338
      %v1565 = vmul.f32 %v1510, 0.35355338
      %v1566 = vmul.f32 %v1512, 0.35355338
      %v1567 = vmul.f32 %v1515, 0.35355338
      %v1568 = vmul.f32 %v1517, 0.35355338
      %v1569 = vmul.f32 %v1520, 0.35355338
      %v1570 = vmul.f32 %v1522, 0.35355338
      %v1571 = vmul.f32 %v1525, 0.35355338
      %v1572 = vmul.f32 %v1527, 0.35355338
      %v1573 = vmul.f32 %v1530, 0.35355338
      %v1574 = vmul.f32 %v1532, 0.35355338
      %v1575 = vmul.f32 %v1535, 0.35355338
      %v1576 = vmul.f32 %v1537, 0.35355338
      %v1577 = vmul.f32 %v1540, 0.35355338
      %v1578 = vmul.f32 %v1542, 0.35355338
      %v1579 = vmul.f32 %v1545, 0.35355338
      %v1580 = vmul.f32 %v1547, 0.35355338
      %v1581 = vld [vmem:[%s2] sm:$0xff]
      %v1582 = vld [vmem:[%s2 + $0x8] sm:$0xff]
      %v1583 = vld [vmem:[%s2 + $0x10] sm:$0xff]
      %v1584 = vld [vmem:[%s2 + $0x18] sm:$0xff]
      %v1585 = vld [vmem:[%s2 + $0x20] sm:$0xff]
      %v1586 = vld [vmem:[%s2 + $0x28] sm:$0xff]
      %v1587 = vld [vmem:[%s2 + $0x30] sm:$0xff]
      %v1588 = vld [vmem:[%s2 + $0x38] sm:$0xff]
      %v1589 = vld [vmem:[%s2 + $0x40] sm:$0xff]
      %v1590 = vld [vmem:[%s2 + $0x48] sm:$0xff]
      %v1591 = vld [vmem:[%s2 + $0x50] sm:$0xff]
      %v1592 = vld [vmem:[%s2 + $0x58] sm:$0xff]
      %v1593 = vld [vmem:[%s2 + $0x60] sm:$0xff]
      %v1594 = vld [vmem:[%s2 + $0x68] sm:$0xff]
      %v1595 = vld [vmem:[%s2 + $0x70] sm:$0xff]
      %v1596 = vld [vmem:[%s2 + $0x78] sm:$0xff]
      %v1597 = vld [vmem:[%s2 + $0x80] sm:$0xff]
      %v1598 = vld [vmem:[%s2 + $0x88] sm:$0xff]
      %v1599 = vld [vmem:[%s2 + $0x90] sm:$0xff]
      %v1600 = vld [vmem:[%s2 + $0x98] sm:$0xff]
      %v1601 = vld [vmem:[%s2 + $0xa0] sm:$0xff]
      %v1602 = vld [vmem:[%s2 + $0xa8] sm:$0xff]
      %v1603 = vld [vmem:[%s2 + $0xb0] sm:$0xff]
      %v1604 = vld [vmem:[%s2 + $0xb8] sm:$0xff]
      %v1605 = vld [vmem:[%s2 + $0xc0] sm:$0xff]
      %v1606 = vld [vmem:[%s2 + $0xc8] sm:$0xff]
      %v1607 = vld [vmem:[%s2 + $0xd0] sm:$0xff]
      %v1608 = vld [vmem:[%s2 + $0xd8] sm:$0xff]
      %v1609 = vld [vmem:[%s2 + $0xe0] sm:$0xff]
      %v1610 = vld [vmem:[%s2 + $0xe8] sm:$0xff]
      %v1611 = vld [vmem:[%s2 + $0xf0] sm:$0xff]
      %v1612 = vld [vmem:[%s2 + $0xf8] sm:$0xff]
      %v1613 = vld [vmem:[%s7] sm:$0xf]
      %v1614 = vld [vmem:[%s7 + $0x4] sm:$0xf]
      %v1615 = vld [vmem:[%s7 + $0x8] sm:$0xf]
      %v1616 = vld [vmem:[%s7 + $0xc] sm:$0xf]
      %v1617 = vld [vmem:[%s1] sm:$0xff]
      %v1618 = vld [vmem:[%s1 + $0x8] sm:$0xff]
      %v1619 = vld [vmem:[%s1 + $0x10] sm:$0xff]
      %v1620 = vld [vmem:[%s1 + $0x18] sm:$0xff]
      %v1621 = vld [vmem:[%s1 + $0x20] sm:$0xff]
      %v1622 = vld [vmem:[%s1 + $0x28] sm:$0xff]
      %v1623 = vld [vmem:[%s1 + $0x30] sm:$0xff]
      %v1624 = vld [vmem:[%s1 + $0x38] sm:$0xff]
      %1633 = vrot.lane.b32.xlu0 %v1470, 96
      %v1634 = vpop.permute.xlu0 %1633
      %1635 = vrot.lane.b32.xlu0 %v1472, 96
      %v1636 = vpop.permute.xlu0 %1635
      %1637 = vrot.lane.b32.xlu0 %v1475, 96
      %v1638 = vpop.permute.xlu0 %1637
      %1639 = vrot.lane.b32.xlu0 %v1477, 96
      %v1640 = vpop.permute.xlu0 %1639
      %1641 = vrot.lane.b32.xlu0 %v1480, 96
      %v1642 = vpop.permute.xlu0 %1641
      %1643 = vrot.lane.b32.xlu0 %v1482, 96
      %v1644 = vpop.permute.xlu0 %1643
      %1645 = vrot.lane.b32.xlu0 %v1485, 96
      %v1646 = vpop.permute.xlu0 %1645
      %1647 = vrot.lane.b32.xlu0 %v1487, 96
      %v1648 = vpop.permute.xlu0 %1647
      %vm1649 = vcmask 64512
      %v1651 = vsel %vm1649, %v1549, 0
      %v1654 = vsel %vm1649, %v1550, 0
      %v1657 = vsel %vm1649, %v1551, 0
      %v1660 = vsel %vm1649, %v1552, 0
      %v1663 = vsel %vm1649, %v1553, 0
      %v1666 = vsel %vm1649, %v1554, 0
      %v1669 = vsel %vm1649, %v1555, 0
      %v1672 = vsel %vm1649, %v1556, 0
      %v1674 = vsel %vm1649, %v1634, 0
      %v1676 = vsel %vm1649, %v1636, 0
      %v1678 = vsel %vm1649, %v1638, 0
      %v1680 = vsel %vm1649, %v1640, 0
      %v1682 = vsel %vm1649, %v1642, 0
      %v1684 = vsel %vm1649, %v1644, 0
      %v1686 = vsel %vm1649, %v1646, 0
      %v1688 = vsel %vm1649, %v1648, 0
      %1690 = vmatpush.xpose.msra.mxu0 0.0
      %1691 = vmatpush.xpose.msra.mxu0 0.0
      %1692 = vmatpush.xpose.msra.mxu0 0.0
      %1693 = vmatpush.xpose.msra.mxu0 0.0
      %1694 = vmatpush.xpose.msra.mxu0 0.0
      %1695 = vmatpush.xpose.msra.mxu0 0.0
      %1696 = vmatpush.xpose.msra.mxu0 0.0
      %1697 = vmatpush.xpose.msra.mxu0 0.0
      %1698 = vmatpush.xpose.msra.mxu0 %v1688
      %1699 = vmatpush.xpose.msra.mxu0 %v1686
      %1700 = vmatpush.xpose.msra.mxu0 %v1684
      %1701 = vmatpush.xpose.msra.mxu0 %v1682
      %1702 = vmatpush.xpose.msra.mxu0 %v1680
      %1703 = vmatpush.xpose.msra.mxu0 %v1678
      %1704 = vmatpush.xpose.msra.mxu0 %v1676
      %1705 = vmatpush.xpose.msra.mxu0 %v1674
      %1706 = vmatmul.f32.gmra.mxu0 %v1651
      %v1707 = vpop.f32.mrf.mxu0
      %v1708 = vadd.f32 %v1617, %v1707
      %1709 = vmatmul.f32.gmra.mxu0 %v1654
      %v1710 = vpop.f32.mrf.mxu0
      %v1711 = vadd.f32 %v1618, %v1710
      %1712 = vmatmul.f32.gmra.mxu0 %v1657
      %v1713 = vpop.f32.mrf.mxu0
      %v1714 = vadd.f32 %v1619, %v1713
      %1715 = vmatmul.f32.gmra.mxu0 %v1660
      %v1716 = vpop.f32.mrf.mxu0
      %v1717 = vadd.f32 %v1620, %v1716
      %1718 = vmatmul.f32.gmra.mxu0 %v1663
      %v1719 = vpop.f32.mrf.mxu0
      %v1720 = vadd.f32 %v1621, %v1719
      %1721 = vmatmul.f32.gmra.mxu0 %v1666
      %v1722 = vpop.f32.mrf.mxu0
      %v1723 = vadd.f32 %v1622, %v1722
      %1724 = vmatmul.f32.gmra.mxu0 %v1669
      %v1725 = vpop.f32.mrf.mxu0
      %v1726 = vadd.f32 %v1623, %v1725
      %1727 = vmatmul.f32.gmra.mxu0 %v1672
      %v1728 = vpop.f32.mrf.mxu0
      %v1729 = vadd.f32 %v1624, %v1728
      %1730 = vdwg.mxu0
      %1739 = vrot.lane.b32.xlu0 %v1490, 96
      %v1740 = vpop.permute.xlu0 %1739
      %1741 = vrot.lane.b32.xlu0 %v1492, 96
      %v1742 = vpop.permute.xlu0 %1741
      %1743 = vrot.lane.b32.xlu0 %v1495, 96
      %v1744 = vpop.permute.xlu0 %1743
      %1745 = vrot.lane.b32.xlu0 %v1497, 96
      %v1746 = vpop.permute.xlu0 %1745
      %1747 = vrot.lane.b32.xlu0 %v1500, 96
      %v1748 = vpop.permute.xlu0 %1747
      %1749 = vrot.lane.b32.xlu0 %v1502, 96
      %v1750 = vpop.permute.xlu0 %1749
      %1751 = vrot.lane.b32.xlu0 %v1505, 96
      %v1752 = vpop.permute.xlu0 %1751
      %1753 = vrot.lane.b32.xlu0 %v1507, 96
      %v1754 = vpop.permute.xlu0 %1753
      %v1756 = vsel %vm1649, %v1557, 0
      %v1759 = vsel %vm1649, %v1558, 0
      %v1762 = vsel %vm1649, %v1559, 0
      %v1765 = vsel %vm1649, %v1560, 0
      %v1768 = vsel %vm1649, %v1561, 0
      %v1771 = vsel %vm1649, %v1562, 0
      %v1774 = vsel %vm1649, %v1563, 0
      %v1777 = vsel %vm1649, %v1564, 0
      %v1779 = vsel %vm1649, %v1740, 0
      %v1781 = vsel %vm1649, %v1742, 0
      %v1783 = vsel %vm1649, %v1744, 0
      %v1785 = vsel %vm1649, %v1746, 0
      %v1787 = vsel %vm1649, %v1748, 0
      %v1789 = vsel %vm1649, %v1750, 0
      %v1791 = vsel %vm1649, %v1752, 0
      %v1793 = vsel %vm1649, %v1754, 0
      %1795 = vmatpush.xpose.msra.mxu0 0.0
      %1796 = vmatpush.xpose.msra.mxu0 0.0
      %1797 = vmatpush.xpose.msra.mxu0 0.0
      %1798 = vmatpush.xpose.msra.mxu0 0.0
      %1799 = vmatpush.xpose.msra.mxu0 0.0
      %1800 = vmatpush.xpose.msra.mxu0 0.0
      %1801 = vmatpush.xpose.msra.mxu0 0.0
      %1802 = vmatpush.xpose.msra.mxu0 0.0
      %1803 = vmatpush.xpose.msra.mxu0 %v1793
      %1804 = vmatpush.xpose.msra.mxu0 %v1791
      %1805 = vmatpush.xpose.msra.mxu0 %v1789
      %1806 = vmatpush.xpose.msra.mxu0 %v1787
      %1807 = vmatpush.xpose.msra.mxu0 %v1785
      %1808 = vmatpush.xpose.msra.mxu0 %v1783
      %1809 = vmatpush.xpose.msra.mxu0 %v1781
      %1810 = vmatpush.xpose.msra.mxu0 %v1779
      %1811 = vmatmul.f32.gmra.mxu0 %v1756
      %v1812 = vpop.f32.mrf.mxu0
      %v1813 = vadd.f32 %v1617, %v1812
      %1814 = vmatmul.f32.gmra.mxu0 %v1759
      %v1815 = vpop.f32.mrf.mxu0
      %v1816 = vadd.f32 %v1618, %v1815
      %1817 = vmatmul.f32.gmra.mxu0 %v1762
      %v1818 = vpop.f32.mrf.mxu0
      %v1819 = vadd.f32 %v1619, %v1818
      %1820 = vmatmul.f32.gmra.mxu0 %v1765
      %v1821 = vpop.f32.mrf.mxu0
      %v1822 = vadd.f32 %v1620, %v1821
      %1823 = vmatmul.f32.gmra.mxu0 %v1768
      %v1824 = vpop.f32.mrf.mxu0
      %v1825 = vadd.f32 %v1621, %v1824
      %1826 = vmatmul.f32.gmra.mxu0 %v1771
      %v1827 = vpop.f32.mrf.mxu0
      %v1828 = vadd.f32 %v1622, %v1827
      %1829 = vmatmul.f32.gmra.mxu0 %v1774
      %v1830 = vpop.f32.mrf.mxu0
      %v1831 = vadd.f32 %v1623, %v1830
      %1832 = vmatmul.f32.gmra.mxu0 %v1777
      %v1833 = vpop.f32.mrf.mxu0
      %v1834 = vadd.f32 %v1624, %v1833
      %1835 = vdwg.mxu0
      %1844 = vrot.lane.b32.xlu0 %v1510, 96
      %v1845 = vpop.permute.xlu0 %1844
      %1846 = vrot.lane.b32.xlu0 %v1512, 96
      %v1847 = vpop.permute.xlu0 %1846
      %1848 = vrot.lane.b32.xlu0 %v1515, 96
      %v1849 = vpop.permute.xlu0 %1848
      %1850 = vrot.lane.b32.xlu0 %v1517, 96
      %v1851 = vpop.permute.xlu0 %1850
      %1852 = vrot.lane.b32.xlu0 %v1520, 96
      %v1853 = vpop.permute.xlu0 %1852
      %1854 = vrot.lane.b32.xlu0 %v1522, 96
      %v1855 = vpop.permute.xlu0 %1854
      %1856 = vrot.lane.b32.xlu0 %v1525, 96
      %v1857 = vpop.permute.xlu0 %1856
      %1858 = vrot.lane.b32.xlu0 %v1527, 96
      %v1859 = vpop.permute.xlu0 %1858
      %v1861 = vsel %vm1649, %v1565, 0
      %v1864 = vsel %vm1649, %v1566, 0
      %v1867 = vsel %vm1649, %v1567, 0
      %v1870 = vsel %vm1649, %v1568, 0
      %v1873 = vsel %vm1649, %v1569, 0
      %v1876 = vsel %vm1649, %v1570, 0
      %v1879 = vsel %vm1649, %v1571, 0
      %v1882 = vsel %vm1649, %v1572, 0
      %v1884 = vsel %vm1649, %v1845, 0
      %v1886 = vsel %vm1649, %v1847, 0
      %v1888 = vsel %vm1649, %v1849, 0
      %v1890 = vsel %vm1649, %v1851, 0
      %v1892 = vsel %vm1649, %v1853, 0
      %v1894 = vsel %vm1649, %v1855, 0
      %v1896 = vsel %vm1649, %v1857, 0
      %v1898 = vsel %vm1649, %v1859, 0
      %1900 = vmatpush.xpose.msra.mxu0 0.0
      %1901 = vmatpush.xpose.msra.mxu0 0.0
      %1902 = vmatpush.xpose.msra.mxu0 0.0
      %1903 = vmatpush.xpose.msra.mxu0 0.0
      %1904 = vmatpush.xpose.msra.mxu0 0.0
      %1905 = vmatpush.xpose.msra.mxu0 0.0
      %1906 = vmatpush.xpose.msra.mxu0 0.0
      %1907 = vmatpush.xpose.msra.mxu0 0.0
      %1908 = vmatpush.xpose.msra.mxu0 %v1898
      %1909 = vmatpush.xpose.msra.mxu0 %v1896
      %1910 = vmatpush.xpose.msra.mxu0 %v1894
      %1911 = vmatpush.xpose.msra.mxu0 %v1892
      %1912 = vmatpush.xpose.msra.mxu0 %v1890
      %1913 = vmatpush.xpose.msra.mxu0 %v1888
      %1914 = vmatpush.xpose.msra.mxu0 %v1886
      %1915 = vmatpush.xpose.msra.mxu0 %v1884
      %1916 = vmatmul.f32.gmra.mxu0 %v1861
      %v1917 = vpop.f32.mrf.mxu0
      %v1918 = vadd.f32 %v1617, %v1917
      %1919 = vmatmul.f32.gmra.mxu0 %v1864
      %v1920 = vpop.f32.mrf.mxu0
      %v1921 = vadd.f32 %v1618, %v1920
      %1922 = vmatmul.f32.gmra.mxu0 %v1867
      %v1923 = vpop.f32.mrf.mxu0
      %v1924 = vadd.f32 %v1619, %v1923
      %1925 = vmatmul.f32.gmra.mxu0 %v1870
      %v1926 = vpop.f32.mrf.mxu0
      %v1927 = vadd.f32 %v1620, %v1926
      %1928 = vmatmul.f32.gmra.mxu0 %v1873
      %v1929 = vpop.f32.mrf.mxu0
      %v1930 = vadd.f32 %v1621, %v1929
      %1931 = vmatmul.f32.gmra.mxu0 %v1876
      %v1932 = vpop.f32.mrf.mxu0
      %v1933 = vadd.f32 %v1622, %v1932
      %1934 = vmatmul.f32.gmra.mxu0 %v1879
      %v1935 = vpop.f32.mrf.mxu0
      %v1936 = vadd.f32 %v1623, %v1935
      %1937 = vmatmul.f32.gmra.mxu0 %v1882
      %v1938 = vpop.f32.mrf.mxu0
      %v1939 = vadd.f32 %v1624, %v1938
      %1940 = vdwg.mxu0
      %1949 = vrot.lane.b32.xlu0 %v1530, 96
      %v1950 = vpop.permute.xlu0 %1949
      %1951 = vrot.lane.b32.xlu0 %v1532, 96
      %v1952 = vpop.permute.xlu0 %1951
      %1953 = vrot.lane.b32.xlu0 %v1535, 96
      %v1954 = vpop.permute.xlu0 %1953
      %1955 = vrot.lane.b32.xlu0 %v1537, 96
      %v1956 = vpop.permute.xlu0 %1955
      %1957 = vrot.lane.b32.xlu0 %v1540, 96
      %v1958 = vpop.permute.xlu0 %1957
      %1959 = vrot.lane.b32.xlu0 %v1542, 96
      %v1960 = vpop.permute.xlu0 %1959
      %1961 = vrot.lane.b32.xlu0 %v1545, 96
      %v1962 = vpop.permute.xlu0 %1961
      %1963 = vrot.lane.b32.xlu0 %v1547, 96
      %v1964 = vpop.permute.xlu0 %1963
      %v1966 = vsel %vm1649, %v1573, 0
      %v1969 = vsel %vm1649, %v1574, 0
      %v1972 = vsel %vm1649, %v1575, 0
      %v1975 = vsel %vm1649, %v1576, 0
      %v1978 = vsel %vm1649, %v1577, 0
      %v1981 = vsel %vm1649, %v1578, 0
      %v1984 = vsel %vm1649, %v1579, 0
      %v1987 = vsel %vm1649, %v1580, 0
      %v1989 = vsel %vm1649, %v1950, 0
      %v1991 = vsel %vm1649, %v1952, 0
      %v1993 = vsel %vm1649, %v1954, 0
      %v1995 = vsel %vm1649, %v1956, 0
      %v1997 = vsel %vm1649, %v1958, 0
      %v1999 = vsel %vm1649, %v1960, 0
      %v2001 = vsel %vm1649, %v1962, 0
      %v2003 = vsel %vm1649, %v1964, 0
      %2005 = vmatpush.xpose.msra.mxu0 0.0
      %2006 = vmatpush.xpose.msra.mxu0 0.0
      %2007 = vmatpush.xpose.msra.mxu0 0.0
      %2008 = vmatpush.xpose.msra.mxu0 0.0
      %2009 = vmatpush.xpose.msra.mxu0 0.0
      %2010 = vmatpush.xpose.msra.mxu0 0.0
      %2011 = vmatpush.xpose.msra.mxu0 0.0
      %2012 = vmatpush.xpose.msra.mxu0 0.0
      %2013 = vmatpush.xpose.msra.mxu0 %v2003
      %2014 = vmatpush.xpose.msra.mxu0 %v2001
      %2015 = vmatpush.xpose.msra.mxu0 %v1999
      %2016 = vmatpush.xpose.msra.mxu0 %v1997
      %2017 = vmatpush.xpose.msra.mxu0 %v1995
      %2018 = vmatpush.xpose.msra.mxu0 %v1993
      %2019 = vmatpush.xpose.msra.mxu0 %v1991
      %2020 = vmatpush.xpose.msra.mxu0 %v1989
      %2021 = vmatmul.f32.gmra.mxu0 %v1966
      %v2022 = vpop.f32.mrf.mxu0
      %v2023 = vadd.f32 %v1617, %v2022
      %2024 = vmatmul.f32.gmra.mxu0 %v1969
      %v2025 = vpop.f32.mrf.mxu0
      %v2026 = vadd.f32 %v1618, %v2025
      %2027 = vmatmul.f32.gmra.mxu0 %v1972
      %v2028 = vpop.f32.mrf.mxu0
      %v2029 = vadd.f32 %v1619, %v2028
      %2030 = vmatmul.f32.gmra.mxu0 %v1975
      %v2031 = vpop.f32.mrf.mxu0
      %v2032 = vadd.f32 %v1620, %v2031
      %2033 = vmatmul.f32.gmra.mxu0 %v1978
      %v2034 = vpop.f32.mrf.mxu0
      %v2035 = vadd.f32 %v1621, %v2034
      %2036 = vmatmul.f32.gmra.mxu0 %v1981
      %v2037 = vpop.f32.mrf.mxu0
      %v2038 = vadd.f32 %v1622, %v2037
      %2039 = vmatmul.f32.gmra.mxu0 %v1984
      %v2040 = vpop.f32.mrf.mxu0
      %v2041 = vadd.f32 %v1623, %v2040
      %2042 = vmatmul.f32.gmra.mxu0 %v1987
      %v2043 = vpop.f32.mrf.mxu0
      %v2044 = vadd.f32 %v1624, %v2043
      %2045 = vdwg.mxu0
      %v2046 = vadd.f32 %v1708, %v1581
      %v2047 = vadd.f32 %v1711, %v1582
      %v2048 = vadd.f32 %v1714, %v1583
      %v2049 = vadd.f32 %v1717, %v1584
      %v2050 = vadd.f32 %v1720, %v1585
      %v2051 = vadd.f32 %v1723, %v1586
      %v2052 = vadd.f32 %v1726, %v1587
      %v2053 = vadd.f32 %v1729, %v1588
      %v2054 = vadd.f32 %v1813, %v1589
      %v2055 = vadd.f32 %v1816, %v1590
      %v2056 = vadd.f32 %v1819, %v1591
      %v2057 = vadd.f32 %v1822, %v1592
      %v2058 = vadd.f32 %v1825, %v1593
      %v2059 = vadd.f32 %v1828, %v1594
      %v2060 = vadd.f32 %v1831, %v1595
      %v2061 = vadd.f32 %v1834, %v1596
      %v2062 = vadd.f32 %v1918, %v1597
      %v2063 = vadd.f32 %v1921, %v1598
      %v2064 = vadd.f32 %v1924, %v1599
      %v2065 = vadd.f32 %v1927, %v1600
      %v2066 = vadd.f32 %v1930, %v1601
      %v2067 = vadd.f32 %v1933, %v1602
      %v2068 = vadd.f32 %v1936, %v1603
      %v2069 = vadd.f32 %v1939, %v1604
      %v2070 = vadd.f32 %v2023, %v1605
      %v2071 = vadd.f32 %v2026, %v1606
      %v2072 = vadd.f32 %v2029, %v1607
      %v2073 = vadd.f32 %v2032, %v1608
      %v2074 = vadd.f32 %v2035, %v1609
      %v2075 = vadd.f32 %v2038, %v1610
      %v2076 = vadd.f32 %v2041, %v1611
      %v2077 = vadd.f32 %v2044, %v1612
      %vm2078 = vcmask 523264
      %v2079 = vsel %vm2078, %v2046, -inf
      %2080 = vmax.xlane.f32.xlu0 %v2079
      %v2081 = vpop.xlane.xlu0 %2080
      %v2082 = vsel %vm2078, %v2047, -inf
      %2083 = vmax.xlane.f32.xlu0 %v2082
      %v2084 = vpop.xlane.xlu0 %2083
      %v2085 = vsel %vm2078, %v2048, -inf
      %2086 = vmax.xlane.f32.xlu0 %v2085
      %v2087 = vpop.xlane.xlu0 %2086
      %v2088 = vsel %vm2078, %v2049, -inf
      %2089 = vmax.xlane.f32.xlu0 %v2088
      %v2090 = vpop.xlane.xlu0 %2089
      %v2091 = vsel %vm2078, %v2050, -inf
      %2092 = vmax.xlane.f32.xlu0 %v2091
      %v2093 = vpop.xlane.xlu0 %2092
      %v2094 = vsel %vm2078, %v2051, -inf
      %2095 = vmax.xlane.f32.xlu0 %v2094
      %v2096 = vpop.xlane.xlu0 %2095
      %v2097 = vsel %vm2078, %v2052, -inf
      %2098 = vmax.xlane.f32.xlu0 %v2097
      %v2099 = vpop.xlane.xlu0 %2098
      %v2100 = vsel %vm2078, %v2053, -inf
      %2101 = vmax.xlane.f32.xlu0 %v2100
      %v2102 = vpop.xlane.xlu0 %2101
      %v2103 = vsel %vm2078, %v2054, -inf
      %2104 = vmax.xlane.f32.xlu0 %v2103
      %v2105 = vpop.xlane.xlu0 %2104
      %v2106 = vsel %vm2078, %v2055, -inf
      %2107 = vmax.xlane.f32.xlu0 %v2106
      %v2108 = vpop.xlane.xlu0 %2107
      %v2109 = vsel %vm2078, %v2056, -inf
      %2110 = vmax.xlane.f32.xlu0 %v2109
      %v2111 = vpop.xlane.xlu0 %2110
      %v2112 = vsel %vm2078, %v2057, -inf
      %2113 = vmax.xlane.f32.xlu0 %v2112
      %v2114 = vpop.xlane.xlu0 %2113
      %v2115 = vsel %vm2078, %v2058, -inf
      %2116 = vmax.xlane.f32.xlu0 %v2115
      %v2117 = vpop.xlane.xlu0 %2116
      %v2118 = vsel %vm2078, %v2059, -inf
      %2119 = vmax.xlane.f32.xlu0 %v2118
      %v2120 = vpop.xlane.xlu0 %2119
      %v2121 = vsel %vm2078, %v2060, -inf
      %2122 = vmax.xlane.f32.xlu0 %v2121
      %v2123 = vpop.xlane.xlu0 %2122
      %v2124 = vsel %vm2078, %v2061, -inf
      %2125 = vmax.xlane.f32.xlu0 %v2124
      %v2126 = vpop.xlane.xlu0 %2125
      %v2127 = vsel %vm2078, %v2062, -inf
      %2128 = vmax.xlane.f32.xlu0 %v2127
      %v2129 = vpop.xlane.xlu0 %2128
      %v2130 = vsel %vm2078, %v2063, -inf
      %2131 = vmax.xlane.f32.xlu0 %v2130
      %v2132 = vpop.xlane.xlu0 %2131
      %v2133 = vsel %vm2078, %v2064, -inf
      %2134 = vmax.xlane.f32.xlu0 %v2133
      %v2135 = vpop.xlane.xlu0 %2134
      %v2136 = vsel %vm2078, %v2065, -inf
      %2137 = vmax.xlane.f32.xlu0 %v2136
      %v2138 = vpop.xlane.xlu0 %2137
      %v2139 = vsel %vm2078, %v2066, -inf
      %2140 = vmax.xlane.f32.xlu0 %v2139
      %v2141 = vpop.xlane.xlu0 %2140
      %v2142 = vsel %vm2078, %v2067, -inf
      %2143 = vmax.xlane.f32.xlu0 %v2142
      %v2144 = vpop.xlane.xlu0 %2143
      %v2145 = vsel %vm2078, %v2068, -inf
      %2146 = vmax.xlane.f32.xlu0 %v2145
      %v2147 = vpop.xlane.xlu0 %2146
      %v2148 = vsel %vm2078, %v2069, -inf
      %2149 = vmax.xlane.f32.xlu0 %v2148
      %v2150 = vpop.xlane.xlu0 %2149
      %v2151 = vsel %vm2078, %v2070, -inf
      %2152 = vmax.xlane.f32.xlu0 %v2151
      %v2153 = vpop.xlane.xlu0 %2152
      %v2154 = vsel %vm2078, %v2071, -inf
      %2155 = vmax.xlane.f32.xlu0 %v2154
      %v2156 = vpop.xlane.xlu0 %2155
      %v2157 = vsel %vm2078, %v2072, -inf
      %2158 = vmax.xlane.f32.xlu0 %v2157
      %v2159 = vpop.xlane.xlu0 %2158
      %v2160 = vsel %vm2078, %v2073, -inf
      %2161 = vmax.xlane.f32.xlu0 %v2160
      %v2162 = vpop.xlane.xlu0 %2161
      %v2163 = vsel %vm2078, %v2074, -inf
      %2164 = vmax.xlane.f32.xlu0 %v2163
      %v2165 = vpop.xlane.xlu0 %2164
      %v2166 = vsel %vm2078, %v2075, -inf
      %2167 = vmax.xlane.f32.xlu0 %v2166
      %v2168 = vpop.xlane.xlu0 %2167
      %v2169 = vsel %vm2078, %v2076, -inf
      %2170 = vmax.xlane.f32.xlu0 %v2169
      %v2171 = vpop.xlane.xlu0 %2170
      %v2172 = vsel %vm2078, %v2077, -inf
      %2173 = vmax.xlane.f32.xlu0 %v2172
      %v2174 = vpop.xlane.xlu0 %2173
      %v2175 = vsub.f32 %v2046, %v2081
      %v2176 = vsub.f32 %v2047, %v2084
      %v2177 = vsub.f32 %v2048, %v2087
      %v2178 = vsub.f32 %v2049, %v2090
      %v2179 = vsub.f32 %v2050, %v2093
      %v2180 = vsub.f32 %v2051, %v2096
      %v2181 = vsub.f32 %v2052, %v2099
      %v2182 = vsub.f32 %v2053, %v2102
      %v2183 = vsub.f32 %v2054, %v2105
      %v2184 = vsub.f32 %v2055, %v2108
      %v2185 = vsub.f32 %v2056, %v2111
      %v2186 = vsub.f32 %v2057, %v2114
      %v2187 = vsub.f32 %v2058, %v2117
      %v2188 = vsub.f32 %v2059, %v2120
      %v2189 = vsub.f32 %v2060, %v2123
      %v2190 = vsub.f32 %v2061, %v2126
      %v2191 = vsub.f32 %v2062, %v2129
      %v2192 = vsub.f32 %v2063, %v2132
      %v2193 = vsub.f32 %v2064, %v2135
      %v2194 = vsub.f32 %v2065, %v2138
      %v2195 = vsub.f32 %v2066, %v2141
      %v2196 = vsub.f32 %v2067, %v2144
      %v2197 = vsub.f32 %v2068, %v2147
      %v2198 = vsub.f32 %v2069, %v2150
      %v2199 = vsub.f32 %v2070, %v2153
      %v2200 = vsub.f32 %v2071, %v2156
      %v2201 = vsub.f32 %v2072, %v2159
      %v2202 = vsub.f32 %v2073, %v2162
      %v2203 = vsub.f32 %v2074, %v2165
      %v2204 = vsub.f32 %v2075, %v2168
      %v2205 = vsub.f32 %v2076, %v2171
      %v2206 = vsub.f32 %v2077, %v2174
      %v2207 = vmul.f32 %v2175, 1.442695
      %v2208 = vpow.pop %v2207
      %v2209 = vmul.f32 %v2176, 1.442695
      %v2210 = vpow.pop %v2209
      %v2211 = vmul.f32 %v2177, 1.442695
      %v2212 = vpow.pop %v2211
      %v2213 = vmul.f32 %v2178, 1.442695
      %v2214 = vpow.pop %v2213
      %v2215 = vmul.f32 %v2179, 1.442695
      %v2216 = vpow.pop %v2215
      %v2217 = vmul.f32 %v2180, 1.442695
      %v2218 = vpow.pop %v2217
      %v2219 = vmul.f32 %v2181, 1.442695
      %v2220 = vpow.pop %v2219
      %v2221 = vmul.f32 %v2182, 1.442695
      %v2222 = vpow.pop %v2221
      %v2223 = vmul.f32 %v2183, 1.442695
      %v2224 = vpow.pop %v2223
      %v2225 = vmul.f32 %v2184, 1.442695
      %v2226 = vpow.pop %v2225
      %v2227 = vmul.f32 %v2185, 1.442695
      %v2228 = vpow.pop %v2227
      %v2229 = vmul.f32 %v2186, 1.442695
      %v2230 = vpow.pop %v2229
      %v2231 = vmul.f32 %v2187, 1.442695
      %v2232 = vpow.pop %v2231
      %v2233 = vmul.f32 %v2188, 1.442695
      %v2234 = vpow.pop %v2233
      %v2235 = vmul.f32 %v2189, 1.442695
      %v2236 = vpow.pop %v2235
      %v2237 = vmul.f32 %v2190, 1.442695
      %v2238 = vpow.pop %v2237
      %v2239 = vmul.f32 %v2191, 1.442695
      %v2240 = vpow.pop %v2239
      %v2241 = vmul.f32 %v2192, 1.442695
      %v2242 = vpow.pop %v2241
      %v2243 = vmul.f32 %v2193, 1.442695
      %v2244 = vpow.pop %v2243
      %v2245 = vmul.f32 %v2194, 1.442695
      %v2246 = vpow.pop %v2245
      %v2247 = vmul.f32 %v2195, 1.442695
      %v2248 = vpow.pop %v2247
      %v2249 = vmul.f32 %v2196, 1.442695
      %v2250 = vpow.pop %v2249
      %v2251 = vmul.f32 %v2197, 1.442695
      %v2252 = vpow.pop %v2251
      %v2253 = vmul.f32 %v2198, 1.442695
      %v2254 = vpow.pop %v2253
      %v2255 = vmul.f32 %v2199, 1.442695
      %v2256 = vpow.pop %v2255
      %v2257 = vmul.f32 %v2200, 1.442695
      %v2258 = vpow.pop %v2257
      %v2259 = vmul.f32 %v2201, 1.442695
      %v2260 = vpow.pop %v2259
      %v2261 = vmul.f32 %v2202, 1.442695
      %v2262 = vpow.pop %v2261
      %v2263 = vmul.f32 %v2203, 1.442695
      %v2264 = vpow.pop %v2263
      %v2265 = vmul.f32 %v2204, 1.442695
      %v2266 = vpow.pop %v2265
      %v2267 = vmul.f32 %v2205, 1.442695
      %v2268 = vpow.pop %v2267
      %v2269 = vmul.f32 %v2206, 1.442695
      %v2270 = vpow.pop %v2269
      %v2271 = vsel %vm2078, %v2208, 0.0
      %2272 = vadd.xlane.f32.xlu0 %v2271
      %v2273 = vpop.xlane.xlu0 %2272
      %v2274 = vsel %vm2078, %v2210, 0.0
      %2275 = vadd.xlane.f32.xlu0 %v2274
      %v2276 = vpop.xlane.xlu0 %2275
      %v2277 = vsel %vm2078, %v2212, 0.0
      %2278 = vadd.xlane.f32.xlu0 %v2277
      %v2279 = vpop.xlane.xlu0 %2278
      %v2280 = vsel %vm2078, %v2214, 0.0
      %2281 = vadd.xlane.f32.xlu0 %v2280
      %v2282 = vpop.xlane.xlu0 %2281
      %v2283 = vsel %vm2078, %v2216, 0.0
      %2284 = vadd.xlane.f32.xlu0 %v2283
      %v2285 = vpop.xlane.xlu0 %2284
      %v2286 = vsel %vm2078, %v2218, 0.0
      %2287 = vadd.xlane.f32.xlu0 %v2286
      %v2288 = vpop.xlane.xlu0 %2287
      %v2289 = vsel %vm2078, %v2220, 0.0
      %2290 = vadd.xlane.f32.xlu0 %v2289
      %v2291 = vpop.xlane.xlu0 %2290
      %v2292 = vsel %vm2078, %v2222, 0.0
      %2293 = vadd.xlane.f32.xlu0 %v2292
      %v2294 = vpop.xlane.xlu0 %2293
      %v2295 = vsel %vm2078, %v2224, 0.0
      %2296 = vadd.xlane.f32.xlu0 %v2295
      %v2297 = vpop.xlane.xlu0 %2296
      %v2298 = vsel %vm2078, %v2226, 0.0
      %2299 = vadd.xlane.f32.xlu0 %v2298
      %v2300 = vpop.xlane.xlu0 %2299
      %v2301 = vsel %vm2078, %v2228, 0.0
      %2302 = vadd.xlane.f32.xlu0 %v2301
      %v2303 = vpop.xlane.xlu0 %2302
      %v2304 = vsel %vm2078, %v2230, 0.0
      %2305 = vadd.xlane.f32.xlu0 %v2304
      %v2306 = vpop.xlane.xlu0 %2305
      %v2307 = vsel %vm2078, %v2232, 0.0
      %2308 = vadd.xlane.f32.xlu0 %v2307
      %v2309 = vpop.xlane.xlu0 %2308
      %v2310 = vsel %vm2078, %v2234, 0.0
      %2311 = vadd.xlane.f32.xlu0 %v2310
      %v2312 = vpop.xlane.xlu0 %2311
      %v2313 = vsel %vm2078, %v2236, 0.0
      %2314 = vadd.xlane.f32.xlu0 %v2313
      %v2315 = vpop.xlane.xlu0 %2314
      %v2316 = vsel %vm2078, %v2238, 0.0
      %2317 = vadd.xlane.f32.xlu0 %v2316
      %v2318 = vpop.xlane.xlu0 %2317
      %v2319 = vsel %vm2078, %v2240, 0.0
      %2320 = vadd.xlane.f32.xlu0 %v2319
      %v2321 = vpop.xlane.xlu0 %2320
      %v2322 = vsel %vm2078, %v2242, 0.0
      %2323 = vadd.xlane.f32.xlu0 %v2322
      %v2324 = vpop.xlane.xlu0 %2323
      %v2325 = vsel %vm2078, %v2244, 0.0
      %2326 = vadd.xlane.f32.xlu0 %v2325
      %v2327 = vpop.xlane.xlu0 %2326
      %v2328 = vsel %vm2078, %v2246, 0.0
      %2329 = vadd.xlane.f32.xlu0 %v2328
      %v2330 = vpop.xlane.xlu0 %2329
      %v2331 = vsel %vm2078, %v2248, 0.0
      %2332 = vadd.xlane.f32.xlu0 %v2331
      %v2333 = vpop.xlane.xlu0 %2332
      %v2334 = vsel %vm2078, %v2250, 0.0
      %2335 = vadd.xlane.f32.xlu0 %v2334
      %v2336 = vpop.xlane.xlu0 %2335
      %v2337 = vsel %vm2078, %v2252, 0.0
      %2338 = vadd.xlane.f32.xlu0 %v2337
      %v2339 = vpop.xlane.xlu0 %2338
      %v2340 = vsel %vm2078, %v2254, 0.0
      %2341 = vadd.xlane.f32.xlu0 %v2340
      %v2342 = vpop.xlane.xlu0 %2341
      %v2343 = vsel %vm2078, %v2256, 0.0
      %2344 = vadd.xlane.f32.xlu0 %v2343
      %v2345 = vpop.xlane.xlu0 %2344
      %v2346 = vsel %vm2078, %v2258, 0.0
      %2347 = vadd.xlane.f32.xlu0 %v2346
      %v2348 = vpop.xlane.xlu0 %2347
      %v2349 = vsel %vm2078, %v2260, 0.0
      %2350 = vadd.xlane.f32.xlu0 %v2349
      %v2351 = vpop.xlane.xlu0 %2350
      %v2352 = vsel %vm2078, %v2262, 0.0
      %2353 = vadd.xlane.f32.xlu0 %v2352
      %v2354 = vpop.xlane.xlu0 %2353
      %v2355 = vsel %vm2078, %v2264, 0.0
      %2356 = vadd.xlane.f32.xlu0 %v2355
      %v2357 = vpop.xlane.xlu0 %2356
      %v2358 = vsel %vm2078, %v2266, 0.0
      %2359 = vadd.xlane.f32.xlu0 %v2358
      %v2360 = vpop.xlane.xlu0 %2359
      %v2361 = vsel %vm2078, %v2268, 0.0
      %2362 = vadd.xlane.f32.xlu0 %v2361
      %v2363 = vpop.xlane.xlu0 %2362
      %v2364 = vsel %vm2078, %v2270, 0.0
      %2365 = vadd.xlane.f32.xlu0 %v2364
      %v2366 = vpop.xlane.xlu0 %2365
      %v2367 = vrcp.pop %v2273
      %v2368 = vrcp.pop %v2276
      %v2369 = vrcp.pop %v2279
      %v2370 = vrcp.pop %v2282
      %v2371 = vrcp.pop %v2285
      %v2372 = vrcp.pop %v2288
      %v2373 = vrcp.pop %v2291
      %v2374 = vrcp.pop %v2294
      %v2375 = vrcp.pop %v2297
      %v2376 = vrcp.pop %v2300
      %v2377 = vrcp.pop %v2303
      %v2378 = vrcp.pop %v2306
      %v2379 = vrcp.pop %v2309
      %v2380 = vrcp.pop %v2312
      %v2381 = vrcp.pop %v2315
      %v2382 = vrcp.pop %v2318
      %v2383 = vrcp.pop %v2321
      %v2384 = vrcp.pop %v2324
      %v2385 = vrcp.pop %v2327
      %v2386 = vrcp.pop %v2330
      %v2387 = vrcp.pop %v2333
      %v2388 = vrcp.pop %v2336
      %v2389 = vrcp.pop %v2339
      %v2390 = vrcp.pop %v2342
      %v2391 = vrcp.pop %v2345
      %v2392 = vrcp.pop %v2348
      %v2393 = vrcp.pop %v2351
      %v2394 = vrcp.pop %v2354
      %v2395 = vrcp.pop %v2357
      %v2396 = vrcp.pop %v2360
      %v2397 = vrcp.pop %v2363
      %v2398 = vrcp.pop %v2366
      %v2399 = vmul.f32 %v2208, %v2367
      %v2400 = vmul.f32 %v2210, %v2368
      %v2401 = vmul.f32 %v2212, %v2369
      %v2402 = vmul.f32 %v2214, %v2370
      %v2403 = vmul.f32 %v2216, %v2371
      %v2404 = vmul.f32 %v2218, %v2372
      %v2405 = vmul.f32 %v2220, %v2373
      %v2406 = vmul.f32 %v2222, %v2374
      %v2407 = vmul.f32 %v2224, %v2375
      %v2408 = vmul.f32 %v2226, %v2376
      %v2409 = vmul.f32 %v2228, %v2377
      %v2410 = vmul.f32 %v2230, %v2378
      %v2411 = vmul.f32 %v2232, %v2379
      %v2412 = vmul.f32 %v2234, %v2380
      %v2413 = vmul.f32 %v2236, %v2381
      %v2414 = vmul.f32 %v2238, %v2382
      %v2415 = vmul.f32 %v2240, %v2383
      %v2416 = vmul.f32 %v2242, %v2384
      %v2417 = vmul.f32 %v2244, %v2385
      %v2418 = vmul.f32 %v2246, %v2386
      %v2419 = vmul.f32 %v2248, %v2387
      %v2420 = vmul.f32 %v2250, %v2388
      %v2421 = vmul.f32 %v2252, %v2389
      %v2422 = vmul.f32 %v2254, %v2390
      %v2423 = vmul.f32 %v2256, %v2391
      %v2424 = vmul.f32 %v2258, %v2392
      %v2425 = vmul.f32 %v2260, %v2393
      %v2426 = vmul.f32 %v2262, %v2394
      %v2427 = vmul.f32 %v2264, %v2395
      %v2428 = vmul.f32 %v2266, %v2396
      %v2429 = vmul.f32 %v2268, %v2397
      %v2430 = vmul.f32 %v2270, %v2398
      %2431 = vrot.lane.b32.xlu0 %v1470, 64
      %v2432 = vpop.permute.xlu0 %2431
      %2433 = vrot.lane.b32.xlu0 %v1472, 64
      %v2434 = vpop.permute.xlu0 %2433
      %2435 = vrot.lane.b32.xlu0 %v1475, 64
      %v2436 = vpop.permute.xlu0 %2435
      %2437 = vrot.lane.b32.xlu0 %v1477, 64
      %v2438 = vpop.permute.xlu0 %2437
      %2439 = vrot.lane.b32.xlu0 %v1480, 64
      %v2440 = vpop.permute.xlu0 %2439
      %2441 = vrot.lane.b32.xlu0 %v1482, 64
      %v2442 = vpop.permute.xlu0 %2441
      %2443 = vrot.lane.b32.xlu0 %v1485, 64
      %v2444 = vpop.permute.xlu0 %2443
      %2445 = vrot.lane.b32.xlu0 %v1487, 64
      %v2446 = vpop.permute.xlu0 %2445
      %v2456 = vsel %vm2078, %v2399, 0
      %v2459 = vsel %vm2078, %v2400, 0
      %v2462 = vsel %vm2078, %v2401, 0
      %v2465 = vsel %vm2078, %v2402, 0
      %v2468 = vsel %vm2078, %v2403, 0
      %v2471 = vsel %vm2078, %v2404, 0
      %v2474 = vsel %vm2078, %v2405, 0
      %v2477 = vsel %vm2078, %v2406, 0
      %2479 = vmatpush.msra.mxu0 0.0
      %2480 = vmatpush.msra.mxu0 0.0
      %2481 = vmatpush.msra.mxu0 0.0
      %2482 = vmatpush.msra.mxu0 0.0
      %2483 = vmatpush.msra.mxu0 0.0
      %2484 = vmatpush.msra.mxu0 0.0
      %2485 = vmatpush.msra.mxu0 0.0
      %2486 = vmatpush.msra.mxu0 0.0
      %2487 = vmatpush.msra.mxu0 %v2446
      %2488 = vmatpush.msra.mxu0 %v2444
      %2489 = vmatpush.msra.mxu0 %v2442
      %2490 = vmatpush.msra.mxu0 %v2440
      %2491 = vmatpush.msra.mxu0 %v2438
      %2492 = vmatpush.msra.mxu0 %v2436
      %2493 = vmatpush.msra.mxu0 %v2434
      %2494 = vmatpush.msra.mxu0 %v2432
      %2495 = vmatmul.f32.gmra.mxu0 %v2456
      %v2496 = vpop.f32.mrf.mxu0
      %v2497 = vadd.f32 0.0, %v2496
      %2498 = vmatmul.f32.gmra.mxu0 %v2459
      %v2499 = vpop.f32.mrf.mxu0
      %v2500 = vadd.f32 0.0, %v2499
      %2501 = vmatmul.f32.gmra.mxu0 %v2462
      %v2502 = vpop.f32.mrf.mxu0
      %v2503 = vadd.f32 0.0, %v2502
      %2504 = vmatmul.f32.gmra.mxu0 %v2465
      %v2505 = vpop.f32.mrf.mxu0
      %v2506 = vadd.f32 0.0, %v2505
      %2507 = vmatmul.f32.gmra.mxu0 %v2468
      %v2508 = vpop.f32.mrf.mxu0
      %v2509 = vadd.f32 0.0, %v2508
      %2510 = vmatmul.f32.gmra.mxu0 %v2471
      %v2511 = vpop.f32.mrf.mxu0
      %v2512 = vadd.f32 0.0, %v2511
      %2513 = vmatmul.f32.gmra.mxu0 %v2474
      %v2514 = vpop.f32.mrf.mxu0
      %v2515 = vadd.f32 0.0, %v2514
      %2516 = vmatmul.f32.gmra.mxu0 %v2477
      %v2517 = vpop.f32.mrf.mxu0
      %v2518 = vadd.f32 0.0, %v2517
      %2519 = vdwg.mxu0
      %2520 = vrot.lane.b32.xlu0 %v1490, 64
      %v2521 = vpop.permute.xlu0 %2520
      %2522 = vrot.lane.b32.xlu0 %v1492, 64
      %v2523 = vpop.permute.xlu0 %2522
      %2524 = vrot.lane.b32.xlu0 %v1495, 64
      %v2525 = vpop.permute.xlu0 %2524
      %2526 = vrot.lane.b32.xlu0 %v1497, 64
      %v2527 = vpop.permute.xlu0 %2526
      %2528 = vrot.lane.b32.xlu0 %v1500, 64
      %v2529 = vpop.permute.xlu0 %2528
      %2530 = vrot.lane.b32.xlu0 %v1502, 64
      %v2531 = vpop.permute.xlu0 %2530
      %2532 = vrot.lane.b32.xlu0 %v1505, 64
      %v2533 = vpop.permute.xlu0 %2532
      %2534 = vrot.lane.b32.xlu0 %v1507, 64
      %v2535 = vpop.permute.xlu0 %2534
      %v2545 = vsel %vm2078, %v2407, 0
      %v2548 = vsel %vm2078, %v2408, 0
      %v2551 = vsel %vm2078, %v2409, 0
      %v2554 = vsel %vm2078, %v2410, 0
      %v2557 = vsel %vm2078, %v2411, 0
      %v2560 = vsel %vm2078, %v2412, 0
      %v2563 = vsel %vm2078, %v2413, 0
      %v2566 = vsel %vm2078, %v2414, 0
      %2568 = vmatpush.msra.mxu0 0.0
      %2569 = vmatpush.msra.mxu0 0.0
      %2570 = vmatpush.msra.mxu0 0.0
      %2571 = vmatpush.msra.mxu0 0.0
      %2572 = vmatpush.msra.mxu0 0.0
      %2573 = vmatpush.msra.mxu0 0.0
      %2574 = vmatpush.msra.mxu0 0.0
      %2575 = vmatpush.msra.mxu0 0.0
      %2576 = vmatpush.msra.mxu0 %v2535
      %2577 = vmatpush.msra.mxu0 %v2533
      %2578 = vmatpush.msra.mxu0 %v2531
      %2579 = vmatpush.msra.mxu0 %v2529
      %2580 = vmatpush.msra.mxu0 %v2527
      %2581 = vmatpush.msra.mxu0 %v2525
      %2582 = vmatpush.msra.mxu0 %v2523
      %2583 = vmatpush.msra.mxu0 %v2521
      %2584 = vmatmul.f32.gmra.mxu0 %v2545
      %v2585 = vpop.f32.mrf.mxu0
      %v2586 = vadd.f32 0.0, %v2585
      %2587 = vmatmul.f32.gmra.mxu0 %v2548
      %v2588 = vpop.f32.mrf.mxu0
      %v2589 = vadd.f32 0.0, %v2588
      %2590 = vmatmul.f32.gmra.mxu0 %v2551
      %v2591 = vpop.f32.mrf.mxu0
      %v2592 = vadd.f32 0.0, %v2591
      %2593 = vmatmul.f32.gmra.mxu0 %v2554
      %v2594 = vpop.f32.mrf.mxu0
      %v2595 = vadd.f32 0.0, %v2594
      %2596 = vmatmul.f32.gmra.mxu0 %v2557
      %v2597 = vpop.f32.mrf.mxu0
      %v2598 = vadd.f32 0.0, %v2597
      %2599 = vmatmul.f32.gmra.mxu0 %v2560
      %v2600 = vpop.f32.mrf.mxu0
      %v2601 = vadd.f32 0.0, %v2600
      %2602 = vmatmul.f32.gmra.mxu0 %v2563
      %v2603 = vpop.f32.mrf.mxu0
      %v2604 = vadd.f32 0.0, %v2603
      %2605 = vmatmul.f32.gmra.mxu0 %v2566
      %v2606 = vpop.f32.mrf.mxu0
      %v2607 = vadd.f32 0.0, %v2606
      %2608 = vdwg.mxu0
      %2609 = vrot.lane.b32.xlu0 %v1510, 64
      %v2610 = vpop.permute.xlu0 %2609
      %2611 = vrot.lane.b32.xlu0 %v1512, 64
      %v2612 = vpop.permute.xlu0 %2611
      %2613 = vrot.lane.b32.xlu0 %v1515, 64
      %v2614 = vpop.permute.xlu0 %2613
      %2615 = vrot.lane.b32.xlu0 %v1517, 64
      %v2616 = vpop.permute.xlu0 %2615
      %2617 = vrot.lane.b32.xlu0 %v1520, 64
      %v2618 = vpop.permute.xlu0 %2617
      %2619 = vrot.lane.b32.xlu0 %v1522, 64
      %v2620 = vpop.permute.xlu0 %2619
      %2621 = vrot.lane.b32.xlu0 %v1525, 64
      %v2622 = vpop.permute.xlu0 %2621
      %2623 = vrot.lane.b32.xlu0 %v1527, 64
      %v2624 = vpop.permute.xlu0 %2623
      %v2634 = vsel %vm2078, %v2415, 0
      %v2637 = vsel %vm2078, %v2416, 0
      %v2640 = vsel %vm2078, %v2417, 0
      %v2643 = vsel %vm2078, %v2418, 0
      %v2646 = vsel %vm2078, %v2419, 0
      %v2649 = vsel %vm2078, %v2420, 0
      %v2652 = vsel %vm2078, %v2421, 0
      %v2655 = vsel %vm2078, %v2422, 0
      %2657 = vmatpush.msra.mxu0 0.0
      %2658 = vmatpush.msra.mxu0 0.0
      %2659 = vmatpush.msra.mxu0 0.0
      %2660 = vmatpush.msra.mxu0 0.0
      %2661 = vmatpush.msra.mxu0 0.0
      %2662 = vmatpush.msra.mxu0 0.0
      %2663 = vmatpush.msra.mxu0 0.0
      %2664 = vmatpush.msra.mxu0 0.0
      %2665 = vmatpush.msra.mxu0 %v2624
      %2666 = vmatpush.msra.mxu0 %v2622
      %2667 = vmatpush.msra.mxu0 %v2620
      %2668 = vmatpush.msra.mxu0 %v2618
      %2669 = vmatpush.msra.mxu0 %v2616
      %2670 = vmatpush.msra.mxu0 %v2614
      %2671 = vmatpush.msra.mxu0 %v2612
      %2672 = vmatpush.msra.mxu0 %v2610
      %2673 = vmatmul.f32.gmra.mxu0 %v2634
      %v2674 = vpop.f32.mrf.mxu0
      %v2675 = vadd.f32 0.0, %v2674
      %2676 = vmatmul.f32.gmra.mxu0 %v2637
      %v2677 = vpop.f32.mrf.mxu0
      %v2678 = vadd.f32 0.0, %v2677
      %2679 = vmatmul.f32.gmra.mxu0 %v2640
      %v2680 = vpop.f32.mrf.mxu0
      %v2681 = vadd.f32 0.0, %v2680
      %2682 = vmatmul.f32.gmra.mxu0 %v2643
      %v2683 = vpop.f32.mrf.mxu0
      %v2684 = vadd.f32 0.0, %v2683
      %2685 = vmatmul.f32.gmra.mxu0 %v2646
      %v2686 = vpop.f32.mrf.mxu0
      %v2687 = vadd.f32 0.0, %v2686
      %2688 = vmatmul.f32.gmra.mxu0 %v2649
      %v2689 = vpop.f32.mrf.mxu0
      %v2690 = vadd.f32 0.0, %v2689
      %2691 = vmatmul.f32.gmra.mxu0 %v2652
      %v2692 = vpop.f32.mrf.mxu0
      %v2693 = vadd.f32 0.0, %v2692
      %2694 = vmatmul.f32.gmra.mxu0 %v2655
      %v2695 = vpop.f32.mrf.mxu0
      %v2696 = vadd.f32 0.0, %v2695
      %2697 = vdwg.mxu0
      %2698 = vrot.lane.b32.xlu0 %v1530, 64
      %v2699 = vpop.permute.xlu0 %2698
      %2700 = vrot.lane.b32.xlu0 %v1532, 64
      %v2701 = vpop.permute.xlu0 %2700
      %2702 = vrot.lane.b32.xlu0 %v1535, 64
      %v2703 = vpop.permute.xlu0 %2702
      %2704 = vrot.lane.b32.xlu0 %v1537, 64
      %v2705 = vpop.permute.xlu0 %2704
      %2706 = vrot.lane.b32.xlu0 %v1540, 64
      %v2707 = vpop.permute.xlu0 %2706
      %2708 = vrot.lane.b32.xlu0 %v1542, 64
      %v2709 = vpop.permute.xlu0 %2708
      %2710 = vrot.lane.b32.xlu0 %v1545, 64
      %v2711 = vpop.permute.xlu0 %2710
      %2712 = vrot.lane.b32.xlu0 %v1547, 64
      %v2713 = vpop.permute.xlu0 %2712
      %v2723 = vsel %vm2078, %v2423, 0
      %v2726 = vsel %vm2078, %v2424, 0
      %v2729 = vsel %vm2078, %v2425, 0
      %v2732 = vsel %vm2078, %v2426, 0
      %v2735 = vsel %vm2078, %v2427, 0
      %v2738 = vsel %vm2078, %v2428, 0
      %v2741 = vsel %vm2078, %v2429, 0
      %v2744 = vsel %vm2078, %v2430, 0
      %2746 = vmatpush.msra.mxu0 0.0
      %2747 = vmatpush.msra.mxu0 0.0
      %2748 = vmatpush.msra.mxu0 0.0
      %2749 = vmatpush.msra.mxu0 0.0
      %2750 = vmatpush.msra.mxu0 0.0
      %2751 = vmatpush.msra.mxu0 0.0
      %2752 = vmatpush.msra.mxu0 0.0
      %2753 = vmatpush.msra.mxu0 0.0
      %2754 = vmatpush.msra.mxu0 %v2713
      %2755 = vmatpush.msra.mxu0 %v2711
      %2756 = vmatpush.msra.mxu0 %v2709
      %2757 = vmatpush.msra.mxu0 %v2707
      %2758 = vmatpush.msra.mxu0 %v2705
      %2759 = vmatpush.msra.mxu0 %v2703
      %2760 = vmatpush.msra.mxu0 %v2701
      %2761 = vmatpush.msra.mxu0 %v2699
      %2762 = vmatmul.f32.gmra.mxu0 %v2723
      %v2763 = vpop.f32.mrf.mxu0
      %v2764 = vadd.f32 0.0, %v2763
      %2765 = vmatmul.f32.gmra.mxu0 %v2726
      %v2766 = vpop.f32.mrf.mxu0
      %v2767 = vadd.f32 0.0, %v2766
      %2768 = vmatmul.f32.gmra.mxu0 %v2729
      %v2769 = vpop.f32.mrf.mxu0
      %v2770 = vadd.f32 0.0, %v2769
      %2771 = vmatmul.f32.gmra.mxu0 %v2732
      %v2772 = vpop.f32.mrf.mxu0
      %v2773 = vadd.f32 0.0, %v2772
      %2774 = vmatmul.f32.gmra.mxu0 %v2735
      %v2775 = vpop.f32.mrf.mxu0
      %v2776 = vadd.f32 0.0, %v2775
      %2777 = vmatmul.f32.gmra.mxu0 %v2738
      %v2778 = vpop.f32.mrf.mxu0
      %v2779 = vadd.f32 0.0, %v2778
      %2780 = vmatmul.f32.gmra.mxu0 %v2741
      %v2781 = vpop.f32.mrf.mxu0
      %v2782 = vadd.f32 0.0, %v2781
      %2783 = vmatmul.f32.gmra.mxu0 %v2744
      %v2784 = vpop.f32.mrf.mxu0
      %v2785 = vadd.f32 0.0, %v2784
      %2786 = vdwg.mxu0
      %v2787 = vpack.c.bf16 %v2500, %v2497
      %v2788 = vpack.c.bf16 %v2506, %v2503
      %v2789 = vpack.c.bf16 %v2512, %v2509
      %v2790 = vpack.c.bf16 %v2518, %v2515
      %v2791 = vpack.c.bf16 %v2589, %v2586
      %v2792 = vpack.c.bf16 %v2595, %v2592
      %v2793 = vpack.c.bf16 %v2601, %v2598
      %v2794 = vpack.c.bf16 %v2607, %v2604
      %v2795 = vpack.c.bf16 %v2678, %v2675
      %v2796 = vpack.c.bf16 %v2684, %v2681
      %v2797 = vpack.c.bf16 %v2690, %v2687
      %v2798 = vpack.c.bf16 %v2696, %v2693
      %v2799 = vpack.c.bf16 %v2767, %v2764
      %v2800 = vpack.c.bf16 %v2773, %v2770
      %v2801 = vpack.c.bf16 %v2779, %v2776
      %v2802 = vpack.c.bf16 %v2785, %v2782
      %s2803 = scalar_lea.vmem %s1, 64
      %v2804 = vld [vmem:[%s2803] sm:$0xff]
      %v2805 = vld [vmem:[%s2803 + $0x8] sm:$0xff]
      %v2806 = vld [vmem:[%s2803 + $0x10] sm:$0xff]
      %v2807 = vld [vmem:[%s2803 + $0x18] sm:$0xff]
      %v2808 = vld [vmem:[%s2803 + $0x20] sm:$0xff]
      %v2809 = vld [vmem:[%s2803 + $0x28] sm:$0xff]
      %v2810 = vld [vmem:[%s2803 + $0x30] sm:$0xff]
      %v2811 = vld [vmem:[%s2803 + $0x38] sm:$0xff]
      %2812 = vrot.lane.b32.xlu0 %v1549, 120
      %v2813 = vpop.permute.xlu0 %2812
      %2814 = vrot.lane.b32.xlu0 %v1550, 120
      %v2815 = vpop.permute.xlu0 %2814
      %2816 = vrot.lane.b32.xlu0 %v1551, 120
      %v2817 = vpop.permute.xlu0 %2816
      %2818 = vrot.lane.b32.xlu0 %v1552, 120
      %v2819 = vpop.permute.xlu0 %2818
      %2820 = vrot.lane.b32.xlu0 %v1553, 120
      %v2821 = vpop.permute.xlu0 %2820
      %2822 = vrot.lane.b32.xlu0 %v1554, 120
      %v2823 = vpop.permute.xlu0 %2822
      %2824 = vrot.lane.b32.xlu0 %v1555, 120
      %v2825 = vpop.permute.xlu0 %2824
      %2826 = vrot.lane.b32.xlu0 %v1556, 120
      %v2827 = vpop.permute.xlu0 %2826
      %2828 = vrot.lane.b32.xlu0 %v1470, 88
      %v2829 = vpop.permute.xlu0 %2828
      %2830 = vrot.lane.b32.xlu0 %v1472, 88
      %v2831 = vpop.permute.xlu0 %2830
      %2832 = vrot.lane.b32.xlu0 %v1475, 88
      %v2833 = vpop.permute.xlu0 %2832
      %2834 = vrot.lane.b32.xlu0 %v1477, 88
      %v2835 = vpop.permute.xlu0 %2834
      %2836 = vrot.lane.b32.xlu0 %v1480, 88
      %v2837 = vpop.permute.xlu0 %2836
      %2838 = vrot.lane.b32.xlu0 %v1482, 88
      %v2839 = vpop.permute.xlu0 %2838
      %2840 = vrot.lane.b32.xlu0 %v1485, 88
      %v2841 = vpop.permute.xlu0 %2840
      %2842 = vrot.lane.b32.xlu0 %v1487, 88
      %v2843 = vpop.permute.xlu0 %2842
      %v2844 = vsel %vm1649, %v2813, 0
      %v2846 = vsel %vm1649, %v2815, 0
      %v2848 = vsel %vm1649, %v2817, 0
      %v2850 = vsel %vm1649, %v2819, 0
      %v2852 = vsel %vm1649, %v2821, 0
      %v2854 = vsel %vm1649, %v2823, 0
      %v2856 = vsel %vm1649, %v2825, 0
      %v2858 = vsel %vm1649, %v2827, 0
      %v2860 = vsel %vm1649, %v2829, 0
      %v2862 = vsel %vm1649, %v2831, 0
      %v2864 = vsel %vm1649, %v2833, 0
      %v2866 = vsel %vm1649, %v2835, 0
      %v2868 = vsel %vm1649, %v2837, 0
      %v2870 = vsel %vm1649, %v2839, 0
      %v2872 = vsel %vm1649, %v2841, 0
      %v2874 = vsel %vm1649, %v2843, 0
      %2876 = vmatpush.xpose.msra.mxu0 0.0
      %2877 = vmatpush.xpose.msra.mxu0 0.0
      %2878 = vmatpush.xpose.msra.mxu0 0.0
      %2879 = vmatpush.xpose.msra.mxu0 0.0
      %2880 = vmatpush.xpose.msra.mxu0 0.0
      %2881 = vmatpush.xpose.msra.mxu0 0.0
      %2882 = vmatpush.xpose.msra.mxu0 0.0
      %2883 = vmatpush.xpose.msra.mxu0 0.0
      %2884 = vmatpush.xpose.msra.mxu0 %v2874
      %2885 = vmatpush.xpose.msra.mxu0 %v2872
      %2886 = vmatpush.xpose.msra.mxu0 %v2870
      %2887 = vmatpush.xpose.msra.mxu0 %v2868
      %2888 = vmatpush.xpose.msra.mxu0 %v2866
      %2889 = vmatpush.xpose.msra.mxu0 %v2864
      %2890 = vmatpush.xpose.msra.mxu0 %v2862
      %2891 = vmatpush.xpose.msra.mxu0 %v2860
      %2892 = vmatmul.f32.gmra.mxu0 %v2844
      %v2893 = vpop.f32.mrf.mxu0
      %v2894 = vadd.f32 %v2804, %v2893
      %2895 = vmatmul.f32.gmra.mxu0 %v2846
      %v2896 = vpop.f32.mrf.mxu0
      %v2897 = vadd.f32 %v2805, %v2896
      %2898 = vmatmul.f32.gmra.mxu0 %v2848
      %v2899 = vpop.f32.mrf.mxu0
      %v2900 = vadd.f32 %v2806, %v2899
      %2901 = vmatmul.f32.gmra.mxu0 %v2850
      %v2902 = vpop.f32.mrf.mxu0
      %v2903 = vadd.f32 %v2807, %v2902
      %2904 = vmatmul.f32.gmra.mxu0 %v2852
      %v2905 = vpop.f32.mrf.mxu0
      %v2906 = vadd.f32 %v2808, %v2905
      %2907 = vmatmul.f32.gmra.mxu0 %v2854
      %v2908 = vpop.f32.mrf.mxu0
      %v2909 = vadd.f32 %v2809, %v2908
      %2910 = vmatmul.f32.gmra.mxu0 %v2856
      %v2911 = vpop.f32.mrf.mxu0
      %v2912 = vadd.f32 %v2810, %v2911
      %2913 = vmatmul.f32.gmra.mxu0 %v2858
      %v2914 = vpop.f32.mrf.mxu0
      %v2915 = vadd.f32 %v2811, %v2914
      %2916 = vdwg.mxu0
      %2917 = vrot.lane.b32.xlu0 %v1557, 120
      %v2918 = vpop.permute.xlu0 %2917
      %2919 = vrot.lane.b32.xlu0 %v1558, 120
      %v2920 = vpop.permute.xlu0 %2919
      %2921 = vrot.lane.b32.xlu0 %v1559, 120
      %v2922 = vpop.permute.xlu0 %2921
      %2923 = vrot.lane.b32.xlu0 %v1560, 120
      %v2924 = vpop.permute.xlu0 %2923
      %2925 = vrot.lane.b32.xlu0 %v1561, 120
      %v2926 = vpop.permute.xlu0 %2925
      %2927 = vrot.lane.b32.xlu0 %v1562, 120
      %v2928 = vpop.permute.xlu0 %2927
      %2929 = vrot.lane.b32.xlu0 %v1563, 120
      %v2930 = vpop.permute.xlu0 %2929
      %2931 = vrot.lane.b32.xlu0 %v1564, 120
      %v2932 = vpop.permute.xlu0 %2931
      %2933 = vrot.lane.b32.xlu0 %v1490, 88
      %v2934 = vpop.permute.xlu0 %2933
      %2935 = vrot.lane.b32.xlu0 %v1492, 88
      %v2936 = vpop.permute.xlu0 %2935
      %2937 = vrot.lane.b32.xlu0 %v1495, 88
      %v2938 = vpop.permute.xlu0 %2937
      %2939 = vrot.lane.b32.xlu0 %v1497, 88
      %v2940 = vpop.permute.xlu0 %2939
      %2941 = vrot.lane.b32.xlu0 %v1500, 88
      %v2942 = vpop.permute.xlu0 %2941
      %2943 = vrot.lane.b32.xlu0 %v1502, 88
      %v2944 = vpop.permute.xlu0 %2943
      %2945 = vrot.lane.b32.xlu0 %v1505, 88
      %v2946 = vpop.permute.xlu0 %2945
      %2947 = vrot.lane.b32.xlu0 %v1507, 88
      %v2948 = vpop.permute.xlu0 %2947
      %v2949 = vsel %vm1649, %v2918, 0
      %v2951 = vsel %vm1649, %v2920, 0
      %v2953 = vsel %vm1649, %v2922, 0
      %v2955 = vsel %vm1649, %v2924, 0
      %v2957 = vsel %vm1649, %v2926, 0
      %v2959 = vsel %vm1649, %v2928, 0
      %v2961 = vsel %vm1649, %v2930, 0
      %v2963 = vsel %vm1649, %v2932, 0
      %v2965 = vsel %vm1649, %v2934, 0
      %v2967 = vsel %vm1649, %v2936, 0
      %v2969 = vsel %vm1649, %v2938, 0
      %v2971 = vsel %vm1649, %v2940, 0
      %v2973 = vsel %vm1649, %v2942, 0
      %v2975 = vsel %vm1649, %v2944, 0
      %v2977 = vsel %vm1649, %v2946, 0
      %v2979 = vsel %vm1649, %v2948, 0
      %2981 = vmatpush.xpose.msra.mxu0 0.0
      %2982 = vmatpush.xpose.msra.mxu0 0.0
      %2983 = vmatpush.xpose.msra.mxu0 0.0
      %2984 = vmatpush.xpose.msra.mxu0 0.0
      %2985 = vmatpush.xpose.msra.mxu0 0.0
      %2986 = vmatpush.xpose.msra.mxu0 0.0
      %2987 = vmatpush.xpose.msra.mxu0 0.0
      %2988 = vmatpush.xpose.msra.mxu0 0.0
      %2989 = vmatpush.xpose.msra.mxu0 %v2979
      %2990 = vmatpush.xpose.msra.mxu0 %v2977
      %2991 = vmatpush.xpose.msra.mxu0 %v2975
      %2992 = vmatpush.xpose.msra.mxu0 %v2973
      %2993 = vmatpush.xpose.msra.mxu0 %v2971
      %2994 = vmatpush.xpose.msra.mxu0 %v2969
      %2995 = vmatpush.xpose.msra.mxu0 %v2967
      %2996 = vmatpush.xpose.msra.mxu0 %v2965
      %2997 = vmatmul.f32.gmra.mxu0 %v2949
      %v2998 = vpop.f32.mrf.mxu0
      %v2999 = vadd.f32 %v2804, %v2998
      %3000 = vmatmul.f32.gmra.mxu0 %v2951
      %v3001 = vpop.f32.mrf.mxu0
      %v3002 = vadd.f32 %v2805, %v3001
      %3003 = vmatmul.f32.gmra.mxu0 %v2953
      %v3004 = vpop.f32.mrf.mxu0
      %v3005 = vadd.f32 %v2806, %v3004
      %3006 = vmatmul.f32.gmra.mxu0 %v2955
      %v3007 = vpop.f32.mrf.mxu0
      %v3008 = vadd.f32 %v2807, %v3007
      %3009 = vmatmul.f32.gmra.mxu0 %v2957
      %v3010 = vpop.f32.mrf.mxu0
      %v3011 = vadd.f32 %v2808, %v3010
      %3012 = vmatmul.f32.gmra.mxu0 %v2959
      %v3013 = vpop.f32.mrf.mxu0
      %v3014 = vadd.f32 %v2809, %v3013
      %3015 = vmatmul.f32.gmra.mxu0 %v2961
      %v3016 = vpop.f32.mrf.mxu0
      %v3017 = vadd.f32 %v2810, %v3016
      %3018 = vmatmul.f32.gmra.mxu0 %v2963
      %v3019 = vpop.f32.mrf.mxu0
      %v3020 = vadd.f32 %v2811, %v3019
      %3021 = vdwg.mxu0
      %3022 = vrot.lane.b32.xlu0 %v1565, 120
      %v3023 = vpop.permute.xlu0 %3022
      %3024 = vrot.lane.b32.xlu0 %v1566, 120
      %v3025 = vpop.permute.xlu0 %3024
      %3026 = vrot.lane.b32.xlu0 %v1567, 120
      %v3027 = vpop.permute.xlu0 %3026
      %3028 = vrot.lane.b32.xlu0 %v1568, 120
      %v3029 = vpop.permute.xlu0 %3028
      %3030 = vrot.lane.b32.xlu0 %v1569, 120
      %v3031 = vpop.permute.xlu0 %3030
      %3032 = vrot.lane.b32.xlu0 %v1570, 120
      %v3033 = vpop.permute.xlu0 %3032
      %3034 = vrot.lane.b32.xlu0 %v1571, 120
      %v3035 = vpop.permute.xlu0 %3034
      %3036 = vrot.lane.b32.xlu0 %v1572, 120
      %v3037 = vpop.permute.xlu0 %3036
      %3038 = vrot.lane.b32.xlu0 %v1510, 88
      %v3039 = vpop.permute.xlu0 %3038
      %3040 = vrot.lane.b32.xlu0 %v1512, 88
      %v3041 = vpop.permute.xlu0 %3040
      %3042 = vrot.lane.b32.xlu0 %v1515, 88
      %v3043 = vpop.permute.xlu0 %3042
      %3044 = vrot.lane.b32.xlu0 %v1517, 88
      %v3045 = vpop.permute.xlu0 %3044
      %3046 = vrot.lane.b32.xlu0 %v1520, 88
      %v3047 = vpop.permute.xlu0 %3046
      %3048 = vrot.lane.b32.xlu0 %v1522, 88
      %v3049 = vpop.permute.xlu0 %3048
      %3050 = vrot.lane.b32.xlu0 %v1525, 88
      %v3051 = vpop.permute.xlu0 %3050
      %3052 = vrot.lane.b32.xlu0 %v1527, 88
      %v3053 = vpop.permute.xlu0 %3052
      %v3054 = vsel %vm1649, %v3023, 0
      %v3056 = vsel %vm1649, %v3025, 0
      %v3058 = vsel %vm1649, %v3027, 0
      %v3060 = vsel %vm1649, %v3029, 0
      %v3062 = vsel %vm1649, %v3031, 0
      %v3064 = vsel %vm1649, %v3033, 0
      %v3066 = vsel %vm1649, %v3035, 0
      %v3068 = vsel %vm1649, %v3037, 0
      %v3070 = vsel %vm1649, %v3039, 0
      %v3072 = vsel %vm1649, %v3041, 0
      %v3074 = vsel %vm1649, %v3043, 0
      %v3076 = vsel %vm1649, %v3045, 0
      %v3078 = vsel %vm1649, %v3047, 0
      %v3080 = vsel %vm1649, %v3049, 0
      %v3082 = vsel %vm1649, %v3051, 0
      %v3084 = vsel %vm1649, %v3053, 0
      %3086 = vmatpush.xpose.msra.mxu0 0.0
      %3087 = vmatpush.xpose.msra.mxu0 0.0
      %3088 = vmatpush.xpose.msra.mxu0 0.0
      %3089 = vmatpush.xpose.msra.mxu0 0.0
      %3090 = vmatpush.xpose.msra.mxu0 0.0
      %3091 = vmatpush.xpose.msra.mxu0 0.0
      %3092 = vmatpush.xpose.msra.mxu0 0.0
      %3093 = vmatpush.xpose.msra.mxu0 0.0
      %3094 = vmatpush.xpose.msra.mxu0 %v3084
      %3095 = vmatpush.xpose.msra.mxu0 %v3082
      %3096 = vmatpush.xpose.msra.mxu0 %v3080
      %3097 = vmatpush.xpose.msra.mxu0 %v3078
      %3098 = vmatpush.xpose.msra.mxu0 %v3076
      %3099 = vmatpush.xpose.msra.mxu0 %v3074
      %3100 = vmatpush.xpose.msra.mxu0 %v3072
      %3101 = vmatpush.xpose.msra.mxu0 %v3070
      %3102 = vmatmul.f32.gmra.mxu0 %v3054
      %v3103 = vpop.f32.mrf.mxu0
      %v3104 = vadd.f32 %v2804, %v3103
      %3105 = vmatmul.f32.gmra.mxu0 %v3056
      %v3106 = vpop.f32.mrf.mxu0
      %v3107 = vadd.f32 %v2805, %v3106
      %3108 = vmatmul.f32.gmra.mxu0 %v3058
      %v3109 = vpop.f32.mrf.mxu0
      %v3110 = vadd.f32 %v2806, %v3109
      %3111 = vmatmul.f32.gmra.mxu0 %v3060
      %v3112 = vpop.f32.mrf.mxu0
      %v3113 = vadd.f32 %v2807, %v3112
      %3114 = vmatmul.f32.gmra.mxu0 %v3062
      %v3115 = vpop.f32.mrf.mxu0
      %v3116 = vadd.f32 %v2808, %v3115
      %3117 = vmatmul.f32.gmra.mxu0 %v3064
      %v3118 = vpop.f32.mrf.mxu0
      %v3119 = vadd.f32 %v2809, %v3118
      %3120 = vmatmul.f32.gmra.mxu0 %v3066
      %v3121 = vpop.f32.mrf.mxu0
      %v3122 = vadd.f32 %v2810, %v3121
      %3123 = vmatmul.f32.gmra.mxu0 %v3068
      %v3124 = vpop.f32.mrf.mxu0
      %v3125 = vadd.f32 %v2811, %v3124
      %3126 = vdwg.mxu0
      %3127 = vrot.lane.b32.xlu0 %v1573, 120
      %v3128 = vpop.permute.xlu0 %3127
      %3129 = vrot.lane.b32.xlu0 %v1574, 120
      %v3130 = vpop.permute.xlu0 %3129
      %3131 = vrot.lane.b32.xlu0 %v1575, 120
      %v3132 = vpop.permute.xlu0 %3131
      %3133 = vrot.lane.b32.xlu0 %v1576, 120
      %v3134 = vpop.permute.xlu0 %3133
      %3135 = vrot.lane.b32.xlu0 %v1577, 120
      %v3136 = vpop.permute.xlu0 %3135
      %3137 = vrot.lane.b32.xlu0 %v1578, 120
      %v3138 = vpop.permute.xlu0 %3137
      %3139 = vrot.lane.b32.xlu0 %v1579, 120
      %v3140 = vpop.permute.xlu0 %3139
      %3141 = vrot.lane.b32.xlu0 %v1580, 120
      %v3142 = vpop.permute.xlu0 %3141
      %3143 = vrot.lane.b32.xlu0 %v1530, 88
      %v3144 = vpop.permute.xlu0 %3143
      %3145 = vrot.lane.b32.xlu0 %v1532, 88
      %v3146 = vpop.permute.xlu0 %3145
      %3147 = vrot.lane.b32.xlu0 %v1535, 88
      %v3148 = vpop.permute.xlu0 %3147
      %3149 = vrot.lane.b32.xlu0 %v1537, 88
      %v3150 = vpop.permute.xlu0 %3149
      %3151 = vrot.lane.b32.xlu0 %v1540, 88
      %v3152 = vpop.permute.xlu0 %3151
      %3153 = vrot.lane.b32.xlu0 %v1542, 88
      %v3154 = vpop.permute.xlu0 %3153
      %3155 = vrot.lane.b32.xlu0 %v1545, 88
      %v3156 = vpop.permute.xlu0 %3155
      %3157 = vrot.lane.b32.xlu0 %v1547, 88
      %v3158 = vpop.permute.xlu0 %3157
      %v3159 = vsel %vm1649, %v3128, 0
      %v3161 = vsel %vm1649, %v3130, 0
      %v3163 = vsel %vm1649, %v3132, 0
      %v3165 = vsel %vm1649, %v3134, 0
      %v3167 = vsel %vm1649, %v3136, 0
      %v3169 = vsel %vm1649, %v3138, 0
      %v3171 = vsel %vm1649, %v3140, 0
      %v3173 = vsel %vm1649, %v3142, 0
      %v3175 = vsel %vm1649, %v3144, 0
      %v3177 = vsel %vm1649, %v3146, 0
      %v3179 = vsel %vm1649, %v3148, 0
      %v3181 = vsel %vm1649, %v3150, 0
      %v3183 = vsel %vm1649, %v3152, 0
      %v3185 = vsel %vm1649, %v3154, 0
      %v3187 = vsel %vm1649, %v3156, 0
      %v3189 = vsel %vm1649, %v3158, 0
      %3191 = vmatpush.xpose.msra.mxu0 0.0
      %3192 = vmatpush.xpose.msra.mxu0 0.0
      %3193 = vmatpush.xpose.msra.mxu0 0.0
      %3194 = vmatpush.xpose.msra.mxu0 0.0
      %3195 = vmatpush.xpose.msra.mxu0 0.0
      %3196 = vmatpush.xpose.msra.mxu0 0.0
      %3197 = vmatpush.xpose.msra.mxu0 0.0
      %3198 = vmatpush.xpose.msra.mxu0 0.0
      %3199 = vmatpush.xpose.msra.mxu0 %v3189
      %3200 = vmatpush.xpose.msra.mxu0 %v3187
      %3201 = vmatpush.xpose.msra.mxu0 %v3185
      %3202 = vmatpush.xpose.msra.mxu0 %v3183
      %3203 = vmatpush.xpose.msra.mxu0 %v3181
      %3204 = vmatpush.xpose.msra.mxu0 %v3179
      %3205 = vmatpush.xpose.msra.mxu0 %v3177
      %3206 = vmatpush.xpose.msra.mxu0 %v3175
      %3207 = vmatmul.f32.gmra.mxu0 %v3159
      %v3208 = vpop.f32.mrf.mxu0
      %v3209 = vadd.f32 %v2804, %v3208
      %3210 = vmatmul.f32.gmra.mxu0 %v3161
      %v3211 = vpop.f32.mrf.mxu0
      %v3212 = vadd.f32 %v2805, %v3211
      %3213 = vmatmul.f32.gmra.mxu0 %v3163
      %v3214 = vpop.f32.mrf.mxu0
      %v3215 = vadd.f32 %v2806, %v3214
      %3216 = vmatmul.f32.gmra.mxu0 %v3165
      %v3217 = vpop.f32.mrf.mxu0
      %v3218 = vadd.f32 %v2807, %v3217
      %3219 = vmatmul.f32.gmra.mxu0 %v3167
      %v3220 = vpop.f32.mrf.mxu0
      %v3221 = vadd.f32 %v2808, %v3220
      %3222 = vmatmul.f32.gmra.mxu0 %v3169
      %v3223 = vpop.f32.mrf.mxu0
      %v3224 = vadd.f32 %v2809, %v3223
      %3225 = vmatmul.f32.gmra.mxu0 %v3171
      %v3226 = vpop.f32.mrf.mxu0
      %v3227 = vadd.f32 %v2810, %v3226
      %3228 = vmatmul.f32.gmra.mxu0 %v3173
      %v3229 = vpop.f32.mrf.mxu0
      %v3230 = vadd.f32 %v2811, %v3229
      %3231 = vdwg.mxu0
      %v3232 = vadd.f32 %v2894, %v1581
      %v3233 = vadd.f32 %v2897, %v1582
      %v3234 = vadd.f32 %v2900, %v1583
      %v3235 = vadd.f32 %v2903, %v1584
      %v3236 = vadd.f32 %v2906, %v1585
      %v3237 = vadd.f32 %v2909, %v1586
      %v3238 = vadd.f32 %v2912, %v1587
      %v3239 = vadd.f32 %v2915, %v1588
      %v3240 = vadd.f32 %v2999, %v1589
      %v3241 = vadd.f32 %v3002, %v1590
      %v3242 = vadd.f32 %v3005, %v1591
      %v3243 = vadd.f32 %v3008, %v1592
      %v3244 = vadd.f32 %v3011, %v1593
      %v3245 = vadd.f32 %v3014, %v1594
      %v3246 = vadd.f32 %v3017, %v1595
      %v3247 = vadd.f32 %v3020, %v1596
      %v3248 = vadd.f32 %v3104, %v1597
      %v3249 = vadd.f32 %v3107, %v1598
      %v3250 = vadd.f32 %v3110, %v1599
      %v3251 = vadd.f32 %v3113, %v1600
      %v3252 = vadd.f32 %v3116, %v1601
      %v3253 = vadd.f32 %v3119, %v1602
      %v3254 = vadd.f32 %v3122, %v1603
      %v3255 = vadd.f32 %v3125, %v1604
      %v3256 = vadd.f32 %v3209, %v1605
      %v3257 = vadd.f32 %v3212, %v1606
      %v3258 = vadd.f32 %v3215, %v1607
      %v3259 = vadd.f32 %v3218, %v1608
      %v3260 = vadd.f32 %v3221, %v1609
      %v3261 = vadd.f32 %v3224, %v1610
      %v3262 = vadd.f32 %v3227, %v1611
      %v3263 = vadd.f32 %v3230, %v1612
      %v3264 = vsel %vm2078, %v3232, -inf
      %3265 = vmax.xlane.f32.xlu0 %v3264
      %v3266 = vpop.xlane.xlu0 %3265
      %v3267 = vsel %vm2078, %v3233, -inf
      %3268 = vmax.xlane.f32.xlu0 %v3267
      %v3269 = vpop.xlane.xlu0 %3268
      %v3270 = vsel %vm2078, %v3234, -inf
      %3271 = vmax.xlane.f32.xlu0 %v3270
      %v3272 = vpop.xlane.xlu0 %3271
      %v3273 = vsel %vm2078, %v3235, -inf
      %3274 = vmax.xlane.f32.xlu0 %v3273
      %v3275 = vpop.xlane.xlu0 %3274
      %v3276 = vsel %vm2078, %v3236, -inf
      %3277 = vmax.xlane.f32.xlu0 %v3276
      %v3278 = vpop.xlane.xlu0 %3277
      %v3279 = vsel %vm2078, %v3237, -inf
      %3280 = vmax.xlane.f32.xlu0 %v3279
      %v3281 = vpop.xlane.xlu0 %3280
      %v3282 = vsel %vm2078, %v3238, -inf
      %3283 = vmax.xlane.f32.xlu0 %v3282
      %v3284 = vpop.xlane.xlu0 %3283
      %v3285 = vsel %vm2078, %v3239, -inf
      %3286 = vmax.xlane.f32.xlu0 %v3285
      %v3287 = vpop.xlane.xlu0 %3286
      %v3288 = vsel %vm2078, %v3240, -inf
      %3289 = vmax.xlane.f32.xlu0 %v3288
      %v3290 = vpop.xlane.xlu0 %3289
      %v3291 = vsel %vm2078, %v3241, -inf
      %3292 = vmax.xlane.f32.xlu0 %v3291
      %v3293 = vpop.xlane.xlu0 %3292
      %v3294 = vsel %vm2078, %v3242, -inf
      %3295 = vmax.xlane.f32.xlu0 %v3294
      %v3296 = vpop.xlane.xlu0 %3295
      %v3297 = vsel %vm2078, %v3243, -inf
      %3298 = vmax.xlane.f32.xlu0 %v3297
      %v3299 = vpop.xlane.xlu0 %3298
      %v3300 = vsel %vm2078, %v3244, -inf
      %3301 = vmax.xlane.f32.xlu0 %v3300
      %v3302 = vpop.xlane.xlu0 %3301
      %v3303 = vsel %vm2078, %v3245, -inf
      %3304 = vmax.xlane.f32.xlu0 %v3303
      %v3305 = vpop.xlane.xlu0 %3304
      %v3306 = vsel %vm2078, %v3246, -inf
      %3307 = vmax.xlane.f32.xlu0 %v3306
      %v3308 = vpop.xlane.xlu0 %3307
      %v3309 = vsel %vm2078, %v3247, -inf
      %3310 = vmax.xlane.f32.xlu0 %v3309
      %v3311 = vpop.xlane.xlu0 %3310
      %v3312 = vsel %vm2078, %v3248, -inf
      %3313 = vmax.xlane.f32.xlu0 %v3312
      %v3314 = vpop.xlane.xlu0 %3313
      %v3315 = vsel %vm2078, %v3249, -inf
      %3316 = vmax.xlane.f32.xlu0 %v3315
      %v3317 = vpop.xlane.xlu0 %3316
      %v3318 = vsel %vm2078, %v3250, -inf
      %3319 = vmax.xlane.f32.xlu0 %v3318
      %v3320 = vpop.xlane.xlu0 %3319
      %v3321 = vsel %vm2078, %v3251, -inf
      %3322 = vmax.xlane.f32.xlu0 %v3321
      %v3323 = vpop.xlane.xlu0 %3322
      %v3324 = vsel %vm2078, %v3252, -inf
      %3325 = vmax.xlane.f32.xlu0 %v3324
      %v3326 = vpop.xlane.xlu0 %3325
      %v3327 = vsel %vm2078, %v3253, -inf
      %3328 = vmax.xlane.f32.xlu0 %v3327
      %v3329 = vpop.xlane.xlu0 %3328
      %v3330 = vsel %vm2078, %v3254, -inf
      %3331 = vmax.xlane.f32.xlu0 %v3330
      %v3332 = vpop.xlane.xlu0 %3331
      %v3333 = vsel %vm2078, %v3255, -inf
      %3334 = vmax.xlane.f32.xlu0 %v3333
      %v3335 = vpop.xlane.xlu0 %3334
      %v3336 = vsel %vm2078, %v3256, -inf
      %3337 = vmax.xlane.f32.xlu0 %v3336
      %v3338 = vpop.xlane.xlu0 %3337
      %v3339 = vsel %vm2078, %v3257, -inf
      %3340 = vmax.xlane.f32.xlu0 %v3339
      %v3341 = vpop.xlane.xlu0 %3340
      %v3342 = vsel %vm2078, %v3258, -inf
      %3343 = vmax.xlane.f32.xlu0 %v3342
      %v3344 = vpop.xlane.xlu0 %3343
      %v3345 = vsel %vm2078, %v3259, -inf
      %3346 = vmax.xlane.f32.xlu0 %v3345
      %v3347 = vpop.xlane.xlu0 %3346
      %v3348 = vsel %vm2078, %v3260, -inf
      %3349 = vmax.xlane.f32.xlu0 %v3348
      %v3350 = vpop.xlane.xlu0 %3349
      %v3351 = vsel %vm2078, %v3261, -inf
      %3352 = vmax.xlane.f32.xlu0 %v3351
      %v3353 = vpop.xlane.xlu0 %3352
      %v3354 = vsel %vm2078, %v3262, -inf
      %3355 = vmax.xlane.f32.xlu0 %v3354
      %v3356 = vpop.xlane.xlu0 %3355
      %v3357 = vsel %vm2078, %v3263, -inf
      %3358 = vmax.xlane.f32.xlu0 %v3357
      %v3359 = vpop.xlane.xlu0 %3358
      %v3360 = vsub.f32 %v3232, %v3266
      %v3361 = vsub.f32 %v3233, %v3269
      %v3362 = vsub.f32 %v3234, %v3272
      %v3363 = vsub.f32 %v3235, %v3275
      %v3364 = vsub.f32 %v3236, %v3278
      %v3365 = vsub.f32 %v3237, %v3281
      %v3366 = vsub.f32 %v3238, %v3284
      %v3367 = vsub.f32 %v3239, %v3287
      %v3368 = vsub.f32 %v3240, %v3290
      %v3369 = vsub.f32 %v3241, %v3293
      %v3370 = vsub.f32 %v3242, %v3296
      %v3371 = vsub.f32 %v3243, %v3299
      %v3372 = vsub.f32 %v3244, %v3302
      %v3373 = vsub.f32 %v3245, %v3305
      %v3374 = vsub.f32 %v3246, %v3308
      %v3375 = vsub.f32 %v3247, %v3311
      %v3376 = vsub.f32 %v3248, %v3314
      %v3377 = vsub.f32 %v3249, %v3317
      %v3378 = vsub.f32 %v3250, %v3320
      %v3379 = vsub.f32 %v3251, %v3323
      %v3380 = vsub.f32 %v3252, %v3326
      %v3381 = vsub.f32 %v3253, %v3329
      %v3382 = vsub.f32 %v3254, %v3332
      %v3383 = vsub.f32 %v3255, %v3335
      %v3384 = vsub.f32 %v3256, %v3338
      %v3385 = vsub.f32 %v3257, %v3341
      %v3386 = vsub.f32 %v3258, %v3344
      %v3387 = vsub.f32 %v3259, %v3347
      %v3388 = vsub.f32 %v3260, %v3350
      %v3389 = vsub.f32 %v3261, %v3353
      %v3390 = vsub.f32 %v3262, %v3356
      %v3391 = vsub.f32 %v3263, %v3359
      %v3392 = vmul.f32 %v3360, 1.442695
      %v3393 = vpow.pop %v3392
      %v3394 = vmul.f32 %v3361, 1.442695
      %v3395 = vpow.pop %v3394
      %v3396 = vmul.f32 %v3362, 1.442695
      %v3397 = vpow.pop %v3396
      %v3398 = vmul.f32 %v3363, 1.442695
      %v3399 = vpow.pop %v3398
      %v3400 = vmul.f32 %v3364, 1.442695
      %v3401 = vpow.pop %v3400
      %v3402 = vmul.f32 %v3365, 1.442695
      %v3403 = vpow.pop %v3402
      %v3404 = vmul.f32 %v3366, 1.442695
      %v3405 = vpow.pop %v3404
      %v3406 = vmul.f32 %v3367, 1.442695
      %v3407 = vpow.pop %v3406
      %v3408 = vmul.f32 %v3368, 1.442695
      %v3409 = vpow.pop %v3408
      %v3410 = vmul.f32 %v3369, 1.442695
      %v3411 = vpow.pop %v3410
      %v3412 = vmul.f32 %v3370, 1.442695
      %v3413 = vpow.pop %v3412
      %v3414 = vmul.f32 %v3371, 1.442695
      %v3415 = vpow.pop %v3414
      %v3416 = vmul.f32 %v3372, 1.442695
      %v3417 = vpow.pop %v3416
      %v3418 = vmul.f32 %v3373, 1.442695
      %v3419 = vpow.pop %v3418
      %v3420 = vmul.f32 %v3374, 1.442695
      %v3421 = vpow.pop %v3420
      %v3422 = vmul.f32 %v3375, 1.442695
      %v3423 = vpow.pop %v3422
      %v3424 = vmul.f32 %v3376, 1.442695
      %v3425 = vpow.pop %v3424
      %v3426 = vmul.f32 %v3377, 1.442695
      %v3427 = vpow.pop %v3426
      %v3428 = vmul.f32 %v3378, 1.442695
      %v3429 = vpow.pop %v3428
      %v3430 = vmul.f32 %v3379, 1.442695
      %v3431 = vpow.pop %v3430
      %v3432 = vmul.f32 %v3380, 1.442695
      %v3433 = vpow.pop %v3432
      %v3434 = vmul.f32 %v3381, 1.442695
      %v3435 = vpow.pop %v3434
      %v3436 = vmul.f32 %v3382, 1.442695
      %v3437 = vpow.pop %v3436
      %v3438 = vmul.f32 %v3383, 1.442695
      %v3439 = vpow.pop %v3438
      %v3440 = vmul.f32 %v3384, 1.442695
      %v3441 = vpow.pop %v3440
      %v3442 = vmul.f32 %v3385, 1.442695
      %v3443 = vpow.pop %v3442
      %v3444 = vmul.f32 %v3386, 1.442695
      %v3445 = vpow.pop %v3444
      %v3446 = vmul.f32 %v3387, 1.442695
      %v3447 = vpow.pop %v3446
      %v3448 = vmul.f32 %v3388, 1.442695
      %v3449 = vpow.pop %v3448
      %v3450 = vmul.f32 %v3389, 1.442695
      %v3451 = vpow.pop %v3450
      %v3452 = vmul.f32 %v3390, 1.442695
      %v3453 = vpow.pop %v3452
      %v3454 = vmul.f32 %v3391, 1.442695
      %v3455 = vpow.pop %v3454
      %v3456 = vsel %vm2078, %v3393, 0.0
      %3457 = vadd.xlane.f32.xlu0 %v3456
      %v3458 = vpop.xlane.xlu0 %3457
      %v3459 = vsel %vm2078, %v3395, 0.0
      %3460 = vadd.xlane.f32.xlu0 %v3459
      %v3461 = vpop.xlane.xlu0 %3460
      %v3462 = vsel %vm2078, %v3397, 0.0
      %3463 = vadd.xlane.f32.xlu0 %v3462
      %v3464 = vpop.xlane.xlu0 %3463
      %v3465 = vsel %vm2078, %v3399, 0.0
      %3466 = vadd.xlane.f32.xlu0 %v3465
      %v3467 = vpop.xlane.xlu0 %3466
      %v3468 = vsel %vm2078, %v3401, 0.0
      %3469 = vadd.xlane.f32.xlu0 %v3468
      %v3470 = vpop.xlane.xlu0 %3469
      %v3471 = vsel %vm2078, %v3403, 0.0
      %3472 = vadd.xlane.f32.xlu0 %v3471
      %v3473 = vpop.xlane.xlu0 %3472
      %v3474 = vsel %vm2078, %v3405, 0.0
      %3475 = vadd.xlane.f32.xlu0 %v3474
      %v3476 = vpop.xlane.xlu0 %3475
      %v3477 = vsel %vm2078, %v3407, 0.0
      %3478 = vadd.xlane.f32.xlu0 %v3477
      %v3479 = vpop.xlane.xlu0 %3478
      %v3480 = vsel %vm2078, %v3409, 0.0
      %3481 = vadd.xlane.f32.xlu0 %v3480
      %v3482 = vpop.xlane.xlu0 %3481
      %v3483 = vsel %vm2078, %v3411, 0.0
      %3484 = vadd.xlane.f32.xlu0 %v3483
      %v3485 = vpop.xlane.xlu0 %3484
      %v3486 = vsel %vm2078, %v3413, 0.0
      %3487 = vadd.xlane.f32.xlu0 %v3486
      %v3488 = vpop.xlane.xlu0 %3487
      %v3489 = vsel %vm2078, %v3415, 0.0
      %3490 = vadd.xlane.f32.xlu0 %v3489
      %v3491 = vpop.xlane.xlu0 %3490
      %v3492 = vsel %vm2078, %v3417, 0.0
      %3493 = vadd.xlane.f32.xlu0 %v3492
      %v3494 = vpop.xlane.xlu0 %3493
      %v3495 = vsel %vm2078, %v3419, 0.0
      %3496 = vadd.xlane.f32.xlu0 %v3495
      %v3497 = vpop.xlane.xlu0 %3496
      %v3498 = vsel %vm2078, %v3421, 0.0
      %3499 = vadd.xlane.f32.xlu0 %v3498
      %v3500 = vpop.xlane.xlu0 %3499
      %v3501 = vsel %vm2078, %v3423, 0.0
      %3502 = vadd.xlane.f32.xlu0 %v3501
      %v3503 = vpop.xlane.xlu0 %3502
      %v3504 = vsel %vm2078, %v3425, 0.0
      %3505 = vadd.xlane.f32.xlu0 %v3504
      %v3506 = vpop.xlane.xlu0 %3505
      %v3507 = vsel %vm2078, %v3427, 0.0
      %3508 = vadd.xlane.f32.xlu0 %v3507
      %v3509 = vpop.xlane.xlu0 %3508
      %v3510 = vsel %vm2078, %v3429, 0.0
      %3511 = vadd.xlane.f32.xlu0 %v3510
      %v3512 = vpop.xlane.xlu0 %3511
      %v3513 = vsel %vm2078, %v3431, 0.0
      %3514 = vadd.xlane.f32.xlu0 %v3513
      %v3515 = vpop.xlane.xlu0 %3514
      %v3516 = vsel %vm2078, %v3433, 0.0
      %3517 = vadd.xlane.f32.xlu0 %v3516
      %v3518 = vpop.xlane.xlu0 %3517
      %v3519 = vsel %vm2078, %v3435, 0.0
      %3520 = vadd.xlane.f32.xlu0 %v3519
      %v3521 = vpop.xlane.xlu0 %3520
      %v3522 = vsel %vm2078, %v3437, 0.0
      %3523 = vadd.xlane.f32.xlu0 %v3522
      %v3524 = vpop.xlane.xlu0 %3523
      %v3525 = vsel %vm2078, %v3439, 0.0
      %3526 = vadd.xlane.f32.xlu0 %v3525
      %v3527 = vpop.xlane.xlu0 %3526
      %v3528 = vsel %vm2078, %v3441, 0.0
      %3529 = vadd.xlane.f32.xlu0 %v3528
      %v3530 = vpop.xlane.xlu0 %3529
      %v3531 = vsel %vm2078, %v3443, 0.0
      %3532 = vadd.xlane.f32.xlu0 %v3531
      %v3533 = vpop.xlane.xlu0 %3532
      %v3534 = vsel %vm2078, %v3445, 0.0
      %3535 = vadd.xlane.f32.xlu0 %v3534
      %v3536 = vpop.xlane.xlu0 %3535
      %v3537 = vsel %vm2078, %v3447, 0.0
      %3538 = vadd.xlane.f32.xlu0 %v3537
      %v3539 = vpop.xlane.xlu0 %3538
      %v3540 = vsel %vm2078, %v3449, 0.0
      %3541 = vadd.xlane.f32.xlu0 %v3540
      %v3542 = vpop.xlane.xlu0 %3541
      %v3543 = vsel %vm2078, %v3451, 0.0
      %3544 = vadd.xlane.f32.xlu0 %v3543
      %v3545 = vpop.xlane.xlu0 %3544
      %v3546 = vsel %vm2078, %v3453, 0.0
      %3547 = vadd.xlane.f32.xlu0 %v3546
      %v3548 = vpop.xlane.xlu0 %3547
      %v3549 = vsel %vm2078, %v3455, 0.0
      %3550 = vadd.xlane.f32.xlu0 %v3549
      %v3551 = vpop.xlane.xlu0 %3550
      %v3552 = vrcp.pop %v3458
      %v3553 = vrcp.pop %v3461
      %v3554 = vrcp.pop %v3464
      %v3555 = vrcp.pop %v3467
      %v3556 = vrcp.pop %v3470
      %v3557 = vrcp.pop %v3473
      %v3558 = vrcp.pop %v3476
      %v3559 = vrcp.pop %v3479
      %v3560 = vrcp.pop %v3482
      %v3561 = vrcp.pop %v3485
      %v3562 = vrcp.pop %v3488
      %v3563 = vrcp.pop %v3491
      %v3564 = vrcp.pop %v3494
      %v3565 = vrcp.pop %v3497
      %v3566 = vrcp.pop %v3500
      %v3567 = vrcp.pop %v3503
      %v3568 = vrcp.pop %v3506
      %v3569 = vrcp.pop %v3509
      %v3570 = vrcp.pop %v3512
      %v3571 = vrcp.pop %v3515
      %v3572 = vrcp.pop %v3518
      %v3573 = vrcp.pop %v3521
      %v3574 = vrcp.pop %v3524
      %v3575 = vrcp.pop %v3527
      %v3576 = vrcp.pop %v3530
      %v3577 = vrcp.pop %v3533
      %v3578 = vrcp.pop %v3536
      %v3579 = vrcp.pop %v3539
      %v3580 = vrcp.pop %v3542
      %v3581 = vrcp.pop %v3545
      %v3582 = vrcp.pop %v3548
      %v3583 = vrcp.pop %v3551
      %v3584 = vmul.f32 %v3393, %v3552
      %v3585 = vmul.f32 %v3395, %v3553
      %v3586 = vmul.f32 %v3397, %v3554
      %v3587 = vmul.f32 %v3399, %v3555
      %v3588 = vmul.f32 %v3401, %v3556
      %v3589 = vmul.f32 %v3403, %v3557
      %v3590 = vmul.f32 %v3405, %v3558
      %v3591 = vmul.f32 %v3407, %v3559
      %v3592 = vmul.f32 %v3409, %v3560
      %v3593 = vmul.f32 %v3411, %v3561
      %v3594 = vmul.f32 %v3413, %v3562
      %v3595 = vmul.f32 %v3415, %v3563
      %v3596 = vmul.f32 %v3417, %v3564
      %v3597 = vmul.f32 %v3419, %v3565
      %v3598 = vmul.f32 %v3421, %v3566
      %v3599 = vmul.f32 %v3423, %v3567
      %v3600 = vmul.f32 %v3425, %v3568
      %v3601 = vmul.f32 %v3427, %v3569
      %v3602 = vmul.f32 %v3429, %v3570
      %v3603 = vmul.f32 %v3431, %v3571
      %v3604 = vmul.f32 %v3433, %v3572
      %v3605 = vmul.f32 %v3435, %v3573
      %v3606 = vmul.f32 %v3437, %v3574
      %v3607 = vmul.f32 %v3439, %v3575
      %v3608 = vmul.f32 %v3441, %v3576
      %v3609 = vmul.f32 %v3443, %v3577
      %v3610 = vmul.f32 %v3445, %v3578
      %v3611 = vmul.f32 %v3447, %v3579
      %v3612 = vmul.f32 %v3449, %v3580
      %v3613 = vmul.f32 %v3451, %v3581
      %v3614 = vmul.f32 %v3453, %v3582
      %v3615 = vmul.f32 %v3455, %v3583
      %3616 = vrot.lane.b32.xlu0 %v1470, 56
      %v3617 = vpop.permute.xlu0 %3616
      %3618 = vrot.lane.b32.xlu0 %v1472, 56
      %v3619 = vpop.permute.xlu0 %3618
      %3620 = vrot.lane.b32.xlu0 %v1475, 56
      %v3621 = vpop.permute.xlu0 %3620
      %3622 = vrot.lane.b32.xlu0 %v1477, 56
      %v3623 = vpop.permute.xlu0 %3622
      %3624 = vrot.lane.b32.xlu0 %v1480, 56
      %v3625 = vpop.permute.xlu0 %3624
      %3626 = vrot.lane.b32.xlu0 %v1482, 56
      %v3627 = vpop.permute.xlu0 %3626
      %3628 = vrot.lane.b32.xlu0 %v1485, 56
      %v3629 = vpop.permute.xlu0 %3628
      %3630 = vrot.lane.b32.xlu0 %v1487, 56
      %v3631 = vpop.permute.xlu0 %3630
      %v3641 = vsel %vm2078, %v3584, 0
      %v3644 = vsel %vm2078, %v3585, 0
      %v3647 = vsel %vm2078, %v3586, 0
      %v3650 = vsel %vm2078, %v3587, 0
      %v3653 = vsel %vm2078, %v3588, 0
      %v3656 = vsel %vm2078, %v3589, 0
      %v3659 = vsel %vm2078, %v3590, 0
      %v3662 = vsel %vm2078, %v3591, 0
      %3664 = vmatpush.msra.mxu0 0.0
      %3665 = vmatpush.msra.mxu0 0.0
      %3666 = vmatpush.msra.mxu0 0.0
      %3667 = vmatpush.msra.mxu0 0.0
      %3668 = vmatpush.msra.mxu0 0.0
      %3669 = vmatpush.msra.mxu0 0.0
      %3670 = vmatpush.msra.mxu0 0.0
      %3671 = vmatpush.msra.mxu0 0.0
      %3672 = vmatpush.msra.mxu0 %v3631
      %3673 = vmatpush.msra.mxu0 %v3629
      %3674 = vmatpush.msra.mxu0 %v3627
      %3675 = vmatpush.msra.mxu0 %v3625
      %3676 = vmatpush.msra.mxu0 %v3623
      %3677 = vmatpush.msra.mxu0 %v3621
      %3678 = vmatpush.msra.mxu0 %v3619
      %3679 = vmatpush.msra.mxu0 %v3617
      %3680 = vmatmul.f32.gmra.mxu0 %v3641
      %v3681 = vpop.f32.mrf.mxu0
      %v3682 = vadd.f32 0.0, %v3681
      %3683 = vmatmul.f32.gmra.mxu0 %v3644
      %v3684 = vpop.f32.mrf.mxu0
      %v3685 = vadd.f32 0.0, %v3684
      %3686 = vmatmul.f32.gmra.mxu0 %v3647
      %v3687 = vpop.f32.mrf.mxu0
      %v3688 = vadd.f32 0.0, %v3687
      %3689 = vmatmul.f32.gmra.mxu0 %v3650
      %v3690 = vpop.f32.mrf.mxu0
      %v3691 = vadd.f32 0.0, %v3690
      %3692 = vmatmul.f32.gmra.mxu0 %v3653
      %v3693 = vpop.f32.mrf.mxu0
      %v3694 = vadd.f32 0.0, %v3693
      %3695 = vmatmul.f32.gmra.mxu0 %v3656
      %v3696 = vpop.f32.mrf.mxu0
      %v3697 = vadd.f32 0.0, %v3696
      %3698 = vmatmul.f32.gmra.mxu0 %v3659
      %v3699 = vpop.f32.mrf.mxu0
      %v3700 = vadd.f32 0.0, %v3699
      %3701 = vmatmul.f32.gmra.mxu0 %v3662
      %v3702 = vpop.f32.mrf.mxu0
      %v3703 = vadd.f32 0.0, %v3702
      %3704 = vdwg.mxu0
      %3705 = vrot.lane.b32.xlu0 %v1490, 56
      %v3706 = vpop.permute.xlu0 %3705
      %3707 = vrot.lane.b32.xlu0 %v1492, 56
      %v3708 = vpop.permute.xlu0 %3707
      %3709 = vrot.lane.b32.xlu0 %v1495, 56
      %v3710 = vpop.permute.xlu0 %3709
      %3711 = vrot.lane.b32.xlu0 %v1497, 56
      %v3712 = vpop.permute.xlu0 %3711
      %3713 = vrot.lane.b32.xlu0 %v1500, 56
      %v3714 = vpop.permute.xlu0 %3713
      %3715 = vrot.lane.b32.xlu0 %v1502, 56
      %v3716 = vpop.permute.xlu0 %3715
      %3717 = vrot.lane.b32.xlu0 %v1505, 56
      %v3718 = vpop.permute.xlu0 %3717
      %3719 = vrot.lane.b32.xlu0 %v1507, 56
      %v3720 = vpop.permute.xlu0 %3719
      %v3730 = vsel %vm2078, %v3592, 0
      %v3733 = vsel %vm2078, %v3593, 0
      %v3736 = vsel %vm2078, %v3594, 0
      %v3739 = vsel %vm2078, %v3595, 0
      %v3742 = vsel %vm2078, %v3596, 0
      %v3745 = vsel %vm2078, %v3597, 0
      %v3748 = vsel %vm2078, %v3598, 0
      %v3751 = vsel %vm2078, %v3599, 0
      %3753 = vmatpush.msra.mxu0 0.0
      %3754 = vmatpush.msra.mxu0 0.0
      %3755 = vmatpush.msra.mxu0 0.0
      %3756 = vmatpush.msra.mxu0 0.0
      %3757 = vmatpush.msra.mxu0 0.0
      %3758 = vmatpush.msra.mxu0 0.0
      %3759 = vmatpush.msra.mxu0 0.0
      %3760 = vmatpush.msra.mxu0 0.0
      %3761 = vmatpush.msra.mxu0 %v3720
      %3762 = vmatpush.msra.mxu0 %v3718
      %3763 = vmatpush.msra.mxu0 %v3716
      %3764 = vmatpush.msra.mxu0 %v3714
      %3765 = vmatpush.msra.mxu0 %v3712
      %3766 = vmatpush.msra.mxu0 %v3710
      %3767 = vmatpush.msra.mxu0 %v3708
      %3768 = vmatpush.msra.mxu0 %v3706
      %3769 = vmatmul.f32.gmra.mxu0 %v3730
      %v3770 = vpop.f32.mrf.mxu0
      %v3771 = vadd.f32 0.0, %v3770
      %3772 = vmatmul.f32.gmra.mxu0 %v3733
      %v3773 = vpop.f32.mrf.mxu0
      %v3774 = vadd.f32 0.0, %v3773
      %3775 = vmatmul.f32.gmra.mxu0 %v3736
      %v3776 = vpop.f32.mrf.mxu0
      %v3777 = vadd.f32 0.0, %v3776
      %3778 = vmatmul.f32.gmra.mxu0 %v3739
      %v3779 = vpop.f32.mrf.mxu0
      %v3780 = vadd.f32 0.0, %v3779
      %3781 = vmatmul.f32.gmra.mxu0 %v3742
      %v3782 = vpop.f32.mrf.mxu0
      %v3783 = vadd.f32 0.0, %v3782
      %3784 = vmatmul.f32.gmra.mxu0 %v3745
      %v3785 = vpop.f32.mrf.mxu0
      %v3786 = vadd.f32 0.0, %v3785
      %3787 = vmatmul.f32.gmra.mxu0 %v3748
      %v3788 = vpop.f32.mrf.mxu0
      %v3789 = vadd.f32 0.0, %v3788
      %3790 = vmatmul.f32.gmra.mxu0 %v3751
      %v3791 = vpop.f32.mrf.mxu0
      %v3792 = vadd.f32 0.0, %v3791
      %3793 = vdwg.mxu0
      %3794 = vrot.lane.b32.xlu0 %v1510, 56
      %v3795 = vpop.permute.xlu0 %3794
      %3796 = vrot.lane.b32.xlu0 %v1512, 56
      %v3797 = vpop.permute.xlu0 %3796
      %3798 = vrot.lane.b32.xlu0 %v1515, 56
      %v3799 = vpop.permute.xlu0 %3798
      %3800 = vrot.lane.b32.xlu0 %v1517, 56
      %v3801 = vpop.permute.xlu0 %3800
      %3802 = vrot.lane.b32.xlu0 %v1520, 56
      %v3803 = vpop.permute.xlu0 %3802
      %3804 = vrot.lane.b32.xlu0 %v1522, 56
      %v3805 = vpop.permute.xlu0 %3804
      %3806 = vrot.lane.b32.xlu0 %v1525, 56
      %v3807 = vpop.permute.xlu0 %3806
      %3808 = vrot.lane.b32.xlu0 %v1527, 56
      %v3809 = vpop.permute.xlu0 %3808
      %v3819 = vsel %vm2078, %v3600, 0
      %v3822 = vsel %vm2078, %v3601, 0
      %v3825 = vsel %vm2078, %v3602, 0
      %v3828 = vsel %vm2078, %v3603, 0
      %v3831 = vsel %vm2078, %v3604, 0
      %v3834 = vsel %vm2078, %v3605, 0
      %v3837 = vsel %vm2078, %v3606, 0
      %v3840 = vsel %vm2078, %v3607, 0
      %3842 = vmatpush.msra.mxu0 0.0
      %3843 = vmatpush.msra.mxu0 0.0
      %3844 = vmatpush.msra.mxu0 0.0
      %3845 = vmatpush.msra.mxu0 0.0
      %3846 = vmatpush.msra.mxu0 0.0
      %3847 = vmatpush.msra.mxu0 0.0
      %3848 = vmatpush.msra.mxu0 0.0
      %3849 = vmatpush.msra.mxu0 0.0
      %3850 = vmatpush.msra.mxu0 %v3809
      %3851 = vmatpush.msra.mxu0 %v3807
      %3852 = vmatpush.msra.mxu0 %v3805
      %3853 = vmatpush.msra.mxu0 %v3803
      %3854 = vmatpush.msra.mxu0 %v3801
      %3855 = vmatpush.msra.mxu0 %v3799
      %3856 = vmatpush.msra.mxu0 %v3797
      %3857 = vmatpush.msra.mxu0 %v3795
      %3858 = vmatmul.f32.gmra.mxu0 %v3819
      %v3859 = vpop.f32.mrf.mxu0
      %v3860 = vadd.f32 0.0, %v3859
      %3861 = vmatmul.f32.gmra.mxu0 %v3822
      %v3862 = vpop.f32.mrf.mxu0
      %v3863 = vadd.f32 0.0, %v3862
      %3864 = vmatmul.f32.gmra.mxu0 %v3825
      %v3865 = vpop.f32.mrf.mxu0
      %v3866 = vadd.f32 0.0, %v3865
      %3867 = vmatmul.f32.gmra.mxu0 %v3828
      %v3868 = vpop.f32.mrf.mxu0
      %v3869 = vadd.f32 0.0, %v3868
      %3870 = vmatmul.f32.gmra.mxu0 %v3831
      %v3871 = vpop.f32.mrf.mxu0
      %v3872 = vadd.f32 0.0, %v3871
      %3873 = vmatmul.f32.gmra.mxu0 %v3834
      %v3874 = vpop.f32.mrf.mxu0
      %v3875 = vadd.f32 0.0, %v3874
      %3876 = vmatmul.f32.gmra.mxu0 %v3837
      %v3877 = vpop.f32.mrf.mxu0
      %v3878 = vadd.f32 0.0, %v3877
      %3879 = vmatmul.f32.gmra.mxu0 %v3840
      %v3880 = vpop.f32.mrf.mxu0
      %v3881 = vadd.f32 0.0, %v3880
      %3882 = vdwg.mxu0
      %3883 = vrot.lane.b32.xlu0 %v1530, 56
      %v3884 = vpop.permute.xlu0 %3883
      %3885 = vrot.lane.b32.xlu0 %v1532, 56
      %v3886 = vpop.permute.xlu0 %3885
      %3887 = vrot.lane.b32.xlu0 %v1535, 56
      %v3888 = vpop.permute.xlu0 %3887
      %3889 = vrot.lane.b32.xlu0 %v1537, 56
      %v3890 = vpop.permute.xlu0 %3889
      %3891 = vrot.lane.b32.xlu0 %v1540, 56
      %v3892 = vpop.permute.xlu0 %3891
      %3893 = vrot.lane.b32.xlu0 %v1542, 56
      %v3894 = vpop.permute.xlu0 %3893
      %3895 = vrot.lane.b32.xlu0 %v1545, 56
      %v3896 = vpop.permute.xlu0 %3895
      %3897 = vrot.lane.b32.xlu0 %v1547, 56
      %v3898 = vpop.permute.xlu0 %3897
      %v3908 = vsel %vm2078, %v3608, 0
      %v3911 = vsel %vm2078, %v3609, 0
      %v3914 = vsel %vm2078, %v3610, 0
      %v3917 = vsel %vm2078, %v3611, 0
      %v3920 = vsel %vm2078, %v3612, 0
      %v3923 = vsel %vm2078, %v3613, 0
      %v3926 = vsel %vm2078, %v3614, 0
      %v3929 = vsel %vm2078, %v3615, 0
      %3931 = vmatpush.msra.mxu0 0.0
      %3932 = vmatpush.msra.mxu0 0.0
      %3933 = vmatpush.msra.mxu0 0.0
      %3934 = vmatpush.msra.mxu0 0.0
      %3935 = vmatpush.msra.mxu0 0.0
      %3936 = vmatpush.msra.mxu0 0.0
      %3937 = vmatpush.msra.mxu0 0.0
      %3938 = vmatpush.msra.mxu0 0.0
      %3939 = vmatpush.msra.mxu0 %v3898
      %3940 = vmatpush.msra.mxu0 %v3896
      %3941 = vmatpush.msra.mxu0 %v3894
      %3942 = vmatpush.msra.mxu0 %v3892
      %3943 = vmatpush.msra.mxu0 %v3890
      %3944 = vmatpush.msra.mxu0 %v3888
      %3945 = vmatpush.msra.mxu0 %v3886
      %3946 = vmatpush.msra.mxu0 %v3884
      %3947 = vmatmul.f32.gmra.mxu0 %v3908
      %v3948 = vpop.f32.mrf.mxu0
      %v3949 = vadd.f32 0.0, %v3948
      %3950 = vmatmul.f32.gmra.mxu0 %v3911
      %v3951 = vpop.f32.mrf.mxu0
      %v3952 = vadd.f32 0.0, %v3951
      %3953 = vmatmul.f32.gmra.mxu0 %v3914
      %v3954 = vpop.f32.mrf.mxu0
      %v3955 = vadd.f32 0.0, %v3954
      %3956 = vmatmul.f32.gmra.mxu0 %v3917
      %v3957 = vpop.f32.mrf.mxu0
      %v3958 = vadd.f32 0.0, %v3957
      %3959 = vmatmul.f32.gmra.mxu0 %v3920
      %v3960 = vpop.f32.mrf.mxu0
      %v3961 = vadd.f32 0.0, %v3960
      %3962 = vmatmul.f32.gmra.mxu0 %v3923
      %v3963 = vpop.f32.mrf.mxu0
      %v3964 = vadd.f32 0.0, %v3963
      %3965 = vmatmul.f32.gmra.mxu0 %v3926
      %v3966 = vpop.f32.mrf.mxu0
      %v3967 = vadd.f32 0.0, %v3966
      %3968 = vmatmul.f32.gmra.mxu0 %v3929
      %v3969 = vpop.f32.mrf.mxu0
      %v3970 = vadd.f32 0.0, %v3969
      %3971 = vdwg.mxu0
      %v3972 = vpack.c.bf16 %v3685, %v3682
      %v3973 = vpack.c.bf16 %v3691, %v3688
      %v3974 = vpack.c.bf16 %v3697, %v3694
      %v3975 = vpack.c.bf16 %v3703, %v3700
      %v3976 = vpack.c.bf16 %v3774, %v3771
      %v3977 = vpack.c.bf16 %v3780, %v3777
      %v3978 = vpack.c.bf16 %v3786, %v3783
      %v3979 = vpack.c.bf16 %v3792, %v3789
      %v3980 = vpack.c.bf16 %v3863, %v3860
      %v3981 = vpack.c.bf16 %v3869, %v3866
      %v3982 = vpack.c.bf16 %v3875, %v3872
      %v3983 = vpack.c.bf16 %v3881, %v3878
      %v3984 = vpack.c.bf16 %v3952, %v3949
      %v3985 = vpack.c.bf16 %v3958, %v3955
      %v3986 = vpack.c.bf16 %v3964, %v3961
      %v3987 = vpack.c.bf16 %v3970, %v3967
      %v3989 = vsel %vm1649, %v3972, 0
      %v3992 = vsel %vm1649, %v3973, 0
      %v3995 = vsel %vm1649, %v3974, 0
      %v3998 = vsel %vm1649, %v3975, 0
      %v4001 = vsel %vm1649, %v3976, 0
      %v4004 = vsel %vm1649, %v3977, 0
      %v4007 = vsel %vm1649, %v3978, 0
      %v4010 = vsel %vm1649, %v3979, 0
      %v4013 = vsel %vm1649, %v3980, 0
      %v4016 = vsel %vm1649, %v3981, 0
      %v4019 = vsel %vm1649, %v3982, 0
      %v4022 = vsel %vm1649, %v3983, 0
      %v4025 = vsel %vm1649, %v3984, 0
      %v4028 = vsel %vm1649, %v3985, 0
      %v4031 = vsel %vm1649, %v3986, 0
      %v4034 = vsel %vm1649, %v3987, 0
      %vm4036 = vcmask 1043456
      %v4038 = vsel %vm4036, %v1614, 0
      %4040 = vmatpush.bf16.msra.mxu0 0
      %4041 = vmatpush.bf16.msra.mxu0 0
      %4042 = vmatpush.bf16.msra.mxu0 0
      %4043 = vmatpush.bf16.msra.mxu0 0
      %4044 = vmatpush.bf16.msra.mxu0 0
      %4045 = vmatpush.bf16.msra.mxu0 0
      %4046 = vmatpush.bf16.msra.mxu0 0
      %4047 = vmatpush.bf16.msra.mxu0 %v4038
      %4048 = vmatmul.bf16.gmra.mxu0 %v3989
      %v4049 = vpop.f32.mrf.mxu0
      %v4050 = vadd.f32 0.0, %v4049
      %v4051 = vpop.f32.mrf.mxu0
      %v4052 = vadd.f32 0.0, %v4051
      %4053 = vmatmul.bf16.gmra.mxu0 %v3992
      %v4054 = vpop.f32.mrf.mxu0
      %v4055 = vadd.f32 0.0, %v4054
      %v4056 = vpop.f32.mrf.mxu0
      %v4057 = vadd.f32 0.0, %v4056
      %4058 = vmatmul.bf16.gmra.mxu0 %v3995
      %v4059 = vpop.f32.mrf.mxu0
      %v4060 = vadd.f32 0.0, %v4059
      %v4061 = vpop.f32.mrf.mxu0
      %v4062 = vadd.f32 0.0, %v4061
      %4063 = vmatmul.bf16.gmra.mxu0 %v3998
      %v4064 = vpop.f32.mrf.mxu0
      %v4065 = vadd.f32 0.0, %v4064
      %v4066 = vpop.f32.mrf.mxu0
      %v4067 = vadd.f32 0.0, %v4066
      %4068 = vmatmul.bf16.gmra.mxu0 %v4001
      %v4069 = vpop.f32.mrf.mxu0
      %v4070 = vadd.f32 0.0, %v4069
      %v4071 = vpop.f32.mrf.mxu0
      %v4072 = vadd.f32 0.0, %v4071
      %4073 = vmatmul.bf16.gmra.mxu0 %v4004
      %v4074 = vpop.f32.mrf.mxu0
      %v4075 = vadd.f32 0.0, %v4074
      %v4076 = vpop.f32.mrf.mxu0
      %v4077 = vadd.f32 0.0, %v4076
      %4078 = vmatmul.bf16.gmra.mxu0 %v4007
      %v4079 = vpop.f32.mrf.mxu0
      %v4080 = vadd.f32 0.0, %v4079
      %v4081 = vpop.f32.mrf.mxu0
      %v4082 = vadd.f32 0.0, %v4081
      %4083 = vmatmul.bf16.gmra.mxu0 %v4010
      %v4084 = vpop.f32.mrf.mxu0
      %v4085 = vadd.f32 0.0, %v4084
      %v4086 = vpop.f32.mrf.mxu0
      %v4087 = vadd.f32 0.0, %v4086
      %4088 = vmatmul.bf16.gmra.mxu0 %v4013
      %v4089 = vpop.f32.mrf.mxu0
      %v4090 = vadd.f32 0.0, %v4089
      %v4091 = vpop.f32.mrf.mxu0
      %v4092 = vadd.f32 0.0, %v4091
      %4093 = vmatmul.bf16.gmra.mxu0 %v4016
      %v4094 = vpop.f32.mrf.mxu0
      %v4095 = vadd.f32 0.0, %v4094
      %v4096 = vpop.f32.mrf.mxu0
      %v4097 = vadd.f32 0.0, %v4096
      %4098 = vmatmul.bf16.gmra.mxu0 %v4019
      %v4099 = vpop.f32.mrf.mxu0
      %v4100 = vadd.f32 0.0, %v4099
      %v4101 = vpop.f32.mrf.mxu0
      %v4102 = vadd.f32 0.0, %v4101
      %4103 = vmatmul.bf16.gmra.mxu0 %v4022
      %v4104 = vpop.f32.mrf.mxu0
      %v4105 = vadd.f32 0.0, %v4104
      %v4106 = vpop.f32.mrf.mxu0
      %v4107 = vadd.f32 0.0, %v4106
      %4108 = vmatmul.bf16.gmra.mxu0 %v4025
      %v4109 = vpop.f32.mrf.mxu0
      %v4110 = vadd.f32 0.0, %v4109
      %v4111 = vpop.f32.mrf.mxu0
      %v4112 = vadd.f32 0.0, %v4111
      %4113 = vmatmul.bf16.gmra.mxu0 %v4028
      %v4114 = vpop.f32.mrf.mxu0
      %v4115 = vadd.f32 0.0, %v4114
      %v4116 = vpop.f32.mrf.mxu0
      %v4117 = vadd.f32 0.0, %v4116
      %4118 = vmatmul.bf16.gmra.mxu0 %v4031
      %v4119 = vpop.f32.mrf.mxu0
      %v4120 = vadd.f32 0.0, %v4119
      %v4121 = vpop.f32.mrf.mxu0
      %v4122 = vadd.f32 0.0, %v4121
      %4123 = vmatmul.bf16.gmra.mxu0 %v4034
      %v4124 = vpop.f32.mrf.mxu0
      %v4125 = vadd.f32 0.0, %v4124
      %v4126 = vpop.f32.mrf.mxu0
      %v4127 = vadd.f32 0.0, %v4126
      %4128 = vdwg.mxu0
      %v4130 = vsel %vm1649, %v2787, 0
      %v4133 = vsel %vm1649, %v2788, 0
      %v4136 = vsel %vm1649, %v2789, 0
      %v4139 = vsel %vm1649, %v2790, 0
      %v4142 = vsel %vm1649, %v2791, 0
      %v4145 = vsel %vm1649, %v2792, 0
      %v4148 = vsel %vm1649, %v2793, 0
      %v4151 = vsel %vm1649, %v2794, 0
      %v4154 = vsel %vm1649, %v2795, 0
      %v4157 = vsel %vm1649, %v2796, 0
      %v4160 = vsel %vm1649, %v2797, 0
      %v4163 = vsel %vm1649, %v2798, 0
      %v4166 = vsel %vm1649, %v2799, 0
      %v4169 = vsel %vm1649, %v2800, 0
      %v4172 = vsel %vm1649, %v2801, 0
      %v4175 = vsel %vm1649, %v2802, 0
      %v4178 = vsel %vm4036, %v1613, 0
      %4180 = vmatpush.bf16.msra.mxu0 0
      %4181 = vmatpush.bf16.msra.mxu0 0
      %4182 = vmatpush.bf16.msra.mxu0 0
      %4183 = vmatpush.bf16.msra.mxu0 0
      %4184 = vmatpush.bf16.msra.mxu0 0
      %4185 = vmatpush.bf16.msra.mxu0 0
      %4186 = vmatpush.bf16.msra.mxu0 0
      %4187 = vmatpush.bf16.msra.mxu0 %v4178
      %4188 = vmatmul.bf16.gmra.mxu0 %v4130
      %v4189 = vpop.f32.mrf.mxu0
      %v4190 = vadd.f32 %v4050, %v4189
      %v4191 = vpop.f32.mrf.mxu0
      %v4192 = vadd.f32 %v4052, %v4191
      %4193 = vmatmul.bf16.gmra.mxu0 %v4133
      %v4194 = vpop.f32.mrf.mxu0
      %v4195 = vadd.f32 %v4055, %v4194
      %v4196 = vpop.f32.mrf.mxu0
      %v4197 = vadd.f32 %v4057, %v4196
      %4198 = vmatmul.bf16.gmra.mxu0 %v4136
      %v4199 = vpop.f32.mrf.mxu0
      %v4200 = vadd.f32 %v4060, %v4199
      %v4201 = vpop.f32.mrf.mxu0
      %v4202 = vadd.f32 %v4062, %v4201
      %4203 = vmatmul.bf16.gmra.mxu0 %v4139
      %v4204 = vpop.f32.mrf.mxu0
      %v4205 = vadd.f32 %v4065, %v4204
      %v4206 = vpop.f32.mrf.mxu0
      %v4207 = vadd.f32 %v4067, %v4206
      %4208 = vmatmul.bf16.gmra.mxu0 %v4142
      %v4209 = vpop.f32.mrf.mxu0
      %v4210 = vadd.f32 %v4070, %v4209
      %v4211 = vpop.f32.mrf.mxu0
      %v4212 = vadd.f32 %v4072, %v4211
      %4213 = vmatmul.bf16.gmra.mxu0 %v4145
      %v4214 = vpop.f32.mrf.mxu0
      %v4215 = vadd.f32 %v4075, %v4214
      %v4216 = vpop.f32.mrf.mxu0
      %v4217 = vadd.f32 %v4077, %v4216
      %4218 = vmatmul.bf16.gmra.mxu0 %v4148
      %v4219 = vpop.f32.mrf.mxu0
      %v4220 = vadd.f32 %v4080, %v4219
      %v4221 = vpop.f32.mrf.mxu0
      %v4222 = vadd.f32 %v4082, %v4221
      %4223 = vmatmul.bf16.gmra.mxu0 %v4151
      %v4224 = vpop.f32.mrf.mxu0
      %v4225 = vadd.f32 %v4085, %v4224
      %v4226 = vpop.f32.mrf.mxu0
      %v4227 = vadd.f32 %v4087, %v4226
      %4228 = vmatmul.bf16.gmra.mxu0 %v4154
      %v4229 = vpop.f32.mrf.mxu0
      %v4230 = vadd.f32 %v4090, %v4229
      %v4231 = vpop.f32.mrf.mxu0
      %v4232 = vadd.f32 %v4092, %v4231
      %4233 = vmatmul.bf16.gmra.mxu0 %v4157
      %v4234 = vpop.f32.mrf.mxu0
      %v4235 = vadd.f32 %v4095, %v4234
      %v4236 = vpop.f32.mrf.mxu0
      %v4237 = vadd.f32 %v4097, %v4236
      %4238 = vmatmul.bf16.gmra.mxu0 %v4160
      %v4239 = vpop.f32.mrf.mxu0
      %v4240 = vadd.f32 %v4100, %v4239
      %v4241 = vpop.f32.mrf.mxu0
      %v4242 = vadd.f32 %v4102, %v4241
      %4243 = vmatmul.bf16.gmra.mxu0 %v4163
      %v4244 = vpop.f32.mrf.mxu0
      %v4245 = vadd.f32 %v4105, %v4244
      %v4246 = vpop.f32.mrf.mxu0
      %v4247 = vadd.f32 %v4107, %v4246
      %4248 = vmatmul.bf16.gmra.mxu0 %v4166
      %v4249 = vpop.f32.mrf.mxu0
      %v4250 = vadd.f32 %v4110, %v4249
      %v4251 = vpop.f32.mrf.mxu0
      %v4252 = vadd.f32 %v4112, %v4251
      %4253 = vmatmul.bf16.gmra.mxu0 %v4169
      %v4254 = vpop.f32.mrf.mxu0
      %v4255 = vadd.f32 %v4115, %v4254
      %v4256 = vpop.f32.mrf.mxu0
      %v4257 = vadd.f32 %v4117, %v4256
      %4258 = vmatmul.bf16.gmra.mxu0 %v4172
      %v4259 = vpop.f32.mrf.mxu0
      %v4260 = vadd.f32 %v4120, %v4259
      %v4261 = vpop.f32.mrf.mxu0
      %v4262 = vadd.f32 %v4122, %v4261
      %4263 = vmatmul.bf16.gmra.mxu0 %v4175
      %v4264 = vpop.f32.mrf.mxu0
      %v4265 = vadd.f32 %v4125, %v4264
      %v4266 = vpop.f32.mrf.mxu0
      %v4267 = vadd.f32 %v4127, %v4266
      %4268 = vdwg.mxu0
      %s4269 = scalar_lea.vmem %s1, 128
      %v4270 = vld [vmem:[%s4269] sm:$0xff]
      %v4271 = vld [vmem:[%s4269 + $0x8] sm:$0xff]
      %v4272 = vld [vmem:[%s4269 + $0x10] sm:$0xff]
      %v4273 = vld [vmem:[%s4269 + $0x18] sm:$0xff]
      %v4274 = vld [vmem:[%s4269 + $0x20] sm:$0xff]
      %v4275 = vld [vmem:[%s4269 + $0x28] sm:$0xff]
      %v4276 = vld [vmem:[%s4269 + $0x30] sm:$0xff]
      %v4277 = vld [vmem:[%s4269 + $0x38] sm:$0xff]
      %4278 = vrot.lane.b32.xlu0 %v1549, 112
      %v4279 = vpop.permute.xlu0 %4278
      %4280 = vrot.lane.b32.xlu0 %v1550, 112
      %v4281 = vpop.permute.xlu0 %4280
      %4282 = vrot.lane.b32.xlu0 %v1551, 112
      %v4283 = vpop.permute.xlu0 %4282
      %4284 = vrot.lane.b32.xlu0 %v1552, 112
      %v4285 = vpop.permute.xlu0 %4284
      %4286 = vrot.lane.b32.xlu0 %v1553, 112
      %v4287 = vpop.permute.xlu0 %4286
      %4288 = vrot.lane.b32.xlu0 %v1554, 112
      %v4289 = vpop.permute.xlu0 %4288
      %4290 = vrot.lane.b32.xlu0 %v1555, 112
      %v4291 = vpop.permute.xlu0 %4290
      %4292 = vrot.lane.b32.xlu0 %v1556, 112
      %v4293 = vpop.permute.xlu0 %4292
      %4294 = vrot.lane.b32.xlu0 %v1470, 80
      %v4295 = vpop.permute.xlu0 %4294
      %4296 = vrot.lane.b32.xlu0 %v1472, 80
      %v4297 = vpop.permute.xlu0 %4296
      %4298 = vrot.lane.b32.xlu0 %v1475, 80
      %v4299 = vpop.permute.xlu0 %4298
      %4300 = vrot.lane.b32.xlu0 %v1477, 80
      %v4301 = vpop.permute.xlu0 %4300
      %4302 = vrot.lane.b32.xlu0 %v1480, 80
      %v4303 = vpop.permute.xlu0 %4302
      %4304 = vrot.lane.b32.xlu0 %v1482, 80
      %v4305 = vpop.permute.xlu0 %4304
      %4306 = vrot.lane.b32.xlu0 %v1485, 80
      %v4307 = vpop.permute.xlu0 %4306
      %4308 = vrot.lane.b32.xlu0 %v1487, 80
      %v4309 = vpop.permute.xlu0 %4308
      %v4310 = vsel %vm1649, %v4279, 0
      %v4312 = vsel %vm1649, %v4281, 0
      %v4314 = vsel %vm1649, %v4283, 0
      %v4316 = vsel %vm1649, %v4285, 0
      %v4318 = vsel %vm1649, %v4287, 0
      %v4320 = vsel %vm1649, %v4289, 0
      %v4322 = vsel %vm1649, %v4291, 0
      %v4324 = vsel %vm1649, %v4293, 0
      %v4326 = vsel %vm1649, %v4295, 0
      %v4328 = vsel %vm1649, %v4297, 0
      %v4330 = vsel %vm1649, %v4299, 0
      %v4332 = vsel %vm1649, %v4301, 0
      %v4334 = vsel %vm1649, %v4303, 0
      %v4336 = vsel %vm1649, %v4305, 0
      %v4338 = vsel %vm1649, %v4307, 0
      %v4340 = vsel %vm1649, %v4309, 0
      %4342 = vmatpush.xpose.msra.mxu0 0.0
      %4343 = vmatpush.xpose.msra.mxu0 0.0
      %4344 = vmatpush.xpose.msra.mxu0 0.0
      %4345 = vmatpush.xpose.msra.mxu0 0.0
      %4346 = vmatpush.xpose.msra.mxu0 0.0
      %4347 = vmatpush.xpose.msra.mxu0 0.0
      %4348 = vmatpush.xpose.msra.mxu0 0.0
      %4349 = vmatpush.xpose.msra.mxu0 0.0
      %4350 = vmatpush.xpose.msra.mxu0 %v4340
      %4351 = vmatpush.xpose.msra.mxu0 %v4338
      %4352 = vmatpush.xpose.msra.mxu0 %v4336
      %4353 = vmatpush.xpose.msra.mxu0 %v4334
      %4354 = vmatpush.xpose.msra.mxu0 %v4332
      %4355 = vmatpush.xpose.msra.mxu0 %v4330
      %4356 = vmatpush.xpose.msra.mxu0 %v4328
      %4357 = vmatpush.xpose.msra.mxu0 %v4326
      %4358 = vmatmul.f32.gmra.mxu0 %v4310
      %v4359 = vpop.f32.mrf.mxu0
      %v4360 = vadd.f32 %v4270, %v4359
      %4361 = vmatmul.f32.gmra.mxu0 %v4312
      %v4362 = vpop.f32.mrf.mxu0
      %v4363 = vadd.f32 %v4271, %v4362
      %4364 = vmatmul.f32.gmra.mxu0 %v4314
      %v4365 = vpop.f32.mrf.mxu0
      %v4366 = vadd.f32 %v4272, %v4365
      %4367 = vmatmul.f32.gmra.mxu0 %v4316
      %v4368 = vpop.f32.mrf.mxu0
      %v4369 = vadd.f32 %v4273, %v4368
      %4370 = vmatmul.f32.gmra.mxu0 %v4318
      %v4371 = vpop.f32.mrf.mxu0
      %v4372 = vadd.f32 %v4274, %v4371
      %4373 = vmatmul.f32.gmra.mxu0 %v4320
      %v4374 = vpop.f32.mrf.mxu0
      %v4375 = vadd.f32 %v4275, %v4374
      %4376 = vmatmul.f32.gmra.mxu0 %v4322
      %v4377 = vpop.f32.mrf.mxu0
      %v4378 = vadd.f32 %v4276, %v4377
      %4379 = vmatmul.f32.gmra.mxu0 %v4324
      %v4380 = vpop.f32.mrf.mxu0
      %v4381 = vadd.f32 %v4277, %v4380
      %4382 = vdwg.mxu0
      %4383 = vrot.lane.b32.xlu0 %v1557, 112
      %v4384 = vpop.permute.xlu0 %4383
      %4385 = vrot.lane.b32.xlu0 %v1558, 112
      %v4386 = vpop.permute.xlu0 %4385
      %4387 = vrot.lane.b32.xlu0 %v1559, 112
      %v4388 = vpop.permute.xlu0 %4387
      %4389 = vrot.lane.b32.xlu0 %v1560, 112
      %v4390 = vpop.permute.xlu0 %4389
      %4391 = vrot.lane.b32.xlu0 %v1561, 112
      %v4392 = vpop.permute.xlu0 %4391
      %4393 = vrot.lane.b32.xlu0 %v1562, 112
      %v4394 = vpop.permute.xlu0 %4393
      %4395 = vrot.lane.b32.xlu0 %v1563, 112
      %v4396 = vpop.permute.xlu0 %4395
      %4397 = vrot.lane.b32.xlu0 %v1564, 112
      %v4398 = vpop.permute.xlu0 %4397
      %4399 = vrot.lane.b32.xlu0 %v1490, 80
      %v4400 = vpop.permute.xlu0 %4399
      %4401 = vrot.lane.b32.xlu0 %v1492, 80
      %v4402 = vpop.permute.xlu0 %4401
      %4403 = vrot.lane.b32.xlu0 %v1495, 80
      %v4404 = vpop.permute.xlu0 %4403
      %4405 = vrot.lane.b32.xlu0 %v1497, 80
      %v4406 = vpop.permute.xlu0 %4405
      %4407 = vrot.lane.b32.xlu0 %v1500, 80
      %v4408 = vpop.permute.xlu0 %4407
      %4409 = vrot.lane.b32.xlu0 %v1502, 80
      %v4410 = vpop.permute.xlu0 %4409
      %4411 = vrot.lane.b32.xlu0 %v1505, 80
      %v4412 = vpop.permute.xlu0 %4411
      %4413 = vrot.lane.b32.xlu0 %v1507, 80
      %v4414 = vpop.permute.xlu0 %4413
      %v4415 = vsel %vm1649, %v4384, 0
      %v4417 = vsel %vm1649, %v4386, 0
      %v4419 = vsel %vm1649, %v4388, 0
      %v4421 = vsel %vm1649, %v4390, 0
      %v4423 = vsel %vm1649, %v4392, 0
      %v4425 = vsel %vm1649, %v4394, 0
      %v4427 = vsel %vm1649, %v4396, 0
      %v4429 = vsel %vm1649, %v4398, 0
      %v4431 = vsel %vm1649, %v4400, 0
      %v4433 = vsel %vm1649, %v4402, 0
      %v4435 = vsel %vm1649, %v4404, 0
      %v4437 = vsel %vm1649, %v4406, 0
      %v4439 = vsel %vm1649, %v4408, 0
      %v4441 = vsel %vm1649, %v4410, 0
      %v4443 = vsel %vm1649, %v4412, 0
      %v4445 = vsel %vm1649, %v4414, 0
      %4447 = vmatpush.xpose.msra.mxu0 0.0
      %4448 = vmatpush.xpose.msra.mxu0 0.0
      %4449 = vmatpush.xpose.msra.mxu0 0.0
      %4450 = vmatpush.xpose.msra.mxu0 0.0
      %4451 = vmatpush.xpose.msra.mxu0 0.0
      %4452 = vmatpush.xpose.msra.mxu0 0.0
      %4453 = vmatpush.xpose.msra.mxu0 0.0
      %4454 = vmatpush.xpose.msra.mxu0 0.0
      %4455 = vmatpush.xpose.msra.mxu0 %v4445
      %4456 = vmatpush.xpose.msra.mxu0 %v4443
      %4457 = vmatpush.xpose.msra.mxu0 %v4441
      %4458 = vmatpush.xpose.msra.mxu0 %v4439
      %4459 = vmatpush.xpose.msra.mxu0 %v4437
      %4460 = vmatpush.xpose.msra.mxu0 %v4435
      %4461 = vmatpush.xpose.msra.mxu0 %v4433
      %4462 = vmatpush.xpose.msra.mxu0 %v4431
      %4463 = vmatmul.f32.gmra.mxu0 %v4415
      %v4464 = vpop.f32.mrf.mxu0
      %v4465 = vadd.f32 %v4270, %v4464
      %4466 = vmatmul.f32.gmra.mxu0 %v4417
      %v4467 = vpop.f32.mrf.mxu0
      %v4468 = vadd.f32 %v4271, %v4467
      %4469 = vmatmul.f32.gmra.mxu0 %v4419
      %v4470 = vpop.f32.mrf.mxu0
      %v4471 = vadd.f32 %v4272, %v4470
      %4472 = vmatmul.f32.gmra.mxu0 %v4421
      %v4473 = vpop.f32.mrf.mxu0
      %v4474 = vadd.f32 %v4273, %v4473
      %4475 = vmatmul.f32.gmra.mxu0 %v4423
      %v4476 = vpop.f32.mrf.mxu0
      %v4477 = vadd.f32 %v4274, %v4476
      %4478 = vmatmul.f32.gmra.mxu0 %v4425
      %v4479 = vpop.f32.mrf.mxu0
      %v4480 = vadd.f32 %v4275, %v4479
      %4481 = vmatmul.f32.gmra.mxu0 %v4427
      %v4482 = vpop.f32.mrf.mxu0
      %v4483 = vadd.f32 %v4276, %v4482
      %4484 = vmatmul.f32.gmra.mxu0 %v4429
      %v4485 = vpop.f32.mrf.mxu0
      %v4486 = vadd.f32 %v4277, %v4485
      %4487 = vdwg.mxu0
      %4488 = vrot.lane.b32.xlu0 %v1565, 112
      %v4489 = vpop.permute.xlu0 %4488
      %4490 = vrot.lane.b32.xlu0 %v1566, 112
      %v4491 = vpop.permute.xlu0 %4490
      %4492 = vrot.lane.b32.xlu0 %v1567, 112
      %v4493 = vpop.permute.xlu0 %4492
      %4494 = vrot.lane.b32.xlu0 %v1568, 112
      %v4495 = vpop.permute.xlu0 %4494
      %4496 = vrot.lane.b32.xlu0 %v1569, 112
      %v4497 = vpop.permute.xlu0 %4496
      %4498 = vrot.lane.b32.xlu0 %v1570, 112
      %v4499 = vpop.permute.xlu0 %4498
      %4500 = vrot.lane.b32.xlu0 %v1571, 112
      %v4501 = vpop.permute.xlu0 %4500
      %4502 = vrot.lane.b32.xlu0 %v1572, 112
      %v4503 = vpop.permute.xlu0 %4502
      %4504 = vrot.lane.b32.xlu0 %v1510, 80
      %v4505 = vpop.permute.xlu0 %4504
      %4506 = vrot.lane.b32.xlu0 %v1512, 80
      %v4507 = vpop.permute.xlu0 %4506
      %4508 = vrot.lane.b32.xlu0 %v1515, 80
      %v4509 = vpop.permute.xlu0 %4508
      %4510 = vrot.lane.b32.xlu0 %v1517, 80
      %v4511 = vpop.permute.xlu0 %4510
      %4512 = vrot.lane.b32.xlu0 %v1520, 80
      %v4513 = vpop.permute.xlu0 %4512
      %4514 = vrot.lane.b32.xlu0 %v1522, 80
      %v4515 = vpop.permute.xlu0 %4514
      %4516 = vrot.lane.b32.xlu0 %v1525, 80
      %v4517 = vpop.permute.xlu0 %4516
      %4518 = vrot.lane.b32.xlu0 %v1527, 80
      %v4519 = vpop.permute.xlu0 %4518
      %v4520 = vsel %vm1649, %v4489, 0
      %v4522 = vsel %vm1649, %v4491, 0
      %v4524 = vsel %vm1649, %v4493, 0
      %v4526 = vsel %vm1649, %v4495, 0
      %v4528 = vsel %vm1649, %v4497, 0
      %v4530 = vsel %vm1649, %v4499, 0
      %v4532 = vsel %vm1649, %v4501, 0
      %v4534 = vsel %vm1649, %v4503, 0
      %v4536 = vsel %vm1649, %v4505, 0
      %v4538 = vsel %vm1649, %v4507, 0
      %v4540 = vsel %vm1649, %v4509, 0
      %v4542 = vsel %vm1649, %v4511, 0
      %v4544 = vsel %vm1649, %v4513, 0
      %v4546 = vsel %vm1649, %v4515, 0
      %v4548 = vsel %vm1649, %v4517, 0
      %v4550 = vsel %vm1649, %v4519, 0
      %4552 = vmatpush.xpose.msra.mxu0 0.0
      %4553 = vmatpush.xpose.msra.mxu0 0.0
      %4554 = vmatpush.xpose.msra.mxu0 0.0
      %4555 = vmatpush.xpose.msra.mxu0 0.0
      %4556 = vmatpush.xpose.msra.mxu0 0.0
      %4557 = vmatpush.xpose.msra.mxu0 0.0
      %4558 = vmatpush.xpose.msra.mxu0 0.0
      %4559 = vmatpush.xpose.msra.mxu0 0.0
      %4560 = vmatpush.xpose.msra.mxu0 %v4550
      %4561 = vmatpush.xpose.msra.mxu0 %v4548
      %4562 = vmatpush.xpose.msra.mxu0 %v4546
      %4563 = vmatpush.xpose.msra.mxu0 %v4544
      %4564 = vmatpush.xpose.msra.mxu0 %v4542
      %4565 = vmatpush.xpose.msra.mxu0 %v4540
      %4566 = vmatpush.xpose.msra.mxu0 %v4538
      %4567 = vmatpush.xpose.msra.mxu0 %v4536
      %4568 = vmatmul.f32.gmra.mxu0 %v4520
      %v4569 = vpop.f32.mrf.mxu0
      %v4570 = vadd.f32 %v4270, %v4569
      %4571 = vmatmul.f32.gmra.mxu0 %v4522
      %v4572 = vpop.f32.mrf.mxu0
      %v4573 = vadd.f32 %v4271, %v4572
      %4574 = vmatmul.f32.gmra.mxu0 %v4524
      %v4575 = vpop.f32.mrf.mxu0
      %v4576 = vadd.f32 %v4272, %v4575
      %4577 = vmatmul.f32.gmra.mxu0 %v4526
      %v4578 = vpop.f32.mrf.mxu0
      %v4579 = vadd.f32 %v4273, %v4578
      %4580 = vmatmul.f32.gmra.mxu0 %v4528
      %v4581 = vpop.f32.mrf.mxu0
      %v4582 = vadd.f32 %v4274, %v4581
      %4583 = vmatmul.f32.gmra.mxu0 %v4530
      %v4584 = vpop.f32.mrf.mxu0
      %v4585 = vadd.f32 %v4275, %v4584
      %4586 = vmatmul.f32.gmra.mxu0 %v4532
      %v4587 = vpop.f32.mrf.mxu0
      %v4588 = vadd.f32 %v4276, %v4587
      %4589 = vmatmul.f32.gmra.mxu0 %v4534
      %v4590 = vpop.f32.mrf.mxu0
      %v4591 = vadd.f32 %v4277, %v4590
      %4592 = vdwg.mxu0
      %4593 = vrot.lane.b32.xlu0 %v1573, 112
      %v4594 = vpop.permute.xlu0 %4593
      %4595 = vrot.lane.b32.xlu0 %v1574, 112
      %v4596 = vpop.permute.xlu0 %4595
      %4597 = vrot.lane.b32.xlu0 %v1575, 112
      %v4598 = vpop.permute.xlu0 %4597
      %4599 = vrot.lane.b32.xlu0 %v1576, 112
      %v4600 = vpop.permute.xlu0 %4599
      %4601 = vrot.lane.b32.xlu0 %v1577, 112
      %v4602 = vpop.permute.xlu0 %4601
      %4603 = vrot.lane.b32.xlu0 %v1578, 112
      %v4604 = vpop.permute.xlu0 %4603
      %4605 = vrot.lane.b32.xlu0 %v1579, 112
      %v4606 = vpop.permute.xlu0 %4605
      %4607 = vrot.lane.b32.xlu0 %v1580, 112
      %v4608 = vpop.permute.xlu0 %4607
      %4609 = vrot.lane.b32.xlu0 %v1530, 80
      %v4610 = vpop.permute.xlu0 %4609
      %4611 = vrot.lane.b32.xlu0 %v1532, 80
      %v4612 = vpop.permute.xlu0 %4611
      %4613 = vrot.lane.b32.xlu0 %v1535, 80
      %v4614 = vpop.permute.xlu0 %4613
      %4615 = vrot.lane.b32.xlu0 %v1537, 80
      %v4616 = vpop.permute.xlu0 %4615
      %4617 = vrot.lane.b32.xlu0 %v1540, 80
      %v4618 = vpop.permute.xlu0 %4617
      %4619 = vrot.lane.b32.xlu0 %v1542, 80
      %v4620 = vpop.permute.xlu0 %4619
      %4621 = vrot.lane.b32.xlu0 %v1545, 80
      %v4622 = vpop.permute.xlu0 %4621
      %4623 = vrot.lane.b32.xlu0 %v1547, 80
      %v4624 = vpop.permute.xlu0 %4623
      %v4625 = vsel %vm1649, %v4594, 0
      %v4627 = vsel %vm1649, %v4596, 0
      %v4629 = vsel %vm1649, %v4598, 0
      %v4631 = vsel %vm1649, %v4600, 0
      %v4633 = vsel %vm1649, %v4602, 0
      %v4635 = vsel %vm1649, %v4604, 0
      %v4637 = vsel %vm1649, %v4606, 0
      %v4639 = vsel %vm1649, %v4608, 0
      %v4641 = vsel %vm1649, %v4610, 0
      %v4643 = vsel %vm1649, %v4612, 0
      %v4645 = vsel %vm1649, %v4614, 0
      %v4647 = vsel %vm1649, %v4616, 0
      %v4649 = vsel %vm1649, %v4618, 0
      %v4651 = vsel %vm1649, %v4620, 0
      %v4653 = vsel %vm1649, %v4622, 0
      %v4655 = vsel %vm1649, %v4624, 0
      %4657 = vmatpush.xpose.msra.mxu0 0.0
      %4658 = vmatpush.xpose.msra.mxu0 0.0
      %4659 = vmatpush.xpose.msra.mxu0 0.0
      %4660 = vmatpush.xpose.msra.mxu0 0.0
      %4661 = vmatpush.xpose.msra.mxu0 0.0
      %4662 = vmatpush.xpose.msra.mxu0 0.0
      %4663 = vmatpush.xpose.msra.mxu0 0.0
      %4664 = vmatpush.xpose.msra.mxu0 0.0
      %4665 = vmatpush.xpose.msra.mxu0 %v4655
      %4666 = vmatpush.xpose.msra.mxu0 %v4653
      %4667 = vmatpush.xpose.msra.mxu0 %v4651
      %4668 = vmatpush.xpose.msra.mxu0 %v4649
      %4669 = vmatpush.xpose.msra.mxu0 %v4647
      %4670 = vmatpush.xpose.msra.mxu0 %v4645
      %4671 = vmatpush.xpose.msra.mxu0 %v4643
      %4672 = vmatpush.xpose.msra.mxu0 %v4641
      %4673 = vmatmul.f32.gmra.mxu0 %v4625
      %v4674 = vpop.f32.mrf.mxu0
      %v4675 = vadd.f32 %v4270, %v4674
      %4676 = vmatmul.f32.gmra.mxu0 %v4627
      %v4677 = vpop.f32.mrf.mxu0
      %v4678 = vadd.f32 %v4271, %v4677
      %4679 = vmatmul.f32.gmra.mxu0 %v4629
      %v4680 = vpop.f32.mrf.mxu0
      %v4681 = vadd.f32 %v4272, %v4680
      %4682 = vmatmul.f32.gmra.mxu0 %v4631
      %v4683 = vpop.f32.mrf.mxu0
      %v4684 = vadd.f32 %v4273, %v4683
      %4685 = vmatmul.f32.gmra.mxu0 %v4633
      %v4686 = vpop.f32.mrf.mxu0
      %v4687 = vadd.f32 %v4274, %v4686
      %4688 = vmatmul.f32.gmra.mxu0 %v4635
      %v4689 = vpop.f32.mrf.mxu0
      %v4690 = vadd.f32 %v4275, %v4689
      %4691 = vmatmul.f32.gmra.mxu0 %v4637
      %v4692 = vpop.f32.mrf.mxu0
      %v4693 = vadd.f32 %v4276, %v4692
      %4694 = vmatmul.f32.gmra.mxu0 %v4639
      %v4695 = vpop.f32.mrf.mxu0
      %v4696 = vadd.f32 %v4277, %v4695
      %4697 = vdwg.mxu0
      %v4698 = vadd.f32 %v4360, %v1581
      %v4699 = vadd.f32 %v4363, %v1582
      %v4700 = vadd.f32 %v4366, %v1583
      %v4701 = vadd.f32 %v4369, %v1584
      %v4702 = vadd.f32 %v4372, %v1585
      %v4703 = vadd.f32 %v4375, %v1586
      %v4704 = vadd.f32 %v4378, %v1587
      %v4705 = vadd.f32 %v4381, %v1588
      %v4706 = vadd.f32 %v4465, %v1589
      %v4707 = vadd.f32 %v4468, %v1590
      %v4708 = vadd.f32 %v4471, %v1591
      %v4709 = vadd.f32 %v4474, %v1592
      %v4710 = vadd.f32 %v4477, %v1593
      %v4711 = vadd.f32 %v4480, %v1594
      %v4712 = vadd.f32 %v4483, %v1595
      %v4713 = vadd.f32 %v4486, %v1596
      %v4714 = vadd.f32 %v4570, %v1597
      %v4715 = vadd.f32 %v4573, %v1598
      %v4716 = vadd.f32 %v4576, %v1599
      %v4717 = vadd.f32 %v4579, %v1600
      %v4718 = vadd.f32 %v4582, %v1601
      %v4719 = vadd.f32 %v4585, %v1602
      %v4720 = vadd.f32 %v4588, %v1603
      %v4721 = vadd.f32 %v4591, %v1604
      %v4722 = vadd.f32 %v4675, %v1605
      %v4723 = vadd.f32 %v4678, %v1606
      %v4724 = vadd.f32 %v4681, %v1607
      %v4725 = vadd.f32 %v4684, %v1608
      %v4726 = vadd.f32 %v4687, %v1609
      %v4727 = vadd.f32 %v4690, %v1610
      %v4728 = vadd.f32 %v4693, %v1611
      %v4729 = vadd.f32 %v4696, %v1612
      %v4730 = vsel %vm2078, %v4698, -inf
      %4731 = vmax.xlane.f32.xlu0 %v4730
      %v4732 = vpop.xlane.xlu0 %4731
      %v4733 = vsel %vm2078, %v4699, -inf
      %4734 = vmax.xlane.f32.xlu0 %v4733
      %v4735 = vpop.xlane.xlu0 %4734
      %v4736 = vsel %vm2078, %v4700, -inf
      %4737 = vmax.xlane.f32.xlu0 %v4736
      %v4738 = vpop.xlane.xlu0 %4737
      %v4739 = vsel %vm2078, %v4701, -inf
      %4740 = vmax.xlane.f32.xlu0 %v4739
      %v4741 = vpop.xlane.xlu0 %4740
      %v4742 = vsel %vm2078, %v4702, -inf
      %4743 = vmax.xlane.f32.xlu0 %v4742
      %v4744 = vpop.xlane.xlu0 %4743
      %v4745 = vsel %vm2078, %v4703, -inf
      %4746 = vmax.xlane.f32.xlu0 %v4745
      %v4747 = vpop.xlane.xlu0 %4746
      %v4748 = vsel %vm2078, %v4704, -inf
      %4749 = vmax.xlane.f32.xlu0 %v4748
      %v4750 = vpop.xlane.xlu0 %4749
      %v4751 = vsel %vm2078, %v4705, -inf
      %4752 = vmax.xlane.f32.xlu0 %v4751
      %v4753 = vpop.xlane.xlu0 %4752
      %v4754 = vsel %vm2078, %v4706, -inf
      %4755 = vmax.xlane.f32.xlu0 %v4754
      %v4756 = vpop.xlane.xlu0 %4755
      %v4757 = vsel %vm2078, %v4707, -inf
      %4758 = vmax.xlane.f32.xlu0 %v4757
      %v4759 = vpop.xlane.xlu0 %4758
      %v4760 = vsel %vm2078, %v4708, -inf
      %4761 = vmax.xlane.f32.xlu0 %v4760
      %v4762 = vpop.xlane.xlu0 %4761
      %v4763 = vsel %vm2078, %v4709, -inf
      %4764 = vmax.xlane.f32.xlu0 %v4763
      %v4765 = vpop.xlane.xlu0 %4764
      %v4766 = vsel %vm2078, %v4710, -inf
      %4767 = vmax.xlane.f32.xlu0 %v4766
      %v4768 = vpop.xlane.xlu0 %4767
      %v4769 = vsel %vm2078, %v4711, -inf
      %4770 = vmax.xlane.f32.xlu0 %v4769
      %v4771 = vpop.xlane.xlu0 %4770
      %v4772 = vsel %vm2078, %v4712, -inf
      %4773 = vmax.xlane.f32.xlu0 %v4772
      %v4774 = vpop.xlane.xlu0 %4773
      %v4775 = vsel %vm2078, %v4713, -inf
      %4776 = vmax.xlane.f32.xlu0 %v4775
      %v4777 = vpop.xlane.xlu0 %4776
      %v4778 = vsel %vm2078, %v4714, -inf
      %4779 = vmax.xlane.f32.xlu0 %v4778
      %v4780 = vpop.xlane.xlu0 %4779
      %v4781 = vsel %vm2078, %v4715, -inf
      %4782 = vmax.xlane.f32.xlu0 %v4781
      %v4783 = vpop.xlane.xlu0 %4782
      %v4784 = vsel %vm2078, %v4716, -inf
      %4785 = vmax.xlane.f32.xlu0 %v4784
      %v4786 = vpop.xlane.xlu0 %4785
      %v4787 = vsel %vm2078, %v4717, -inf
      %4788 = vmax.xlane.f32.xlu0 %v4787
      %v4789 = vpop.xlane.xlu0 %4788
      %v4790 = vsel %vm2078, %v4718, -inf
      %4791 = vmax.xlane.f32.xlu0 %v4790
      %v4792 = vpop.xlane.xlu0 %4791
      %v4793 = vsel %vm2078, %v4719, -inf
      %4794 = vmax.xlane.f32.xlu0 %v4793
      %v4795 = vpop.xlane.xlu0 %4794
      %v4796 = vsel %vm2078, %v4720, -inf
      %4797 = vmax.xlane.f32.xlu0 %v4796
      %v4798 = vpop.xlane.xlu0 %4797
      %v4799 = vsel %vm2078, %v4721, -inf
      %4800 = vmax.xlane.f32.xlu0 %v4799
      %v4801 = vpop.xlane.xlu0 %4800
      %v4802 = vsel %vm2078, %v4722, -inf
      %4803 = vmax.xlane.f32.xlu0 %v4802
      %v4804 = vpop.xlane.xlu0 %4803
      %v4805 = vsel %vm2078, %v4723, -inf
      %4806 = vmax.xlane.f32.xlu0 %v4805
      %v4807 = vpop.xlane.xlu0 %4806
      %v4808 = vsel %vm2078, %v4724, -inf
      %4809 = vmax.xlane.f32.xlu0 %v4808
      %v4810 = vpop.xlane.xlu0 %4809
      %v4811 = vsel %vm2078, %v4725, -inf
      %4812 = vmax.xlane.f32.xlu0 %v4811
      %v4813 = vpop.xlane.xlu0 %4812
      %v4814 = vsel %vm2078, %v4726, -inf
      %4815 = vmax.xlane.f32.xlu0 %v4814
      %v4816 = vpop.xlane.xlu0 %4815
      %v4817 = vsel %vm2078, %v4727, -inf
      %4818 = vmax.xlane.f32.xlu0 %v4817
      %v4819 = vpop.xlane.xlu0 %4818
      %v4820 = vsel %vm2078, %v4728, -inf
      %4821 = vmax.xlane.f32.xlu0 %v4820
      %v4822 = vpop.xlane.xlu0 %4821
      %v4823 = vsel %vm2078, %v4729, -inf
      %4824 = vmax.xlane.f32.xlu0 %v4823
      %v4825 = vpop.xlane.xlu0 %4824
      %v4826 = vsub.f32 %v4698, %v4732
      %v4827 = vsub.f32 %v4699, %v4735
      %v4828 = vsub.f32 %v4700, %v4738
      %v4829 = vsub.f32 %v4701, %v4741
      %v4830 = vsub.f32 %v4702, %v4744
      %v4831 = vsub.f32 %v4703, %v4747
      %v4832 = vsub.f32 %v4704, %v4750
      %v4833 = vsub.f32 %v4705, %v4753
      %v4834 = vsub.f32 %v4706, %v4756
      %v4835 = vsub.f32 %v4707, %v4759
      %v4836 = vsub.f32 %v4708, %v4762
      %v4837 = vsub.f32 %v4709, %v4765
      %v4838 = vsub.f32 %v4710, %v4768
      %v4839 = vsub.f32 %v4711, %v4771
      %v4840 = vsub.f32 %v4712, %v4774
      %v4841 = vsub.f32 %v4713, %v4777
      %v4842 = vsub.f32 %v4714, %v4780
      %v4843 = vsub.f32 %v4715, %v4783
      %v4844 = vsub.f32 %v4716, %v4786
      %v4845 = vsub.f32 %v4717, %v4789
      %v4846 = vsub.f32 %v4718, %v4792
      %v4847 = vsub.f32 %v4719, %v4795
      %v4848 = vsub.f32 %v4720, %v4798
      %v4849 = vsub.f32 %v4721, %v4801
      %v4850 = vsub.f32 %v4722, %v4804
      %v4851 = vsub.f32 %v4723, %v4807
      %v4852 = vsub.f32 %v4724, %v4810
      %v4853 = vsub.f32 %v4725, %v4813
      %v4854 = vsub.f32 %v4726, %v4816
      %v4855 = vsub.f32 %v4727, %v4819
      %v4856 = vsub.f32 %v4728, %v4822
      %v4857 = vsub.f32 %v4729, %v4825
      %v4858 = vmul.f32 %v4826, 1.442695
      %v4859 = vpow.pop %v4858
      %v4860 = vmul.f32 %v4827, 1.442695
      %v4861 = vpow.pop %v4860
      %v4862 = vmul.f32 %v4828, 1.442695
      %v4863 = vpow.pop %v4862
      %v4864 = vmul.f32 %v4829, 1.442695
      %v4865 = vpow.pop %v4864
      %v4866 = vmul.f32 %v4830, 1.442695
      %v4867 = vpow.pop %v4866
      %v4868 = vmul.f32 %v4831, 1.442695
      %v4869 = vpow.pop %v4868
      %v4870 = vmul.f32 %v4832, 1.442695
      %v4871 = vpow.pop %v4870
      %v4872 = vmul.f32 %v4833, 1.442695
      %v4873 = vpow.pop %v4872
      %v4874 = vmul.f32 %v4834, 1.442695
      %v4875 = vpow.pop %v4874
      %v4876 = vmul.f32 %v4835, 1.442695
      %v4877 = vpow.pop %v4876
      %v4878 = vmul.f32 %v4836, 1.442695
      %v4879 = vpow.pop %v4878
      %v4880 = vmul.f32 %v4837, 1.442695
      %v4881 = vpow.pop %v4880
      %v4882 = vmul.f32 %v4838, 1.442695
      %v4883 = vpow.pop %v4882
      %v4884 = vmul.f32 %v4839, 1.442695
      %v4885 = vpow.pop %v4884
      %v4886 = vmul.f32 %v4840, 1.442695
      %v4887 = vpow.pop %v4886
      %v4888 = vmul.f32 %v4841, 1.442695
      %v4889 = vpow.pop %v4888
      %v4890 = vmul.f32 %v4842, 1.442695
      %v4891 = vpow.pop %v4890
      %v4892 = vmul.f32 %v4843, 1.442695
      %v4893 = vpow.pop %v4892
      %v4894 = vmul.f32 %v4844, 1.442695
      %v4895 = vpow.pop %v4894
      %v4896 = vmul.f32 %v4845, 1.442695
      %v4897 = vpow.pop %v4896
      %v4898 = vmul.f32 %v4846, 1.442695
      %v4899 = vpow.pop %v4898
      %v4900 = vmul.f32 %v4847, 1.442695
      %v4901 = vpow.pop %v4900
      %v4902 = vmul.f32 %v4848, 1.442695
      %v4903 = vpow.pop %v4902
      %v4904 = vmul.f32 %v4849, 1.442695
      %v4905 = vpow.pop %v4904
      %v4906 = vmul.f32 %v4850, 1.442695
      %v4907 = vpow.pop %v4906
      %v4908 = vmul.f32 %v4851, 1.442695
      %v4909 = vpow.pop %v4908
      %v4910 = vmul.f32 %v4852, 1.442695
      %v4911 = vpow.pop %v4910
      %v4912 = vmul.f32 %v4853, 1.442695
      %v4913 = vpow.pop %v4912
      %v4914 = vmul.f32 %v4854, 1.442695
      %v4915 = vpow.pop %v4914
      %v4916 = vmul.f32 %v4855, 1.442695
      %v4917 = vpow.pop %v4916
      %v4918 = vmul.f32 %v4856, 1.442695
      %v4919 = vpow.pop %v4918
      %v4920 = vmul.f32 %v4857, 1.442695
      %v4921 = vpow.pop %v4920
      %v4922 = vsel %vm2078, %v4859, 0.0
      %4923 = vadd.xlane.f32.xlu0 %v4922
      %v4924 = vpop.xlane.xlu0 %4923
      %v4925 = vsel %vm2078, %v4861, 0.0
      %4926 = vadd.xlane.f32.xlu0 %v4925
      %v4927 = vpop.xlane.xlu0 %4926
      %v4928 = vsel %vm2078, %v4863, 0.0
      %4929 = vadd.xlane.f32.xlu0 %v4928
      %v4930 = vpop.xlane.xlu0 %4929
      %v4931 = vsel %vm2078, %v4865, 0.0
      %4932 = vadd.xlane.f32.xlu0 %v4931
      %v4933 = vpop.xlane.xlu0 %4932
      %v4934 = vsel %vm2078, %v4867, 0.0
      %4935 = vadd.xlane.f32.xlu0 %v4934
      %v4936 = vpop.xlane.xlu0 %4935
      %v4937 = vsel %vm2078, %v4869, 0.0
      %4938 = vadd.xlane.f32.xlu0 %v4937
      %v4939 = vpop.xlane.xlu0 %4938
      %v4940 = vsel %vm2078, %v4871, 0.0
      %4941 = vadd.xlane.f32.xlu0 %v4940
      %v4942 = vpop.xlane.xlu0 %4941
      %v4943 = vsel %vm2078, %v4873, 0.0
      %4944 = vadd.xlane.f32.xlu0 %v4943
      %v4945 = vpop.xlane.xlu0 %4944
      %v4946 = vsel %vm2078, %v4875, 0.0
      %4947 = vadd.xlane.f32.xlu0 %v4946
      %v4948 = vpop.xlane.xlu0 %4947
      %v4949 = vsel %vm2078, %v4877, 0.0
      %4950 = vadd.xlane.f32.xlu0 %v4949
      %v4951 = vpop.xlane.xlu0 %4950
      %v4952 = vsel %vm2078, %v4879, 0.0
      %4953 = vadd.xlane.f32.xlu0 %v4952
      %v4954 = vpop.xlane.xlu0 %4953
      %v4955 = vsel %vm2078, %v4881, 0.0
      %4956 = vadd.xlane.f32.xlu0 %v4955
      %v4957 = vpop.xlane.xlu0 %4956
      %v4958 = vsel %vm2078, %v4883, 0.0
      %4959 = vadd.xlane.f32.xlu0 %v4958
      %v4960 = vpop.xlane.xlu0 %4959
      %v4961 = vsel %vm2078, %v4885, 0.0
      %4962 = vadd.xlane.f32.xlu0 %v4961
      %v4963 = vpop.xlane.xlu0 %4962
      %v4964 = vsel %vm2078, %v4887, 0.0
      %4965 = vadd.xlane.f32.xlu0 %v4964
      %v4966 = vpop.xlane.xlu0 %4965
      %v4967 = vsel %vm2078, %v4889, 0.0
      %4968 = vadd.xlane.f32.xlu0 %v4967
      %v4969 = vpop.xlane.xlu0 %4968
      %v4970 = vsel %vm2078, %v4891, 0.0
      %4971 = vadd.xlane.f32.xlu0 %v4970
      %v4972 = vpop.xlane.xlu0 %4971
      %v4973 = vsel %vm2078, %v4893, 0.0
      %4974 = vadd.xlane.f32.xlu0 %v4973
      %v4975 = vpop.xlane.xlu0 %4974
      %v4976 = vsel %vm2078, %v4895, 0.0
      %4977 = vadd.xlane.f32.xlu0 %v4976
      %v4978 = vpop.xlane.xlu0 %4977
      %v4979 = vsel %vm2078, %v4897, 0.0
      %4980 = vadd.xlane.f32.xlu0 %v4979
      %v4981 = vpop.xlane.xlu0 %4980
      %v4982 = vsel %vm2078, %v4899, 0.0
      %4983 = vadd.xlane.f32.xlu0 %v4982
      %v4984 = vpop.xlane.xlu0 %4983
      %v4985 = vsel %vm2078, %v4901, 0.0
      %4986 = vadd.xlane.f32.xlu0 %v4985
      %v4987 = vpop.xlane.xlu0 %4986
      %v4988 = vsel %vm2078, %v4903, 0.0
      %4989 = vadd.xlane.f32.xlu0 %v4988
      %v4990 = vpop.xlane.xlu0 %4989
      %v4991 = vsel %vm2078, %v4905, 0.0
      %4992 = vadd.xlane.f32.xlu0 %v4991
      %v4993 = vpop.xlane.xlu0 %4992
      %v4994 = vsel %vm2078, %v4907, 0.0
      %4995 = vadd.xlane.f32.xlu0 %v4994
      %v4996 = vpop.xlane.xlu0 %4995
      %v4997 = vsel %vm2078, %v4909, 0.0
      %4998 = vadd.xlane.f32.xlu0 %v4997
      %v4999 = vpop.xlane.xlu0 %4998
      %v5000 = vsel %vm2078, %v4911, 0.0
      %5001 = vadd.xlane.f32.xlu0 %v5000
      %v5002 = vpop.xlane.xlu0 %5001
      %v5003 = vsel %vm2078, %v4913, 0.0
      %5004 = vadd.xlane.f32.xlu0 %v5003
      %v5005 = vpop.xlane.xlu0 %5004
      %v5006 = vsel %vm2078, %v4915, 0.0
      %5007 = vadd.xlane.f32.xlu0 %v5006
      %v5008 = vpop.xlane.xlu0 %5007
      %v5009 = vsel %vm2078, %v4917, 0.0
      %5010 = vadd.xlane.f32.xlu0 %v5009
      %v5011 = vpop.xlane.xlu0 %5010
      %v5012 = vsel %vm2078, %v4919, 0.0
      %5013 = vadd.xlane.f32.xlu0 %v5012
      %v5014 = vpop.xlane.xlu0 %5013
      %v5015 = vsel %vm2078, %v4921, 0.0
      %5016 = vadd.xlane.f32.xlu0 %v5015
      %v5017 = vpop.xlane.xlu0 %5016
      %v5018 = vrcp.pop %v4924
      %v5019 = vrcp.pop %v4927
      %v5020 = vrcp.pop %v4930
      %v5021 = vrcp.pop %v4933
      %v5022 = vrcp.pop %v4936
      %v5023 = vrcp.pop %v4939
      %v5024 = vrcp.pop %v4942
      %v5025 = vrcp.pop %v4945
      %v5026 = vrcp.pop %v4948
      %v5027 = vrcp.pop %v4951
      %v5028 = vrcp.pop %v4954
      %v5029 = vrcp.pop %v4957
      %v5030 = vrcp.pop %v4960
      %v5031 = vrcp.pop %v4963
      %v5032 = vrcp.pop %v4966
      %v5033 = vrcp.pop %v4969
      %v5034 = vrcp.pop %v4972
      %v5035 = vrcp.pop %v4975
      %v5036 = vrcp.pop %v4978
      %v5037 = vrcp.pop %v4981
      %v5038 = vrcp.pop %v4984
      %v5039 = vrcp.pop %v4987
      %v5040 = vrcp.pop %v4990
      %v5041 = vrcp.pop %v4993
      %v5042 = vrcp.pop %v4996
      %v5043 = vrcp.pop %v4999
      %v5044 = vrcp.pop %v5002
      %v5045 = vrcp.pop %v5005
      %v5046 = vrcp.pop %v5008
      %v5047 = vrcp.pop %v5011
      %v5048 = vrcp.pop %v5014
      %v5049 = vrcp.pop %v5017
      %v5050 = vmul.f32 %v4859, %v5018
      %v5051 = vmul.f32 %v4861, %v5019
      %v5052 = vmul.f32 %v4863, %v5020
      %v5053 = vmul.f32 %v4865, %v5021
      %v5054 = vmul.f32 %v4867, %v5022
      %v5055 = vmul.f32 %v4869, %v5023
      %v5056 = vmul.f32 %v4871, %v5024
      %v5057 = vmul.f32 %v4873, %v5025
      %v5058 = vmul.f32 %v4875, %v5026
      %v5059 = vmul.f32 %v4877, %v5027
      %v5060 = vmul.f32 %v4879, %v5028
      %v5061 = vmul.f32 %v4881, %v5029
      %v5062 = vmul.f32 %v4883, %v5030
      %v5063 = vmul.f32 %v4885, %v5031
      %v5064 = vmul.f32 %v4887, %v5032
      %v5065 = vmul.f32 %v4889, %v5033
      %v5066 = vmul.f32 %v4891, %v5034
      %v5067 = vmul.f32 %v4893, %v5035
      %v5068 = vmul.f32 %v4895, %v5036
      %v5069 = vmul.f32 %v4897, %v5037
      %v5070 = vmul.f32 %v4899, %v5038
      %v5071 = vmul.f32 %v4901, %v5039
      %v5072 = vmul.f32 %v4903, %v5040
      %v5073 = vmul.f32 %v4905, %v5041
      %v5074 = vmul.f32 %v4907, %v5042
      %v5075 = vmul.f32 %v4909, %v5043
      %v5076 = vmul.f32 %v4911, %v5044
      %v5077 = vmul.f32 %v4913, %v5045
      %v5078 = vmul.f32 %v4915, %v5046
      %v5079 = vmul.f32 %v4917, %v5047
      %v5080 = vmul.f32 %v4919, %v5048
      %v5081 = vmul.f32 %v4921, %v5049
      %5082 = vrot.lane.b32.xlu0 %v1470, 48
      %v5083 = vpop.permute.xlu0 %5082
      %5084 = vrot.lane.b32.xlu0 %v1472, 48
      %v5085 = vpop.permute.xlu0 %5084
      %5086 = vrot.lane.b32.xlu0 %v1475, 48
      %v5087 = vpop.permute.xlu0 %5086
      %5088 = vrot.lane.b32.xlu0 %v1477, 48
      %v5089 = vpop.permute.xlu0 %5088
      %5090 = vrot.lane.b32.xlu0 %v1480, 48
      %v5091 = vpop.permute.xlu0 %5090
      %5092 = vrot.lane.b32.xlu0 %v1482, 48
      %v5093 = vpop.permute.xlu0 %5092
      %5094 = vrot.lane.b32.xlu0 %v1485, 48
      %v5095 = vpop.permute.xlu0 %5094
      %5096 = vrot.lane.b32.xlu0 %v1487, 48
      %v5097 = vpop.permute.xlu0 %5096
      %v5107 = vsel %vm2078, %v5050, 0
      %v5110 = vsel %vm2078, %v5051, 0
      %v5113 = vsel %vm2078, %v5052, 0
      %v5116 = vsel %vm2078, %v5053, 0
      %v5119 = vsel %vm2078, %v5054, 0
      %v5122 = vsel %vm2078, %v5055, 0
      %v5125 = vsel %vm2078, %v5056, 0
      %v5128 = vsel %vm2078, %v5057, 0
      %5130 = vmatpush.msra.mxu0 0.0
      %5131 = vmatpush.msra.mxu0 0.0
      %5132 = vmatpush.msra.mxu0 0.0
      %5133 = vmatpush.msra.mxu0 0.0
      %5134 = vmatpush.msra.mxu0 0.0
      %5135 = vmatpush.msra.mxu0 0.0
      %5136 = vmatpush.msra.mxu0 0.0
      %5137 = vmatpush.msra.mxu0 0.0
      %5138 = vmatpush.msra.mxu0 %v5097
      %5139 = vmatpush.msra.mxu0 %v5095
      %5140 = vmatpush.msra.mxu0 %v5093
      %5141 = vmatpush.msra.mxu0 %v5091
      %5142 = vmatpush.msra.mxu0 %v5089
      %5143 = vmatpush.msra.mxu0 %v5087
      %5144 = vmatpush.msra.mxu0 %v5085
      %5145 = vmatpush.msra.mxu0 %v5083
      %5146 = vmatmul.f32.gmra.mxu0 %v5107
      %v5147 = vpop.f32.mrf.mxu0
      %v5148 = vadd.f32 0.0, %v5147
      %5149 = vmatmul.f32.gmra.mxu0 %v5110
      %v5150 = vpop.f32.mrf.mxu0
      %v5151 = vadd.f32 0.0, %v5150
      %5152 = vmatmul.f32.gmra.mxu0 %v5113
      %v5153 = vpop.f32.mrf.mxu0
      %v5154 = vadd.f32 0.0, %v5153
      %5155 = vmatmul.f32.gmra.mxu0 %v5116
      %v5156 = vpop.f32.mrf.mxu0
      %v5157 = vadd.f32 0.0, %v5156
      %5158 = vmatmul.f32.gmra.mxu0 %v5119
      %v5159 = vpop.f32.mrf.mxu0
      %v5160 = vadd.f32 0.0, %v5159
      %5161 = vmatmul.f32.gmra.mxu0 %v5122
      %v5162 = vpop.f32.mrf.mxu0
      %v5163 = vadd.f32 0.0, %v5162
      %5164 = vmatmul.f32.gmra.mxu0 %v5125
      %v5165 = vpop.f32.mrf.mxu0
      %v5166 = vadd.f32 0.0, %v5165
      %5167 = vmatmul.f32.gmra.mxu0 %v5128
      %v5168 = vpop.f32.mrf.mxu0
      %v5169 = vadd.f32 0.0, %v5168
      %5170 = vdwg.mxu0
      %5171 = vrot.lane.b32.xlu0 %v1490, 48
      %v5172 = vpop.permute.xlu0 %5171
      %5173 = vrot.lane.b32.xlu0 %v1492, 48
      %v5174 = vpop.permute.xlu0 %5173
      %5175 = vrot.lane.b32.xlu0 %v1495, 48
      %v5176 = vpop.permute.xlu0 %5175
      %5177 = vrot.lane.b32.xlu0 %v1497, 48
      %v5178 = vpop.permute.xlu0 %5177
      %5179 = vrot.lane.b32.xlu0 %v1500, 48
      %v5180 = vpop.permute.xlu0 %5179
      %5181 = vrot.lane.b32.xlu0 %v1502, 48
      %v5182 = vpop.permute.xlu0 %5181
      %5183 = vrot.lane.b32.xlu0 %v1505, 48
      %v5184 = vpop.permute.xlu0 %5183
      %5185 = vrot.lane.b32.xlu0 %v1507, 48
      %v5186 = vpop.permute.xlu0 %5185
      %v5196 = vsel %vm2078, %v5058, 0
      %v5199 = vsel %vm2078, %v5059, 0
      %v5202 = vsel %vm2078, %v5060, 0
      %v5205 = vsel %vm2078, %v5061, 0
      %v5208 = vsel %vm2078, %v5062, 0
      %v5211 = vsel %vm2078, %v5063, 0
      %v5214 = vsel %vm2078, %v5064, 0
      %v5217 = vsel %vm2078, %v5065, 0
      %5219 = vmatpush.msra.mxu0 0.0
      %5220 = vmatpush.msra.mxu0 0.0
      %5221 = vmatpush.msra.mxu0 0.0
      %5222 = vmatpush.msra.mxu0 0.0
      %5223 = vmatpush.msra.mxu0 0.0
      %5224 = vmatpush.msra.mxu0 0.0
      %5225 = vmatpush.msra.mxu0 0.0
      %5226 = vmatpush.msra.mxu0 0.0
      %5227 = vmatpush.msra.mxu0 %v5186
      %5228 = vmatpush.msra.mxu0 %v5184
      %5229 = vmatpush.msra.mxu0 %v5182
      %5230 = vmatpush.msra.mxu0 %v5180
      %5231 = vmatpush.msra.mxu0 %v5178
      %5232 = vmatpush.msra.mxu0 %v5176
      %5233 = vmatpush.msra.mxu0 %v5174
      %5234 = vmatpush.msra.mxu0 %v5172
      %5235 = vmatmul.f32.gmra.mxu0 %v5196
      %v5236 = vpop.f32.mrf.mxu0
      %v5237 = vadd.f32 0.0, %v5236
      %5238 = vmatmul.f32.gmra.mxu0 %v5199
      %v5239 = vpop.f32.mrf.mxu0
      %v5240 = vadd.f32 0.0, %v5239
      %5241 = vmatmul.f32.gmra.mxu0 %v5202
      %v5242 = vpop.f32.mrf.mxu0
      %v5243 = vadd.f32 0.0, %v5242
      %5244 = vmatmul.f32.gmra.mxu0 %v5205
      %v5245 = vpop.f32.mrf.mxu0
      %v5246 = vadd.f32 0.0, %v5245
      %5247 = vmatmul.f32.gmra.mxu0 %v5208
      %v5248 = vpop.f32.mrf.mxu0
      %v5249 = vadd.f32 0.0, %v5248
      %5250 = vmatmul.f32.gmra.mxu0 %v5211
      %v5251 = vpop.f32.mrf.mxu0
      %v5252 = vadd.f32 0.0, %v5251
      %5253 = vmatmul.f32.gmra.mxu0 %v5214
      %v5254 = vpop.f32.mrf.mxu0
      %v5255 = vadd.f32 0.0, %v5254
      %5256 = vmatmul.f32.gmra.mxu0 %v5217
      %v5257 = vpop.f32.mrf.mxu0
      %v5258 = vadd.f32 0.0, %v5257
      %5259 = vdwg.mxu0
      %5260 = vrot.lane.b32.xlu0 %v1510, 48
      %v5261 = vpop.permute.xlu0 %5260
      %5262 = vrot.lane.b32.xlu0 %v1512, 48
      %v5263 = vpop.permute.xlu0 %5262
      %5264 = vrot.lane.b32.xlu0 %v1515, 48
      %v5265 = vpop.permute.xlu0 %5264
      %5266 = vrot.lane.b32.xlu0 %v1517, 48
      %v5267 = vpop.permute.xlu0 %5266
      %5268 = vrot.lane.b32.xlu0 %v1520, 48
      %v5269 = vpop.permute.xlu0 %5268
      %5270 = vrot.lane.b32.xlu0 %v1522, 48
      %v5271 = vpop.permute.xlu0 %5270
      %5272 = vrot.lane.b32.xlu0 %v1525, 48
      %v5273 = vpop.permute.xlu0 %5272
      %5274 = vrot.lane.b32.xlu0 %v1527, 48
      %v5275 = vpop.permute.xlu0 %5274
      %v5285 = vsel %vm2078, %v5066, 0
      %v5288 = vsel %vm2078, %v5067, 0
      %v5291 = vsel %vm2078, %v5068, 0
      %v5294 = vsel %vm2078, %v5069, 0
      %v5297 = vsel %vm2078, %v5070, 0
      %v5300 = vsel %vm2078, %v5071, 0
      %v5303 = vsel %vm2078, %v5072, 0
      %v5306 = vsel %vm2078, %v5073, 0
      %5308 = vmatpush.msra.mxu0 0.0
      %5309 = vmatpush.msra.mxu0 0.0
      %5310 = vmatpush.msra.mxu0 0.0
      %5311 = vmatpush.msra.mxu0 0.0
      %5312 = vmatpush.msra.mxu0 0.0
      %5313 = vmatpush.msra.mxu0 0.0
      %5314 = vmatpush.msra.mxu0 0.0
      %5315 = vmatpush.msra.mxu0 0.0
      %5316 = vmatpush.msra.mxu0 %v5275
      %5317 = vmatpush.msra.mxu0 %v5273
      %5318 = vmatpush.msra.mxu0 %v5271
      %5319 = vmatpush.msra.mxu0 %v5269
      %5320 = vmatpush.msra.mxu0 %v5267
      %5321 = vmatpush.msra.mxu0 %v5265
      %5322 = vmatpush.msra.mxu0 %v5263
      %5323 = vmatpush.msra.mxu0 %v5261
      %5324 = vmatmul.f32.gmra.mxu0 %v5285
      %v5325 = vpop.f32.mrf.mxu0
      %v5326 = vadd.f32 0.0, %v5325
      %5327 = vmatmul.f32.gmra.mxu0 %v5288
      %v5328 = vpop.f32.mrf.mxu0
      %v5329 = vadd.f32 0.0, %v5328
      %5330 = vmatmul.f32.gmra.mxu0 %v5291
      %v5331 = vpop.f32.mrf.mxu0
      %v5332 = vadd.f32 0.0, %v5331
      %5333 = vmatmul.f32.gmra.mxu0 %v5294
      %v5334 = vpop.f32.mrf.mxu0
      %v5335 = vadd.f32 0.0, %v5334
      %5336 = vmatmul.f32.gmra.mxu0 %v5297
      %v5337 = vpop.f32.mrf.mxu0
      %v5338 = vadd.f32 0.0, %v5337
      %5339 = vmatmul.f32.gmra.mxu0 %v5300
      %v5340 = vpop.f32.mrf.mxu0
      %v5341 = vadd.f32 0.0, %v5340
      %5342 = vmatmul.f32.gmra.mxu0 %v5303
      %v5343 = vpop.f32.mrf.mxu0
      %v5344 = vadd.f32 0.0, %v5343
      %5345 = vmatmul.f32.gmra.mxu0 %v5306
      %v5346 = vpop.f32.mrf.mxu0
      %v5347 = vadd.f32 0.0, %v5346
      %5348 = vdwg.mxu0
      %5349 = vrot.lane.b32.xlu0 %v1530, 48
      %v5350 = vpop.permute.xlu0 %5349
      %5351 = vrot.lane.b32.xlu0 %v1532, 48
      %v5352 = vpop.permute.xlu0 %5351
      %5353 = vrot.lane.b32.xlu0 %v1535, 48
      %v5354 = vpop.permute.xlu0 %5353
      %5355 = vrot.lane.b32.xlu0 %v1537, 48
      %v5356 = vpop.permute.xlu0 %5355
      %5357 = vrot.lane.b32.xlu0 %v1540, 48
      %v5358 = vpop.permute.xlu0 %5357
      %5359 = vrot.lane.b32.xlu0 %v1542, 48
      %v5360 = vpop.permute.xlu0 %5359
      %5361 = vrot.lane.b32.xlu0 %v1545, 48
      %v5362 = vpop.permute.xlu0 %5361
      %5363 = vrot.lane.b32.xlu0 %v1547, 48
      %v5364 = vpop.permute.xlu0 %5363
      %v5374 = vsel %vm2078, %v5074, 0
      %v5377 = vsel %vm2078, %v5075, 0
      %v5380 = vsel %vm2078, %v5076, 0
      %v5383 = vsel %vm2078, %v5077, 0
      %v5386 = vsel %vm2078, %v5078, 0
      %v5389 = vsel %vm2078, %v5079, 0
      %v5392 = vsel %vm2078, %v5080, 0
      %v5395 = vsel %vm2078, %v5081, 0
      %5397 = vmatpush.msra.mxu0 0.0
      %5398 = vmatpush.msra.mxu0 0.0
      %5399 = vmatpush.msra.mxu0 0.0
      %5400 = vmatpush.msra.mxu0 0.0
      %5401 = vmatpush.msra.mxu0 0.0
      %5402 = vmatpush.msra.mxu0 0.0
      %5403 = vmatpush.msra.mxu0 0.0
      %5404 = vmatpush.msra.mxu0 0.0
      %5405 = vmatpush.msra.mxu0 %v5364
      %5406 = vmatpush.msra.mxu0 %v5362
      %5407 = vmatpush.msra.mxu0 %v5360
      %5408 = vmatpush.msra.mxu0 %v5358
      %5409 = vmatpush.msra.mxu0 %v5356
      %5410 = vmatpush.msra.mxu0 %v5354
      %5411 = vmatpush.msra.mxu0 %v5352
      %5412 = vmatpush.msra.mxu0 %v5350
      %5413 = vmatmul.f32.gmra.mxu0 %v5374
      %v5414 = vpop.f32.mrf.mxu0
      %v5415 = vadd.f32 0.0, %v5414
      %5416 = vmatmul.f32.gmra.mxu0 %v5377
      %v5417 = vpop.f32.mrf.mxu0
      %v5418 = vadd.f32 0.0, %v5417
      %5419 = vmatmul.f32.gmra.mxu0 %v5380
      %v5420 = vpop.f32.mrf.mxu0
      %v5421 = vadd.f32 0.0, %v5420
      %5422 = vmatmul.f32.gmra.mxu0 %v5383
      %v5423 = vpop.f32.mrf.mxu0
      %v5424 = vadd.f32 0.0, %v5423
      %5425 = vmatmul.f32.gmra.mxu0 %v5386
      %v5426 = vpop.f32.mrf.mxu0
      %v5427 = vadd.f32 0.0, %v5426
      %5428 = vmatmul.f32.gmra.mxu0 %v5389
      %v5429 = vpop.f32.mrf.mxu0
      %v5430 = vadd.f32 0.0, %v5429
      %5431 = vmatmul.f32.gmra.mxu0 %v5392
      %v5432 = vpop.f32.mrf.mxu0
      %v5433 = vadd.f32 0.0, %v5432
      %5434 = vmatmul.f32.gmra.mxu0 %v5395
      %v5435 = vpop.f32.mrf.mxu0
      %v5436 = vadd.f32 0.0, %v5435
      %5437 = vdwg.mxu0
      %v5438 = vpack.c.bf16 %v5151, %v5148
      %v5439 = vpack.c.bf16 %v5157, %v5154
      %v5440 = vpack.c.bf16 %v5163, %v5160
      %v5441 = vpack.c.bf16 %v5169, %v5166
      %v5442 = vpack.c.bf16 %v5240, %v5237
      %v5443 = vpack.c.bf16 %v5246, %v5243
      %v5444 = vpack.c.bf16 %v5252, %v5249
      %v5445 = vpack.c.bf16 %v5258, %v5255
      %v5446 = vpack.c.bf16 %v5329, %v5326
      %v5447 = vpack.c.bf16 %v5335, %v5332
      %v5448 = vpack.c.bf16 %v5341, %v5338
      %v5449 = vpack.c.bf16 %v5347, %v5344
      %v5450 = vpack.c.bf16 %v5418, %v5415
      %v5451 = vpack.c.bf16 %v5424, %v5421
      %v5452 = vpack.c.bf16 %v5430, %v5427
      %v5453 = vpack.c.bf16 %v5436, %v5433
      %v5455 = vsel %vm1649, %v5438, 0
      %v5458 = vsel %vm1649, %v5439, 0
      %v5461 = vsel %vm1649, %v5440, 0
      %v5464 = vsel %vm1649, %v5441, 0
      %v5467 = vsel %vm1649, %v5442, 0
      %v5470 = vsel %vm1649, %v5443, 0
      %v5473 = vsel %vm1649, %v5444, 0
      %v5476 = vsel %vm1649, %v5445, 0
      %v5479 = vsel %vm1649, %v5446, 0
      %v5482 = vsel %vm1649, %v5447, 0
      %v5485 = vsel %vm1649, %v5448, 0
      %v5488 = vsel %vm1649, %v5449, 0
      %v5491 = vsel %vm1649, %v5450, 0
      %v5494 = vsel %vm1649, %v5451, 0
      %v5497 = vsel %vm1649, %v5452, 0
      %v5500 = vsel %vm1649, %v5453, 0
      %v5503 = vsel %vm4036, %v1615, 0
      %5505 = vmatpush.bf16.msra.mxu0 0
      %5506 = vmatpush.bf16.msra.mxu0 0
      %5507 = vmatpush.bf16.msra.mxu0 0
      %5508 = vmatpush.bf16.msra.mxu0 0
      %5509 = vmatpush.bf16.msra.mxu0 0
      %5510 = vmatpush.bf16.msra.mxu0 0
      %5511 = vmatpush.bf16.msra.mxu0 0
      %5512 = vmatpush.bf16.msra.mxu0 %v5503
      %5513 = vmatmul.bf16.gmra.mxu0 %v5455
      %v5514 = vpop.f32.mrf.mxu0
      %v5515 = vadd.f32 0.0, %v5514
      %v5516 = vpop.f32.mrf.mxu0
      %v5517 = vadd.f32 0.0, %v5516
      %5518 = vmatmul.bf16.gmra.mxu0 %v5458
      %v5519 = vpop.f32.mrf.mxu0
      %v5520 = vadd.f32 0.0, %v5519
      %v5521 = vpop.f32.mrf.mxu0
      %v5522 = vadd.f32 0.0, %v5521
      %5523 = vmatmul.bf16.gmra.mxu0 %v5461
      %v5524 = vpop.f32.mrf.mxu0
      %v5525 = vadd.f32 0.0, %v5524
      %v5526 = vpop.f32.mrf.mxu0
      %v5527 = vadd.f32 0.0, %v5526
      %5528 = vmatmul.bf16.gmra.mxu0 %v5464
      %v5529 = vpop.f32.mrf.mxu0
      %v5530 = vadd.f32 0.0, %v5529
      %v5531 = vpop.f32.mrf.mxu0
      %v5532 = vadd.f32 0.0, %v5531
      %5533 = vmatmul.bf16.gmra.mxu0 %v5467
      %v5534 = vpop.f32.mrf.mxu0
      %v5535 = vadd.f32 0.0, %v5534
      %v5536 = vpop.f32.mrf.mxu0
      %v5537 = vadd.f32 0.0, %v5536
      %5538 = vmatmul.bf16.gmra.mxu0 %v5470
      %v5539 = vpop.f32.mrf.mxu0
      %v5540 = vadd.f32 0.0, %v5539
      %v5541 = vpop.f32.mrf.mxu0
      %v5542 = vadd.f32 0.0, %v5541
      %5543 = vmatmul.bf16.gmra.mxu0 %v5473
      %v5544 = vpop.f32.mrf.mxu0
      %v5545 = vadd.f32 0.0, %v5544
      %v5546 = vpop.f32.mrf.mxu0
      %v5547 = vadd.f32 0.0, %v5546
      %5548 = vmatmul.bf16.gmra.mxu0 %v5476
      %v5549 = vpop.f32.mrf.mxu0
      %v5550 = vadd.f32 0.0, %v5549
      %v5551 = vpop.f32.mrf.mxu0
      %v5552 = vadd.f32 0.0, %v5551
      %5553 = vmatmul.bf16.gmra.mxu0 %v5479
      %v5554 = vpop.f32.mrf.mxu0
      %v5555 = vadd.f32 0.0, %v5554
      %v5556 = vpop.f32.mrf.mxu0
      %v5557 = vadd.f32 0.0, %v5556
      %5558 = vmatmul.bf16.gmra.mxu0 %v5482
      %v5559 = vpop.f32.mrf.mxu0
      %v5560 = vadd.f32 0.0, %v5559
      %v5561 = vpop.f32.mrf.mxu0
      %v5562 = vadd.f32 0.0, %v5561
      %5563 = vmatmul.bf16.gmra.mxu0 %v5485
      %v5564 = vpop.f32.mrf.mxu0
      %v5565 = vadd.f32 0.0, %v5564
      %v5566 = vpop.f32.mrf.mxu0
      %v5567 = vadd.f32 0.0, %v5566
      %5568 = vmatmul.bf16.gmra.mxu0 %v5488
      %v5569 = vpop.f32.mrf.mxu0
      %v5570 = vadd.f32 0.0, %v5569
      %v5571 = vpop.f32.mrf.mxu0
      %v5572 = vadd.f32 0.0, %v5571
      %5573 = vmatmul.bf16.gmra.mxu0 %v5491
      %v5574 = vpop.f32.mrf.mxu0
      %v5575 = vadd.f32 0.0, %v5574
      %v5576 = vpop.f32.mrf.mxu0
      %v5577 = vadd.f32 0.0, %v5576
      %5578 = vmatmul.bf16.gmra.mxu0 %v5494
      %v5579 = vpop.f32.mrf.mxu0
      %v5580 = vadd.f32 0.0, %v5579
      %v5581 = vpop.f32.mrf.mxu0
      %v5582 = vadd.f32 0.0, %v5581
      %5583 = vmatmul.bf16.gmra.mxu0 %v5497
      %v5584 = vpop.f32.mrf.mxu0
      %v5585 = vadd.f32 0.0, %v5584
      %v5586 = vpop.f32.mrf.mxu0
      %v5587 = vadd.f32 0.0, %v5586
      %5588 = vmatmul.bf16.gmra.mxu0 %v5500
      %v5589 = vpop.f32.mrf.mxu0
      %v5590 = vadd.f32 0.0, %v5589
      %v5591 = vpop.f32.mrf.mxu0
      %v5592 = vadd.f32 0.0, %v5591
      %5593 = vdwg.mxu0
      %v5594 = vadd.f32 %v4190, %v5515
      %v5595 = vadd.f32 %v4192, %v5517
      %v5596 = vadd.f32 %v4195, %v5520
      %v5597 = vadd.f32 %v4197, %v5522
      %v5598 = vadd.f32 %v4200, %v5525
      %v5599 = vadd.f32 %v4202, %v5527
      %v5600 = vadd.f32 %v4205, %v5530
      %v5601 = vadd.f32 %v4207, %v5532
      %v5602 = vadd.f32 %v4210, %v5535
      %v5603 = vadd.f32 %v4212, %v5537
      %v5604 = vadd.f32 %v4215, %v5540
      %v5605 = vadd.f32 %v4217, %v5542
      %v5606 = vadd.f32 %v4220, %v5545
      %v5607 = vadd.f32 %v4222, %v5547
      %v5608 = vadd.f32 %v4225, %v5550
      %v5609 = vadd.f32 %v4227, %v5552
      %v5610 = vadd.f32 %v4230, %v5555
      %v5611 = vadd.f32 %v4232, %v5557
      %v5612 = vadd.f32 %v4235, %v5560
      %v5613 = vadd.f32 %v4237, %v5562
      %v5614 = vadd.f32 %v4240, %v5565
      %v5615 = vadd.f32 %v4242, %v5567
      %v5616 = vadd.f32 %v4245, %v5570
      %v5617 = vadd.f32 %v4247, %v5572
      %v5618 = vadd.f32 %v4250, %v5575
      %v5619 = vadd.f32 %v4252, %v5577
      %v5620 = vadd.f32 %v4255, %v5580
      %v5621 = vadd.f32 %v4257, %v5582
      %v5622 = vadd.f32 %v4260, %v5585
      %v5623 = vadd.f32 %v4262, %v5587
      %v5624 = vadd.f32 %v4265, %v5590
      %v5625 = vadd.f32 %v4267, %v5592
      %s5626 = scalar_lea.vmem %s1, 192
      %v5627 = vld [vmem:[%s5626] sm:$0xff]
      %v5628 = vld [vmem:[%s5626 + $0x8] sm:$0xff]
      %v5629 = vld [vmem:[%s5626 + $0x10] sm:$0xff]
      %v5630 = vld [vmem:[%s5626 + $0x18] sm:$0xff]
      %v5631 = vld [vmem:[%s5626 + $0x20] sm:$0xff]
      %v5632 = vld [vmem:[%s5626 + $0x28] sm:$0xff]
      %v5633 = vld [vmem:[%s5626 + $0x30] sm:$0xff]
      %v5634 = vld [vmem:[%s5626 + $0x38] sm:$0xff]
      %5635 = vrot.lane.b32.xlu0 %v1549, 104
      %v5636 = vpop.permute.xlu0 %5635
      %5637 = vrot.lane.b32.xlu0 %v1550, 104
      %v5638 = vpop.permute.xlu0 %5637
      %5639 = vrot.lane.b32.xlu0 %v1551, 104
      %v5640 = vpop.permute.xlu0 %5639
      %5641 = vrot.lane.b32.xlu0 %v1552, 104
      %v5642 = vpop.permute.xlu0 %5641
      %5643 = vrot.lane.b32.xlu0 %v1553, 104
      %v5644 = vpop.permute.xlu0 %5643
      %5645 = vrot.lane.b32.xlu0 %v1554, 104
      %v5646 = vpop.permute.xlu0 %5645
      %5647 = vrot.lane.b32.xlu0 %v1555, 104
      %v5648 = vpop.permute.xlu0 %5647
      %5649 = vrot.lane.b32.xlu0 %v1556, 104
      %v5650 = vpop.permute.xlu0 %5649
      %5651 = vrot.lane.b32.xlu0 %v1470, 72
      %v5652 = vpop.permute.xlu0 %5651
      %5653 = vrot.lane.b32.xlu0 %v1472, 72
      %v5654 = vpop.permute.xlu0 %5653
      %5655 = vrot.lane.b32.xlu0 %v1475, 72
      %v5656 = vpop.permute.xlu0 %5655
      %5657 = vrot.lane.b32.xlu0 %v1477, 72
      %v5658 = vpop.permute.xlu0 %5657
      %5659 = vrot.lane.b32.xlu0 %v1480, 72
      %v5660 = vpop.permute.xlu0 %5659
      %5661 = vrot.lane.b32.xlu0 %v1482, 72
      %v5662 = vpop.permute.xlu0 %5661
      %5663 = vrot.lane.b32.xlu0 %v1485, 72
      %v5664 = vpop.permute.xlu0 %5663
      %5665 = vrot.lane.b32.xlu0 %v1487, 72
      %v5666 = vpop.permute.xlu0 %5665
      %v5667 = vsel %vm1649, %v5636, 0
      %v5669 = vsel %vm1649, %v5638, 0
      %v5671 = vsel %vm1649, %v5640, 0
      %v5673 = vsel %vm1649, %v5642, 0
      %v5675 = vsel %vm1649, %v5644, 0
      %v5677 = vsel %vm1649, %v5646, 0
      %v5679 = vsel %vm1649, %v5648, 0
      %v5681 = vsel %vm1649, %v5650, 0
      %v5683 = vsel %vm1649, %v5652, 0
      %v5685 = vsel %vm1649, %v5654, 0
      %v5687 = vsel %vm1649, %v5656, 0
      %v5689 = vsel %vm1649, %v5658, 0
      %v5691 = vsel %vm1649, %v5660, 0
      %v5693 = vsel %vm1649, %v5662, 0
      %v5695 = vsel %vm1649, %v5664, 0
      %v5697 = vsel %vm1649, %v5666, 0
      %5699 = vmatpush.xpose.msra.mxu0 0.0
      %5700 = vmatpush.xpose.msra.mxu0 0.0
      %5701 = vmatpush.xpose.msra.mxu0 0.0
      %5702 = vmatpush.xpose.msra.mxu0 0.0
      %5703 = vmatpush.xpose.msra.mxu0 0.0
      %5704 = vmatpush.xpose.msra.mxu0 0.0
      %5705 = vmatpush.xpose.msra.mxu0 0.0
      %5706 = vmatpush.xpose.msra.mxu0 0.0
      %5707 = vmatpush.xpose.msra.mxu0 %v5697
      %5708 = vmatpush.xpose.msra.mxu0 %v5695
      %5709 = vmatpush.xpose.msra.mxu0 %v5693
      %5710 = vmatpush.xpose.msra.mxu0 %v5691
      %5711 = vmatpush.xpose.msra.mxu0 %v5689
      %5712 = vmatpush.xpose.msra.mxu0 %v5687
      %5713 = vmatpush.xpose.msra.mxu0 %v5685
      %5714 = vmatpush.xpose.msra.mxu0 %v5683
      %5715 = vmatmul.f32.gmra.mxu0 %v5667
      %v5716 = vpop.f32.mrf.mxu0
      %v5717 = vadd.f32 %v5627, %v5716
      %5718 = vmatmul.f32.gmra.mxu0 %v5669
      %v5719 = vpop.f32.mrf.mxu0
      %v5720 = vadd.f32 %v5628, %v5719
      %5721 = vmatmul.f32.gmra.mxu0 %v5671
      %v5722 = vpop.f32.mrf.mxu0
      %v5723 = vadd.f32 %v5629, %v5722
      %5724 = vmatmul.f32.gmra.mxu0 %v5673
      %v5725 = vpop.f32.mrf.mxu0
      %v5726 = vadd.f32 %v5630, %v5725
      %5727 = vmatmul.f32.gmra.mxu0 %v5675
      %v5728 = vpop.f32.mrf.mxu0
      %v5729 = vadd.f32 %v5631, %v5728
      %5730 = vmatmul.f32.gmra.mxu0 %v5677
      %v5731 = vpop.f32.mrf.mxu0
      %v5732 = vadd.f32 %v5632, %v5731
      %5733 = vmatmul.f32.gmra.mxu0 %v5679
      %v5734 = vpop.f32.mrf.mxu0
      %v5735 = vadd.f32 %v5633, %v5734
      %5736 = vmatmul.f32.gmra.mxu0 %v5681
      %v5737 = vpop.f32.mrf.mxu0
      %v5738 = vadd.f32 %v5634, %v5737
      %5739 = vdwg.mxu0
      %5740 = vrot.lane.b32.xlu0 %v1557, 104
      %v5741 = vpop.permute.xlu0 %5740
      %5742 = vrot.lane.b32.xlu0 %v1558, 104
      %v5743 = vpop.permute.xlu0 %5742
      %5744 = vrot.lane.b32.xlu0 %v1559, 104
      %v5745 = vpop.permute.xlu0 %5744
      %5746 = vrot.lane.b32.xlu0 %v1560, 104
      %v5747 = vpop.permute.xlu0 %5746
      %5748 = vrot.lane.b32.xlu0 %v1561, 104
      %v5749 = vpop.permute.xlu0 %5748
      %5750 = vrot.lane.b32.xlu0 %v1562, 104
      %v5751 = vpop.permute.xlu0 %5750
      %5752 = vrot.lane.b32.xlu0 %v1563, 104
      %v5753 = vpop.permute.xlu0 %5752
      %5754 = vrot.lane.b32.xlu0 %v1564, 104
      %v5755 = vpop.permute.xlu0 %5754
      %5756 = vrot.lane.b32.xlu0 %v1490, 72
      %v5757 = vpop.permute.xlu0 %5756
      %5758 = vrot.lane.b32.xlu0 %v1492, 72
      %v5759 = vpop.permute.xlu0 %5758
      %5760 = vrot.lane.b32.xlu0 %v1495, 72
      %v5761 = vpop.permute.xlu0 %5760
      %5762 = vrot.lane.b32.xlu0 %v1497, 72
      %v5763 = vpop.permute.xlu0 %5762
      %5764 = vrot.lane.b32.xlu0 %v1500, 72
      %v5765 = vpop.permute.xlu0 %5764
      %5766 = vrot.lane.b32.xlu0 %v1502, 72
      %v5767 = vpop.permute.xlu0 %5766
      %5768 = vrot.lane.b32.xlu0 %v1505, 72
      %v5769 = vpop.permute.xlu0 %5768
      %5770 = vrot.lane.b32.xlu0 %v1507, 72
      %v5771 = vpop.permute.xlu0 %5770
      %v5772 = vsel %vm1649, %v5741, 0
      %v5774 = vsel %vm1649, %v5743, 0
      %v5776 = vsel %vm1649, %v5745, 0
      %v5778 = vsel %vm1649, %v5747, 0
      %v5780 = vsel %vm1649, %v5749, 0
      %v5782 = vsel %vm1649, %v5751, 0
      %v5784 = vsel %vm1649, %v5753, 0
      %v5786 = vsel %vm1649, %v5755, 0
      %v5788 = vsel %vm1649, %v5757, 0
      %v5790 = vsel %vm1649, %v5759, 0
      %v5792 = vsel %vm1649, %v5761, 0
      %v5794 = vsel %vm1649, %v5763, 0
      %v5796 = vsel %vm1649, %v5765, 0
      %v5798 = vsel %vm1649, %v5767, 0
      %v5800 = vsel %vm1649, %v5769, 0
      %v5802 = vsel %vm1649, %v5771, 0
      %5804 = vmatpush.xpose.msra.mxu0 0.0
      %5805 = vmatpush.xpose.msra.mxu0 0.0
      %5806 = vmatpush.xpose.msra.mxu0 0.0
      %5807 = vmatpush.xpose.msra.mxu0 0.0
      %5808 = vmatpush.xpose.msra.mxu0 0.0
      %5809 = vmatpush.xpose.msra.mxu0 0.0
      %5810 = vmatpush.xpose.msra.mxu0 0.0
      %5811 = vmatpush.xpose.msra.mxu0 0.0
      %5812 = vmatpush.xpose.msra.mxu0 %v5802
      %5813 = vmatpush.xpose.msra.mxu0 %v5800
      %5814 = vmatpush.xpose.msra.mxu0 %v5798
      %5815 = vmatpush.xpose.msra.mxu0 %v5796
      %5816 = vmatpush.xpose.msra.mxu0 %v5794
      %5817 = vmatpush.xpose.msra.mxu0 %v5792
      %5818 = vmatpush.xpose.msra.mxu0 %v5790
      %5819 = vmatpush.xpose.msra.mxu0 %v5788
      %5820 = vmatmul.f32.gmra.mxu0 %v5772
      %v5821 = vpop.f32.mrf.mxu0
      %v5822 = vadd.f32 %v5627, %v5821
      %5823 = vmatmul.f32.gmra.mxu0 %v5774
      %v5824 = vpop.f32.mrf.mxu0
      %v5825 = vadd.f32 %v5628, %v5824
      %5826 = vmatmul.f32.gmra.mxu0 %v5776
      %v5827 = vpop.f32.mrf.mxu0
      %v5828 = vadd.f32 %v5629, %v5827
      %5829 = vmatmul.f32.gmra.mxu0 %v5778
      %v5830 = vpop.f32.mrf.mxu0
      %v5831 = vadd.f32 %v5630, %v5830
      %5832 = vmatmul.f32.gmra.mxu0 %v5780
      %v5833 = vpop.f32.mrf.mxu0
      %v5834 = vadd.f32 %v5631, %v5833
      %5835 = vmatmul.f32.gmra.mxu0 %v5782
      %v5836 = vpop.f32.mrf.mxu0
      %v5837 = vadd.f32 %v5632, %v5836
      %5838 = vmatmul.f32.gmra.mxu0 %v5784
      %v5839 = vpop.f32.mrf.mxu0
      %v5840 = vadd.f32 %v5633, %v5839
      %5841 = vmatmul.f32.gmra.mxu0 %v5786
      %v5842 = vpop.f32.mrf.mxu0
      %v5843 = vadd.f32 %v5634, %v5842
      %5844 = vdwg.mxu0
      %5845 = vrot.lane.b32.xlu0 %v1565, 104
      %v5846 = vpop.permute.xlu0 %5845
      %5847 = vrot.lane.b32.xlu0 %v1566, 104
      %v5848 = vpop.permute.xlu0 %5847
      %5849 = vrot.lane.b32.xlu0 %v1567, 104
      %v5850 = vpop.permute.xlu0 %5849
      %5851 = vrot.lane.b32.xlu0 %v1568, 104
      %v5852 = vpop.permute.xlu0 %5851
      %5853 = vrot.lane.b32.xlu0 %v1569, 104
      %v5854 = vpop.permute.xlu0 %5853
      %5855 = vrot.lane.b32.xlu0 %v1570, 104
      %v5856 = vpop.permute.xlu0 %5855
      %5857 = vrot.lane.b32.xlu0 %v1571, 104
      %v5858 = vpop.permute.xlu0 %5857
      %5859 = vrot.lane.b32.xlu0 %v1572, 104
      %v5860 = vpop.permute.xlu0 %5859
      %5861 = vrot.lane.b32.xlu0 %v1510, 72
      %v5862 = vpop.permute.xlu0 %5861
      %5863 = vrot.lane.b32.xlu0 %v1512, 72
      %v5864 = vpop.permute.xlu0 %5863
      %5865 = vrot.lane.b32.xlu0 %v1515, 72
      %v5866 = vpop.permute.xlu0 %5865
      %5867 = vrot.lane.b32.xlu0 %v1517, 72
      %v5868 = vpop.permute.xlu0 %5867
      %5869 = vrot.lane.b32.xlu0 %v1520, 72
      %v5870 = vpop.permute.xlu0 %5869
      %5871 = vrot.lane.b32.xlu0 %v1522, 72
      %v5872 = vpop.permute.xlu0 %5871
      %5873 = vrot.lane.b32.xlu0 %v1525, 72
      %v5874 = vpop.permute.xlu0 %5873
      %5875 = vrot.lane.b32.xlu0 %v1527, 72
      %v5876 = vpop.permute.xlu0 %5875
      %v5877 = vsel %vm1649, %v5846, 0
      %v5879 = vsel %vm1649, %v5848, 0
      %v5881 = vsel %vm1649, %v5850, 0
      %v5883 = vsel %vm1649, %v5852, 0
      %v5885 = vsel %vm1649, %v5854, 0
      %v5887 = vsel %vm1649, %v5856, 0
      %v5889 = vsel %vm1649, %v5858, 0
      %v5891 = vsel %vm1649, %v5860, 0
      %v5893 = vsel %vm1649, %v5862, 0
      %v5895 = vsel %vm1649, %v5864, 0
      %v5897 = vsel %vm1649, %v5866, 0
      %v5899 = vsel %vm1649, %v5868, 0
      %v5901 = vsel %vm1649, %v5870, 0
      %v5903 = vsel %vm1649, %v5872, 0
      %v5905 = vsel %vm1649, %v5874, 0
      %v5907 = vsel %vm1649, %v5876, 0
      %5909 = vmatpush.xpose.msra.mxu0 0.0
      %5910 = vmatpush.xpose.msra.mxu0 0.0
      %5911 = vmatpush.xpose.msra.mxu0 0.0
      %5912 = vmatpush.xpose.msra.mxu0 0.0
      %5913 = vmatpush.xpose.msra.mxu0 0.0
      %5914 = vmatpush.xpose.msra.mxu0 0.0
      %5915 = vmatpush.xpose.msra.mxu0 0.0
      %5916 = vmatpush.xpose.msra.mxu0 0.0
      %5917 = vmatpush.xpose.msra.mxu0 %v5907
      %5918 = vmatpush.xpose.msra.mxu0 %v5905
      %5919 = vmatpush.xpose.msra.mxu0 %v5903
      %5920 = vmatpush.xpose.msra.mxu0 %v5901
      %5921 = vmatpush.xpose.msra.mxu0 %v5899
      %5922 = vmatpush.xpose.msra.mxu0 %v5897
      %5923 = vmatpush.xpose.msra.mxu0 %v5895
      %5924 = vmatpush.xpose.msra.mxu0 %v5893
      %5925 = vmatmul.f32.gmra.mxu0 %v5877
      %v5926 = vpop.f32.mrf.mxu0
      %v5927 = vadd.f32 %v5627, %v5926
      %5928 = vmatmul.f32.gmra.mxu0 %v5879
      %v5929 = vpop.f32.mrf.mxu0
      %v5930 = vadd.f32 %v5628, %v5929
      %5931 = vmatmul.f32.gmra.mxu0 %v5881
      %v5932 = vpop.f32.mrf.mxu0
      %v5933 = vadd.f32 %v5629, %v5932
      %5934 = vmatmul.f32.gmra.mxu0 %v5883
      %v5935 = vpop.f32.mrf.mxu0
      %v5936 = vadd.f32 %v5630, %v5935
      %5937 = vmatmul.f32.gmra.mxu0 %v5885
      %v5938 = vpop.f32.mrf.mxu0
      %v5939 = vadd.f32 %v5631, %v5938
      %5940 = vmatmul.f32.gmra.mxu0 %v5887
      %v5941 = vpop.f32.mrf.mxu0
      %v5942 = vadd.f32 %v5632, %v5941
      %5943 = vmatmul.f32.gmra.mxu0 %v5889
      %v5944 = vpop.f32.mrf.mxu0
      %v5945 = vadd.f32 %v5633, %v5944
      %5946 = vmatmul.f32.gmra.mxu0 %v5891
      %v5947 = vpop.f32.mrf.mxu0
      %v5948 = vadd.f32 %v5634, %v5947
      %5949 = vdwg.mxu0
      %5950 = vrot.lane.b32.xlu0 %v1573, 104
      %v5951 = vpop.permute.xlu0 %5950
      %5952 = vrot.lane.b32.xlu0 %v1574, 104
      %v5953 = vpop.permute.xlu0 %5952
      %5954 = vrot.lane.b32.xlu0 %v1575, 104
      %v5955 = vpop.permute.xlu0 %5954
      %5956 = vrot.lane.b32.xlu0 %v1576, 104
      %v5957 = vpop.permute.xlu0 %5956
      %5958 = vrot.lane.b32.xlu0 %v1577, 104
      %v5959 = vpop.permute.xlu0 %5958
      %5960 = vrot.lane.b32.xlu0 %v1578, 104
      %v5961 = vpop.permute.xlu0 %5960
      %5962 = vrot.lane.b32.xlu0 %v1579, 104
      %v5963 = vpop.permute.xlu0 %5962
      %5964 = vrot.lane.b32.xlu0 %v1580, 104
      %v5965 = vpop.permute.xlu0 %5964
      %5966 = vrot.lane.b32.xlu0 %v1530, 72
      %v5967 = vpop.permute.xlu0 %5966
      %5968 = vrot.lane.b32.xlu0 %v1532, 72
      %v5969 = vpop.permute.xlu0 %5968
      %5970 = vrot.lane.b32.xlu0 %v1535, 72
      %v5971 = vpop.permute.xlu0 %5970
      %5972 = vrot.lane.b32.xlu0 %v1537, 72
      %v5973 = vpop.permute.xlu0 %5972
      %5974 = vrot.lane.b32.xlu0 %v1540, 72
      %v5975 = vpop.permute.xlu0 %5974
      %5976 = vrot.lane.b32.xlu0 %v1542, 72
      %v5977 = vpop.permute.xlu0 %5976
      %5978 = vrot.lane.b32.xlu0 %v1545, 72
      %v5979 = vpop.permute.xlu0 %5978
      %5980 = vrot.lane.b32.xlu0 %v1547, 72
      %v5981 = vpop.permute.xlu0 %5980
      %v5982 = vsel %vm1649, %v5951, 0
      %v5984 = vsel %vm1649, %v5953, 0
      %v5986 = vsel %vm1649, %v5955, 0
      %v5988 = vsel %vm1649, %v5957, 0
      %v5990 = vsel %vm1649, %v5959, 0
      %v5992 = vsel %vm1649, %v5961, 0
      %v5994 = vsel %vm1649, %v5963, 0
      %v5996 = vsel %vm1649, %v5965, 0
      %v5998 = vsel %vm1649, %v5967, 0
      %v6000 = vsel %vm1649, %v5969, 0
      %v6002 = vsel %vm1649, %v5971, 0
      %v6004 = vsel %vm1649, %v5973, 0
      %v6006 = vsel %vm1649, %v5975, 0
      %v6008 = vsel %vm1649, %v5977, 0
      %v6010 = vsel %vm1649, %v5979, 0
      %v6012 = vsel %vm1649, %v5981, 0
      %6014 = vmatpush.xpose.msra.mxu0 0.0
      %6015 = vmatpush.xpose.msra.mxu0 0.0
      %6016 = vmatpush.xpose.msra.mxu0 0.0
      %6017 = vmatpush.xpose.msra.mxu0 0.0
      %6018 = vmatpush.xpose.msra.mxu0 0.0
      %6019 = vmatpush.xpose.msra.mxu0 0.0
      %6020 = vmatpush.xpose.msra.mxu0 0.0
      %6021 = vmatpush.xpose.msra.mxu0 0.0
      %6022 = vmatpush.xpose.msra.mxu0 %v6012
      %6023 = vmatpush.xpose.msra.mxu0 %v6010
      %6024 = vmatpush.xpose.msra.mxu0 %v6008
      %6025 = vmatpush.xpose.msra.mxu0 %v6006
      %6026 = vmatpush.xpose.msra.mxu0 %v6004
      %6027 = vmatpush.xpose.msra.mxu0 %v6002
      %6028 = vmatpush.xpose.msra.mxu0 %v6000
      %6029 = vmatpush.xpose.msra.mxu0 %v5998
      %6030 = vmatmul.f32.gmra.mxu0 %v5982
      %v6031 = vpop.f32.mrf.mxu0
      %v6032 = vadd.f32 %v5627, %v6031
      %6033 = vmatmul.f32.gmra.mxu0 %v5984
      %v6034 = vpop.f32.mrf.mxu0
      %v6035 = vadd.f32 %v5628, %v6034
      %6036 = vmatmul.f32.gmra.mxu0 %v5986
      %v6037 = vpop.f32.mrf.mxu0
      %v6038 = vadd.f32 %v5629, %v6037
      %6039 = vmatmul.f32.gmra.mxu0 %v5988
      %v6040 = vpop.f32.mrf.mxu0
      %v6041 = vadd.f32 %v5630, %v6040
      %6042 = vmatmul.f32.gmra.mxu0 %v5990
      %v6043 = vpop.f32.mrf.mxu0
      %v6044 = vadd.f32 %v5631, %v6043
      %6045 = vmatmul.f32.gmra.mxu0 %v5992
      %v6046 = vpop.f32.mrf.mxu0
      %v6047 = vadd.f32 %v5632, %v6046
      %6048 = vmatmul.f32.gmra.mxu0 %v5994
      %v6049 = vpop.f32.mrf.mxu0
      %v6050 = vadd.f32 %v5633, %v6049
      %6051 = vmatmul.f32.gmra.mxu0 %v5996
      %v6052 = vpop.f32.mrf.mxu0
      %v6053 = vadd.f32 %v5634, %v6052
      %6054 = vdwg.mxu0
      %v6055 = vadd.f32 %v5717, %v1581
      %v6056 = vadd.f32 %v5720, %v1582
      %v6057 = vadd.f32 %v5723, %v1583
      %v6058 = vadd.f32 %v5726, %v1584
      %v6059 = vadd.f32 %v5729, %v1585
      %v6060 = vadd.f32 %v5732, %v1586
      %v6061 = vadd.f32 %v5735, %v1587
      %v6062 = vadd.f32 %v5738, %v1588
      %v6063 = vadd.f32 %v5822, %v1589
      %v6064 = vadd.f32 %v5825, %v1590
      %v6065 = vadd.f32 %v5828, %v1591
      %v6066 = vadd.f32 %v5831, %v1592
      %v6067 = vadd.f32 %v5834, %v1593
      %v6068 = vadd.f32 %v5837, %v1594
      %v6069 = vadd.f32 %v5840, %v1595
      %v6070 = vadd.f32 %v5843, %v1596
      %v6071 = vadd.f32 %v5927, %v1597
      %v6072 = vadd.f32 %v5930, %v1598
      %v6073 = vadd.f32 %v5933, %v1599
      %v6074 = vadd.f32 %v5936, %v1600
      %v6075 = vadd.f32 %v5939, %v1601
      %v6076 = vadd.f32 %v5942, %v1602
      %v6077 = vadd.f32 %v5945, %v1603
      %v6078 = vadd.f32 %v5948, %v1604
      %v6079 = vadd.f32 %v6032, %v1605
      %v6080 = vadd.f32 %v6035, %v1606
      %v6081 = vadd.f32 %v6038, %v1607
      %v6082 = vadd.f32 %v6041, %v1608
      %v6083 = vadd.f32 %v6044, %v1609
      %v6084 = vadd.f32 %v6047, %v1610
      %v6085 = vadd.f32 %v6050, %v1611
      %v6086 = vadd.f32 %v6053, %v1612
      %v6087 = vsel %vm2078, %v6055, -inf
      %6088 = vmax.xlane.f32.xlu0 %v6087
      %v6089 = vpop.xlane.xlu0 %6088
      %v6090 = vsel %vm2078, %v6056, -inf
      %6091 = vmax.xlane.f32.xlu0 %v6090
      %v6092 = vpop.xlane.xlu0 %6091
      %v6093 = vsel %vm2078, %v6057, -inf
      %6094 = vmax.xlane.f32.xlu0 %v6093
      %v6095 = vpop.xlane.xlu0 %6094
      %v6096 = vsel %vm2078, %v6058, -inf
      %6097 = vmax.xlane.f32.xlu0 %v6096
      %v6098 = vpop.xlane.xlu0 %6097
      %v6099 = vsel %vm2078, %v6059, -inf
      %6100 = vmax.xlane.f32.xlu0 %v6099
      %v6101 = vpop.xlane.xlu0 %6100
      %v6102 = vsel %vm2078, %v6060, -inf
      %6103 = vmax.xlane.f32.xlu0 %v6102
      %v6104 = vpop.xlane.xlu0 %6103
      %v6105 = vsel %vm2078, %v6061, -inf
      %6106 = vmax.xlane.f32.xlu0 %v6105
      %v6107 = vpop.xlane.xlu0 %6106
      %v6108 = vsel %vm2078, %v6062, -inf
      %6109 = vmax.xlane.f32.xlu0 %v6108
      %v6110 = vpop.xlane.xlu0 %6109
      %v6111 = vsel %vm2078, %v6063, -inf
      %6112 = vmax.xlane.f32.xlu0 %v6111
      %v6113 = vpop.xlane.xlu0 %6112
      %v6114 = vsel %vm2078, %v6064, -inf
      %6115 = vmax.xlane.f32.xlu0 %v6114
      %v6116 = vpop.xlane.xlu0 %6115
      %v6117 = vsel %vm2078, %v6065, -inf
      %6118 = vmax.xlane.f32.xlu0 %v6117
      %v6119 = vpop.xlane.xlu0 %6118
      %v6120 = vsel %vm2078, %v6066, -inf
      %6121 = vmax.xlane.f32.xlu0 %v6120
      %v6122 = vpop.xlane.xlu0 %6121
      %v6123 = vsel %vm2078, %v6067, -inf
      %6124 = vmax.xlane.f32.xlu0 %v6123
      %v6125 = vpop.xlane.xlu0 %6124
      %v6126 = vsel %vm2078, %v6068, -inf
      %6127 = vmax.xlane.f32.xlu0 %v6126
      %v6128 = vpop.xlane.xlu0 %6127
      %v6129 = vsel %vm2078, %v6069, -inf
      %6130 = vmax.xlane.f32.xlu0 %v6129
      %v6131 = vpop.xlane.xlu0 %6130
      %v6132 = vsel %vm2078, %v6070, -inf
      %6133 = vmax.xlane.f32.xlu0 %v6132
      %v6134 = vpop.xlane.xlu0 %6133
      %v6135 = vsel %vm2078, %v6071, -inf
      %6136 = vmax.xlane.f32.xlu0 %v6135
      %v6137 = vpop.xlane.xlu0 %6136
      %v6138 = vsel %vm2078, %v6072, -inf
      %6139 = vmax.xlane.f32.xlu0 %v6138
      %v6140 = vpop.xlane.xlu0 %6139
      %v6141 = vsel %vm2078, %v6073, -inf
      %6142 = vmax.xlane.f32.xlu0 %v6141
      %v6143 = vpop.xlane.xlu0 %6142
      %v6144 = vsel %vm2078, %v6074, -inf
      %6145 = vmax.xlane.f32.xlu0 %v6144
      %v6146 = vpop.xlane.xlu0 %6145
      %v6147 = vsel %vm2078, %v6075, -inf
      %6148 = vmax.xlane.f32.xlu0 %v6147
      %v6149 = vpop.xlane.xlu0 %6148
      %v6150 = vsel %vm2078, %v6076, -inf
      %6151 = vmax.xlane.f32.xlu0 %v6150
      %v6152 = vpop.xlane.xlu0 %6151
      %v6153 = vsel %vm2078, %v6077, -inf
      %6154 = vmax.xlane.f32.xlu0 %v6153
      %v6155 = vpop.xlane.xlu0 %6154
      %v6156 = vsel %vm2078, %v6078, -inf
      %6157 = vmax.xlane.f32.xlu0 %v6156
      %v6158 = vpop.xlane.xlu0 %6157
      %v6159 = vsel %vm2078, %v6079, -inf
      %6160 = vmax.xlane.f32.xlu0 %v6159
      %v6161 = vpop.xlane.xlu0 %6160
      %v6162 = vsel %vm2078, %v6080, -inf
      %6163 = vmax.xlane.f32.xlu0 %v6162
      %v6164 = vpop.xlane.xlu0 %6163
      %v6165 = vsel %vm2078, %v6081, -inf
      %6166 = vmax.xlane.f32.xlu0 %v6165
      %v6167 = vpop.xlane.xlu0 %6166
      %v6168 = vsel %vm2078, %v6082, -inf
      %6169 = vmax.xlane.f32.xlu0 %v6168
      %v6170 = vpop.xlane.xlu0 %6169
      %v6171 = vsel %vm2078, %v6083, -inf
      %6172 = vmax.xlane.f32.xlu0 %v6171
      %v6173 = vpop.xlane.xlu0 %6172
      %v6174 = vsel %vm2078, %v6084, -inf
      %6175 = vmax.xlane.f32.xlu0 %v6174
      %v6176 = vpop.xlane.xlu0 %6175
      %v6177 = vsel %vm2078, %v6085, -inf
      %6178 = vmax.xlane.f32.xlu0 %v6177
      %v6179 = vpop.xlane.xlu0 %6178
      %v6180 = vsel %vm2078, %v6086, -inf
      %6181 = vmax.xlane.f32.xlu0 %v6180
      %v6182 = vpop.xlane.xlu0 %6181
      %v6183 = vsub.f32 %v6055, %v6089
      %v6184 = vsub.f32 %v6056, %v6092
      %v6185 = vsub.f32 %v6057, %v6095
      %v6186 = vsub.f32 %v6058, %v6098
      %v6187 = vsub.f32 %v6059, %v6101
      %v6188 = vsub.f32 %v6060, %v6104
      %v6189 = vsub.f32 %v6061, %v6107
      %v6190 = vsub.f32 %v6062, %v6110
      %v6191 = vsub.f32 %v6063, %v6113
      %v6192 = vsub.f32 %v6064, %v6116
      %v6193 = vsub.f32 %v6065, %v6119
      %v6194 = vsub.f32 %v6066, %v6122
      %v6195 = vsub.f32 %v6067, %v6125
      %v6196 = vsub.f32 %v6068, %v6128
      %v6197 = vsub.f32 %v6069, %v6131
      %v6198 = vsub.f32 %v6070, %v6134
      %v6199 = vsub.f32 %v6071, %v6137
      %v6200 = vsub.f32 %v6072, %v6140
      %v6201 = vsub.f32 %v6073, %v6143
      %v6202 = vsub.f32 %v6074, %v6146
      %v6203 = vsub.f32 %v6075, %v6149
      %v6204 = vsub.f32 %v6076, %v6152
      %v6205 = vsub.f32 %v6077, %v6155
      %v6206 = vsub.f32 %v6078, %v6158
      %v6207 = vsub.f32 %v6079, %v6161
      %v6208 = vsub.f32 %v6080, %v6164
      %v6209 = vsub.f32 %v6081, %v6167
      %v6210 = vsub.f32 %v6082, %v6170
      %v6211 = vsub.f32 %v6083, %v6173
      %v6212 = vsub.f32 %v6084, %v6176
      %v6213 = vsub.f32 %v6085, %v6179
      %v6214 = vsub.f32 %v6086, %v6182
      %v6215 = vmul.f32 %v6183, 1.442695
      %v6216 = vpow.pop %v6215
      %v6217 = vmul.f32 %v6184, 1.442695
      %v6218 = vpow.pop %v6217
      %v6219 = vmul.f32 %v6185, 1.442695
      %v6220 = vpow.pop %v6219
      %v6221 = vmul.f32 %v6186, 1.442695
      %v6222 = vpow.pop %v6221
      %v6223 = vmul.f32 %v6187, 1.442695
      %v6224 = vpow.pop %v6223
      %v6225 = vmul.f32 %v6188, 1.442695
      %v6226 = vpow.pop %v6225
      %v6227 = vmul.f32 %v6189, 1.442695
      %v6228 = vpow.pop %v6227
      %v6229 = vmul.f32 %v6190, 1.442695
      %v6230 = vpow.pop %v6229
      %v6231 = vmul.f32 %v6191, 1.442695
      %v6232 = vpow.pop %v6231
      %v6233 = vmul.f32 %v6192, 1.442695
      %v6234 = vpow.pop %v6233
      %v6235 = vmul.f32 %v6193, 1.442695
      %v6236 = vpow.pop %v6235
      %v6237 = vmul.f32 %v6194, 1.442695
      %v6238 = vpow.pop %v6237
      %v6239 = vmul.f32 %v6195, 1.442695
      %v6240 = vpow.pop %v6239
      %v6241 = vmul.f32 %v6196, 1.442695
      %v6242 = vpow.pop %v6241
      %v6243 = vmul.f32 %v6197, 1.442695
      %v6244 = vpow.pop %v6243
      %v6245 = vmul.f32 %v6198, 1.442695
      %v6246 = vpow.pop %v6245
      %v6247 = vmul.f32 %v6199, 1.442695
      %v6248 = vpow.pop %v6247
      %v6249 = vmul.f32 %v6200, 1.442695
      %v6250 = vpow.pop %v6249
      %v6251 = vmul.f32 %v6201, 1.442695
      %v6252 = vpow.pop %v6251
      %v6253 = vmul.f32 %v6202, 1.442695
      %v6254 = vpow.pop %v6253
      %v6255 = vmul.f32 %v6203, 1.442695
      %v6256 = vpow.pop %v6255
      %v6257 = vmul.f32 %v6204, 1.442695
      %v6258 = vpow.pop %v6257
      %v6259 = vmul.f32 %v6205, 1.442695
      %v6260 = vpow.pop %v6259
      %v6261 = vmul.f32 %v6206, 1.442695
      %v6262 = vpow.pop %v6261
      %v6263 = vmul.f32 %v6207, 1.442695
      %v6264 = vpow.pop %v6263
      %v6265 = vmul.f32 %v6208, 1.442695
      %v6266 = vpow.pop %v6265
      %v6267 = vmul.f32 %v6209, 1.442695
      %v6268 = vpow.pop %v6267
      %v6269 = vmul.f32 %v6210, 1.442695
      %v6270 = vpow.pop %v6269
      %v6271 = vmul.f32 %v6211, 1.442695
      %v6272 = vpow.pop %v6271
      %v6273 = vmul.f32 %v6212, 1.442695
      %v6274 = vpow.pop %v6273
      %v6275 = vmul.f32 %v6213, 1.442695
      %v6276 = vpow.pop %v6275
      %v6277 = vmul.f32 %v6214, 1.442695
      %v6278 = vpow.pop %v6277
      %v6279 = vsel %vm2078, %v6216, 0.0
      %6280 = vadd.xlane.f32.xlu0 %v6279
      %v6281 = vpop.xlane.xlu0 %6280
      %v6282 = vsel %vm2078, %v6218, 0.0
      %6283 = vadd.xlane.f32.xlu0 %v6282
      %v6284 = vpop.xlane.xlu0 %6283
      %v6285 = vsel %vm2078, %v6220, 0.0
      %6286 = vadd.xlane.f32.xlu0 %v6285
      %v6287 = vpop.xlane.xlu0 %6286
      %v6288 = vsel %vm2078, %v6222, 0.0
      %6289 = vadd.xlane.f32.xlu0 %v6288
      %v6290 = vpop.xlane.xlu0 %6289
      %v6291 = vsel %vm2078, %v6224, 0.0
      %6292 = vadd.xlane.f32.xlu0 %v6291
      %v6293 = vpop.xlane.xlu0 %6292
      %v6294 = vsel %vm2078, %v6226, 0.0
      %6295 = vadd.xlane.f32.xlu0 %v6294
      %v6296 = vpop.xlane.xlu0 %6295
      %v6297 = vsel %vm2078, %v6228, 0.0
      %6298 = vadd.xlane.f32.xlu0 %v6297
      %v6299 = vpop.xlane.xlu0 %6298
      %v6300 = vsel %vm2078, %v6230, 0.0
      %6301 = vadd.xlane.f32.xlu0 %v6300
      %v6302 = vpop.xlane.xlu0 %6301
      %v6303 = vsel %vm2078, %v6232, 0.0
      %6304 = vadd.xlane.f32.xlu0 %v6303
      %v6305 = vpop.xlane.xlu0 %6304
      %v6306 = vsel %vm2078, %v6234, 0.0
      %6307 = vadd.xlane.f32.xlu0 %v6306
      %v6308 = vpop.xlane.xlu0 %6307
      %v6309 = vsel %vm2078, %v6236, 0.0
      %6310 = vadd.xlane.f32.xlu0 %v6309
      %v6311 = vpop.xlane.xlu0 %6310
      %v6312 = vsel %vm2078, %v6238, 0.0
      %6313 = vadd.xlane.f32.xlu0 %v6312
      %v6314 = vpop.xlane.xlu0 %6313
      %v6315 = vsel %vm2078, %v6240, 0.0
      %6316 = vadd.xlane.f32.xlu0 %v6315
      %v6317 = vpop.xlane.xlu0 %6316
      %v6318 = vsel %vm2078, %v6242, 0.0
      %6319 = vadd.xlane.f32.xlu0 %v6318
      %v6320 = vpop.xlane.xlu0 %6319
      %v6321 = vsel %vm2078, %v6244, 0.0
      %6322 = vadd.xlane.f32.xlu0 %v6321
      %v6323 = vpop.xlane.xlu0 %6322
      %v6324 = vsel %vm2078, %v6246, 0.0
      %6325 = vadd.xlane.f32.xlu0 %v6324
      %v6326 = vpop.xlane.xlu0 %6325
      %v6327 = vsel %vm2078, %v6248, 0.0
      %6328 = vadd.xlane.f32.xlu0 %v6327
      %v6329 = vpop.xlane.xlu0 %6328
      %v6330 = vsel %vm2078, %v6250, 0.0
      %6331 = vadd.xlane.f32.xlu0 %v6330
      %v6332 = vpop.xlane.xlu0 %6331
      %v6333 = vsel %vm2078, %v6252, 0.0
      %6334 = vadd.xlane.f32.xlu0 %v6333
      %v6335 = vpop.xlane.xlu0 %6334
      %v6336 = vsel %vm2078, %v6254, 0.0
      %6337 = vadd.xlane.f32.xlu0 %v6336
      %v6338 = vpop.xlane.xlu0 %6337
      %v6339 = vsel %vm2078, %v6256, 0.0
      %6340 = vadd.xlane.f32.xlu0 %v6339
      %v6341 = vpop.xlane.xlu0 %6340
      %v6342 = vsel %vm2078, %v6258, 0.0
      %6343 = vadd.xlane.f32.xlu0 %v6342
      %v6344 = vpop.xlane.xlu0 %6343
      %v6345 = vsel %vm2078, %v6260, 0.0
      %6346 = vadd.xlane.f32.xlu0 %v6345
      %v6347 = vpop.xlane.xlu0 %6346
      %v6348 = vsel %vm2078, %v6262, 0.0
      %6349 = vadd.xlane.f32.xlu0 %v6348
      %v6350 = vpop.xlane.xlu0 %6349
      %v6351 = vsel %vm2078, %v6264, 0.0
      %6352 = vadd.xlane.f32.xlu0 %v6351
      %v6353 = vpop.xlane.xlu0 %6352
      %v6354 = vsel %vm2078, %v6266, 0.0
      %6355 = vadd.xlane.f32.xlu0 %v6354
      %v6356 = vpop.xlane.xlu0 %6355
      %v6357 = vsel %vm2078, %v6268, 0.0
      %6358 = vadd.xlane.f32.xlu0 %v6357
      %v6359 = vpop.xlane.xlu0 %6358
      %v6360 = vsel %vm2078, %v6270, 0.0
      %6361 = vadd.xlane.f32.xlu0 %v6360
      %v6362 = vpop.xlane.xlu0 %6361
      %v6363 = vsel %vm2078, %v6272, 0.0
      %6364 = vadd.xlane.f32.xlu0 %v6363
      %v6365 = vpop.xlane.xlu0 %6364
      %v6366 = vsel %vm2078, %v6274, 0.0
      %6367 = vadd.xlane.f32.xlu0 %v6366
      %v6368 = vpop.xlane.xlu0 %6367
      %v6369 = vsel %vm2078, %v6276, 0.0
      %6370 = vadd.xlane.f32.xlu0 %v6369
      %v6371 = vpop.xlane.xlu0 %6370
      %v6372 = vsel %vm2078, %v6278, 0.0
      %6373 = vadd.xlane.f32.xlu0 %v6372
      %v6374 = vpop.xlane.xlu0 %6373
      %v6375 = vrcp.pop %v6281
      %v6376 = vrcp.pop %v6284
      %v6377 = vrcp.pop %v6287
      %v6378 = vrcp.pop %v6290
      %v6379 = vrcp.pop %v6293
      %v6380 = vrcp.pop %v6296
      %v6381 = vrcp.pop %v6299
      %v6382 = vrcp.pop %v6302
      %v6383 = vrcp.pop %v6305
      %v6384 = vrcp.pop %v6308
      %v6385 = vrcp.pop %v6311
      %v6386 = vrcp.pop %v6314
      %v6387 = vrcp.pop %v6317
      %v6388 = vrcp.pop %v6320
      %v6389 = vrcp.pop %v6323
      %v6390 = vrcp.pop %v6326
      %v6391 = vrcp.pop %v6329
      %v6392 = vrcp.pop %v6332
      %v6393 = vrcp.pop %v6335
      %v6394 = vrcp.pop %v6338
      %v6395 = vrcp.pop %v6341
      %v6396 = vrcp.pop %v6344
      %v6397 = vrcp.pop %v6347
      %v6398 = vrcp.pop %v6350
      %v6399 = vrcp.pop %v6353
      %v6400 = vrcp.pop %v6356
      %v6401 = vrcp.pop %v6359
      %v6402 = vrcp.pop %v6362
      %v6403 = vrcp.pop %v6365
      %v6404 = vrcp.pop %v6368
      %v6405 = vrcp.pop %v6371
      %v6406 = vrcp.pop %v6374
      %v6407 = vmul.f32 %v6216, %v6375
      %v6408 = vmul.f32 %v6218, %v6376
      %v6409 = vmul.f32 %v6220, %v6377
      %v6410 = vmul.f32 %v6222, %v6378
      %v6411 = vmul.f32 %v6224, %v6379
      %v6412 = vmul.f32 %v6226, %v6380
      %v6413 = vmul.f32 %v6228, %v6381
      %v6414 = vmul.f32 %v6230, %v6382
      %v6415 = vmul.f32 %v6232, %v6383
      %v6416 = vmul.f32 %v6234, %v6384
      %v6417 = vmul.f32 %v6236, %v6385
      %v6418 = vmul.f32 %v6238, %v6386
      %v6419 = vmul.f32 %v6240, %v6387
      %v6420 = vmul.f32 %v6242, %v6388
      %v6421 = vmul.f32 %v6244, %v6389
      %v6422 = vmul.f32 %v6246, %v6390
      %v6423 = vmul.f32 %v6248, %v6391
      %v6424 = vmul.f32 %v6250, %v6392
      %v6425 = vmul.f32 %v6252, %v6393
      %v6426 = vmul.f32 %v6254, %v6394
      %v6427 = vmul.f32 %v6256, %v6395
      %v6428 = vmul.f32 %v6258, %v6396
      %v6429 = vmul.f32 %v6260, %v6397
      %v6430 = vmul.f32 %v6262, %v6398
      %v6431 = vmul.f32 %v6264, %v6399
      %v6432 = vmul.f32 %v6266, %v6400
      %v6433 = vmul.f32 %v6268, %v6401
      %v6434 = vmul.f32 %v6270, %v6402
      %v6435 = vmul.f32 %v6272, %v6403
      %v6436 = vmul.f32 %v6274, %v6404
      %v6437 = vmul.f32 %v6276, %v6405
      %v6438 = vmul.f32 %v6278, %v6406
      %6439 = vrot.lane.b32.xlu0 %v1470, 40
      %v6440 = vpop.permute.xlu0 %6439
      %6441 = vrot.lane.b32.xlu0 %v1472, 40
      %v6442 = vpop.permute.xlu0 %6441
      %6443 = vrot.lane.b32.xlu0 %v1475, 40
      %v6444 = vpop.permute.xlu0 %6443
      %6445 = vrot.lane.b32.xlu0 %v1477, 40
      %v6446 = vpop.permute.xlu0 %6445
      %6447 = vrot.lane.b32.xlu0 %v1480, 40
      %v6448 = vpop.permute.xlu0 %6447
      %6449 = vrot.lane.b32.xlu0 %v1482, 40
      %v6450 = vpop.permute.xlu0 %6449
      %6451 = vrot.lane.b32.xlu0 %v1485, 40
      %v6452 = vpop.permute.xlu0 %6451
      %6453 = vrot.lane.b32.xlu0 %v1487, 40
      %v6454 = vpop.permute.xlu0 %6453
      %v6464 = vsel %vm2078, %v6407, 0
      %v6467 = vsel %vm2078, %v6408, 0
      %v6470 = vsel %vm2078, %v6409, 0
      %v6473 = vsel %vm2078, %v6410, 0
      %v6476 = vsel %vm2078, %v6411, 0
      %v6479 = vsel %vm2078, %v6412, 0
      %v6482 = vsel %vm2078, %v6413, 0
      %v6485 = vsel %vm2078, %v6414, 0
      %6487 = vmatpush.msra.mxu0 0.0
      %6488 = vmatpush.msra.mxu0 0.0
      %6489 = vmatpush.msra.mxu0 0.0
      %6490 = vmatpush.msra.mxu0 0.0
      %6491 = vmatpush.msra.mxu0 0.0
      %6492 = vmatpush.msra.mxu0 0.0
      %6493 = vmatpush.msra.mxu0 0.0
      %6494 = vmatpush.msra.mxu0 0.0
      %6495 = vmatpush.msra.mxu0 %v6454
      %6496 = vmatpush.msra.mxu0 %v6452
      %6497 = vmatpush.msra.mxu0 %v6450
      %6498 = vmatpush.msra.mxu0 %v6448
      %6499 = vmatpush.msra.mxu0 %v6446
      %6500 = vmatpush.msra.mxu0 %v6444
      %6501 = vmatpush.msra.mxu0 %v6442
      %6502 = vmatpush.msra.mxu0 %v6440
      %6503 = vmatmul.f32.gmra.mxu0 %v6464
      %v6504 = vpop.f32.mrf.mxu0
      %v6505 = vadd.f32 0.0, %v6504
      %6506 = vmatmul.f32.gmra.mxu0 %v6467
      %v6507 = vpop.f32.mrf.mxu0
      %v6508 = vadd.f32 0.0, %v6507
      %6509 = vmatmul.f32.gmra.mxu0 %v6470
      %v6510 = vpop.f32.mrf.mxu0
      %v6511 = vadd.f32 0.0, %v6510
      %6512 = vmatmul.f32.gmra.mxu0 %v6473
      %v6513 = vpop.f32.mrf.mxu0
      %v6514 = vadd.f32 0.0, %v6513
      %6515 = vmatmul.f32.gmra.mxu0 %v6476
      %v6516 = vpop.f32.mrf.mxu0
      %v6517 = vadd.f32 0.0, %v6516
      %6518 = vmatmul.f32.gmra.mxu0 %v6479
      %v6519 = vpop.f32.mrf.mxu0
      %v6520 = vadd.f32 0.0, %v6519
      %6521 = vmatmul.f32.gmra.mxu0 %v6482
      %v6522 = vpop.f32.mrf.mxu0
      %v6523 = vadd.f32 0.0, %v6522
      %6524 = vmatmul.f32.gmra.mxu0 %v6485
      %v6525 = vpop.f32.mrf.mxu0
      %v6526 = vadd.f32 0.0, %v6525
      %6527 = vdwg.mxu0
      %6528 = vrot.lane.b32.xlu0 %v1490, 40
      %v6529 = vpop.permute.xlu0 %6528
      %6530 = vrot.lane.b32.xlu0 %v1492, 40
      %v6531 = vpop.permute.xlu0 %6530
      %6532 = vrot.lane.b32.xlu0 %v1495, 40
      %v6533 = vpop.permute.xlu0 %6532
      %6534 = vrot.lane.b32.xlu0 %v1497, 40
      %v6535 = vpop.permute.xlu0 %6534
      %6536 = vrot.lane.b32.xlu0 %v1500, 40
      %v6537 = vpop.permute.xlu0 %6536
      %6538 = vrot.lane.b32.xlu0 %v1502, 40
      %v6539 = vpop.permute.xlu0 %6538
      %6540 = vrot.lane.b32.xlu0 %v1505, 40
      %v6541 = vpop.permute.xlu0 %6540
      %6542 = vrot.lane.b32.xlu0 %v1507, 40
      %v6543 = vpop.permute.xlu0 %6542
      %v6553 = vsel %vm2078, %v6415, 0
      %v6556 = vsel %vm2078, %v6416, 0
      %v6559 = vsel %vm2078, %v6417, 0
      %v6562 = vsel %vm2078, %v6418, 0
      %v6565 = vsel %vm2078, %v6419, 0
      %v6568 = vsel %vm2078, %v6420, 0
      %v6571 = vsel %vm2078, %v6421, 0
      %v6574 = vsel %vm2078, %v6422, 0
      %6576 = vmatpush.msra.mxu0 0.0
      %6577 = vmatpush.msra.mxu0 0.0
      %6578 = vmatpush.msra.mxu0 0.0
      %6579 = vmatpush.msra.mxu0 0.0
      %6580 = vmatpush.msra.mxu0 0.0
      %6581 = vmatpush.msra.mxu0 0.0
      %6582 = vmatpush.msra.mxu0 0.0
      %6583 = vmatpush.msra.mxu0 0.0
      %6584 = vmatpush.msra.mxu0 %v6543
      %6585 = vmatpush.msra.mxu0 %v6541
      %6586 = vmatpush.msra.mxu0 %v6539
      %6587 = vmatpush.msra.mxu0 %v6537
      %6588 = vmatpush.msra.mxu0 %v6535
      %6589 = vmatpush.msra.mxu0 %v6533
      %6590 = vmatpush.msra.mxu0 %v6531
      %6591 = vmatpush.msra.mxu0 %v6529
      %6592 = vmatmul.f32.gmra.mxu0 %v6553
      %v6593 = vpop.f32.mrf.mxu0
      %v6594 = vadd.f32 0.0, %v6593
      %6595 = vmatmul.f32.gmra.mxu0 %v6556
      %v6596 = vpop.f32.mrf.mxu0
      %v6597 = vadd.f32 0.0, %v6596
      %6598 = vmatmul.f32.gmra.mxu0 %v6559
      %v6599 = vpop.f32.mrf.mxu0
      %v6600 = vadd.f32 0.0, %v6599
      %6601 = vmatmul.f32.gmra.mxu0 %v6562
      %v6602 = vpop.f32.mrf.mxu0
      %v6603 = vadd.f32 0.0, %v6602
      %6604 = vmatmul.f32.gmra.mxu0 %v6565
      %v6605 = vpop.f32.mrf.mxu0
      %v6606 = vadd.f32 0.0, %v6605
      %6607 = vmatmul.f32.gmra.mxu0 %v6568
      %v6608 = vpop.f32.mrf.mxu0
      %v6609 = vadd.f32 0.0, %v6608
      %6610 = vmatmul.f32.gmra.mxu0 %v6571
      %v6611 = vpop.f32.mrf.mxu0
      %v6612 = vadd.f32 0.0, %v6611
      %6613 = vmatmul.f32.gmra.mxu0 %v6574
      %v6614 = vpop.f32.mrf.mxu0
      %v6615 = vadd.f32 0.0, %v6614
      %6616 = vdwg.mxu0
      %6617 = vrot.lane.b32.xlu0 %v1510, 40
      %v6618 = vpop.permute.xlu0 %6617
      %6619 = vrot.lane.b32.xlu0 %v1512, 40
      %v6620 = vpop.permute.xlu0 %6619
      %6621 = vrot.lane.b32.xlu0 %v1515, 40
      %v6622 = vpop.permute.xlu0 %6621
      %6623 = vrot.lane.b32.xlu0 %v1517, 40
      %v6624 = vpop.permute.xlu0 %6623
      %6625 = vrot.lane.b32.xlu0 %v1520, 40
      %v6626 = vpop.permute.xlu0 %6625
      %6627 = vrot.lane.b32.xlu0 %v1522, 40
      %v6628 = vpop.permute.xlu0 %6627
      %6629 = vrot.lane.b32.xlu0 %v1525, 40
      %v6630 = vpop.permute.xlu0 %6629
      %6631 = vrot.lane.b32.xlu0 %v1527, 40
      %v6632 = vpop.permute.xlu0 %6631
      %v6642 = vsel %vm2078, %v6423, 0
      %v6645 = vsel %vm2078, %v6424, 0
      %v6648 = vsel %vm2078, %v6425, 0
      %v6651 = vsel %vm2078, %v6426, 0
      %v6654 = vsel %vm2078, %v6427, 0
      %v6657 = vsel %vm2078, %v6428, 0
      %v6660 = vsel %vm2078, %v6429, 0
      %v6663 = vsel %vm2078, %v6430, 0
      %6665 = vmatpush.msra.mxu0 0.0
      %6666 = vmatpush.msra.mxu0 0.0
      %6667 = vmatpush.msra.mxu0 0.0
      %6668 = vmatpush.msra.mxu0 0.0
      %6669 = vmatpush.msra.mxu0 0.0
      %6670 = vmatpush.msra.mxu0 0.0
      %6671 = vmatpush.msra.mxu0 0.0
      %6672 = vmatpush.msra.mxu0 0.0
      %6673 = vmatpush.msra.mxu0 %v6632
      %6674 = vmatpush.msra.mxu0 %v6630
      %6675 = vmatpush.msra.mxu0 %v6628
      %6676 = vmatpush.msra.mxu0 %v6626
      %6677 = vmatpush.msra.mxu0 %v6624
      %6678 = vmatpush.msra.mxu0 %v6622
      %6679 = vmatpush.msra.mxu0 %v6620
      %6680 = vmatpush.msra.mxu0 %v6618
      %6681 = vmatmul.f32.gmra.mxu0 %v6642
      %v6682 = vpop.f32.mrf.mxu0
      %v6683 = vadd.f32 0.0, %v6682
      %6684 = vmatmul.f32.gmra.mxu0 %v6645
      %v6685 = vpop.f32.mrf.mxu0
      %v6686 = vadd.f32 0.0, %v6685
      %6687 = vmatmul.f32.gmra.mxu0 %v6648
      %v6688 = vpop.f32.mrf.mxu0
      %v6689 = vadd.f32 0.0, %v6688
      %6690 = vmatmul.f32.gmra.mxu0 %v6651
      %v6691 = vpop.f32.mrf.mxu0
      %v6692 = vadd.f32 0.0, %v6691
      %6693 = vmatmul.f32.gmra.mxu0 %v6654
      %v6694 = vpop.f32.mrf.mxu0
      %v6695 = vadd.f32 0.0, %v6694
      %6696 = vmatmul.f32.gmra.mxu0 %v6657
      %v6697 = vpop.f32.mrf.mxu0
      %v6698 = vadd.f32 0.0, %v6697
      %6699 = vmatmul.f32.gmra.mxu0 %v6660
      %v6700 = vpop.f32.mrf.mxu0
      %v6701 = vadd.f32 0.0, %v6700
      %6702 = vmatmul.f32.gmra.mxu0 %v6663
      %v6703 = vpop.f32.mrf.mxu0
      %v6704 = vadd.f32 0.0, %v6703
      %6705 = vdwg.mxu0
      %6706 = vrot.lane.b32.xlu0 %v1530, 40
      %v6707 = vpop.permute.xlu0 %6706
      %6708 = vrot.lane.b32.xlu0 %v1532, 40
      %v6709 = vpop.permute.xlu0 %6708
      %6710 = vrot.lane.b32.xlu0 %v1535, 40
      %v6711 = vpop.permute.xlu0 %6710
      %6712 = vrot.lane.b32.xlu0 %v1537, 40
      %v6713 = vpop.permute.xlu0 %6712
      %6714 = vrot.lane.b32.xlu0 %v1540, 40
      %v6715 = vpop.permute.xlu0 %6714
      %6716 = vrot.lane.b32.xlu0 %v1542, 40
      %v6717 = vpop.permute.xlu0 %6716
      %6718 = vrot.lane.b32.xlu0 %v1545, 40
      %v6719 = vpop.permute.xlu0 %6718
      %6720 = vrot.lane.b32.xlu0 %v1547, 40
      %v6721 = vpop.permute.xlu0 %6720
      %v6731 = vsel %vm2078, %v6431, 0
      %v6734 = vsel %vm2078, %v6432, 0
      %v6737 = vsel %vm2078, %v6433, 0
      %v6740 = vsel %vm2078, %v6434, 0
      %v6743 = vsel %vm2078, %v6435, 0
      %v6746 = vsel %vm2078, %v6436, 0
      %v6749 = vsel %vm2078, %v6437, 0
      %v6752 = vsel %vm2078, %v6438, 0
      %6754 = vmatpush.msra.mxu0 0.0
      %6755 = vmatpush.msra.mxu0 0.0
      %6756 = vmatpush.msra.mxu0 0.0
      %6757 = vmatpush.msra.mxu0 0.0
      %6758 = vmatpush.msra.mxu0 0.0
      %6759 = vmatpush.msra.mxu0 0.0
      %6760 = vmatpush.msra.mxu0 0.0
      %6761 = vmatpush.msra.mxu0 0.0
      %6762 = vmatpush.msra.mxu0 %v6721
      %6763 = vmatpush.msra.mxu0 %v6719
      %6764 = vmatpush.msra.mxu0 %v6717
      %6765 = vmatpush.msra.mxu0 %v6715
      %6766 = vmatpush.msra.mxu0 %v6713
      %6767 = vmatpush.msra.mxu0 %v6711
      %6768 = vmatpush.msra.mxu0 %v6709
      %6769 = vmatpush.msra.mxu0 %v6707
      %6770 = vmatmul.f32.gmra.mxu0 %v6731
      %v6771 = vpop.f32.mrf.mxu0
      %v6772 = vadd.f32 0.0, %v6771
      %6773 = vmatmul.f32.gmra.mxu0 %v6734
      %v6774 = vpop.f32.mrf.mxu0
      %v6775 = vadd.f32 0.0, %v6774
      %6776 = vmatmul.f32.gmra.mxu0 %v6737
      %v6777 = vpop.f32.mrf.mxu0
      %v6778 = vadd.f32 0.0, %v6777
      %6779 = vmatmul.f32.gmra.mxu0 %v6740
      %v6780 = vpop.f32.mrf.mxu0
      %v6781 = vadd.f32 0.0, %v6780
      %6782 = vmatmul.f32.gmra.mxu0 %v6743
      %v6783 = vpop.f32.mrf.mxu0
      %v6784 = vadd.f32 0.0, %v6783
      %6785 = vmatmul.f32.gmra.mxu0 %v6746
      %v6786 = vpop.f32.mrf.mxu0
      %v6787 = vadd.f32 0.0, %v6786
      %6788 = vmatmul.f32.gmra.mxu0 %v6749
      %v6789 = vpop.f32.mrf.mxu0
      %v6790 = vadd.f32 0.0, %v6789
      %6791 = vmatmul.f32.gmra.mxu0 %v6752
      %v6792 = vpop.f32.mrf.mxu0
      %v6793 = vadd.f32 0.0, %v6792
      %6794 = vdwg.mxu0
      %v6795 = vpack.c.bf16 %v6508, %v6505
      %v6796 = vpack.c.bf16 %v6514, %v6511
      %v6797 = vpack.c.bf16 %v6520, %v6517
      %v6798 = vpack.c.bf16 %v6526, %v6523
      %v6799 = vpack.c.bf16 %v6597, %v6594
      %v6800 = vpack.c.bf16 %v6603, %v6600
      %v6801 = vpack.c.bf16 %v6609, %v6606
      %v6802 = vpack.c.bf16 %v6615, %v6612
      %v6803 = vpack.c.bf16 %v6686, %v6683
      %v6804 = vpack.c.bf16 %v6692, %v6689
      %v6805 = vpack.c.bf16 %v6698, %v6695
      %v6806 = vpack.c.bf16 %v6704, %v6701
      %v6807 = vpack.c.bf16 %v6775, %v6772
      %v6808 = vpack.c.bf16 %v6781, %v6778
      %v6809 = vpack.c.bf16 %v6787, %v6784
      %v6810 = vpack.c.bf16 %v6793, %v6790
      %v6812 = vsel %vm1649, %v6795, 0
      %v6815 = vsel %vm1649, %v6796, 0
      %v6818 = vsel %vm1649, %v6797, 0
      %v6821 = vsel %vm1649, %v6798, 0
      %v6824 = vsel %vm1649, %v6799, 0
      %v6827 = vsel %vm1649, %v6800, 0
      %v6830 = vsel %vm1649, %v6801, 0
      %v6833 = vsel %vm1649, %v6802, 0
      %v6836 = vsel %vm1649, %v6803, 0
      %v6839 = vsel %vm1649, %v6804, 0
      %v6842 = vsel %vm1649, %v6805, 0
      %v6845 = vsel %vm1649, %v6806, 0
      %v6848 = vsel %vm1649, %v6807, 0
      %v6851 = vsel %vm1649, %v6808, 0
      %v6854 = vsel %vm1649, %v6809, 0
      %v6857 = vsel %vm1649, %v6810, 0
      %v6860 = vsel %vm4036, %v1616, 0
      %6862 = vmatpush.bf16.msra.mxu0 0
      %6863 = vmatpush.bf16.msra.mxu0 0
      %6864 = vmatpush.bf16.msra.mxu0 0
      %6865 = vmatpush.bf16.msra.mxu0 0
      %6866 = vmatpush.bf16.msra.mxu0 0
      %6867 = vmatpush.bf16.msra.mxu0 0
      %6868 = vmatpush.bf16.msra.mxu0 0
      %6869 = vmatpush.bf16.msra.mxu0 %v6860
      %6870 = vmatmul.bf16.gmra.mxu0 %v6812
      %v6871 = vpop.f32.mrf.mxu0
      %v6872 = vadd.f32 0.0, %v6871
      %v6873 = vpop.f32.mrf.mxu0
      %v6874 = vadd.f32 0.0, %v6873
      %6875 = vmatmul.bf16.gmra.mxu0 %v6815
      %v6876 = vpop.f32.mrf.mxu0
      %v6877 = vadd.f32 0.0, %v6876
      %v6878 = vpop.f32.mrf.mxu0
      %v6879 = vadd.f32 0.0, %v6878
      %6880 = vmatmul.bf16.gmra.mxu0 %v6818
      %v6881 = vpop.f32.mrf.mxu0
      %v6882 = vadd.f32 0.0, %v6881
      %v6883 = vpop.f32.mrf.mxu0
      %v6884 = vadd.f32 0.0, %v6883
      %6885 = vmatmul.bf16.gmra.mxu0 %v6821
      %v6886 = vpop.f32.mrf.mxu0
      %v6887 = vadd.f32 0.0, %v6886
      %v6888 = vpop.f32.mrf.mxu0
      %v6889 = vadd.f32 0.0, %v6888
      %6890 = vmatmul.bf16.gmra.mxu0 %v6824
      %v6891 = vpop.f32.mrf.mxu0
      %v6892 = vadd.f32 0.0, %v6891
      %v6893 = vpop.f32.mrf.mxu0
      %v6894 = vadd.f32 0.0, %v6893
      %6895 = vmatmul.bf16.gmra.mxu0 %v6827
      %v6896 = vpop.f32.mrf.mxu0
      %v6897 = vadd.f32 0.0, %v6896
      %v6898 = vpop.f32.mrf.mxu0
      %v6899 = vadd.f32 0.0, %v6898
      %6900 = vmatmul.bf16.gmra.mxu0 %v6830
      %v6901 = vpop.f32.mrf.mxu0
      %v6902 = vadd.f32 0.0, %v6901
      %v6903 = vpop.f32.mrf.mxu0
      %v6904 = vadd.f32 0.0, %v6903
      %6905 = vmatmul.bf16.gmra.mxu0 %v6833
      %v6906 = vpop.f32.mrf.mxu0
      %v6907 = vadd.f32 0.0, %v6906
      %v6908 = vpop.f32.mrf.mxu0
      %v6909 = vadd.f32 0.0, %v6908
      %6910 = vmatmul.bf16.gmra.mxu0 %v6836
      %v6911 = vpop.f32.mrf.mxu0
      %v6912 = vadd.f32 0.0, %v6911
      %v6913 = vpop.f32.mrf.mxu0
      %v6914 = vadd.f32 0.0, %v6913
      %6915 = vmatmul.bf16.gmra.mxu0 %v6839
      %v6916 = vpop.f32.mrf.mxu0
      %v6917 = vadd.f32 0.0, %v6916
      %v6918 = vpop.f32.mrf.mxu0
      %v6919 = vadd.f32 0.0, %v6918
      %6920 = vmatmul.bf16.gmra.mxu0 %v6842
      %v6921 = vpop.f32.mrf.mxu0
      %v6922 = vadd.f32 0.0, %v6921
      %v6923 = vpop.f32.mrf.mxu0
      %v6924 = vadd.f32 0.0, %v6923
      %6925 = vmatmul.bf16.gmra.mxu0 %v6845
      %v6926 = vpop.f32.mrf.mxu0
      %v6927 = vadd.f32 0.0, %v6926
      %v6928 = vpop.f32.mrf.mxu0
      %v6929 = vadd.f32 0.0, %v6928
      %6930 = vmatmul.bf16.gmra.mxu0 %v6848
      %v6931 = vpop.f32.mrf.mxu0
      %v6932 = vadd.f32 0.0, %v6931
      %v6933 = vpop.f32.mrf.mxu0
      %v6934 = vadd.f32 0.0, %v6933
      %6935 = vmatmul.bf16.gmra.mxu0 %v6851
      %v6936 = vpop.f32.mrf.mxu0
      %v6937 = vadd.f32 0.0, %v6936
      %v6938 = vpop.f32.mrf.mxu0
      %v6939 = vadd.f32 0.0, %v6938
      %6940 = vmatmul.bf16.gmra.mxu0 %v6854
      %v6941 = vpop.f32.mrf.mxu0
      %v6942 = vadd.f32 0.0, %v6941
      %v6943 = vpop.f32.mrf.mxu0
      %v6944 = vadd.f32 0.0, %v6943
      %6945 = vmatmul.bf16.gmra.mxu0 %v6857
      %v6946 = vpop.f32.mrf.mxu0
      %v6947 = vadd.f32 0.0, %v6946
      %v6948 = vpop.f32.mrf.mxu0
      %v6949 = vadd.f32 0.0, %v6948
      %6950 = vdwg.mxu0
      %v6951 = vadd.f32 %v5594, %v6872
      %v6952 = vadd.f32 %v5595, %v6874
      %v6953 = vadd.f32 %v5596, %v6877
      %v6954 = vadd.f32 %v5597, %v6879
      %v6955 = vadd.f32 %v5598, %v6882
      %v6956 = vadd.f32 %v5599, %v6884
      %v6957 = vadd.f32 %v5600, %v6887
      %v6958 = vadd.f32 %v5601, %v6889
      %v6959 = vadd.f32 %v5602, %v6892
      %v6960 = vadd.f32 %v5603, %v6894
      %v6961 = vadd.f32 %v5604, %v6897
      %v6962 = vadd.f32 %v5605, %v6899
      %v6963 = vadd.f32 %v5606, %v6902
      %v6964 = vadd.f32 %v5607, %v6904
      %v6965 = vadd.f32 %v5608, %v6907
      %v6966 = vadd.f32 %v5609, %v6909
      %v6967 = vadd.f32 %v5610, %v6912
      %v6968 = vadd.f32 %v5611, %v6914
      %v6969 = vadd.f32 %v5612, %v6917
      %v6970 = vadd.f32 %v5613, %v6919
      %v6971 = vadd.f32 %v5614, %v6922
      %v6972 = vadd.f32 %v5615, %v6924
      %v6973 = vadd.f32 %v5616, %v6927
      %v6974 = vadd.f32 %v5617, %v6929
      %v6975 = vadd.f32 %v5618, %v6932
      %v6976 = vadd.f32 %v5619, %v6934
      %v6977 = vadd.f32 %v5620, %v6937
      %v6978 = vadd.f32 %v5621, %v6939
      %v6979 = vadd.f32 %v5622, %v6942
      %v6980 = vadd.f32 %v5623, %v6944
      %v6981 = vadd.f32 %v5624, %v6947
      %v6982 = vadd.f32 %v5625, %v6949
      %v6983 = vld [vmem:[%s8] sm:$0x1]
      %v6985 = vperm.slane %v6983, 0
      %v6987 = vadd.f32 %v6951, %v6985
      %v6988 = vadd.f32 %v6952, %v6985
      %v6989 = vadd.f32 %v6953, %v6985
      %v6990 = vadd.f32 %v6954, %v6985
      %v6991 = vadd.f32 %v6955, %v6985
      %v6992 = vadd.f32 %v6956, %v6985
      %v6993 = vadd.f32 %v6957, %v6985
      %v6994 = vadd.f32 %v6958, %v6985
      %v6995 = vadd.f32 %v6959, %v6985
      %v6996 = vadd.f32 %v6960, %v6985
      %v6997 = vadd.f32 %v6961, %v6985
      %v6998 = vadd.f32 %v6962, %v6985
      %v6999 = vadd.f32 %v6963, %v6985
      %v7000 = vadd.f32 %v6964, %v6985
      %v7001 = vadd.f32 %v6965, %v6985
      %v7002 = vadd.f32 %v6966, %v6985
      %v7003 = vadd.f32 %v6967, %v6985
      %v7004 = vadd.f32 %v6968, %v6985
      %v7005 = vadd.f32 %v6969, %v6985
      %v7006 = vadd.f32 %v6970, %v6985
      %v7007 = vadd.f32 %v6971, %v6985
      %v7008 = vadd.f32 %v6972, %v6985
      %v7009 = vadd.f32 %v6973, %v6985
      %v7010 = vadd.f32 %v6974, %v6985
      %v7011 = vadd.f32 %v6975, %v6985
      %v7012 = vadd.f32 %v6976, %v6985
      %v7013 = vadd.f32 %v6977, %v6985
      %v7014 = vadd.f32 %v6978, %v6985
      %v7015 = vadd.f32 %v6979, %v6985
      %v7016 = vadd.f32 %v6980, %v6985
      %v7017 = vadd.f32 %v6981, %v6985
      %v7018 = vadd.f32 %v6982, %v6985
      %v7019 = vadd.f32 %v496, %v6987
      %v7020 = vadd.f32 %v497, %v6988
      %v7021 = vadd.f32 %v498, %v6989
      %v7022 = vadd.f32 %v499, %v6990
      %v7023 = vadd.f32 %v500, %v6991
      %v7024 = vadd.f32 %v501, %v6992
      %v7025 = vadd.f32 %v502, %v6993
      %v7026 = vadd.f32 %v503, %v6994
      %v7027 = vadd.f32 %v504, %v6995
      %v7028 = vadd.f32 %v505, %v6996
      %v7029 = vadd.f32 %v506, %v6997
      %v7030 = vadd.f32 %v507, %v6998
      %v7031 = vadd.f32 %v508, %v6999
      %v7032 = vadd.f32 %v509, %v7000
      %v7033 = vadd.f32 %v510, %v7001
      %v7034 = vadd.f32 %v511, %v7002
      %v7035 = vadd.f32 %v512, %v7003
      %v7036 = vadd.f32 %v513, %v7004
      %v7037 = vadd.f32 %v514, %v7005
      %v7038 = vadd.f32 %v515, %v7006
      %v7039 = vadd.f32 %v516, %v7007
      %v7040 = vadd.f32 %v517, %v7008
      %v7041 = vadd.f32 %v518, %v7009
      %v7042 = vadd.f32 %v519, %v7010
      %v7043 = vadd.f32 %v520, %v7011
      %v7044 = vadd.f32 %v521, %v7012
      %v7045 = vadd.f32 %v522, %v7013
      %v7046 = vadd.f32 %v523, %v7014
      %v7047 = vadd.f32 %v524, %v7015
      %v7048 = vadd.f32 %v525, %v7016
      %v7049 = vadd.f32 %v526, %v7017
      %v7050 = vadd.f32 %v527, %v7018
      %v7051 = vsel %vm528, %v7019, 0.0
      %7052 = vadd.xlane.f32.xlu0 %v7051
      %v7053 = vpop.xlane.xlu0 %7052
      %v7054 = vsel %vm528, %v7020, 0.0
      %7055 = vadd.xlane.f32.xlu0 %v7054
      %v7056 = vpop.xlane.xlu0 %7055
      %v7057 = vsel %vm528, %v7021, 0.0
      %7058 = vadd.xlane.f32.xlu0 %v7057
      %v7059 = vpop.xlane.xlu0 %7058
      %v7060 = vsel %vm528, %v7022, 0.0
      %7061 = vadd.xlane.f32.xlu0 %v7060
      %v7062 = vpop.xlane.xlu0 %7061
      %v7063 = vsel %vm528, %v7023, 0.0
      %7064 = vadd.xlane.f32.xlu0 %v7063
      %v7065 = vpop.xlane.xlu0 %7064
      %v7066 = vsel %vm528, %v7024, 0.0
      %7067 = vadd.xlane.f32.xlu0 %v7066
      %v7068 = vpop.xlane.xlu0 %7067
      %v7069 = vsel %vm528, %v7025, 0.0
      %7070 = vadd.xlane.f32.xlu0 %v7069
      %v7071 = vpop.xlane.xlu0 %7070
      %v7072 = vsel %vm528, %v7026, 0.0
      %7073 = vadd.xlane.f32.xlu0 %v7072
      %v7074 = vpop.xlane.xlu0 %7073
      %v7075 = vsel %vm528, %v7027, 0.0
      %7076 = vadd.xlane.f32.xlu0 %v7075
      %v7077 = vpop.xlane.xlu0 %7076
      %v7078 = vsel %vm528, %v7028, 0.0
      %7079 = vadd.xlane.f32.xlu0 %v7078
      %v7080 = vpop.xlane.xlu0 %7079
      %v7081 = vsel %vm528, %v7029, 0.0
      %7082 = vadd.xlane.f32.xlu0 %v7081
      %v7083 = vpop.xlane.xlu0 %7082
      %v7084 = vsel %vm528, %v7030, 0.0
      %7085 = vadd.xlane.f32.xlu0 %v7084
      %v7086 = vpop.xlane.xlu0 %7085
      %v7087 = vsel %vm528, %v7031, 0.0
      %7088 = vadd.xlane.f32.xlu0 %v7087
      %v7089 = vpop.xlane.xlu0 %7088
      %v7090 = vsel %vm528, %v7032, 0.0
      %7091 = vadd.xlane.f32.xlu0 %v7090
      %v7092 = vpop.xlane.xlu0 %7091
      %v7093 = vsel %vm528, %v7033, 0.0
      %7094 = vadd.xlane.f32.xlu0 %v7093
      %v7095 = vpop.xlane.xlu0 %7094
      %v7096 = vsel %vm528, %v7034, 0.0
      %7097 = vadd.xlane.f32.xlu0 %v7096
      %v7098 = vpop.xlane.xlu0 %7097
      %v7099 = vsel %vm528, %v7035, 0.0
      %7100 = vadd.xlane.f32.xlu0 %v7099
      %v7101 = vpop.xlane.xlu0 %7100
      %v7102 = vsel %vm528, %v7036, 0.0
      %7103 = vadd.xlane.f32.xlu0 %v7102
      %v7104 = vpop.xlane.xlu0 %7103
      %v7105 = vsel %vm528, %v7037, 0.0
      %7106 = vadd.xlane.f32.xlu0 %v7105
      %v7107 = vpop.xlane.xlu0 %7106
      %v7108 = vsel %vm528, %v7038, 0.0
      %7109 = vadd.xlane.f32.xlu0 %v7108
      %v7110 = vpop.xlane.xlu0 %7109
      %v7111 = vsel %vm528, %v7039, 0.0
      %7112 = vadd.xlane.f32.xlu0 %v7111
      %v7113 = vpop.xlane.xlu0 %7112
      %v7114 = vsel %vm528, %v7040, 0.0
      %7115 = vadd.xlane.f32.xlu0 %v7114
      %v7116 = vpop.xlane.xlu0 %7115
      %v7117 = vsel %vm528, %v7041, 0.0
      %7118 = vadd.xlane.f32.xlu0 %v7117
      %v7119 = vpop.xlane.xlu0 %7118
      %v7120 = vsel %vm528, %v7042, 0.0
      %7121 = vadd.xlane.f32.xlu0 %v7120
      %v7122 = vpop.xlane.xlu0 %7121
      %v7123 = vsel %vm528, %v7043, 0.0
      %7124 = vadd.xlane.f32.xlu0 %v7123
      %v7125 = vpop.xlane.xlu0 %7124
      %v7126 = vsel %vm528, %v7044, 0.0
      %7127 = vadd.xlane.f32.xlu0 %v7126
      %v7128 = vpop.xlane.xlu0 %7127
      %v7129 = vsel %vm528, %v7045, 0.0
      %7130 = vadd.xlane.f32.xlu0 %v7129
      %v7131 = vpop.xlane.xlu0 %7130
      %v7132 = vsel %vm528, %v7046, 0.0
      %7133 = vadd.xlane.f32.xlu0 %v7132
      %v7134 = vpop.xlane.xlu0 %7133
      %v7135 = vsel %vm528, %v7047, 0.0
      %7136 = vadd.xlane.f32.xlu0 %v7135
      %v7137 = vpop.xlane.xlu0 %7136
      %v7138 = vsel %vm528, %v7048, 0.0
      %7139 = vadd.xlane.f32.xlu0 %v7138
      %v7140 = vpop.xlane.xlu0 %7139
      %v7141 = vsel %vm528, %v7049, 0.0
      %7142 = vadd.xlane.f32.xlu0 %v7141
      %v7143 = vpop.xlane.xlu0 %7142
      %v7144 = vsel %vm528, %v7050, 0.0
      %7145 = vadd.xlane.f32.xlu0 %v7144
      %v7146 = vpop.xlane.xlu0 %7145
      %v7147 = vmul.f32 %v7053, %v631
      %v7148 = vmul.f32 %v7056, %v631
      %v7149 = vmul.f32 %v7059, %v631
      %v7150 = vmul.f32 %v7062, %v631
      %v7151 = vmul.f32 %v7065, %v631
      %v7152 = vmul.f32 %v7068, %v631
      %v7153 = vmul.f32 %v7071, %v631
      %v7154 = vmul.f32 %v7074, %v631
      %v7155 = vmul.f32 %v7077, %v631
      %v7156 = vmul.f32 %v7080, %v631
      %v7157 = vmul.f32 %v7083, %v631
      %v7158 = vmul.f32 %v7086, %v631
      %v7159 = vmul.f32 %v7089, %v631
      %v7160 = vmul.f32 %v7092, %v631
      %v7161 = vmul.f32 %v7095, %v631
      %v7162 = vmul.f32 %v7098, %v631
      %v7163 = vmul.f32 %v7101, %v631
      %v7164 = vmul.f32 %v7104, %v631
      %v7165 = vmul.f32 %v7107, %v631
      %v7166 = vmul.f32 %v7110, %v631
      %v7167 = vmul.f32 %v7113, %v631
      %v7168 = vmul.f32 %v7116, %v631
      %v7169 = vmul.f32 %v7119, %v631
      %v7170 = vmul.f32 %v7122, %v631
      %v7171 = vmul.f32 %v7125, %v631
      %v7172 = vmul.f32 %v7128, %v631
      %v7173 = vmul.f32 %v7131, %v631
      %v7174 = vmul.f32 %v7134, %v631
      %v7175 = vmul.f32 %v7137, %v631
      %v7176 = vmul.f32 %v7140, %v631
      %v7177 = vmul.f32 %v7143, %v631
      %v7178 = vmul.f32 %v7146, %v631
      %v7179 = vmul.f32 %v7019, %v7019
      %v7180 = vmul.f32 %v7020, %v7020
      %v7181 = vmul.f32 %v7021, %v7021
      %v7182 = vmul.f32 %v7022, %v7022
      %v7183 = vmul.f32 %v7023, %v7023
      %v7184 = vmul.f32 %v7024, %v7024
      %v7185 = vmul.f32 %v7025, %v7025
      %v7186 = vmul.f32 %v7026, %v7026
      %v7187 = vmul.f32 %v7027, %v7027
      %v7188 = vmul.f32 %v7028, %v7028
      %v7189 = vmul.f32 %v7029, %v7029
      %v7190 = vmul.f32 %v7030, %v7030
      %v7191 = vmul.f32 %v7031, %v7031
      %v7192 = vmul.f32 %v7032, %v7032
      %v7193 = vmul.f32 %v7033, %v7033
      %v7194 = vmul.f32 %v7034, %v7034
      %v7195 = vmul.f32 %v7035, %v7035
      %v7196 = vmul.f32 %v7036, %v7036
      %v7197 = vmul.f32 %v7037, %v7037
      %v7198 = vmul.f32 %v7038, %v7038
      %v7199 = vmul.f32 %v7039, %v7039
      %v7200 = vmul.f32 %v7040, %v7040
      %v7201 = vmul.f32 %v7041, %v7041
      %v7202 = vmul.f32 %v7042, %v7042
      %v7203 = vmul.f32 %v7043, %v7043
      %v7204 = vmul.f32 %v7044, %v7044
      %v7205 = vmul.f32 %v7045, %v7045
      %v7206 = vmul.f32 %v7046, %v7046
      %v7207 = vmul.f32 %v7047, %v7047
      %v7208 = vmul.f32 %v7048, %v7048
      %v7209 = vmul.f32 %v7049, %v7049
      %v7210 = vmul.f32 %v7050, %v7050
      %v7211 = vsel %vm528, %v7179, 0.0
      %7212 = vadd.xlane.f32.xlu0 %v7211
      %v7213 = vpop.xlane.xlu0 %7212
      %v7214 = vsel %vm528, %v7180, 0.0
      %7215 = vadd.xlane.f32.xlu0 %v7214
      %v7216 = vpop.xlane.xlu0 %7215
      %v7217 = vsel %vm528, %v7181, 0.0
      %7218 = vadd.xlane.f32.xlu0 %v7217
      %v7219 = vpop.xlane.xlu0 %7218
      %v7220 = vsel %vm528, %v7182, 0.0
      %7221 = vadd.xlane.f32.xlu0 %v7220
      %v7222 = vpop.xlane.xlu0 %7221
      %v7223 = vsel %vm528, %v7183, 0.0
      %7224 = vadd.xlane.f32.xlu0 %v7223
      %v7225 = vpop.xlane.xlu0 %7224
      %v7226 = vsel %vm528, %v7184, 0.0
      %7227 = vadd.xlane.f32.xlu0 %v7226
      %v7228 = vpop.xlane.xlu0 %7227
      %v7229 = vsel %vm528, %v7185, 0.0
      %7230 = vadd.xlane.f32.xlu0 %v7229
      %v7231 = vpop.xlane.xlu0 %7230
      %v7232 = vsel %vm528, %v7186, 0.0
      %7233 = vadd.xlane.f32.xlu0 %v7232
      %v7234 = vpop.xlane.xlu0 %7233
      %v7235 = vsel %vm528, %v7187, 0.0
      %7236 = vadd.xlane.f32.xlu0 %v7235
      %v7237 = vpop.xlane.xlu0 %7236
      %v7238 = vsel %vm528, %v7188, 0.0
      %7239 = vadd.xlane.f32.xlu0 %v7238
      %v7240 = vpop.xlane.xlu0 %7239
      %v7241 = vsel %vm528, %v7189, 0.0
      %7242 = vadd.xlane.f32.xlu0 %v7241
      %v7243 = vpop.xlane.xlu0 %7242
      %v7244 = vsel %vm528, %v7190, 0.0
      %7245 = vadd.xlane.f32.xlu0 %v7244
      %v7246 = vpop.xlane.xlu0 %7245
      %v7247 = vsel %vm528, %v7191, 0.0
      %7248 = vadd.xlane.f32.xlu0 %v7247
      %v7249 = vpop.xlane.xlu0 %7248
      %v7250 = vsel %vm528, %v7192, 0.0
      %7251 = vadd.xlane.f32.xlu0 %v7250
      %v7252 = vpop.xlane.xlu0 %7251
      %v7253 = vsel %vm528, %v7193, 0.0
      %7254 = vadd.xlane.f32.xlu0 %v7253
      %v7255 = vpop.xlane.xlu0 %7254
      %v7256 = vsel %vm528, %v7194, 0.0
      %7257 = vadd.xlane.f32.xlu0 %v7256
      %v7258 = vpop.xlane.xlu0 %7257
      %v7259 = vsel %vm528, %v7195, 0.0
      %7260 = vadd.xlane.f32.xlu0 %v7259
      %v7261 = vpop.xlane.xlu0 %7260
      %v7262 = vsel %vm528, %v7196, 0.0
      %7263 = vadd.xlane.f32.xlu0 %v7262
      %v7264 = vpop.xlane.xlu0 %7263
      %v7265 = vsel %vm528, %v7197, 0.0
      %7266 = vadd.xlane.f32.xlu0 %v7265
      %v7267 = vpop.xlane.xlu0 %7266
      %v7268 = vsel %vm528, %v7198, 0.0
      %7269 = vadd.xlane.f32.xlu0 %v7268
      %v7270 = vpop.xlane.xlu0 %7269
      %v7271 = vsel %vm528, %v7199, 0.0
      %7272 = vadd.xlane.f32.xlu0 %v7271
      %v7273 = vpop.xlane.xlu0 %7272
      %v7274 = vsel %vm528, %v7200, 0.0
      %7275 = vadd.xlane.f32.xlu0 %v7274
      %v7276 = vpop.xlane.xlu0 %7275
      %v7277 = vsel %vm528, %v7201, 0.0
      %7278 = vadd.xlane.f32.xlu0 %v7277
      %v7279 = vpop.xlane.xlu0 %7278
      %v7280 = vsel %vm528, %v7202, 0.0
      %7281 = vadd.xlane.f32.xlu0 %v7280
      %v7282 = vpop.xlane.xlu0 %7281
      %v7283 = vsel %vm528, %v7203, 0.0
      %7284 = vadd.xlane.f32.xlu0 %v7283
      %v7285 = vpop.xlane.xlu0 %7284
      %v7286 = vsel %vm528, %v7204, 0.0
      %7287 = vadd.xlane.f32.xlu0 %v7286
      %v7288 = vpop.xlane.xlu0 %7287
      %v7289 = vsel %vm528, %v7205, 0.0
      %7290 = vadd.xlane.f32.xlu0 %v7289
      %v7291 = vpop.xlane.xlu0 %7290
      %v7292 = vsel %vm528, %v7206, 0.0
      %7293 = vadd.xlane.f32.xlu0 %v7292
      %v7294 = vpop.xlane.xlu0 %7293
      %v7295 = vsel %vm528, %v7207, 0.0
      %7296 = vadd.xlane.f32.xlu0 %v7295
      %v7297 = vpop.xlane.xlu0 %7296
      %v7298 = vsel %vm528, %v7208, 0.0
      %7299 = vadd.xlane.f32.xlu0 %v7298
      %v7300 = vpop.xlane.xlu0 %7299
      %v7301 = vsel %vm528, %v7209, 0.0
      %7302 = vadd.xlane.f32.xlu0 %v7301
      %v7303 = vpop.xlane.xlu0 %7302
      %v7304 = vsel %vm528, %v7210, 0.0
      %7305 = vadd.xlane.f32.xlu0 %v7304
      %v7306 = vpop.xlane.xlu0 %7305
      %v7307 = vmul.f32 %v7213, %v631
      %v7308 = vmul.f32 %v7216, %v631
      %v7309 = vmul.f32 %v7219, %v631
      %v7310 = vmul.f32 %v7222, %v631
      %v7311 = vmul.f32 %v7225, %v631
      %v7312 = vmul.f32 %v7228, %v631
      %v7313 = vmul.f32 %v7231, %v631
      %v7314 = vmul.f32 %v7234, %v631
      %v7315 = vmul.f32 %v7237, %v631
      %v7316 = vmul.f32 %v7240, %v631
      %v7317 = vmul.f32 %v7243, %v631
      %v7318 = vmul.f32 %v7246, %v631
      %v7319 = vmul.f32 %v7249, %v631
      %v7320 = vmul.f32 %v7252, %v631
      %v7321 = vmul.f32 %v7255, %v631
      %v7322 = vmul.f32 %v7258, %v631
      %v7323 = vmul.f32 %v7261, %v631
      %v7324 = vmul.f32 %v7264, %v631
      %v7325 = vmul.f32 %v7267, %v631
      %v7326 = vmul.f32 %v7270, %v631
      %v7327 = vmul.f32 %v7273, %v631
      %v7328 = vmul.f32 %v7276, %v631
      %v7329 = vmul.f32 %v7279, %v631
      %v7330 = vmul.f32 %v7282, %v631
      %v7331 = vmul.f32 %v7285, %v631
      %v7332 = vmul.f32 %v7288, %v631
      %v7333 = vmul.f32 %v7291, %v631
      %v7334 = vmul.f32 %v7294, %v631
      %v7335 = vmul.f32 %v7297, %v631
      %v7336 = vmul.f32 %v7300, %v631
      %v7337 = vmul.f32 %v7303, %v631
      %v7338 = vmul.f32 %v7306, %v631
      %v7339 = vsub.f32 %v7019, %v7147
      %v7340 = vsub.f32 %v7020, %v7148
      %v7341 = vsub.f32 %v7021, %v7149
      %v7342 = vsub.f32 %v7022, %v7150
      %v7343 = vsub.f32 %v7023, %v7151
      %v7344 = vsub.f32 %v7024, %v7152
      %v7345 = vsub.f32 %v7025, %v7153
      %v7346 = vsub.f32 %v7026, %v7154
      %v7347 = vsub.f32 %v7027, %v7155
      %v7348 = vsub.f32 %v7028, %v7156
      %v7349 = vsub.f32 %v7029, %v7157
      %v7350 = vsub.f32 %v7030, %v7158
      %v7351 = vsub.f32 %v7031, %v7159
      %v7352 = vsub.f32 %v7032, %v7160
      %v7353 = vsub.f32 %v7033, %v7161
      %v7354 = vsub.f32 %v7034, %v7162
      %v7355 = vsub.f32 %v7035, %v7163
      %v7356 = vsub.f32 %v7036, %v7164
      %v7357 = vsub.f32 %v7037, %v7165
      %v7358 = vsub.f32 %v7038, %v7166
      %v7359 = vsub.f32 %v7039, %v7167
      %v7360 = vsub.f32 %v7040, %v7168
      %v7361 = vsub.f32 %v7041, %v7169
      %v7362 = vsub.f32 %v7042, %v7170
      %v7363 = vsub.f32 %v7043, %v7171
      %v7364 = vsub.f32 %v7044, %v7172
      %v7365 = vsub.f32 %v7045, %v7173
      %v7366 = vsub.f32 %v7046, %v7174
      %v7367 = vsub.f32 %v7047, %v7175
      %v7368 = vsub.f32 %v7048, %v7176
      %v7369 = vsub.f32 %v7049, %v7177
      %v7370 = vsub.f32 %v7050, %v7178
      %v7371 = vmul.f32 %v7147, %v7147
      %v7372 = vmul.f32 %v7148, %v7148
      %v7373 = vmul.f32 %v7149, %v7149
      %v7374 = vmul.f32 %v7150, %v7150
      %v7375 = vmul.f32 %v7151, %v7151
      %v7376 = vmul.f32 %v7152, %v7152
      %v7377 = vmul.f32 %v7153, %v7153
      %v7378 = vmul.f32 %v7154, %v7154
      %v7379 = vmul.f32 %v7155, %v7155
      %v7380 = vmul.f32 %v7156, %v7156
      %v7381 = vmul.f32 %v7157, %v7157
      %v7382 = vmul.f32 %v7158, %v7158
      %v7383 = vmul.f32 %v7159, %v7159
      %v7384 = vmul.f32 %v7160, %v7160
      %v7385 = vmul.f32 %v7161, %v7161
      %v7386 = vmul.f32 %v7162, %v7162
      %v7387 = vmul.f32 %v7163, %v7163
      %v7388 = vmul.f32 %v7164, %v7164
      %v7389 = vmul.f32 %v7165, %v7165
      %v7390 = vmul.f32 %v7166, %v7166
      %v7391 = vmul.f32 %v7167, %v7167
      %v7392 = vmul.f32 %v7168, %v7168
      %v7393 = vmul.f32 %v7169, %v7169
      %v7394 = vmul.f32 %v7170, %v7170
      %v7395 = vmul.f32 %v7171, %v7171
      %v7396 = vmul.f32 %v7172, %v7172
      %v7397 = vmul.f32 %v7173, %v7173
      %v7398 = vmul.f32 %v7174, %v7174
      %v7399 = vmul.f32 %v7175, %v7175
      %v7400 = vmul.f32 %v7176, %v7176
      %v7401 = vmul.f32 %v7177, %v7177
      %v7402 = vmul.f32 %v7178, %v7178
      %v7403 = vsub.f32 %v7307, %v7371
      %v7404 = vsub.f32 %v7308, %v7372
      %v7405 = vsub.f32 %v7309, %v7373
      %v7406 = vsub.f32 %v7310, %v7374
      %v7407 = vsub.f32 %v7311, %v7375
      %v7408 = vsub.f32 %v7312, %v7376
      %v7409 = vsub.f32 %v7313, %v7377
      %v7410 = vsub.f32 %v7314, %v7378
      %v7411 = vsub.f32 %v7315, %v7379
      %v7412 = vsub.f32 %v7316, %v7380
      %v7413 = vsub.f32 %v7317, %v7381
      %v7414 = vsub.f32 %v7318, %v7382
      %v7415 = vsub.f32 %v7319, %v7383
      %v7416 = vsub.f32 %v7320, %v7384
      %v7417 = vsub.f32 %v7321, %v7385
      %v7418 = vsub.f32 %v7322, %v7386
      %v7419 = vsub.f32 %v7323, %v7387
      %v7420 = vsub.f32 %v7324, %v7388
      %v7421 = vsub.f32 %v7325, %v7389
      %v7422 = vsub.f32 %v7326, %v7390
      %v7423 = vsub.f32 %v7327, %v7391
      %v7424 = vsub.f32 %v7328, %v7392
      %v7425 = vsub.f32 %v7329, %v7393
      %v7426 = vsub.f32 %v7330, %v7394
      %v7427 = vsub.f32 %v7331, %v7395
      %v7428 = vsub.f32 %v7332, %v7396
      %v7429 = vsub.f32 %v7333, %v7397
      %v7430 = vsub.f32 %v7334, %v7398
      %v7431 = vsub.f32 %v7335, %v7399
      %v7432 = vsub.f32 %v7336, %v7400
      %v7433 = vsub.f32 %v7337, %v7401
      %v7434 = vsub.f32 %v7338, %v7402
      %v7435 = vadd.f32 %v7403, 1e-05
      %v7436 = vadd.f32 %v7404, 1e-05
      %v7437 = vadd.f32 %v7405, 1e-05
      %v7438 = vadd.f32 %v7406, 1e-05
      %v7439 = vadd.f32 %v7407, 1e-05
      %v7440 = vadd.f32 %v7408, 1e-05
      %v7441 = vadd.f32 %v7409, 1e-05
      %v7442 = vadd.f32 %v7410, 1e-05
      %v7443 = vadd.f32 %v7411, 1e-05
      %v7444 = vadd.f32 %v7412, 1e-05
      %v7445 = vadd.f32 %v7413, 1e-05
      %v7446 = vadd.f32 %v7414, 1e-05
      %v7447 = vadd.f32 %v7415, 1e-05
      %v7448 = vadd.f32 %v7416, 1e-05
      %v7449 = vadd.f32 %v7417, 1e-05
      %v7450 = vadd.f32 %v7418, 1e-05
      %v7451 = vadd.f32 %v7419, 1e-05
      %v7452 = vadd.f32 %v7420, 1e-05
      %v7453 = vadd.f32 %v7421, 1e-05
      %v7454 = vadd.f32 %v7422, 1e-05
      %v7455 = vadd.f32 %v7423, 1e-05
      %v7456 = vadd.f32 %v7424, 1e-05
      %v7457 = vadd.f32 %v7425, 1e-05
      %v7458 = vadd.f32 %v7426, 1e-05
      %v7459 = vadd.f32 %v7427, 1e-05
      %v7460 = vadd.f32 %v7428, 1e-05
      %v7461 = vadd.f32 %v7429, 1e-05
      %v7462 = vadd.f32 %v7430, 1e-05
      %v7463 = vadd.f32 %v7431, 1e-05
      %v7464 = vadd.f32 %v7432, 1e-05
      %v7465 = vadd.f32 %v7433, 1e-05
      %v7466 = vadd.f32 %v7434, 1e-05
      %v7467 = vrsqrt.pop %v7435
      %v7468 = vmul.f32 %v7467, %v7435
      %v7469 = vmul.f32 %v7468, %v7467
      %v7470 = vmul.f32 0.5, %v7469
      %v7471 = vsub.f32 1.5, %v7470
      %v7472 = vmul.f32 %v7467, %v7471
      %vm7473 = vweird.f32 %v7435
      %vm7474 = vweird.f32 %v7467
      %vm7475 = vmor %vm7473, %vm7474
      %v7476 = vsel %vm7475, %v7467, %v7472
      %v7477 = vrsqrt.pop %v7436
      %v7478 = vmul.f32 %v7477, %v7436
      %v7479 = vmul.f32 %v7478, %v7477
      %v7480 = vmul.f32 0.5, %v7479
      %v7481 = vsub.f32 1.5, %v7480
      %v7482 = vmul.f32 %v7477, %v7481
      %vm7483 = vweird.f32 %v7436
      %vm7484 = vweird.f32 %v7477
      %vm7485 = vmor %vm7483, %vm7484
      %v7486 = vsel %vm7485, %v7477, %v7482
      %v7487 = vrsqrt.pop %v7437
      %v7488 = vmul.f32 %v7487, %v7437
      %v7489 = vmul.f32 %v7488, %v7487
      %v7490 = vmul.f32 0.5, %v7489
      %v7491 = vsub.f32 1.5, %v7490
      %v7492 = vmul.f32 %v7487, %v7491
      %vm7493 = vweird.f32 %v7437
      %vm7494 = vweird.f32 %v7487
      %vm7495 = vmor %vm7493, %vm7494
      %v7496 = vsel %vm7495, %v7487, %v7492
      %v7497 = vrsqrt.pop %v7438
      %v7498 = vmul.f32 %v7497, %v7438
      %v7499 = vmul.f32 %v7498, %v7497
      %v7500 = vmul.f32 0.5, %v7499
      %v7501 = vsub.f32 1.5, %v7500
      %v7502 = vmul.f32 %v7497, %v7501
      %vm7503 = vweird.f32 %v7438
      %vm7504 = vweird.f32 %v7497
      %vm7505 = vmor %vm7503, %vm7504
      %v7506 = vsel %vm7505, %v7497, %v7502
      %v7507 = vrsqrt.pop %v7439
      %v7508 = vmul.f32 %v7507, %v7439
      %v7509 = vmul.f32 %v7508, %v7507
      %v7510 = vmul.f32 0.5, %v7509
      %v7511 = vsub.f32 1.5, %v7510
      %v7512 = vmul.f32 %v7507, %v7511
      %vm7513 = vweird.f32 %v7439
      %vm7514 = vweird.f32 %v7507
      %vm7515 = vmor %vm7513, %vm7514
      %v7516 = vsel %vm7515, %v7507, %v7512
      %v7517 = vrsqrt.pop %v7440
      %v7518 = vmul.f32 %v7517, %v7440
      %v7519 = vmul.f32 %v7518, %v7517
      %v7520 = vmul.f32 0.5, %v7519
      %v7521 = vsub.f32 1.5, %v7520
      %v7522 = vmul.f32 %v7517, %v7521
      %vm7523 = vweird.f32 %v7440
      %vm7524 = vweird.f32 %v7517
      %vm7525 = vmor %vm7523, %vm7524
      %v7526 = vsel %vm7525, %v7517, %v7522
      %v7527 = vrsqrt.pop %v7441
      %v7528 = vmul.f32 %v7527, %v7441
      %v7529 = vmul.f32 %v7528, %v7527
      %v7530 = vmul.f32 0.5, %v7529
      %v7531 = vsub.f32 1.5, %v7530
      %v7532 = vmul.f32 %v7527, %v7531
      %vm7533 = vweird.f32 %v7441
      %vm7534 = vweird.f32 %v7527
      %vm7535 = vmor %vm7533, %vm7534
      %v7536 = vsel %vm7535, %v7527, %v7532
      %v7537 = vrsqrt.pop %v7442
      %v7538 = vmul.f32 %v7537, %v7442
      %v7539 = vmul.f32 %v7538, %v7537
      %v7540 = vmul.f32 0.5, %v7539
      %v7541 = vsub.f32 1.5, %v7540
      %v7542 = vmul.f32 %v7537, %v7541
      %vm7543 = vweird.f32 %v7442
      %vm7544 = vweird.f32 %v7537
      %vm7545 = vmor %vm7543, %vm7544
      %v7546 = vsel %vm7545, %v7537, %v7542
      %v7547 = vrsqrt.pop %v7443
      %v7548 = vmul.f32 %v7547, %v7443
      %v7549 = vmul.f32 %v7548, %v7547
      %v7550 = vmul.f32 0.5, %v7549
      %v7551 = vsub.f32 1.5, %v7550
      %v7552 = vmul.f32 %v7547, %v7551
      %vm7553 = vweird.f32 %v7443
      %vm7554 = vweird.f32 %v7547
      %vm7555 = vmor %vm7553, %vm7554
      %v7556 = vsel %vm7555, %v7547, %v7552
      %v7557 = vrsqrt.pop %v7444
      %v7558 = vmul.f32 %v7557, %v7444
      %v7559 = vmul.f32 %v7558, %v7557
      %v7560 = vmul.f32 0.5, %v7559
      %v7561 = vsub.f32 1.5, %v7560
      %v7562 = vmul.f32 %v7557, %v7561
      %vm7563 = vweird.f32 %v7444
      %vm7564 = vweird.f32 %v7557
      %vm7565 = vmor %vm7563, %vm7564
      %v7566 = vsel %vm7565, %v7557, %v7562
      %v7567 = vrsqrt.pop %v7445
      %v7568 = vmul.f32 %v7567, %v7445
      %v7569 = vmul.f32 %v7568, %v7567
      %v7570 = vmul.f32 0.5, %v7569
      %v7571 = vsub.f32 1.5, %v7570
      %v7572 = vmul.f32 %v7567, %v7571
      %vm7573 = vweird.f32 %v7445
      %vm7574 = vweird.f32 %v7567
      %vm7575 = vmor %vm7573, %vm7574
      %v7576 = vsel %vm7575, %v7567, %v7572
      %v7577 = vrsqrt.pop %v7446
      %v7578 = vmul.f32 %v7577, %v7446
      %v7579 = vmul.f32 %v7578, %v7577
      %v7580 = vmul.f32 0.5, %v7579
      %v7581 = vsub.f32 1.5, %v7580
      %v7582 = vmul.f32 %v7577, %v7581
      %vm7583 = vweird.f32 %v7446
      %vm7584 = vweird.f32 %v7577
      %vm7585 = vmor %vm7583, %vm7584
      %v7586 = vsel %vm7585, %v7577, %v7582
      %v7587 = vrsqrt.pop %v7447
      %v7588 = vmul.f32 %v7587, %v7447
      %v7589 = vmul.f32 %v7588, %v7587
      %v7590 = vmul.f32 0.5, %v7589
      %v7591 = vsub.f32 1.5, %v7590
      %v7592 = vmul.f32 %v7587, %v7591
      %vm7593 = vweird.f32 %v7447
      %vm7594 = vweird.f32 %v7587
      %vm7595 = vmor %vm7593, %vm7594
      %v7596 = vsel %vm7595, %v7587, %v7592
      %v7597 = vrsqrt.pop %v7448
      %v7598 = vmul.f32 %v7597, %v7448
      %v7599 = vmul.f32 %v7598, %v7597
      %v7600 = vmul.f32 0.5, %v7599
      %v7601 = vsub.f32 1.5, %v7600
      %v7602 = vmul.f32 %v7597, %v7601
      %vm7603 = vweird.f32 %v7448
      %vm7604 = vweird.f32 %v7597
      %vm7605 = vmor %vm7603, %vm7604
      %v7606 = vsel %vm7605, %v7597, %v7602
      %v7607 = vrsqrt.pop %v7449
      %v7608 = vmul.f32 %v7607, %v7449
      %v7609 = vmul.f32 %v7608, %v7607
      %v7610 = vmul.f32 0.5, %v7609
      %v7611 = vsub.f32 1.5, %v7610
      %v7612 = vmul.f32 %v7607, %v7611
      %vm7613 = vweird.f32 %v7449
      %vm7614 = vweird.f32 %v7607
      %vm7615 = vmor %vm7613, %vm7614
      %v7616 = vsel %vm7615, %v7607, %v7612
      %v7617 = vrsqrt.pop %v7450
      %v7618 = vmul.f32 %v7617, %v7450
      %v7619 = vmul.f32 %v7618, %v7617
      %v7620 = vmul.f32 0.5, %v7619
      %v7621 = vsub.f32 1.5, %v7620
      %v7622 = vmul.f32 %v7617, %v7621
      %vm7623 = vweird.f32 %v7450
      %vm7624 = vweird.f32 %v7617
      %vm7625 = vmor %vm7623, %vm7624
      %v7626 = vsel %vm7625, %v7617, %v7622
      %v7627 = vrsqrt.pop %v7451
      %v7628 = vmul.f32 %v7627, %v7451
      %v7629 = vmul.f32 %v7628, %v7627
      %v7630 = vmul.f32 0.5, %v7629
      %v7631 = vsub.f32 1.5, %v7630
      %v7632 = vmul.f32 %v7627, %v7631
      %vm7633 = vweird.f32 %v7451
      %vm7634 = vweird.f32 %v7627
      %vm7635 = vmor %vm7633, %vm7634
      %v7636 = vsel %vm7635, %v7627, %v7632
      %v7637 = vrsqrt.pop %v7452
      %v7638 = vmul.f32 %v7637, %v7452
      %v7639 = vmul.f32 %v7638, %v7637
      %v7640 = vmul.f32 0.5, %v7639
      %v7641 = vsub.f32 1.5, %v7640
      %v7642 = vmul.f32 %v7637, %v7641
      %vm7643 = vweird.f32 %v7452
      %vm7644 = vweird.f32 %v7637
      %vm7645 = vmor %vm7643, %vm7644
      %v7646 = vsel %vm7645, %v7637, %v7642
      %v7647 = vrsqrt.pop %v7453
      %v7648 = vmul.f32 %v7647, %v7453
      %v7649 = vmul.f32 %v7648, %v7647
      %v7650 = vmul.f32 0.5, %v7649
      %v7651 = vsub.f32 1.5, %v7650
      %v7652 = vmul.f32 %v7647, %v7651
      %vm7653 = vweird.f32 %v7453
      %vm7654 = vweird.f32 %v7647
      %vm7655 = vmor %vm7653, %vm7654
      %v7656 = vsel %vm7655, %v7647, %v7652
      %v7657 = vrsqrt.pop %v7454
      %v7658 = vmul.f32 %v7657, %v7454
      %v7659 = vmul.f32 %v7658, %v7657
      %v7660 = vmul.f32 0.5, %v7659
      %v7661 = vsub.f32 1.5, %v7660
      %v7662 = vmul.f32 %v7657, %v7661
      %vm7663 = vweird.f32 %v7454
      %vm7664 = vweird.f32 %v7657
      %vm7665 = vmor %vm7663, %vm7664
      %v7666 = vsel %vm7665, %v7657, %v7662
      %v7667 = vrsqrt.pop %v7455
      %v7668 = vmul.f32 %v7667, %v7455
      %v7669 = vmul.f32 %v7668, %v7667
      %v7670 = vmul.f32 0.5, %v7669
      %v7671 = vsub.f32 1.5, %v7670
      %v7672 = vmul.f32 %v7667, %v7671
      %vm7673 = vweird.f32 %v7455
      %vm7674 = vweird.f32 %v7667
      %vm7675 = vmor %vm7673, %vm7674
      %v7676 = vsel %vm7675, %v7667, %v7672
      %v7677 = vrsqrt.pop %v7456
      %v7678 = vmul.f32 %v7677, %v7456
      %v7679 = vmul.f32 %v7678, %v7677
      %v7680 = vmul.f32 0.5, %v7679
      %v7681 = vsub.f32 1.5, %v7680
      %v7682 = vmul.f32 %v7677, %v7681
      %vm7683 = vweird.f32 %v7456
      %vm7684 = vweird.f32 %v7677
      %vm7685 = vmor %vm7683, %vm7684
      %v7686 = vsel %vm7685, %v7677, %v7682
      %v7687 = vrsqrt.pop %v7457
      %v7688 = vmul.f32 %v7687, %v7457
      %v7689 = vmul.f32 %v7688, %v7687
      %v7690 = vmul.f32 0.5, %v7689
      %v7691 = vsub.f32 1.5, %v7690
      %v7692 = vmul.f32 %v7687, %v7691
      %vm7693 = vweird.f32 %v7457
      %vm7694 = vweird.f32 %v7687
      %vm7695 = vmor %vm7693, %vm7694
      %v7696 = vsel %vm7695, %v7687, %v7692
      %v7697 = vrsqrt.pop %v7458
      %v7698 = vmul.f32 %v7697, %v7458
      %v7699 = vmul.f32 %v7698, %v7697
      %v7700 = vmul.f32 0.5, %v7699
      %v7701 = vsub.f32 1.5, %v7700
      %v7702 = vmul.f32 %v7697, %v7701
      %vm7703 = vweird.f32 %v7458
      %vm7704 = vweird.f32 %v7697
      %vm7705 = vmor %vm7703, %vm7704
      %v7706 = vsel %vm7705, %v7697, %v7702
      %v7707 = vrsqrt.pop %v7459
      %v7708 = vmul.f32 %v7707, %v7459
      %v7709 = vmul.f32 %v7708, %v7707
      %v7710 = vmul.f32 0.5, %v7709
      %v7711 = vsub.f32 1.5, %v7710
      %v7712 = vmul.f32 %v7707, %v7711
      %vm7713 = vweird.f32 %v7459
      %vm7714 = vweird.f32 %v7707
      %vm7715 = vmor %vm7713, %vm7714
      %v7716 = vsel %vm7715, %v7707, %v7712
      %v7717 = vrsqrt.pop %v7460
      %v7718 = vmul.f32 %v7717, %v7460
      %v7719 = vmul.f32 %v7718, %v7717
      %v7720 = vmul.f32 0.5, %v7719
      %v7721 = vsub.f32 1.5, %v7720
      %v7722 = vmul.f32 %v7717, %v7721
      %vm7723 = vweird.f32 %v7460
      %vm7724 = vweird.f32 %v7717
      %vm7725 = vmor %vm7723, %vm7724
      %v7726 = vsel %vm7725, %v7717, %v7722
      %v7727 = vrsqrt.pop %v7461
      %v7728 = vmul.f32 %v7727, %v7461
      %v7729 = vmul.f32 %v7728, %v7727
      %v7730 = vmul.f32 0.5, %v7729
      %v7731 = vsub.f32 1.5, %v7730
      %v7732 = vmul.f32 %v7727, %v7731
      %vm7733 = vweird.f32 %v7461
      %vm7734 = vweird.f32 %v7727
      %vm7735 = vmor %vm7733, %vm7734
      %v7736 = vsel %vm7735, %v7727, %v7732
      %v7737 = vrsqrt.pop %v7462
      %v7738 = vmul.f32 %v7737, %v7462
      %v7739 = vmul.f32 %v7738, %v7737
      %v7740 = vmul.f32 0.5, %v7739
      %v7741 = vsub.f32 1.5, %v7740
      %v7742 = vmul.f32 %v7737, %v7741
      %vm7743 = vweird.f32 %v7462
      %vm7744 = vweird.f32 %v7737
      %vm7745 = vmor %vm7743, %vm7744
      %v7746 = vsel %vm7745, %v7737, %v7742
      %v7747 = vrsqrt.pop %v7463
      %v7748 = vmul.f32 %v7747, %v7463
      %v7749 = vmul.f32 %v7748, %v7747
      %v7750 = vmul.f32 0.5, %v7749
      %v7751 = vsub.f32 1.5, %v7750
      %v7752 = vmul.f32 %v7747, %v7751
      %vm7753 = vweird.f32 %v7463
      %vm7754 = vweird.f32 %v7747
      %vm7755 = vmor %vm7753, %vm7754
      %v7756 = vsel %vm7755, %v7747, %v7752
      %v7757 = vrsqrt.pop %v7464
      %v7758 = vmul.f32 %v7757, %v7464
      %v7759 = vmul.f32 %v7758, %v7757
      %v7760 = vmul.f32 0.5, %v7759
      %v7761 = vsub.f32 1.5, %v7760
      %v7762 = vmul.f32 %v7757, %v7761
      %vm7763 = vweird.f32 %v7464
      %vm7764 = vweird.f32 %v7757
      %vm7765 = vmor %vm7763, %vm7764
      %v7766 = vsel %vm7765, %v7757, %v7762
      %v7767 = vrsqrt.pop %v7465
      %v7768 = vmul.f32 %v7767, %v7465
      %v7769 = vmul.f32 %v7768, %v7767
      %v7770 = vmul.f32 0.5, %v7769
      %v7771 = vsub.f32 1.5, %v7770
      %v7772 = vmul.f32 %v7767, %v7771
      %vm7773 = vweird.f32 %v7465
      %vm7774 = vweird.f32 %v7767
      %vm7775 = vmor %vm7773, %vm7774
      %v7776 = vsel %vm7775, %v7767, %v7772
      %v7777 = vrsqrt.pop %v7466
      %v7778 = vmul.f32 %v7777, %v7466
      %v7779 = vmul.f32 %v7778, %v7777
      %v7780 = vmul.f32 0.5, %v7779
      %v7781 = vsub.f32 1.5, %v7780
      %v7782 = vmul.f32 %v7777, %v7781
      %vm7783 = vweird.f32 %v7466
      %vm7784 = vweird.f32 %v7777
      %vm7785 = vmor %vm7783, %vm7784
      %v7786 = vsel %vm7785, %v7777, %v7782
      %v7787 = vmul.f32 %v7339, %v7476
      %v7788 = vmul.f32 %v7340, %v7486
      %v7789 = vmul.f32 %v7341, %v7496
      %v7790 = vmul.f32 %v7342, %v7506
      %v7791 = vmul.f32 %v7343, %v7516
      %v7792 = vmul.f32 %v7344, %v7526
      %v7793 = vmul.f32 %v7345, %v7536
      %v7794 = vmul.f32 %v7346, %v7546
      %v7795 = vmul.f32 %v7347, %v7556
      %v7796 = vmul.f32 %v7348, %v7566
      %v7797 = vmul.f32 %v7349, %v7576
      %v7798 = vmul.f32 %v7350, %v7586
      %v7799 = vmul.f32 %v7351, %v7596
      %v7800 = vmul.f32 %v7352, %v7606
      %v7801 = vmul.f32 %v7353, %v7616
      %v7802 = vmul.f32 %v7354, %v7626
      %v7803 = vmul.f32 %v7355, %v7636
      %v7804 = vmul.f32 %v7356, %v7646
      %v7805 = vmul.f32 %v7357, %v7656
      %v7806 = vmul.f32 %v7358, %v7666
      %v7807 = vmul.f32 %v7359, %v7676
      %v7808 = vmul.f32 %v7360, %v7686
      %v7809 = vmul.f32 %v7361, %v7696
      %v7810 = vmul.f32 %v7362, %v7706
      %v7811 = vmul.f32 %v7363, %v7716
      %v7812 = vmul.f32 %v7364, %v7726
      %v7813 = vmul.f32 %v7365, %v7736
      %v7814 = vmul.f32 %v7366, %v7746
      %v7815 = vmul.f32 %v7367, %v7756
      %v7816 = vmul.f32 %v7368, %v7766
      %v7817 = vmul.f32 %v7369, %v7776
      %v7818 = vmul.f32 %v7370, %v7786
      %v7819 = vld [vmem:[%s9] sm:$0x1]
      %v7821 = vperm.slane %v7819, 0
      %v7823 = vmul.f32 %v7787, %v7821
      %v7824 = vmul.f32 %v7788, %v7821
      %v7825 = vmul.f32 %v7789, %v7821
      %v7826 = vmul.f32 %v7790, %v7821
      %v7827 = vmul.f32 %v7791, %v7821
      %v7828 = vmul.f32 %v7792, %v7821
      %v7829 = vmul.f32 %v7793, %v7821
      %v7830 = vmul.f32 %v7794, %v7821
      %v7831 = vmul.f32 %v7795, %v7821
      %v7832 = vmul.f32 %v7796, %v7821
      %v7833 = vmul.f32 %v7797, %v7821
      %v7834 = vmul.f32 %v7798, %v7821
      %v7835 = vmul.f32 %v7799, %v7821
      %v7836 = vmul.f32 %v7800, %v7821
      %v7837 = vmul.f32 %v7801, %v7821
      %v7838 = vmul.f32 %v7802, %v7821
      %v7839 = vmul.f32 %v7803, %v7821
      %v7840 = vmul.f32 %v7804, %v7821
      %v7841 = vmul.f32 %v7805, %v7821
      %v7842 = vmul.f32 %v7806, %v7821
      %v7843 = vmul.f32 %v7807, %v7821
      %v7844 = vmul.f32 %v7808, %v7821
      %v7845 = vmul.f32 %v7809, %v7821
      %v7846 = vmul.f32 %v7810, %v7821
      %v7847 = vmul.f32 %v7811, %v7821
      %v7848 = vmul.f32 %v7812, %v7821
      %v7849 = vmul.f32 %v7813, %v7821
      %v7850 = vmul.f32 %v7814, %v7821
      %v7851 = vmul.f32 %v7815, %v7821
      %v7852 = vmul.f32 %v7816, %v7821
      %v7853 = vmul.f32 %v7817, %v7821
      %v7854 = vmul.f32 %v7818, %v7821
      %v7855 = vld [vmem:[%s10] sm:$0x1]
      %v7857 = vperm.slane %v7855, 0
      %v7859 = vadd.f32 %v7823, %v7857
      %v7860 = vadd.f32 %v7824, %v7857
      %v7861 = vadd.f32 %v7825, %v7857
      %v7862 = vadd.f32 %v7826, %v7857
      %v7863 = vadd.f32 %v7827, %v7857
      %v7864 = vadd.f32 %v7828, %v7857
      %v7865 = vadd.f32 %v7829, %v7857
      %v7866 = vadd.f32 %v7830, %v7857
      %v7867 = vadd.f32 %v7831, %v7857
      %v7868 = vadd.f32 %v7832, %v7857
      %v7869 = vadd.f32 %v7833, %v7857
      %v7870 = vadd.f32 %v7834, %v7857
      %v7871 = vadd.f32 %v7835, %v7857
      %v7872 = vadd.f32 %v7836, %v7857
      %v7873 = vadd.f32 %v7837, %v7857
      %v7874 = vadd.f32 %v7838, %v7857
      %v7875 = vadd.f32 %v7839, %v7857
      %v7876 = vadd.f32 %v7840, %v7857
      %v7877 = vadd.f32 %v7841, %v7857
      %v7878 = vadd.f32 %v7842, %v7857
      %v7879 = vadd.f32 %v7843, %v7857
      %v7880 = vadd.f32 %v7844, %v7857
      %v7881 = vadd.f32 %v7845, %v7857
      %v7882 = vadd.f32 %v7846, %v7857
      %v7883 = vadd.f32 %v7847, %v7857
      %v7884 = vadd.f32 %v7848, %v7857
      %v7885 = vadd.f32 %v7849, %v7857
      %v7886 = vadd.f32 %v7850, %v7857
      %v7887 = vadd.f32 %v7851, %v7857
      %v7888 = vadd.f32 %v7852, %v7857
      %v7889 = vadd.f32 %v7853, %v7857
      %v7890 = vadd.f32 %v7854, %v7857
      %v7891 = vpack.c.bf16 %v7860, %v7859
      %v7892 = vpack.c.bf16 %v7862, %v7861
      %v7893 = vpack.c.bf16 %v7864, %v7863
      %v7894 = vpack.c.bf16 %v7866, %v7865
      %v7895 = vpack.c.bf16 %v7868, %v7867
      %v7896 = vpack.c.bf16 %v7870, %v7869
      %v7897 = vpack.c.bf16 %v7872, %v7871
      %v7898 = vpack.c.bf16 %v7874, %v7873
      %v7899 = vpack.c.bf16 %v7876, %v7875
      %v7900 = vpack.c.bf16 %v7878, %v7877
      %v7901 = vpack.c.bf16 %v7880, %v7879
      %v7902 = vpack.c.bf16 %v7882, %v7881
      %v7903 = vpack.c.bf16 %v7884, %v7883
      %v7904 = vpack.c.bf16 %v7886, %v7885
      %v7905 = vpack.c.bf16 %v7888, %v7887
      %v7906 = vpack.c.bf16 %v7890, %v7889
      %v7907 = vld [vmem:[%s11] sm:$0xf]
      %v7908 = vld [vmem:[%s11 + $0x4] sm:$0xf]
      %v7909 = vld [vmem:[%s11 + $0x8] sm:$0xf]
      %v7910 = vld [vmem:[%s11 + $0xc] sm:$0xf]
      %v7911 = vld [vmem:[%s12] sm:$0x1]
      %v7913 = vperm.slane %v7911, 0
      %v7919 = vunpack.c.l.b16 %v7907
      %v7920 = vunpack.c.l.b16 %v7908
      %v7921 = vunpack.c.l.b16 %v7909
      %v7922 = vunpack.c.l.b16 %v7910
      %v7923 = vpack.c.b16 %v7920, %v7919
      %v7924 = vpack.c.b16 %v7922, %v7921
      %v7928 = vsel %vm528, %v7891, 0
      %v7931 = vsel %vm528, %v7892, 0
      %v7934 = vsel %vm528, %v7893, 0
      %v7937 = vsel %vm528, %v7894, 0
      %v7940 = vsel %vm528, %v7895, 0
      %v7943 = vsel %vm528, %v7896, 0
      %v7946 = vsel %vm528, %v7897, 0
      %v7949 = vsel %vm528, %v7898, 0
      %v7952 = vsel %vm528, %v7899, 0
      %v7955 = vsel %vm528, %v7900, 0
      %v7958 = vsel %vm528, %v7901, 0
      %v7961 = vsel %vm528, %v7902, 0
      %v7964 = vsel %vm528, %v7903, 0
      %v7967 = vsel %vm528, %v7904, 0
      %v7970 = vsel %vm528, %v7905, 0
      %v7973 = vsel %vm528, %v7906, 0
      %7975 = vmatpush.bf16.msra.mxu0 0
      %7976 = vmatpush.bf16.msra.mxu0 0
      %7977 = vmatpush.bf16.msra.mxu0 0
      %7978 = vmatpush.bf16.msra.mxu0 0
      %7979 = vmatpush.bf16.msra.mxu0 0
      %7980 = vmatpush.bf16.msra.mxu0 0
      %7981 = vmatpush.bf16.msra.mxu0 %v7924
      %7982 = vmatpush.bf16.msra.mxu0 %v7923
      %7983 = vmatmul.bf16.gmra.mxu0 %v7928
      %v7984 = vpop.f32.mrf.mxu0
      %v7985 = vadd.f32 %v7913, %v7984
      %v7986 = vpop.f32.mrf.mxu0
      %v7987 = vadd.f32 %v7913, %v7986
      %7988 = vmatmul.bf16.gmra.mxu0 %v7931
      %v7989 = vpop.f32.mrf.mxu0
      %v7990 = vadd.f32 %v7913, %v7989
      %v7991 = vpop.f32.mrf.mxu0
      %v7992 = vadd.f32 %v7913, %v7991
      %7993 = vmatmul.bf16.gmra.mxu0 %v7934
      %v7994 = vpop.f32.mrf.mxu0
      %v7995 = vadd.f32 %v7913, %v7994
      %v7996 = vpop.f32.mrf.mxu0
      %v7997 = vadd.f32 %v7913, %v7996
      %7998 = vmatmul.bf16.gmra.mxu0 %v7937
      %v7999 = vpop.f32.mrf.mxu0
      %v8000 = vadd.f32 %v7913, %v7999
      %v8001 = vpop.f32.mrf.mxu0
      %v8002 = vadd.f32 %v7913, %v8001
      %8003 = vmatmul.bf16.gmra.mxu0 %v7940
      %v8004 = vpop.f32.mrf.mxu0
      %v8005 = vadd.f32 %v7913, %v8004
      %v8006 = vpop.f32.mrf.mxu0
      %v8007 = vadd.f32 %v7913, %v8006
      %8008 = vmatmul.bf16.gmra.mxu0 %v7943
      %v8009 = vpop.f32.mrf.mxu0
      %v8010 = vadd.f32 %v7913, %v8009
      %v8011 = vpop.f32.mrf.mxu0
      %v8012 = vadd.f32 %v7913, %v8011
      %8013 = vmatmul.bf16.gmra.mxu0 %v7946
      %v8014 = vpop.f32.mrf.mxu0
      %v8015 = vadd.f32 %v7913, %v8014
      %v8016 = vpop.f32.mrf.mxu0
      %v8017 = vadd.f32 %v7913, %v8016
      %8018 = vmatmul.bf16.gmra.mxu0 %v7949
      %v8019 = vpop.f32.mrf.mxu0
      %v8020 = vadd.f32 %v7913, %v8019
      %v8021 = vpop.f32.mrf.mxu0
      %v8022 = vadd.f32 %v7913, %v8021
      %8023 = vmatmul.bf16.gmra.mxu0 %v7952
      %v8024 = vpop.f32.mrf.mxu0
      %v8025 = vadd.f32 %v7913, %v8024
      %v8026 = vpop.f32.mrf.mxu0
      %v8027 = vadd.f32 %v7913, %v8026
      %8028 = vmatmul.bf16.gmra.mxu0 %v7955
      %v8029 = vpop.f32.mrf.mxu0
      %v8030 = vadd.f32 %v7913, %v8029
      %v8031 = vpop.f32.mrf.mxu0
      %v8032 = vadd.f32 %v7913, %v8031
      %8033 = vmatmul.bf16.gmra.mxu0 %v7958
      %v8034 = vpop.f32.mrf.mxu0
      %v8035 = vadd.f32 %v7913, %v8034
      %v8036 = vpop.f32.mrf.mxu0
      %v8037 = vadd.f32 %v7913, %v8036
      %8038 = vmatmul.bf16.gmra.mxu0 %v7961
      %v8039 = vpop.f32.mrf.mxu0
      %v8040 = vadd.f32 %v7913, %v8039
      %v8041 = vpop.f32.mrf.mxu0
      %v8042 = vadd.f32 %v7913, %v8041
      %8043 = vmatmul.bf16.gmra.mxu0 %v7964
      %v8044 = vpop.f32.mrf.mxu0
      %v8045 = vadd.f32 %v7913, %v8044
      %v8046 = vpop.f32.mrf.mxu0
      %v8047 = vadd.f32 %v7913, %v8046
      %8048 = vmatmul.bf16.gmra.mxu0 %v7967
      %v8049 = vpop.f32.mrf.mxu0
      %v8050 = vadd.f32 %v7913, %v8049
      %v8051 = vpop.f32.mrf.mxu0
      %v8052 = vadd.f32 %v7913, %v8051
      %8053 = vmatmul.bf16.gmra.mxu0 %v7970
      %v8054 = vpop.f32.mrf.mxu0
      %v8055 = vadd.f32 %v7913, %v8054
      %v8056 = vpop.f32.mrf.mxu0
      %v8057 = vadd.f32 %v7913, %v8056
      %8058 = vmatmul.bf16.gmra.mxu0 %v7973
      %v8059 = vpop.f32.mrf.mxu0
      %v8060 = vadd.f32 %v7913, %v8059
      %v8061 = vpop.f32.mrf.mxu0
      %v8062 = vadd.f32 %v7913, %v8061
      %8063 = vdwg.mxu0
      %v8064 = vmul.f32 %v7985, 0.5
      %v8065 = vmul.f32 %v7987, 0.5
      %v8066 = vmul.f32 %v7990, 0.5
      %v8067 = vmul.f32 %v7992, 0.5
      %v8068 = vmul.f32 %v7995, 0.5
      %v8069 = vmul.f32 %v7997, 0.5
      %v8070 = vmul.f32 %v8000, 0.5
      %v8071 = vmul.f32 %v8002, 0.5
      %v8072 = vmul.f32 %v8005, 0.5
      %v8073 = vmul.f32 %v8007, 0.5
      %v8074 = vmul.f32 %v8010, 0.5
      %v8075 = vmul.f32 %v8012, 0.5
      %v8076 = vmul.f32 %v8015, 0.5
      %v8077 = vmul.f32 %v8017, 0.5
      %v8078 = vmul.f32 %v8020, 0.5
      %v8079 = vmul.f32 %v8022, 0.5
      %v8080 = vmul.f32 %v8025, 0.5
      %v8081 = vmul.f32 %v8027, 0.5
      %v8082 = vmul.f32 %v8030, 0.5
      %v8083 = vmul.f32 %v8032, 0.5
      %v8084 = vmul.f32 %v8035, 0.5
      %v8085 = vmul.f32 %v8037, 0.5
      %v8086 = vmul.f32 %v8040, 0.5
      %v8087 = vmul.f32 %v8042, 0.5
      %v8088 = vmul.f32 %v8045, 0.5
      %v8089 = vmul.f32 %v8047, 0.5
      %v8090 = vmul.f32 %v8050, 0.5
      %v8091 = vmul.f32 %v8052, 0.5
      %v8092 = vmul.f32 %v8055, 0.5
      %v8093 = vmul.f32 %v8057, 0.5
      %v8094 = vmul.f32 %v8060, 0.5
      %v8095 = vmul.f32 %v8062, 0.5
      %v8096 = vmul.f32 %v7985, 0.70710677
      %v8097 = vmul.f32 %v7987, 0.70710677
      %v8098 = vmul.f32 %v7990, 0.70710677
      %v8099 = vmul.f32 %v7992, 0.70710677
      %v8100 = vmul.f32 %v7995, 0.70710677
      %v8101 = vmul.f32 %v7997, 0.70710677
      %v8102 = vmul.f32 %v8000, 0.70710677
      %v8103 = vmul.f32 %v8002, 0.70710677
      %v8104 = vmul.f32 %v8005, 0.70710677
      %v8105 = vmul.f32 %v8007, 0.70710677
      %v8106 = vmul.f32 %v8010, 0.70710677
      %v8107 = vmul.f32 %v8012, 0.70710677
      %v8108 = vmul.f32 %v8015, 0.70710677
      %v8109 = vmul.f32 %v8017, 0.70710677
      %v8110 = vmul.f32 %v8020, 0.70710677
      %v8111 = vmul.f32 %v8022, 0.70710677
      %v8112 = vmul.f32 %v8025, 0.70710677
      %v8113 = vmul.f32 %v8027, 0.70710677
      %v8114 = vmul.f32 %v8030, 0.70710677
      %v8115 = vmul.f32 %v8032, 0.70710677
      %v8116 = vmul.f32 %v8035, 0.70710677
      %v8117 = vmul.f32 %v8037, 0.70710677
      %v8118 = vmul.f32 %v8040, 0.70710677
      %v8119 = vmul.f32 %v8042, 0.70710677
      %v8120 = vmul.f32 %v8045, 0.70710677
      %v8121 = vmul.f32 %v8047, 0.70710677
      %v8122 = vmul.f32 %v8050, 0.70710677
      %v8123 = vmul.f32 %v8052, 0.70710677
      %v8124 = vmul.f32 %v8055, 0.70710677
      %v8125 = vmul.f32 %v8057, 0.70710677
      %v8126 = vmul.f32 %v8060, 0.70710677
      %v8127 = vmul.f32 %v8062, 0.70710677
      %v8128 = vmul.f32 %v8096, %v8096
      %v8129 = vmin.f32 16.0, %v8128
      %v8130 = vmul.f32 %v8129, 2.1237322e-06
      %v8131 = vadd.f32 %v8130, 0.00028619796
      %v8132 = vmul.f32 %v8129, %v8131
      %v8133 = vadd.f32 %v8132, 0.0036580483
      %v8134 = vmul.f32 %v8129, %v8133
      %v8135 = vadd.f32 %v8134, 0.05243302
      %v8136 = vmul.f32 %v8129, %v8135
      %v8137 = vadd.f32 %v8136, 0.18741608
      %v8138 = vmul.f32 %v8129, %v8137
      %v8139 = vadd.f32 %v8138, 1.1283791
      %v8140 = vmul.f32 %v8096, %v8139
      %v8141 = vmul.f32 %v8129, 3.8918573e-05
      %v8142 = vadd.f32 %v8141, 0.001143296
      %v8143 = vmul.f32 %v8129, %v8142
      %v8144 = vadd.f32 %v8143, 0.014752088
      %v8145 = vmul.f32 %v8129, %v8144
      %v8146 = vadd.f32 %v8145, 0.112945676
      %v8147 = vmul.f32 %v8129, %v8146
      %v8148 = vadd.f32 %v8147, 0.4994258
      %v8149 = vmul.f32 %v8129, %v8148
      %v8150 = vadd.f32 %v8149, 1.0
      %v8151 = vrcp.pop %v8150
      %v8152 = vmul.f32 %v8150, %v8151
      %v8153 = vsub.f32 1.0, %v8152
      %v8154 = vmul.f32 %v8151, %v8153
      %v8155 = vadd.f32 %v8151, %v8154
      %vm8156 = vweird.f32 %v8150
      %vm8157 = vweird.f32 %v8151
      %vm8158 = vmor %vm8156, %vm8157
      %v8159 = vsel %vm8158, %v8151, %v8155
      %v8160 = vand.u32 2147483647, %v8150
      %vm8161 = vcmp.eq.f32.partialorder %v8160, 8.507059e+37
      %v8162 = vand.u32 %v8150, 2147483648
      %v8163 = vor.u32 1.1754944e-38, %v8162
      %v8164 = vsel %vm8161, %v8163, %v8159
      %v8165 = vmul.f32 %v8140, %v8164
      %v8166 = vmin.f32 %v8165, 1.0
      %v8167 = vmax.f32 %v8166, -1.0
      %v8168 = vmul.f32 %v8097, %v8097
      %v8169 = vmin.f32 16.0, %v8168
      %v8170 = vmul.f32 %v8169, 2.1237322e-06
      %v8171 = vadd.f32 %v8170, 0.00028619796
      %v8172 = vmul.f32 %v8169, %v8171
      %v8173 = vadd.f32 %v8172, 0.0036580483
      %v8174 = vmul.f32 %v8169, %v8173
      %v8175 = vadd.f32 %v8174, 0.05243302
      %v8176 = vmul.f32 %v8169, %v8175
      %v8177 = vadd.f32 %v8176, 0.18741608
      %v8178 = vmul.f32 %v8169, %v8177
      %v8179 = vadd.f32 %v8178, 1.1283791
      %v8180 = vmul.f32 %v8097, %v8179
      %v8181 = vmul.f32 %v8169, 3.8918573e-05
      %v8182 = vadd.f32 %v8181, 0.001143296
      %v8183 = vmul.f32 %v8169, %v8182
      %v8184 = vadd.f32 %v8183, 0.014752088
      %v8185 = vmul.f32 %v8169, %v8184
      %v8186 = vadd.f32 %v8185, 0.112945676
      %v8187 = vmul.f32 %v8169, %v8186
      %v8188 = vadd.f32 %v8187, 0.4994258
      %v8189 = vmul.f32 %v8169, %v8188
      %v8190 = vadd.f32 %v8189, 1.0
      %v8191 = vrcp.pop %v8190
      %v8192 = vmul.f32 %v8190, %v8191
      %v8193 = vsub.f32 1.0, %v8192
      %v8194 = vmul.f32 %v8191, %v8193
      %v8195 = vadd.f32 %v8191, %v8194
      %vm8196 = vweird.f32 %v8190
      %vm8197 = vweird.f32 %v8191
      %vm8198 = vmor %vm8196, %vm8197
      %v8199 = vsel %vm8198, %v8191, %v8195
      %v8200 = vand.u32 2147483647, %v8190
      %vm8201 = vcmp.eq.f32.partialorder %v8200, 8.507059e+37
      %v8202 = vand.u32 %v8190, 2147483648
      %v8203 = vor.u32 1.1754944e-38, %v8202
      %v8204 = vsel %vm8201, %v8203, %v8199
      %v8205 = vmul.f32 %v8180, %v8204
      %v8206 = vmin.f32 %v8205, 1.0
      %v8207 = vmax.f32 %v8206, -1.0
      %v8208 = vmul.f32 %v8098, %v8098
      %v8209 = vmin.f32 16.0, %v8208
      %v8210 = vmul.f32 %v8209, 2.1237322e-06
      %v8211 = vadd.f32 %v8210, 0.00028619796
      %v8212 = vmul.f32 %v8209, %v8211
      %v8213 = vadd.f32 %v8212, 0.0036580483
      %v8214 = vmul.f32 %v8209, %v8213
      %v8215 = vadd.f32 %v8214, 0.05243302
      %v8216 = vmul.f32 %v8209, %v8215
      %v8217 = vadd.f32 %v8216, 0.18741608
      %v8218 = vmul.f32 %v8209, %v8217
      %v8219 = vadd.f32 %v8218, 1.1283791
      %v8220 = vmul.f32 %v8098, %v8219
      %v8221 = vmul.f32 %v8209, 3.8918573e-05
      %v8222 = vadd.f32 %v8221, 0.001143296
      %v8223 = vmul.f32 %v8209, %v8222
      %v8224 = vadd.f32 %v8223, 0.014752088
      %v8225 = vmul.f32 %v8209, %v8224
      %v8226 = vadd.f32 %v8225, 0.112945676
      %v8227 = vmul.f32 %v8209, %v8226
      %v8228 = vadd.f32 %v8227, 0.4994258
      %v8229 = vmul.f32 %v8209, %v8228
      %v8230 = vadd.f32 %v8229, 1.0
      %v8231 = vrcp.pop %v8230
      %v8232 = vmul.f32 %v8230, %v8231
      %v8233 = vsub.f32 1.0, %v8232
      %v8234 = vmul.f32 %v8231, %v8233
      %v8235 = vadd.f32 %v8231, %v8234
      %vm8236 = vweird.f32 %v8230
      %vm8237 = vweird.f32 %v8231
      %vm8238 = vmor %vm8236, %vm8237
      %v8239 = vsel %vm8238, %v8231, %v8235
      %v8240 = vand.u32 2147483647, %v8230
      %vm8241 = vcmp.eq.f32.partialorder %v8240, 8.507059e+37
      %v8242 = vand.u32 %v8230, 2147483648
      %v8243 = vor.u32 1.1754944e-38, %v8242
      %v8244 = vsel %vm8241, %v8243, %v8239
      %v8245 = vmul.f32 %v8220, %v8244
      %v8246 = vmin.f32 %v8245, 1.0
      %v8247 = vmax.f32 %v8246, -1.0
      %v8248 = vmul.f32 %v8099, %v8099
      %v8249 = vmin.f32 16.0, %v8248
      %v8250 = vmul.f32 %v8249, 2.1237322e-06
      %v8251 = vadd.f32 %v8250, 0.00028619796
      %v8252 = vmul.f32 %v8249, %v8251
      %v8253 = vadd.f32 %v8252, 0.0036580483
      %v8254 = vmul.f32 %v8249, %v8253
      %v8255 = vadd.f32 %v8254, 0.05243302
      %v8256 = vmul.f32 %v8249, %v8255
      %v8257 = vadd.f32 %v8256, 0.18741608
      %v8258 = vmul.f32 %v8249, %v8257
      %v8259 = vadd.f32 %v8258, 1.1283791
      %v8260 = vmul.f32 %v8099, %v8259
      %v8261 = vmul.f32 %v8249, 3.8918573e-05
      %v8262 = vadd.f32 %v8261, 0.001143296
      %v8263 = vmul.f32 %v8249, %v8262
      %v8264 = vadd.f32 %v8263, 0.014752088
      %v8265 = vmul.f32 %v8249, %v8264
      %v8266 = vadd.f32 %v8265, 0.112945676
      %v8267 = vmul.f32 %v8249, %v8266
      %v8268 = vadd.f32 %v8267, 0.4994258
      %v8269 = vmul.f32 %v8249, %v8268
      %v8270 = vadd.f32 %v8269, 1.0
      %v8271 = vrcp.pop %v8270
      %v8272 = vmul.f32 %v8270, %v8271
      %v8273 = vsub.f32 1.0, %v8272
      %v8274 = vmul.f32 %v8271, %v8273
      %v8275 = vadd.f32 %v8271, %v8274
      %vm8276 = vweird.f32 %v8270
      %vm8277 = vweird.f32 %v8271
      %vm8278 = vmor %vm8276, %vm8277
      %v8279 = vsel %vm8278, %v8271, %v8275
      %v8280 = vand.u32 2147483647, %v8270
      %vm8281 = vcmp.eq.f32.partialorder %v8280, 8.507059e+37
      %v8282 = vand.u32 %v8270, 2147483648
      %v8283 = vor.u32 1.1754944e-38, %v8282
      %v8284 = vsel %vm8281, %v8283, %v8279
      %v8285 = vmul.f32 %v8260, %v8284
      %v8286 = vmin.f32 %v8285, 1.0
      %v8287 = vmax.f32 %v8286, -1.0
      %v8288 = vmul.f32 %v8100, %v8100
      %v8289 = vmin.f32 16.0, %v8288
      %v8290 = vmul.f32 %v8289, 2.1237322e-06
      %v8291 = vadd.f32 %v8290, 0.00028619796
      %v8292 = vmul.f32 %v8289, %v8291
      %v8293 = vadd.f32 %v8292, 0.0036580483
      %v8294 = vmul.f32 %v8289, %v8293
      %v8295 = vadd.f32 %v8294, 0.05243302
      %v8296 = vmul.f32 %v8289, %v8295
      %v8297 = vadd.f32 %v8296, 0.18741608
      %v8298 = vmul.f32 %v8289, %v8297
      %v8299 = vadd.f32 %v8298, 1.1283791
      %v8300 = vmul.f32 %v8100, %v8299
      %v8301 = vmul.f32 %v8289, 3.8918573e-05
      %v8302 = vadd.f32 %v8301, 0.001143296
      %v8303 = vmul.f32 %v8289, %v8302
      %v8304 = vadd.f32 %v8303, 0.014752088
      %v8305 = vmul.f32 %v8289, %v8304
      %v8306 = vadd.f32 %v8305, 0.112945676
      %v8307 = vmul.f32 %v8289, %v8306
      %v8308 = vadd.f32 %v8307, 0.4994258
      %v8309 = vmul.f32 %v8289, %v8308
      %v8310 = vadd.f32 %v8309, 1.0
      %v8311 = vrcp.pop %v8310
      %v8312 = vmul.f32 %v8310, %v8311
      %v8313 = vsub.f32 1.0, %v8312
      %v8314 = vmul.f32 %v8311, %v8313
      %v8315 = vadd.f32 %v8311, %v8314
      %vm8316 = vweird.f32 %v8310
      %vm8317 = vweird.f32 %v8311
      %vm8318 = vmor %vm8316, %vm8317
      %v8319 = vsel %vm8318, %v8311, %v8315
      %v8320 = vand.u32 2147483647, %v8310
      %vm8321 = vcmp.eq.f32.partialorder %v8320, 8.507059e+37
      %v8322 = vand.u32 %v8310, 2147483648
      %v8323 = vor.u32 1.1754944e-38, %v8322
      %v8324 = vsel %vm8321, %v8323, %v8319
      %v8325 = vmul.f32 %v8300, %v8324
      %v8326 = vmin.f32 %v8325, 1.0
      %v8327 = vmax.f32 %v8326, -1.0
      %v8328 = vmul.f32 %v8101, %v8101
      %v8329 = vmin.f32 16.0, %v8328
      %v8330 = vmul.f32 %v8329, 2.1237322e-06
      %v8331 = vadd.f32 %v8330, 0.00028619796
      %v8332 = vmul.f32 %v8329, %v8331
      %v8333 = vadd.f32 %v8332, 0.0036580483
      %v8334 = vmul.f32 %v8329, %v8333
      %v8335 = vadd.f32 %v8334, 0.05243302
      %v8336 = vmul.f32 %v8329, %v8335
      %v8337 = vadd.f32 %v8336, 0.18741608
      %v8338 = vmul.f32 %v8329, %v8337
      %v8339 = vadd.f32 %v8338, 1.1283791
      %v8340 = vmul.f32 %v8101, %v8339
      %v8341 = vmul.f32 %v8329, 3.8918573e-05
      %v8342 = vadd.f32 %v8341, 0.001143296
      %v8343 = vmul.f32 %v8329, %v8342
      %v8344 = vadd.f32 %v8343, 0.014752088
      %v8345 = vmul.f32 %v8329, %v8344
      %v8346 = vadd.f32 %v8345, 0.112945676
      %v8347 = vmul.f32 %v8329, %v8346
      %v8348 = vadd.f32 %v8347, 0.4994258
      %v8349 = vmul.f32 %v8329, %v8348
      %v8350 = vadd.f32 %v8349, 1.0
      %v8351 = vrcp.pop %v8350
      %v8352 = vmul.f32 %v8350, %v8351
      %v8353 = vsub.f32 1.0, %v8352
      %v8354 = vmul.f32 %v8351, %v8353
      %v8355 = vadd.f32 %v8351, %v8354
      %vm8356 = vweird.f32 %v8350
      %vm8357 = vweird.f32 %v8351
      %vm8358 = vmor %vm8356, %vm8357
      %v8359 = vsel %vm8358, %v8351, %v8355
      %v8360 = vand.u32 2147483647, %v8350
      %vm8361 = vcmp.eq.f32.partialorder %v8360, 8.507059e+37
      %v8362 = vand.u32 %v8350, 2147483648
      %v8363 = vor.u32 1.1754944e-38, %v8362
      %v8364 = vsel %vm8361, %v8363, %v8359
      %v8365 = vmul.f32 %v8340, %v8364
      %v8366 = vmin.f32 %v8365, 1.0
      %v8367 = vmax.f32 %v8366, -1.0
      %v8368 = vmul.f32 %v8102, %v8102
      %v8369 = vmin.f32 16.0, %v8368
      %v8370 = vmul.f32 %v8369, 2.1237322e-06
      %v8371 = vadd.f32 %v8370, 0.00028619796
      %v8372 = vmul.f32 %v8369, %v8371
      %v8373 = vadd.f32 %v8372, 0.0036580483
      %v8374 = vmul.f32 %v8369, %v8373
      %v8375 = vadd.f32 %v8374, 0.05243302
      %v8376 = vmul.f32 %v8369, %v8375
      %v8377 = vadd.f32 %v8376, 0.18741608
      %v8378 = vmul.f32 %v8369, %v8377
      %v8379 = vadd.f32 %v8378, 1.1283791
      %v8380 = vmul.f32 %v8102, %v8379
      %v8381 = vmul.f32 %v8369, 3.8918573e-05
      %v8382 = vadd.f32 %v8381, 0.001143296
      %v8383 = vmul.f32 %v8369, %v8382
      %v8384 = vadd.f32 %v8383, 0.014752088
      %v8385 = vmul.f32 %v8369, %v8384
      %v8386 = vadd.f32 %v8385, 0.112945676
      %v8387 = vmul.f32 %v8369, %v8386
      %v8388 = vadd.f32 %v8387, 0.4994258
      %v8389 = vmul.f32 %v8369, %v8388
      %v8390 = vadd.f32 %v8389, 1.0
      %v8391 = vrcp.pop %v8390
      %v8392 = vmul.f32 %v8390, %v8391
      %v8393 = vsub.f32 1.0, %v8392
      %v8394 = vmul.f32 %v8391, %v8393
      %v8395 = vadd.f32 %v8391, %v8394
      %vm8396 = vweird.f32 %v8390
      %vm8397 = vweird.f32 %v8391
      %vm8398 = vmor %vm8396, %vm8397
      %v8399 = vsel %vm8398, %v8391, %v8395
      %v8400 = vand.u32 2147483647, %v8390
      %vm8401 = vcmp.eq.f32.partialorder %v8400, 8.507059e+37
      %v8402 = vand.u32 %v8390, 2147483648
      %v8403 = vor.u32 1.1754944e-38, %v8402
      %v8404 = vsel %vm8401, %v8403, %v8399
      %v8405 = vmul.f32 %v8380, %v8404
      %v8406 = vmin.f32 %v8405, 1.0
      %v8407 = vmax.f32 %v8406, -1.0
      %v8408 = vmul.f32 %v8103, %v8103
      %v8409 = vmin.f32 16.0, %v8408
      %v8410 = vmul.f32 %v8409, 2.1237322e-06
      %v8411 = vadd.f32 %v8410, 0.00028619796
      %v8412 = vmul.f32 %v8409, %v8411
      %v8413 = vadd.f32 %v8412, 0.0036580483
      %v8414 = vmul.f32 %v8409, %v8413
      %v8415 = vadd.f32 %v8414, 0.05243302
      %v8416 = vmul.f32 %v8409, %v8415
      %v8417 = vadd.f32 %v8416, 0.18741608
      %v8418 = vmul.f32 %v8409, %v8417
      %v8419 = vadd.f32 %v8418, 1.1283791
      %v8420 = vmul.f32 %v8103, %v8419
      %v8421 = vmul.f32 %v8409, 3.8918573e-05
      %v8422 = vadd.f32 %v8421, 0.001143296
      %v8423 = vmul.f32 %v8409, %v8422
      %v8424 = vadd.f32 %v8423, 0.014752088
      %v8425 = vmul.f32 %v8409, %v8424
      %v8426 = vadd.f32 %v8425, 0.112945676
      %v8427 = vmul.f32 %v8409, %v8426
      %v8428 = vadd.f32 %v8427, 0.4994258
      %v8429 = vmul.f32 %v8409, %v8428
      %v8430 = vadd.f32 %v8429, 1.0
      %v8431 = vrcp.pop %v8430
      %v8432 = vmul.f32 %v8430, %v8431
      %v8433 = vsub.f32 1.0, %v8432
      %v8434 = vmul.f32 %v8431, %v8433
      %v8435 = vadd.f32 %v8431, %v8434
      %vm8436 = vweird.f32 %v8430
      %vm8437 = vweird.f32 %v8431
      %vm8438 = vmor %vm8436, %vm8437
      %v8439 = vsel %vm8438, %v8431, %v8435
      %v8440 = vand.u32 2147483647, %v8430
      %vm8441 = vcmp.eq.f32.partialorder %v8440, 8.507059e+37
      %v8442 = vand.u32 %v8430, 2147483648
      %v8443 = vor.u32 1.1754944e-38, %v8442
      %v8444 = vsel %vm8441, %v8443, %v8439
      %v8445 = vmul.f32 %v8420, %v8444
      %v8446 = vmin.f32 %v8445, 1.0
      %v8447 = vmax.f32 %v8446, -1.0
      %v8448 = vmul.f32 %v8104, %v8104
      %v8449 = vmin.f32 16.0, %v8448
      %v8450 = vmul.f32 %v8449, 2.1237322e-06
      %v8451 = vadd.f32 %v8450, 0.00028619796
      %v8452 = vmul.f32 %v8449, %v8451
      %v8453 = vadd.f32 %v8452, 0.0036580483
      %v8454 = vmul.f32 %v8449, %v8453
      %v8455 = vadd.f32 %v8454, 0.05243302
      %v8456 = vmul.f32 %v8449, %v8455
      %v8457 = vadd.f32 %v8456, 0.18741608
      %v8458 = vmul.f32 %v8449, %v8457
      %v8459 = vadd.f32 %v8458, 1.1283791
      %v8460 = vmul.f32 %v8104, %v8459
      %v8461 = vmul.f32 %v8449, 3.8918573e-05
      %v8462 = vadd.f32 %v8461, 0.001143296
      %v8463 = vmul.f32 %v8449, %v8462
      %v8464 = vadd.f32 %v8463, 0.014752088
      %v8465 = vmul.f32 %v8449, %v8464
      %v8466 = vadd.f32 %v8465, 0.112945676
      %v8467 = vmul.f32 %v8449, %v8466
      %v8468 = vadd.f32 %v8467, 0.4994258
      %v8469 = vmul.f32 %v8449, %v8468
      %v8470 = vadd.f32 %v8469, 1.0
      %v8471 = vrcp.pop %v8470
      %v8472 = vmul.f32 %v8470, %v8471
      %v8473 = vsub.f32 1.0, %v8472
      %v8474 = vmul.f32 %v8471, %v8473
      %v8475 = vadd.f32 %v8471, %v8474
      %vm8476 = vweird.f32 %v8470
      %vm8477 = vweird.f32 %v8471
      %vm8478 = vmor %vm8476, %vm8477
      %v8479 = vsel %vm8478, %v8471, %v8475
      %v8480 = vand.u32 2147483647, %v8470
      %vm8481 = vcmp.eq.f32.partialorder %v8480, 8.507059e+37
      %v8482 = vand.u32 %v8470, 2147483648
      %v8483 = vor.u32 1.1754944e-38, %v8482
      %v8484 = vsel %vm8481, %v8483, %v8479
      %v8485 = vmul.f32 %v8460, %v8484
      %v8486 = vmin.f32 %v8485, 1.0
      %v8487 = vmax.f32 %v8486, -1.0
      %v8488 = vmul.f32 %v8105, %v8105
      %v8489 = vmin.f32 16.0, %v8488
      %v8490 = vmul.f32 %v8489, 2.1237322e-06
      %v8491 = vadd.f32 %v8490, 0.00028619796
      %v8492 = vmul.f32 %v8489, %v8491
      %v8493 = vadd.f32 %v8492, 0.0036580483
      %v8494 = vmul.f32 %v8489, %v8493
      %v8495 = vadd.f32 %v8494, 0.05243302
      %v8496 = vmul.f32 %v8489, %v8495
      %v8497 = vadd.f32 %v8496, 0.18741608
      %v8498 = vmul.f32 %v8489, %v8497
      %v8499 = vadd.f32 %v8498, 1.1283791
      %v8500 = vmul.f32 %v8105, %v8499
      %v8501 = vmul.f32 %v8489, 3.8918573e-05
      %v8502 = vadd.f32 %v8501, 0.001143296
      %v8503 = vmul.f32 %v8489, %v8502
      %v8504 = vadd.f32 %v8503, 0.014752088
      %v8505 = vmul.f32 %v8489, %v8504
      %v8506 = vadd.f32 %v8505, 0.112945676
      %v8507 = vmul.f32 %v8489, %v8506
      %v8508 = vadd.f32 %v8507, 0.4994258
      %v8509 = vmul.f32 %v8489, %v8508
      %v8510 = vadd.f32 %v8509, 1.0
      %v8511 = vrcp.pop %v8510
      %v8512 = vmul.f32 %v8510, %v8511
      %v8513 = vsub.f32 1.0, %v8512
      %v8514 = vmul.f32 %v8511, %v8513
      %v8515 = vadd.f32 %v8511, %v8514
      %vm8516 = vweird.f32 %v8510
      %vm8517 = vweird.f32 %v8511
      %vm8518 = vmor %vm8516, %vm8517
      %v8519 = vsel %vm8518, %v8511, %v8515
      %v8520 = vand.u32 2147483647, %v8510
      %vm8521 = vcmp.eq.f32.partialorder %v8520, 8.507059e+37
      %v8522 = vand.u32 %v8510, 2147483648
      %v8523 = vor.u32 1.1754944e-38, %v8522
      %v8524 = vsel %vm8521, %v8523, %v8519
      %v8525 = vmul.f32 %v8500, %v8524
      %v8526 = vmin.f32 %v8525, 1.0
      %v8527 = vmax.f32 %v8526, -1.0
      %v8528 = vmul.f32 %v8106, %v8106
      %v8529 = vmin.f32 16.0, %v8528
      %v8530 = vmul.f32 %v8529, 2.1237322e-06
      %v8531 = vadd.f32 %v8530, 0.00028619796
      %v8532 = vmul.f32 %v8529, %v8531
      %v8533 = vadd.f32 %v8532, 0.0036580483
      %v8534 = vmul.f32 %v8529, %v8533
      %v8535 = vadd.f32 %v8534, 0.05243302
      %v8536 = vmul.f32 %v8529, %v8535
      %v8537 = vadd.f32 %v8536, 0.18741608
      %v8538 = vmul.f32 %v8529, %v8537
      %v8539 = vadd.f32 %v8538, 1.1283791
      %v8540 = vmul.f32 %v8106, %v8539
      %v8541 = vmul.f32 %v8529, 3.8918573e-05
      %v8542 = vadd.f32 %v8541, 0.001143296
      %v8543 = vmul.f32 %v8529, %v8542
      %v8544 = vadd.f32 %v8543, 0.014752088
      %v8545 = vmul.f32 %v8529, %v8544
      %v8546 = vadd.f32 %v8545, 0.112945676
      %v8547 = vmul.f32 %v8529, %v8546
      %v8548 = vadd.f32 %v8547, 0.4994258
      %v8549 = vmul.f32 %v8529, %v8548
      %v8550 = vadd.f32 %v8549, 1.0
      %v8551 = vrcp.pop %v8550
      %v8552 = vmul.f32 %v8550, %v8551
      %v8553 = vsub.f32 1.0, %v8552
      %v8554 = vmul.f32 %v8551, %v8553
      %v8555 = vadd.f32 %v8551, %v8554
      %vm8556 = vweird.f32 %v8550
      %vm8557 = vweird.f32 %v8551
      %vm8558 = vmor %vm8556, %vm8557
      %v8559 = vsel %vm8558, %v8551, %v8555
      %v8560 = vand.u32 2147483647, %v8550
      %vm8561 = vcmp.eq.f32.partialorder %v8560, 8.507059e+37
      %v8562 = vand.u32 %v8550, 2147483648
      %v8563 = vor.u32 1.1754944e-38, %v8562
      %v8564 = vsel %vm8561, %v8563, %v8559
      %v8565 = vmul.f32 %v8540, %v8564
      %v8566 = vmin.f32 %v8565, 1.0
      %v8567 = vmax.f32 %v8566, -1.0
      %v8568 = vmul.f32 %v8107, %v8107
      %v8569 = vmin.f32 16.0, %v8568
      %v8570 = vmul.f32 %v8569, 2.1237322e-06
      %v8571 = vadd.f32 %v8570, 0.00028619796
      %v8572 = vmul.f32 %v8569, %v8571
      %v8573 = vadd.f32 %v8572, 0.0036580483
      %v8574 = vmul.f32 %v8569, %v8573
      %v8575 = vadd.f32 %v8574, 0.05243302
      %v8576 = vmul.f32 %v8569, %v8575
      %v8577 = vadd.f32 %v8576, 0.18741608
      %v8578 = vmul.f32 %v8569, %v8577
      %v8579 = vadd.f32 %v8578, 1.1283791
      %v8580 = vmul.f32 %v8107, %v8579
      %v8581 = vmul.f32 %v8569, 3.8918573e-05
      %v8582 = vadd.f32 %v8581, 0.001143296
      %v8583 = vmul.f32 %v8569, %v8582
      %v8584 = vadd.f32 %v8583, 0.014752088
      %v8585 = vmul.f32 %v8569, %v8584
      %v8586 = vadd.f32 %v8585, 0.112945676
      %v8587 = vmul.f32 %v8569, %v8586
      %v8588 = vadd.f32 %v8587, 0.4994258
      %v8589 = vmul.f32 %v8569, %v8588
      %v8590 = vadd.f32 %v8589, 1.0
      %v8591 = vrcp.pop %v8590
      %v8592 = vmul.f32 %v8590, %v8591
      %v8593 = vsub.f32 1.0, %v8592
      %v8594 = vmul.f32 %v8591, %v8593
      %v8595 = vadd.f32 %v8591, %v8594
      %vm8596 = vweird.f32 %v8590
      %vm8597 = vweird.f32 %v8591
      %vm8598 = vmor %vm8596, %vm8597
      %v8599 = vsel %vm8598, %v8591, %v8595
      %v8600 = vand.u32 2147483647, %v8590
      %vm8601 = vcmp.eq.f32.partialorder %v8600, 8.507059e+37
      %v8602 = vand.u32 %v8590, 2147483648
      %v8603 = vor.u32 1.1754944e-38, %v8602
      %v8604 = vsel %vm8601, %v8603, %v8599
      %v8605 = vmul.f32 %v8580, %v8604
      %v8606 = vmin.f32 %v8605, 1.0
      %v8607 = vmax.f32 %v8606, -1.0
      %v8608 = vmul.f32 %v8108, %v8108
      %v8609 = vmin.f32 16.0, %v8608
      %v8610 = vmul.f32 %v8609, 2.1237322e-06
      %v8611 = vadd.f32 %v8610, 0.00028619796
      %v8612 = vmul.f32 %v8609, %v8611
      %v8613 = vadd.f32 %v8612, 0.0036580483
      %v8614 = vmul.f32 %v8609, %v8613
      %v8615 = vadd.f32 %v8614, 0.05243302
      %v8616 = vmul.f32 %v8609, %v8615
      %v8617 = vadd.f32 %v8616, 0.18741608
      %v8618 = vmul.f32 %v8609, %v8617
      %v8619 = vadd.f32 %v8618, 1.1283791
      %v8620 = vmul.f32 %v8108, %v8619
      %v8621 = vmul.f32 %v8609, 3.8918573e-05
      %v8622 = vadd.f32 %v8621, 0.001143296
      %v8623 = vmul.f32 %v8609, %v8622
      %v8624 = vadd.f32 %v8623, 0.014752088
      %v8625 = vmul.f32 %v8609, %v8624
      %v8626 = vadd.f32 %v8625, 0.112945676
      %v8627 = vmul.f32 %v8609, %v8626
      %v8628 = vadd.f32 %v8627, 0.4994258
      %v8629 = vmul.f32 %v8609, %v8628
      %v8630 = vadd.f32 %v8629, 1.0
      %v8631 = vrcp.pop %v8630
      %v8632 = vmul.f32 %v8630, %v8631
      %v8633 = vsub.f32 1.0, %v8632
      %v8634 = vmul.f32 %v8631, %v8633
      %v8635 = vadd.f32 %v8631, %v8634
      %vm8636 = vweird.f32 %v8630
      %vm8637 = vweird.f32 %v8631
      %vm8638 = vmor %vm8636, %vm8637
      %v8639 = vsel %vm8638, %v8631, %v8635
      %v8640 = vand.u32 2147483647, %v8630
      %vm8641 = vcmp.eq.f32.partialorder %v8640, 8.507059e+37
      %v8642 = vand.u32 %v8630, 2147483648
      %v8643 = vor.u32 1.1754944e-38, %v8642
      %v8644 = vsel %vm8641, %v8643, %v8639
      %v8645 = vmul.f32 %v8620, %v8644
      %v8646 = vmin.f32 %v8645, 1.0
      %v8647 = vmax.f32 %v8646, -1.0
      %v8648 = vmul.f32 %v8109, %v8109
      %v8649 = vmin.f32 16.0, %v8648
      %v8650 = vmul.f32 %v8649, 2.1237322e-06
      %v8651 = vadd.f32 %v8650, 0.00028619796
      %v8652 = vmul.f32 %v8649, %v8651
      %v8653 = vadd.f32 %v8652, 0.0036580483
      %v8654 = vmul.f32 %v8649, %v8653
      %v8655 = vadd.f32 %v8654, 0.05243302
      %v8656 = vmul.f32 %v8649, %v8655
      %v8657 = vadd.f32 %v8656, 0.18741608
      %v8658 = vmul.f32 %v8649, %v8657
      %v8659 = vadd.f32 %v8658, 1.1283791
      %v8660 = vmul.f32 %v8109, %v8659
      %v8661 = vmul.f32 %v8649, 3.8918573e-05
      %v8662 = vadd.f32 %v8661, 0.001143296
      %v8663 = vmul.f32 %v8649, %v8662
      %v8664 = vadd.f32 %v8663, 0.014752088
      %v8665 = vmul.f32 %v8649, %v8664
      %v8666 = vadd.f32 %v8665, 0.112945676
      %v8667 = vmul.f32 %v8649, %v8666
      %v8668 = vadd.f32 %v8667, 0.4994258
      %v8669 = vmul.f32 %v8649, %v8668
      %v8670 = vadd.f32 %v8669, 1.0
      %v8671 = vrcp.pop %v8670
      %v8672 = vmul.f32 %v8670, %v8671
      %v8673 = vsub.f32 1.0, %v8672
      %v8674 = vmul.f32 %v8671, %v8673
      %v8675 = vadd.f32 %v8671, %v8674
      %vm8676 = vweird.f32 %v8670
      %vm8677 = vweird.f32 %v8671
      %vm8678 = vmor %vm8676, %vm8677
      %v8679 = vsel %vm8678, %v8671, %v8675
      %v8680 = vand.u32 2147483647, %v8670
      %vm8681 = vcmp.eq.f32.partialorder %v8680, 8.507059e+37
      %v8682 = vand.u32 %v8670, 2147483648
      %v8683 = vor.u32 1.1754944e-38, %v8682
      %v8684 = vsel %vm8681, %v8683, %v8679
      %v8685 = vmul.f32 %v8660, %v8684
      %v8686 = vmin.f32 %v8685, 1.0
      %v8687 = vmax.f32 %v8686, -1.0
      %v8688 = vmul.f32 %v8110, %v8110
      %v8689 = vmin.f32 16.0, %v8688
      %v8690 = vmul.f32 %v8689, 2.1237322e-06
      %v8691 = vadd.f32 %v8690, 0.00028619796
      %v8692 = vmul.f32 %v8689, %v8691
      %v8693 = vadd.f32 %v8692, 0.0036580483
      %v8694 = vmul.f32 %v8689, %v8693
      %v8695 = vadd.f32 %v8694, 0.05243302
      %v8696 = vmul.f32 %v8689, %v8695
      %v8697 = vadd.f32 %v8696, 0.18741608
      %v8698 = vmul.f32 %v8689, %v8697
      %v8699 = vadd.f32 %v8698, 1.1283791
      %v8700 = vmul.f32 %v8110, %v8699
      %v8701 = vmul.f32 %v8689, 3.8918573e-05
      %v8702 = vadd.f32 %v8701, 0.001143296
      %v8703 = vmul.f32 %v8689, %v8702
      %v8704 = vadd.f32 %v8703, 0.014752088
      %v8705 = vmul.f32 %v8689, %v8704
      %v8706 = vadd.f32 %v8705, 0.112945676
      %v8707 = vmul.f32 %v8689, %v8706
      %v8708 = vadd.f32 %v8707, 0.4994258
      %v8709 = vmul.f32 %v8689, %v8708
      %v8710 = vadd.f32 %v8709, 1.0
      %v8711 = vrcp.pop %v8710
      %v8712 = vmul.f32 %v8710, %v8711
      %v8713 = vsub.f32 1.0, %v8712
      %v8714 = vmul.f32 %v8711, %v8713
      %v8715 = vadd.f32 %v8711, %v8714
      %vm8716 = vweird.f32 %v8710
      %vm8717 = vweird.f32 %v8711
      %vm8718 = vmor %vm8716, %vm8717
      %v8719 = vsel %vm8718, %v8711, %v8715
      %v8720 = vand.u32 2147483647, %v8710
      %vm8721 = vcmp.eq.f32.partialorder %v8720, 8.507059e+37
      %v8722 = vand.u32 %v8710, 2147483648
      %v8723 = vor.u32 1.1754944e-38, %v8722
      %v8724 = vsel %vm8721, %v8723, %v8719
      %v8725 = vmul.f32 %v8700, %v8724
      %v8726 = vmin.f32 %v8725, 1.0
      %v8727 = vmax.f32 %v8726, -1.0
      %v8728 = vmul.f32 %v8111, %v8111
      %v8729 = vmin.f32 16.0, %v8728
      %v8730 = vmul.f32 %v8729, 2.1237322e-06
      %v8731 = vadd.f32 %v8730, 0.00028619796
      %v8732 = vmul.f32 %v8729, %v8731
      %v8733 = vadd.f32 %v8732, 0.0036580483
      %v8734 = vmul.f32 %v8729, %v8733
      %v8735 = vadd.f32 %v8734, 0.05243302
      %v8736 = vmul.f32 %v8729, %v8735
      %v8737 = vadd.f32 %v8736, 0.18741608
      %v8738 = vmul.f32 %v8729, %v8737
      %v8739 = vadd.f32 %v8738, 1.1283791
      %v8740 = vmul.f32 %v8111, %v8739
      %v8741 = vmul.f32 %v8729, 3.8918573e-05
      %v8742 = vadd.f32 %v8741, 0.001143296
      %v8743 = vmul.f32 %v8729, %v8742
      %v8744 = vadd.f32 %v8743, 0.014752088
      %v8745 = vmul.f32 %v8729, %v8744
      %v8746 = vadd.f32 %v8745, 0.112945676
      %v8747 = vmul.f32 %v8729, %v8746
      %v8748 = vadd.f32 %v8747, 0.4994258
      %v8749 = vmul.f32 %v8729, %v8748
      %v8750 = vadd.f32 %v8749, 1.0
      %v8751 = vrcp.pop %v8750
      %v8752 = vmul.f32 %v8750, %v8751
      %v8753 = vsub.f32 1.0, %v8752
      %v8754 = vmul.f32 %v8751, %v8753
      %v8755 = vadd.f32 %v8751, %v8754
      %vm8756 = vweird.f32 %v8750
      %vm8757 = vweird.f32 %v8751
      %vm8758 = vmor %vm8756, %vm8757
      %v8759 = vsel %vm8758, %v8751, %v8755
      %v8760 = vand.u32 2147483647, %v8750
      %vm8761 = vcmp.eq.f32.partialorder %v8760, 8.507059e+37
      %v8762 = vand.u32 %v8750, 2147483648
      %v8763 = vor.u32 1.1754944e-38, %v8762
      %v8764 = vsel %vm8761, %v8763, %v8759
      %v8765 = vmul.f32 %v8740, %v8764
      %v8766 = vmin.f32 %v8765, 1.0
      %v8767 = vmax.f32 %v8766, -1.0
      %v8768 = vmul.f32 %v8112, %v8112
      %v8769 = vmin.f32 16.0, %v8768
      %v8770 = vmul.f32 %v8769, 2.1237322e-06
      %v8771 = vadd.f32 %v8770, 0.00028619796
      %v8772 = vmul.f32 %v8769, %v8771
      %v8773 = vadd.f32 %v8772, 0.0036580483
      %v8774 = vmul.f32 %v8769, %v8773
      %v8775 = vadd.f32 %v8774, 0.05243302
      %v8776 = vmul.f32 %v8769, %v8775
      %v8777 = vadd.f32 %v8776, 0.18741608
      %v8778 = vmul.f32 %v8769, %v8777
      %v8779 = vadd.f32 %v8778, 1.1283791
      %v8780 = vmul.f32 %v8112, %v8779
      %v8781 = vmul.f32 %v8769, 3.8918573e-05
      %v8782 = vadd.f32 %v8781, 0.001143296
      %v8783 = vmul.f32 %v8769, %v8782
      %v8784 = vadd.f32 %v8783, 0.014752088
      %v8785 = vmul.f32 %v8769, %v8784
      %v8786 = vadd.f32 %v8785, 0.112945676
      %v8787 = vmul.f32 %v8769, %v8786
      %v8788 = vadd.f32 %v8787, 0.4994258
      %v8789 = vmul.f32 %v8769, %v8788
      %v8790 = vadd.f32 %v8789, 1.0
      %v8791 = vrcp.pop %v8790
      %v8792 = vmul.f32 %v8790, %v8791
      %v8793 = vsub.f32 1.0, %v8792
      %v8794 = vmul.f32 %v8791, %v8793
      %v8795 = vadd.f32 %v8791, %v8794
      %vm8796 = vweird.f32 %v8790
      %vm8797 = vweird.f32 %v8791
      %vm8798 = vmor %vm8796, %vm8797
      %v8799 = vsel %vm8798, %v8791, %v8795
      %v8800 = vand.u32 2147483647, %v8790
      %vm8801 = vcmp.eq.f32.partialorder %v8800, 8.507059e+37
      %v8802 = vand.u32 %v8790, 2147483648
      %v8803 = vor.u32 1.1754944e-38, %v8802
      %v8804 = vsel %vm8801, %v8803, %v8799
      %v8805 = vmul.f32 %v8780, %v8804
      %v8806 = vmin.f32 %v8805, 1.0
      %v8807 = vmax.f32 %v8806, -1.0
      %v8808 = vmul.f32 %v8113, %v8113
      %v8809 = vmin.f32 16.0, %v8808
      %v8810 = vmul.f32 %v8809, 2.1237322e-06
      %v8811 = vadd.f32 %v8810, 0.00028619796
      %v8812 = vmul.f32 %v8809, %v8811
      %v8813 = vadd.f32 %v8812, 0.0036580483
      %v8814 = vmul.f32 %v8809, %v8813
      %v8815 = vadd.f32 %v8814, 0.05243302
      %v8816 = vmul.f32 %v8809, %v8815
      %v8817 = vadd.f32 %v8816, 0.18741608
      %v8818 = vmul.f32 %v8809, %v8817
      %v8819 = vadd.f32 %v8818, 1.1283791
      %v8820 = vmul.f32 %v8113, %v8819
      %v8821 = vmul.f32 %v8809, 3.8918573e-05
      %v8822 = vadd.f32 %v8821, 0.001143296
      %v8823 = vmul.f32 %v8809, %v8822
      %v8824 = vadd.f32 %v8823, 0.014752088
      %v8825 = vmul.f32 %v8809, %v8824
      %v8826 = vadd.f32 %v8825, 0.112945676
      %v8827 = vmul.f32 %v8809, %v8826
      %v8828 = vadd.f32 %v8827, 0.4994258
      %v8829 = vmul.f32 %v8809, %v8828
      %v8830 = vadd.f32 %v8829, 1.0
      %v8831 = vrcp.pop %v8830
      %v8832 = vmul.f32 %v8830, %v8831
      %v8833 = vsub.f32 1.0, %v8832
      %v8834 = vmul.f32 %v8831, %v8833
      %v8835 = vadd.f32 %v8831, %v8834
      %vm8836 = vweird.f32 %v8830
      %vm8837 = vweird.f32 %v8831
      %vm8838 = vmor %vm8836, %vm8837
      %v8839 = vsel %vm8838, %v8831, %v8835
      %v8840 = vand.u32 2147483647, %v8830
      %vm8841 = vcmp.eq.f32.partialorder %v8840, 8.507059e+37
      %v8842 = vand.u32 %v8830, 2147483648
      %v8843 = vor.u32 1.1754944e-38, %v8842
      %v8844 = vsel %vm8841, %v8843, %v8839
      %v8845 = vmul.f32 %v8820, %v8844
      %v8846 = vmin.f32 %v8845, 1.0
      %v8847 = vmax.f32 %v8846, -1.0
      %v8848 = vmul.f32 %v8114, %v8114
      %v8849 = vmin.f32 16.0, %v8848
      %v8850 = vmul.f32 %v8849, 2.1237322e-06
      %v8851 = vadd.f32 %v8850, 0.00028619796
      %v8852 = vmul.f32 %v8849, %v8851
      %v8853 = vadd.f32 %v8852, 0.0036580483
      %v8854 = vmul.f32 %v8849, %v8853
      %v8855 = vadd.f32 %v8854, 0.05243302
      %v8856 = vmul.f32 %v8849, %v8855
      %v8857 = vadd.f32 %v8856, 0.18741608
      %v8858 = vmul.f32 %v8849, %v8857
      %v8859 = vadd.f32 %v8858, 1.1283791
      %v8860 = vmul.f32 %v8114, %v8859
      %v8861 = vmul.f32 %v8849, 3.8918573e-05
      %v8862 = vadd.f32 %v8861, 0.001143296
      %v8863 = vmul.f32 %v8849, %v8862
      %v8864 = vadd.f32 %v8863, 0.014752088
      %v8865 = vmul.f32 %v8849, %v8864
      %v8866 = vadd.f32 %v8865, 0.112945676
      %v8867 = vmul.f32 %v8849, %v8866
      %v8868 = vadd.f32 %v8867, 0.4994258
      %v8869 = vmul.f32 %v8849, %v8868
      %v8870 = vadd.f32 %v8869, 1.0
      %v8871 = vrcp.pop %v8870
      %v8872 = vmul.f32 %v8870, %v8871
      %v8873 = vsub.f32 1.0, %v8872
      %v8874 = vmul.f32 %v8871, %v8873
      %v8875 = vadd.f32 %v8871, %v8874
      %vm8876 = vweird.f32 %v8870
      %vm8877 = vweird.f32 %v8871
      %vm8878 = vmor %vm8876, %vm8877
      %v8879 = vsel %vm8878, %v8871, %v8875
      %v8880 = vand.u32 2147483647, %v8870
      %vm8881 = vcmp.eq.f32.partialorder %v8880, 8.507059e+37
      %v8882 = vand.u32 %v8870, 2147483648
      %v8883 = vor.u32 1.1754944e-38, %v8882
      %v8884 = vsel %vm8881, %v8883, %v8879
      %v8885 = vmul.f32 %v8860, %v8884
      %v8886 = vmin.f32 %v8885, 1.0
      %v8887 = vmax.f32 %v8886, -1.0
      %v8888 = vmul.f32 %v8115, %v8115
      %v8889 = vmin.f32 16.0, %v8888
      %v8890 = vmul.f32 %v8889, 2.1237322e-06
      %v8891 = vadd.f32 %v8890, 0.00028619796
      %v8892 = vmul.f32 %v8889, %v8891
      %v8893 = vadd.f32 %v8892, 0.0036580483
      %v8894 = vmul.f32 %v8889, %v8893
      %v8895 = vadd.f32 %v8894, 0.05243302
      %v8896 = vmul.f32 %v8889, %v8895
      %v8897 = vadd.f32 %v8896, 0.18741608
      %v8898 = vmul.f32 %v8889, %v8897
      %v8899 = vadd.f32 %v8898, 1.1283791
      %v8900 = vmul.f32 %v8115, %v8899
      %v8901 = vmul.f32 %v8889, 3.8918573e-05
      %v8902 = vadd.f32 %v8901, 0.001143296
      %v8903 = vmul.f32 %v8889, %v8902
      %v8904 = vadd.f32 %v8903, 0.014752088
      %v8905 = vmul.f32 %v8889, %v8904
      %v8906 = vadd.f32 %v8905, 0.112945676
      %v8907 = vmul.f32 %v8889, %v8906
      %v8908 = vadd.f32 %v8907, 0.4994258
      %v8909 = vmul.f32 %v8889, %v8908
      %v8910 = vadd.f32 %v8909, 1.0
      %v8911 = vrcp.pop %v8910
      %v8912 = vmul.f32 %v8910, %v8911
      %v8913 = vsub.f32 1.0, %v8912
      %v8914 = vmul.f32 %v8911, %v8913
      %v8915 = vadd.f32 %v8911, %v8914
      %vm8916 = vweird.f32 %v8910
      %vm8917 = vweird.f32 %v8911
      %vm8918 = vmor %vm8916, %vm8917
      %v8919 = vsel %vm8918, %v8911, %v8915
      %v8920 = vand.u32 2147483647, %v8910
      %vm8921 = vcmp.eq.f32.partialorder %v8920, 8.507059e+37
      %v8922 = vand.u32 %v8910, 2147483648
      %v8923 = vor.u32 1.1754944e-38, %v8922
      %v8924 = vsel %vm8921, %v8923, %v8919
      %v8925 = vmul.f32 %v8900, %v8924
      %v8926 = vmin.f32 %v8925, 1.0
      %v8927 = vmax.f32 %v8926, -1.0
      %v8928 = vmul.f32 %v8116, %v8116
      %v8929 = vmin.f32 16.0, %v8928
      %v8930 = vmul.f32 %v8929, 2.1237322e-06
      %v8931 = vadd.f32 %v8930, 0.00028619796
      %v8932 = vmul.f32 %v8929, %v8931
      %v8933 = vadd.f32 %v8932, 0.0036580483
      %v8934 = vmul.f32 %v8929, %v8933
      %v8935 = vadd.f32 %v8934, 0.05243302
      %v8936 = vmul.f32 %v8929, %v8935
      %v8937 = vadd.f32 %v8936, 0.18741608
      %v8938 = vmul.f32 %v8929, %v8937
      %v8939 = vadd.f32 %v8938, 1.1283791
      %v8940 = vmul.f32 %v8116, %v8939
      %v8941 = vmul.f32 %v8929, 3.8918573e-05
      %v8942 = vadd.f32 %v8941, 0.001143296
      %v8943 = vmul.f32 %v8929, %v8942
      %v8944 = vadd.f32 %v8943, 0.014752088
      %v8945 = vmul.f32 %v8929, %v8944
      %v8946 = vadd.f32 %v8945, 0.112945676
      %v8947 = vmul.f32 %v8929, %v8946
      %v8948 = vadd.f32 %v8947, 0.4994258
      %v8949 = vmul.f32 %v8929, %v8948
      %v8950 = vadd.f32 %v8949, 1.0
      %v8951 = vrcp.pop %v8950
      %v8952 = vmul.f32 %v8950, %v8951
      %v8953 = vsub.f32 1.0, %v8952
      %v8954 = vmul.f32 %v8951, %v8953
      %v8955 = vadd.f32 %v8951, %v8954
      %vm8956 = vweird.f32 %v8950
      %vm8957 = vweird.f32 %v8951
      %vm8958 = vmor %vm8956, %vm8957
      %v8959 = vsel %vm8958, %v8951, %v8955
      %v8960 = vand.u32 2147483647, %v8950
      %vm8961 = vcmp.eq.f32.partialorder %v8960, 8.507059e+37
      %v8962 = vand.u32 %v8950, 2147483648
      %v8963 = vor.u32 1.1754944e-38, %v8962
      %v8964 = vsel %vm8961, %v8963, %v8959
      %v8965 = vmul.f32 %v8940, %v8964
      %v8966 = vmin.f32 %v8965, 1.0
      %v8967 = vmax.f32 %v8966, -1.0
      %v8968 = vmul.f32 %v8117, %v8117
      %v8969 = vmin.f32 16.0, %v8968
      %v8970 = vmul.f32 %v8969, 2.1237322e-06
      %v8971 = vadd.f32 %v8970, 0.00028619796
      %v8972 = vmul.f32 %v8969, %v8971
      %v8973 = vadd.f32 %v8972, 0.0036580483
      %v8974 = vmul.f32 %v8969, %v8973
      %v8975 = vadd.f32 %v8974, 0.05243302
      %v8976 = vmul.f32 %v8969, %v8975
      %v8977 = vadd.f32 %v8976, 0.18741608
      %v8978 = vmul.f32 %v8969, %v8977
      %v8979 = vadd.f32 %v8978, 1.1283791
      %v8980 = vmul.f32 %v8117, %v8979
      %v8981 = vmul.f32 %v8969, 3.8918573e-05
      %v8982 = vadd.f32 %v8981, 0.001143296
      %v8983 = vmul.f32 %v8969, %v8982
      %v8984 = vadd.f32 %v8983, 0.014752088
      %v8985 = vmul.f32 %v8969, %v8984
      %v8986 = vadd.f32 %v8985, 0.112945676
      %v8987 = vmul.f32 %v8969, %v8986
      %v8988 = vadd.f32 %v8987, 0.4994258
      %v8989 = vmul.f32 %v8969, %v8988
      %v8990 = vadd.f32 %v8989, 1.0
      %v8991 = vrcp.pop %v8990
      %v8992 = vmul.f32 %v8990, %v8991
      %v8993 = vsub.f32 1.0, %v8992
      %v8994 = vmul.f32 %v8991, %v8993
      %v8995 = vadd.f32 %v8991, %v8994
      %vm8996 = vweird.f32 %v8990
      %vm8997 = vweird.f32 %v8991
      %vm8998 = vmor %vm8996, %vm8997
      %v8999 = vsel %vm8998, %v8991, %v8995
      %v9000 = vand.u32 2147483647, %v8990
      %vm9001 = vcmp.eq.f32.partialorder %v9000, 8.507059e+37
      %v9002 = vand.u32 %v8990, 2147483648
      %v9003 = vor.u32 1.1754944e-38, %v9002
      %v9004 = vsel %vm9001, %v9003, %v8999
      %v9005 = vmul.f32 %v8980, %v9004
      %v9006 = vmin.f32 %v9005, 1.0
      %v9007 = vmax.f32 %v9006, -1.0
      %v9008 = vmul.f32 %v8118, %v8118
      %v9009 = vmin.f32 16.0, %v9008
      %v9010 = vmul.f32 %v9009, 2.1237322e-06
      %v9011 = vadd.f32 %v9010, 0.00028619796
      %v9012 = vmul.f32 %v9009, %v9011
      %v9013 = vadd.f32 %v9012, 0.0036580483
      %v9014 = vmul.f32 %v9009, %v9013
      %v9015 = vadd.f32 %v9014, 0.05243302
      %v9016 = vmul.f32 %v9009, %v9015
      %v9017 = vadd.f32 %v9016, 0.18741608
      %v9018 = vmul.f32 %v9009, %v9017
      %v9019 = vadd.f32 %v9018, 1.1283791
      %v9020 = vmul.f32 %v8118, %v9019
      %v9021 = vmul.f32 %v9009, 3.8918573e-05
      %v9022 = vadd.f32 %v9021, 0.001143296
      %v9023 = vmul.f32 %v9009, %v9022
      %v9024 = vadd.f32 %v9023, 0.014752088
      %v9025 = vmul.f32 %v9009, %v9024
      %v9026 = vadd.f32 %v9025, 0.112945676
      %v9027 = vmul.f32 %v9009, %v9026
      %v9028 = vadd.f32 %v9027, 0.4994258
      %v9029 = vmul.f32 %v9009, %v9028
      %v9030 = vadd.f32 %v9029, 1.0
      %v9031 = vrcp.pop %v9030
      %v9032 = vmul.f32 %v9030, %v9031
      %v9033 = vsub.f32 1.0, %v9032
      %v9034 = vmul.f32 %v9031, %v9033
      %v9035 = vadd.f32 %v9031, %v9034
      %vm9036 = vweird.f32 %v9030
      %vm9037 = vweird.f32 %v9031
      %vm9038 = vmor %vm9036, %vm9037
      %v9039 = vsel %vm9038, %v9031, %v9035
      %v9040 = vand.u32 2147483647, %v9030
      %vm9041 = vcmp.eq.f32.partialorder %v9040, 8.507059e+37
      %v9042 = vand.u32 %v9030, 2147483648
      %v9043 = vor.u32 1.1754944e-38, %v9042
      %v9044 = vsel %vm9041, %v9043, %v9039
      %v9045 = vmul.f32 %v9020, %v9044
      %v9046 = vmin.f32 %v9045, 1.0
      %v9047 = vmax.f32 %v9046, -1.0
      %v9048 = vmul.f32 %v8119, %v8119
      %v9049 = vmin.f32 16.0, %v9048
      %v9050 = vmul.f32 %v9049, 2.1237322e-06
      %v9051 = vadd.f32 %v9050, 0.00028619796
      %v9052 = vmul.f32 %v9049, %v9051
      %v9053 = vadd.f32 %v9052, 0.0036580483
      %v9054 = vmul.f32 %v9049, %v9053
      %v9055 = vadd.f32 %v9054, 0.05243302
      %v9056 = vmul.f32 %v9049, %v9055
      %v9057 = vadd.f32 %v9056, 0.18741608
      %v9058 = vmul.f32 %v9049, %v9057
      %v9059 = vadd.f32 %v9058, 1.1283791
      %v9060 = vmul.f32 %v8119, %v9059
      %v9061 = vmul.f32 %v9049, 3.8918573e-05
      %v9062 = vadd.f32 %v9061, 0.001143296
      %v9063 = vmul.f32 %v9049, %v9062
      %v9064 = vadd.f32 %v9063, 0.014752088
      %v9065 = vmul.f32 %v9049, %v9064
      %v9066 = vadd.f32 %v9065, 0.112945676
      %v9067 = vmul.f32 %v9049, %v9066
      %v9068 = vadd.f32 %v9067, 0.4994258
      %v9069 = vmul.f32 %v9049, %v9068
      %v9070 = vadd.f32 %v9069, 1.0
      %v9071 = vrcp.pop %v9070
      %v9072 = vmul.f32 %v9070, %v9071
      %v9073 = vsub.f32 1.0, %v9072
      %v9074 = vmul.f32 %v9071, %v9073
      %v9075 = vadd.f32 %v9071, %v9074
      %vm9076 = vweird.f32 %v9070
      %vm9077 = vweird.f32 %v9071
      %vm9078 = vmor %vm9076, %vm9077
      %v9079 = vsel %vm9078, %v9071, %v9075
      %v9080 = vand.u32 2147483647, %v9070
      %vm9081 = vcmp.eq.f32.partialorder %v9080, 8.507059e+37
      %v9082 = vand.u32 %v9070, 2147483648
      %v9083 = vor.u32 1.1754944e-38, %v9082
      %v9084 = vsel %vm9081, %v9083, %v9079
      %v9085 = vmul.f32 %v9060, %v9084
      %v9086 = vmin.f32 %v9085, 1.0
      %v9087 = vmax.f32 %v9086, -1.0
      %v9088 = vmul.f32 %v8120, %v8120
      %v9089 = vmin.f32 16.0, %v9088
      %v9090 = vmul.f32 %v9089, 2.1237322e-06
      %v9091 = vadd.f32 %v9090, 0.00028619796
      %v9092 = vmul.f32 %v9089, %v9091
      %v9093 = vadd.f32 %v9092, 0.0036580483
      %v9094 = vmul.f32 %v9089, %v9093
      %v9095 = vadd.f32 %v9094, 0.05243302
      %v9096 = vmul.f32 %v9089, %v9095
      %v9097 = vadd.f32 %v9096, 0.18741608
      %v9098 = vmul.f32 %v9089, %v9097
      %v9099 = vadd.f32 %v9098, 1.1283791
      %v9100 = vmul.f32 %v8120, %v9099
      %v9101 = vmul.f32 %v9089, 3.8918573e-05
      %v9102 = vadd.f32 %v9101, 0.001143296
      %v9103 = vmul.f32 %v9089, %v9102
      %v9104 = vadd.f32 %v9103, 0.014752088
      %v9105 = vmul.f32 %v9089, %v9104
      %v9106 = vadd.f32 %v9105, 0.112945676
      %v9107 = vmul.f32 %v9089, %v9106
      %v9108 = vadd.f32 %v9107, 0.4994258
      %v9109 = vmul.f32 %v9089, %v9108
      %v9110 = vadd.f32 %v9109, 1.0
      %v9111 = vrcp.pop %v9110
      %v9112 = vmul.f32 %v9110, %v9111
      %v9113 = vsub.f32 1.0, %v9112
      %v9114 = vmul.f32 %v9111, %v9113
      %v9115 = vadd.f32 %v9111, %v9114
      %vm9116 = vweird.f32 %v9110
      %vm9117 = vweird.f32 %v9111
      %vm9118 = vmor %vm9116, %vm9117
      %v9119 = vsel %vm9118, %v9111, %v9115
      %v9120 = vand.u32 2147483647, %v9110
      %vm9121 = vcmp.eq.f32.partialorder %v9120, 8.507059e+37
      %v9122 = vand.u32 %v9110, 2147483648
      %v9123 = vor.u32 1.1754944e-38, %v9122
      %v9124 = vsel %vm9121, %v9123, %v9119
      %v9125 = vmul.f32 %v9100, %v9124
      %v9126 = vmin.f32 %v9125, 1.0
      %v9127 = vmax.f32 %v9126, -1.0
      %v9128 = vmul.f32 %v8121, %v8121
      %v9129 = vmin.f32 16.0, %v9128
      %v9130 = vmul.f32 %v9129, 2.1237322e-06
      %v9131 = vadd.f32 %v9130, 0.00028619796
      %v9132 = vmul.f32 %v9129, %v9131
      %v9133 = vadd.f32 %v9132, 0.0036580483
      %v9134 = vmul.f32 %v9129, %v9133
      %v9135 = vadd.f32 %v9134, 0.05243302
      %v9136 = vmul.f32 %v9129, %v9135
      %v9137 = vadd.f32 %v9136, 0.18741608
      %v9138 = vmul.f32 %v9129, %v9137
      %v9139 = vadd.f32 %v9138, 1.1283791
      %v9140 = vmul.f32 %v8121, %v9139
      %v9141 = vmul.f32 %v9129, 3.8918573e-05
      %v9142 = vadd.f32 %v9141, 0.001143296
      %v9143 = vmul.f32 %v9129, %v9142
      %v9144 = vadd.f32 %v9143, 0.014752088
      %v9145 = vmul.f32 %v9129, %v9144
      %v9146 = vadd.f32 %v9145, 0.112945676
      %v9147 = vmul.f32 %v9129, %v9146
      %v9148 = vadd.f32 %v9147, 0.4994258
      %v9149 = vmul.f32 %v9129, %v9148
      %v9150 = vadd.f32 %v9149, 1.0
      %v9151 = vrcp.pop %v9150
      %v9152 = vmul.f32 %v9150, %v9151
      %v9153 = vsub.f32 1.0, %v9152
      %v9154 = vmul.f32 %v9151, %v9153
      %v9155 = vadd.f32 %v9151, %v9154
      %vm9156 = vweird.f32 %v9150
      %vm9157 = vweird.f32 %v9151
      %vm9158 = vmor %vm9156, %vm9157
      %v9159 = vsel %vm9158, %v9151, %v9155
      %v9160 = vand.u32 2147483647, %v9150
      %vm9161 = vcmp.eq.f32.partialorder %v9160, 8.507059e+37
      %v9162 = vand.u32 %v9150, 2147483648
      %v9163 = vor.u32 1.1754944e-38, %v9162
      %v9164 = vsel %vm9161, %v9163, %v9159
      %v9165 = vmul.f32 %v9140, %v9164
      %v9166 = vmin.f32 %v9165, 1.0
      %v9167 = vmax.f32 %v9166, -1.0
      %v9168 = vmul.f32 %v8122, %v8122
      %v9169 = vmin.f32 16.0, %v9168
      %v9170 = vmul.f32 %v9169, 2.1237322e-06
      %v9171 = vadd.f32 %v9170, 0.00028619796
      %v9172 = vmul.f32 %v9169, %v9171
      %v9173 = vadd.f32 %v9172, 0.0036580483
      %v9174 = vmul.f32 %v9169, %v9173
      %v9175 = vadd.f32 %v9174, 0.05243302
      %v9176 = vmul.f32 %v9169, %v9175
      %v9177 = vadd.f32 %v9176, 0.18741608
      %v9178 = vmul.f32 %v9169, %v9177
      %v9179 = vadd.f32 %v9178, 1.1283791
      %v9180 = vmul.f32 %v8122, %v9179
      %v9181 = vmul.f32 %v9169, 3.8918573e-05
      %v9182 = vadd.f32 %v9181, 0.001143296
      %v9183 = vmul.f32 %v9169, %v9182
      %v9184 = vadd.f32 %v9183, 0.014752088
      %v9185 = vmul.f32 %v9169, %v9184
      %v9186 = vadd.f32 %v9185, 0.112945676
      %v9187 = vmul.f32 %v9169, %v9186
      %v9188 = vadd.f32 %v9187, 0.4994258
      %v9189 = vmul.f32 %v9169, %v9188
      %v9190 = vadd.f32 %v9189, 1.0
      %v9191 = vrcp.pop %v9190
      %v9192 = vmul.f32 %v9190, %v9191
      %v9193 = vsub.f32 1.0, %v9192
      %v9194 = vmul.f32 %v9191, %v9193
      %v9195 = vadd.f32 %v9191, %v9194
      %vm9196 = vweird.f32 %v9190
      %vm9197 = vweird.f32 %v9191
      %vm9198 = vmor %vm9196, %vm9197
      %v9199 = vsel %vm9198, %v9191, %v9195
      %v9200 = vand.u32 2147483647, %v9190
      %vm9201 = vcmp.eq.f32.partialorder %v9200, 8.507059e+37
      %v9202 = vand.u32 %v9190, 2147483648
      %v9203 = vor.u32 1.1754944e-38, %v9202
      %v9204 = vsel %vm9201, %v9203, %v9199
      %v9205 = vmul.f32 %v9180, %v9204
      %v9206 = vmin.f32 %v9205, 1.0
      %v9207 = vmax.f32 %v9206, -1.0
      %v9208 = vmul.f32 %v8123, %v8123
      %v9209 = vmin.f32 16.0, %v9208
      %v9210 = vmul.f32 %v9209, 2.1237322e-06
      %v9211 = vadd.f32 %v9210, 0.00028619796
      %v9212 = vmul.f32 %v9209, %v9211
      %v9213 = vadd.f32 %v9212, 0.0036580483
      %v9214 = vmul.f32 %v9209, %v9213
      %v9215 = vadd.f32 %v9214, 0.05243302
      %v9216 = vmul.f32 %v9209, %v9215
      %v9217 = vadd.f32 %v9216, 0.18741608
      %v9218 = vmul.f32 %v9209, %v9217
      %v9219 = vadd.f32 %v9218, 1.1283791
      %v9220 = vmul.f32 %v8123, %v9219
      %v9221 = vmul.f32 %v9209, 3.8918573e-05
      %v9222 = vadd.f32 %v9221, 0.001143296
      %v9223 = vmul.f32 %v9209, %v9222
      %v9224 = vadd.f32 %v9223, 0.014752088
      %v9225 = vmul.f32 %v9209, %v9224
      %v9226 = vadd.f32 %v9225, 0.112945676
      %v9227 = vmul.f32 %v9209, %v9226
      %v9228 = vadd.f32 %v9227, 0.4994258
      %v9229 = vmul.f32 %v9209, %v9228
      %v9230 = vadd.f32 %v9229, 1.0
      %v9231 = vrcp.pop %v9230
      %v9232 = vmul.f32 %v9230, %v9231
      %v9233 = vsub.f32 1.0, %v9232
      %v9234 = vmul.f32 %v9231, %v9233
      %v9235 = vadd.f32 %v9231, %v9234
      %vm9236 = vweird.f32 %v9230
      %vm9237 = vweird.f32 %v9231
      %vm9238 = vmor %vm9236, %vm9237
      %v9239 = vsel %vm9238, %v9231, %v9235
      %v9240 = vand.u32 2147483647, %v9230
      %vm9241 = vcmp.eq.f32.partialorder %v9240, 8.507059e+37
      %v9242 = vand.u32 %v9230, 2147483648
      %v9243 = vor.u32 1.1754944e-38, %v9242
      %v9244 = vsel %vm9241, %v9243, %v9239
      %v9245 = vmul.f32 %v9220, %v9244
      %v9246 = vmin.f32 %v9245, 1.0
      %v9247 = vmax.f32 %v9246, -1.0
      %v9248 = vmul.f32 %v8124, %v8124
      %v9249 = vmin.f32 16.0, %v9248
      %v9250 = vmul.f32 %v9249, 2.1237322e-06
      %v9251 = vadd.f32 %v9250, 0.00028619796
      %v9252 = vmul.f32 %v9249, %v9251
      %v9253 = vadd.f32 %v9252, 0.0036580483
      %v9254 = vmul.f32 %v9249, %v9253
      %v9255 = vadd.f32 %v9254, 0.05243302
      %v9256 = vmul.f32 %v9249, %v9255
      %v9257 = vadd.f32 %v9256, 0.18741608
      %v9258 = vmul.f32 %v9249, %v9257
      %v9259 = vadd.f32 %v9258, 1.1283791
      %v9260 = vmul.f32 %v8124, %v9259
      %v9261 = vmul.f32 %v9249, 3.8918573e-05
      %v9262 = vadd.f32 %v9261, 0.001143296
      %v9263 = vmul.f32 %v9249, %v9262
      %v9264 = vadd.f32 %v9263, 0.014752088
      %v9265 = vmul.f32 %v9249, %v9264
      %v9266 = vadd.f32 %v9265, 0.112945676
      %v9267 = vmul.f32 %v9249, %v9266
      %v9268 = vadd.f32 %v9267, 0.4994258
      %v9269 = vmul.f32 %v9249, %v9268
      %v9270 = vadd.f32 %v9269, 1.0
      %v9271 = vrcp.pop %v9270
      %v9272 = vmul.f32 %v9270, %v9271
      %v9273 = vsub.f32 1.0, %v9272
      %v9274 = vmul.f32 %v9271, %v9273
      %v9275 = vadd.f32 %v9271, %v9274
      %vm9276 = vweird.f32 %v9270
      %vm9277 = vweird.f32 %v9271
      %vm9278 = vmor %vm9276, %vm9277
      %v9279 = vsel %vm9278, %v9271, %v9275
      %v9280 = vand.u32 2147483647, %v9270
      %vm9281 = vcmp.eq.f32.partialorder %v9280, 8.507059e+37
      %v9282 = vand.u32 %v9270, 2147483648
      %v9283 = vor.u32 1.1754944e-38, %v9282
      %v9284 = vsel %vm9281, %v9283, %v9279
      %v9285 = vmul.f32 %v9260, %v9284
      %v9286 = vmin.f32 %v9285, 1.0
      %v9287 = vmax.f32 %v9286, -1.0
      %v9288 = vmul.f32 %v8125, %v8125
      %v9289 = vmin.f32 16.0, %v9288
      %v9290 = vmul.f32 %v9289, 2.1237322e-06
      %v9291 = vadd.f32 %v9290, 0.00028619796
      %v9292 = vmul.f32 %v9289, %v9291
      %v9293 = vadd.f32 %v9292, 0.0036580483
      %v9294 = vmul.f32 %v9289, %v9293
      %v9295 = vadd.f32 %v9294, 0.05243302
      %v9296 = vmul.f32 %v9289, %v9295
      %v9297 = vadd.f32 %v9296, 0.18741608
      %v9298 = vmul.f32 %v9289, %v9297
      %v9299 = vadd.f32 %v9298, 1.1283791
      %v9300 = vmul.f32 %v8125, %v9299
      %v9301 = vmul.f32 %v9289, 3.8918573e-05
      %v9302 = vadd.f32 %v9301, 0.001143296
      %v9303 = vmul.f32 %v9289, %v9302
      %v9304 = vadd.f32 %v9303, 0.014752088
      %v9305 = vmul.f32 %v9289, %v9304
      %v9306 = vadd.f32 %v9305, 0.112945676
      %v9307 = vmul.f32 %v9289, %v9306
      %v9308 = vadd.f32 %v9307, 0.4994258
      %v9309 = vmul.f32 %v9289, %v9308
      %v9310 = vadd.f32 %v9309, 1.0
      %v9311 = vrcp.pop %v9310
      %v9312 = vmul.f32 %v9310, %v9311
      %v9313 = vsub.f32 1.0, %v9312
      %v9314 = vmul.f32 %v9311, %v9313
      %v9315 = vadd.f32 %v9311, %v9314
      %vm9316 = vweird.f32 %v9310
      %vm9317 = vweird.f32 %v9311
      %vm9318 = vmor %vm9316, %vm9317
      %v9319 = vsel %vm9318, %v9311, %v9315
      %v9320 = vand.u32 2147483647, %v9310
      %vm9321 = vcmp.eq.f32.partialorder %v9320, 8.507059e+37
      %v9322 = vand.u32 %v9310, 2147483648
      %v9323 = vor.u32 1.1754944e-38, %v9322
      %v9324 = vsel %vm9321, %v9323, %v9319
      %v9325 = vmul.f32 %v9300, %v9324
      %v9326 = vmin.f32 %v9325, 1.0
      %v9327 = vmax.f32 %v9326, -1.0
      %v9328 = vmul.f32 %v8126, %v8126
      %v9329 = vmin.f32 16.0, %v9328
      %v9330 = vmul.f32 %v9329, 2.1237322e-06
      %v9331 = vadd.f32 %v9330, 0.00028619796
      %v9332 = vmul.f32 %v9329, %v9331
      %v9333 = vadd.f32 %v9332, 0.0036580483
      %v9334 = vmul.f32 %v9329, %v9333
      %v9335 = vadd.f32 %v9334, 0.05243302
      %v9336 = vmul.f32 %v9329, %v9335
      %v9337 = vadd.f32 %v9336, 0.18741608
      %v9338 = vmul.f32 %v9329, %v9337
      %v9339 = vadd.f32 %v9338, 1.1283791
      %v9340 = vmul.f32 %v8126, %v9339
      %v9341 = vmul.f32 %v9329, 3.8918573e-05
      %v9342 = vadd.f32 %v9341, 0.001143296
      %v9343 = vmul.f32 %v9329, %v9342
      %v9344 = vadd.f32 %v9343, 0.014752088
      %v9345 = vmul.f32 %v9329, %v9344
      %v9346 = vadd.f32 %v9345, 0.112945676
      %v9347 = vmul.f32 %v9329, %v9346
      %v9348 = vadd.f32 %v9347, 0.4994258
      %v9349 = vmul.f32 %v9329, %v9348
      %v9350 = vadd.f32 %v9349, 1.0
      %v9351 = vrcp.pop %v9350
      %v9352 = vmul.f32 %v9350, %v9351
      %v9353 = vsub.f32 1.0, %v9352
      %v9354 = vmul.f32 %v9351, %v9353
      %v9355 = vadd.f32 %v9351, %v9354
      %vm9356 = vweird.f32 %v9350
      %vm9357 = vweird.f32 %v9351
      %vm9358 = vmor %vm9356, %vm9357
      %v9359 = vsel %vm9358, %v9351, %v9355
      %v9360 = vand.u32 2147483647, %v9350
      %vm9361 = vcmp.eq.f32.partialorder %v9360, 8.507059e+37
      %v9362 = vand.u32 %v9350, 2147483648
      %v9363 = vor.u32 1.1754944e-38, %v9362
      %v9364 = vsel %vm9361, %v9363, %v9359
      %v9365 = vmul.f32 %v9340, %v9364
      %v9366 = vmin.f32 %v9365, 1.0
      %v9367 = vmax.f32 %v9366, -1.0
      %v9368 = vmul.f32 %v8127, %v8127
      %v9369 = vmin.f32 16.0, %v9368
      %v9370 = vmul.f32 %v9369, 2.1237322e-06
      %v9371 = vadd.f32 %v9370, 0.00028619796
      %v9372 = vmul.f32 %v9369, %v9371
      %v9373 = vadd.f32 %v9372, 0.0036580483
      %v9374 = vmul.f32 %v9369, %v9373
      %v9375 = vadd.f32 %v9374, 0.05243302
      %v9376 = vmul.f32 %v9369, %v9375
      %v9377 = vadd.f32 %v9376, 0.18741608
      %v9378 = vmul.f32 %v9369, %v9377
      %v9379 = vadd.f32 %v9378, 1.1283791
      %v9380 = vmul.f32 %v8127, %v9379
      %v9381 = vmul.f32 %v9369, 3.8918573e-05
      %v9382 = vadd.f32 %v9381, 0.001143296
      %v9383 = vmul.f32 %v9369, %v9382
      %v9384 = vadd.f32 %v9383, 0.014752088
      %v9385 = vmul.f32 %v9369, %v9384
      %v9386 = vadd.f32 %v9385, 0.112945676
      %v9387 = vmul.f32 %v9369, %v9386
      %v9388 = vadd.f32 %v9387, 0.4994258
      %v9389 = vmul.f32 %v9369, %v9388
      %v9390 = vadd.f32 %v9389, 1.0
      %v9391 = vrcp.pop %v9390
      %v9392 = vmul.f32 %v9390, %v9391
      %v9393 = vsub.f32 1.0, %v9392
      %v9394 = vmul.f32 %v9391, %v9393
      %v9395 = vadd.f32 %v9391, %v9394
      %vm9396 = vweird.f32 %v9390
      %vm9397 = vweird.f32 %v9391
      %vm9398 = vmor %vm9396, %vm9397
      %v9399 = vsel %vm9398, %v9391, %v9395
      %v9400 = vand.u32 2147483647, %v9390
      %vm9401 = vcmp.eq.f32.partialorder %v9400, 8.507059e+37
      %v9402 = vand.u32 %v9390, 2147483648
      %v9403 = vor.u32 1.1754944e-38, %v9402
      %v9404 = vsel %vm9401, %v9403, %v9399
      %v9405 = vmul.f32 %v9380, %v9404
      %v9406 = vmin.f32 %v9405, 1.0
      %v9407 = vmax.f32 %v9406, -1.0
      %v9408 = vadd.f32 %v8167, 1.0
      %v9409 = vadd.f32 %v8207, 1.0
      %v9410 = vadd.f32 %v8247, 1.0
      %v9411 = vadd.f32 %v8287, 1.0
      %v9412 = vadd.f32 %v8327, 1.0
      %v9413 = vadd.f32 %v8367, 1.0
      %v9414 = vadd.f32 %v8407, 1.0
      %v9415 = vadd.f32 %v8447, 1.0
      %v9416 = vadd.f32 %v8487, 1.0
      %v9417 = vadd.f32 %v8527, 1.0
      %v9418 = vadd.f32 %v8567, 1.0
      %v9419 = vadd.f32 %v8607, 1.0
      %v9420 = vadd.f32 %v8647, 1.0
      %v9421 = vadd.f32 %v8687, 1.0
      %v9422 = vadd.f32 %v8727, 1.0
      %v9423 = vadd.f32 %v8767, 1.0
      %v9424 = vadd.f32 %v8807, 1.0
      %v9425 = vadd.f32 %v8847, 1.0
      %v9426 = vadd.f32 %v8887, 1.0
      %v9427 = vadd.f32 %v8927, 1.0
      %v9428 = vadd.f32 %v8967, 1.0
      %v9429 = vadd.f32 %v9007, 1.0
      %v9430 = vadd.f32 %v9047, 1.0
      %v9431 = vadd.f32 %v9087, 1.0
      %v9432 = vadd.f32 %v9127, 1.0
      %v9433 = vadd.f32 %v9167, 1.0
      %v9434 = vadd.f32 %v9207, 1.0
      %v9435 = vadd.f32 %v9247, 1.0
      %v9436 = vadd.f32 %v9287, 1.0
      %v9437 = vadd.f32 %v9327, 1.0
      %v9438 = vadd.f32 %v9367, 1.0
      %v9439 = vadd.f32 %v9407, 1.0
      %v9440 = vmul.f32 %v8064, %v9408
      %v9441 = vmul.f32 %v8065, %v9409
      %v9442 = vmul.f32 %v8066, %v9410
      %v9443 = vmul.f32 %v8067, %v9411
      %v9444 = vmul.f32 %v8068, %v9412
      %v9445 = vmul.f32 %v8069, %v9413
      %v9446 = vmul.f32 %v8070, %v9414
      %v9447 = vmul.f32 %v8071, %v9415
      %v9448 = vmul.f32 %v8072, %v9416
      %v9449 = vmul.f32 %v8073, %v9417
      %v9450 = vmul.f32 %v8074, %v9418
      %v9451 = vmul.f32 %v8075, %v9419
      %v9452 = vmul.f32 %v8076, %v9420
      %v9453 = vmul.f32 %v8077, %v9421
      %v9454 = vmul.f32 %v8078, %v9422
      %v9455 = vmul.f32 %v8079, %v9423
      %v9456 = vmul.f32 %v8080, %v9424
      %v9457 = vmul.f32 %v8081, %v9425
      %v9458 = vmul.f32 %v8082, %v9426
      %v9459 = vmul.f32 %v8083, %v9427
      %v9460 = vmul.f32 %v8084, %v9428
      %v9461 = vmul.f32 %v8085, %v9429
      %v9462 = vmul.f32 %v8086, %v9430
      %v9463 = vmul.f32 %v8087, %v9431
      %v9464 = vmul.f32 %v8088, %v9432
      %v9465 = vmul.f32 %v8089, %v9433
      %v9466 = vmul.f32 %v8090, %v9434
      %v9467 = vmul.f32 %v8091, %v9435
      %v9468 = vmul.f32 %v8092, %v9436
      %v9469 = vmul.f32 %v8093, %v9437
      %v9470 = vmul.f32 %v8094, %v9438
      %v9471 = vmul.f32 %v8095, %v9439
      %v9472 = vpack.c.bf16 %v9441, %v9440
      %v9473 = vpack.c.bf16 %v9443, %v9442
      %v9474 = vpack.c.bf16 %v9445, %v9444
      %v9475 = vpack.c.bf16 %v9447, %v9446
      %v9476 = vpack.c.bf16 %v9449, %v9448
      %v9477 = vpack.c.bf16 %v9451, %v9450
      %v9478 = vpack.c.bf16 %v9453, %v9452
      %v9479 = vpack.c.bf16 %v9455, %v9454
      %v9480 = vpack.c.bf16 %v9457, %v9456
      %v9481 = vpack.c.bf16 %v9459, %v9458
      %v9482 = vpack.c.bf16 %v9461, %v9460
      %v9483 = vpack.c.bf16 %v9463, %v9462
      %v9484 = vpack.c.bf16 %v9465, %v9464
      %v9485 = vpack.c.bf16 %v9467, %v9466
      %v9486 = vpack.c.bf16 %v9469, %v9468
      %v9487 = vpack.c.bf16 %v9471, %v9470
      %v9488 = vld [vmem:[%s13] sm:$0xf]
      %v9489 = vld [vmem:[%s13 + $0x4] sm:$0xf]
      %v9490 = vld [vmem:[%s13 + $0x8] sm:$0xf]
      %v9491 = vld [vmem:[%s13 + $0xc] sm:$0xf]
      %v9492 = vld [vmem:[%s13 + $0x10] sm:$0xf]
      %v9493 = vld [vmem:[%s13 + $0x14] sm:$0xf]
      %v9494 = vld [vmem:[%s13 + $0x18] sm:$0xf]
      %v9495 = vld [vmem:[%s13 + $0x1c] sm:$0xf]
      %v9496 = vld [vmem:[%s13 + $0x20] sm:$0xf]
      %v9497 = vld [vmem:[%s13 + $0x24] sm:$0xf]
      %v9498 = vld [vmem:[%s13 + $0x28] sm:$0xf]
      %v9499 = vld [vmem:[%s13 + $0x2c] sm:$0xf]
      %v9500 = vld [vmem:[%s13 + $0x30] sm:$0xf]
      %v9501 = vld [vmem:[%s13 + $0x34] sm:$0xf]
      %v9502 = vld [vmem:[%s13 + $0x38] sm:$0xf]
      %v9503 = vld [vmem:[%s13 + $0x3c] sm:$0xf]
      %v9504 = vld [vmem:[%s14] sm:$0x1]
      %v9506 = vperm.slane %v9504, 0
      %v9524 = vunpack.c.l.b16 %v9488
      %v9525 = vunpack.c.l.b16 %v9489
      %v9526 = vunpack.c.l.b16 %v9490
      %v9527 = vunpack.c.l.b16 %v9491
      %v9528 = vunpack.c.l.b16 %v9492
      %v9529 = vunpack.c.l.b16 %v9493
      %v9530 = vunpack.c.l.b16 %v9494
      %v9531 = vunpack.c.l.b16 %v9495
      %v9532 = vunpack.c.l.b16 %v9496
      %v9533 = vunpack.c.l.b16 %v9497
      %v9534 = vunpack.c.l.b16 %v9498
      %v9535 = vunpack.c.l.b16 %v9499
      %v9536 = vunpack.c.l.b16 %v9500
      %v9537 = vunpack.c.l.b16 %v9501
      %v9538 = vunpack.c.l.b16 %v9502
      %v9539 = vunpack.c.l.b16 %v9503
      %v9540 = vpack.c.b16 %v9525, %v9524
      %v9541 = vpack.c.b16 %v9527, %v9526
      %v9542 = vpack.c.b16 %v9529, %v9528
      %v9543 = vpack.c.b16 %v9531, %v9530
      %v9544 = vpack.c.b16 %v9533, %v9532
      %v9545 = vpack.c.b16 %v9535, %v9534
      %v9546 = vpack.c.b16 %v9537, %v9536
      %v9547 = vpack.c.b16 %v9539, %v9538
      %9556 = vmatpush.bf16.msra.mxu0 %v9547
      %9557 = vmatpush.bf16.msra.mxu0 %v9546
      %9558 = vmatpush.bf16.msra.mxu0 %v9545
      %9559 = vmatpush.bf16.msra.mxu0 %v9544
      %9560 = vmatpush.bf16.msra.mxu0 %v9543
      %9561 = vmatpush.bf16.msra.mxu0 %v9542
      %9562 = vmatpush.bf16.msra.mxu0 %v9541
      %9563 = vmatpush.bf16.msra.mxu0 %v9540
      %9564 = vmatmul.bf16.gmra.mxu0 %v9472
      %v9565 = vpop.f32.mrf.mxu0
      %v9566 = vadd.f32 %v9506, %v9565
      %v9567 = vpop.f32.mrf.mxu0
      %v9568 = vadd.f32 %v9506, %v9567
      %9569 = vmatmul.bf16.gmra.mxu0 %v9473
      %v9570 = vpop.f32.mrf.mxu0
      %v9571 = vadd.f32 %v9506, %v9570
      %v9572 = vpop.f32.mrf.mxu0
      %v9573 = vadd.f32 %v9506, %v9572
      %9574 = vmatmul.bf16.gmra.mxu0 %v9474
      %v9575 = vpop.f32.mrf.mxu0
      %v9576 = vadd.f32 %v9506, %v9575
      %v9577 = vpop.f32.mrf.mxu0
      %v9578 = vadd.f32 %v9506, %v9577
      %9579 = vmatmul.bf16.gmra.mxu0 %v9475
      %v9580 = vpop.f32.mrf.mxu0
      %v9581 = vadd.f32 %v9506, %v9580
      %v9582 = vpop.f32.mrf.mxu0
      %v9583 = vadd.f32 %v9506, %v9582
      %9584 = vmatmul.bf16.gmra.mxu0 %v9476
      %v9585 = vpop.f32.mrf.mxu0
      %v9586 = vadd.f32 %v9506, %v9585
      %v9587 = vpop.f32.mrf.mxu0
      %v9588 = vadd.f32 %v9506, %v9587
      %9589 = vmatmul.bf16.gmra.mxu0 %v9477
      %v9590 = vpop.f32.mrf.mxu0
      %v9591 = vadd.f32 %v9506, %v9590
      %v9592 = vpop.f32.mrf.mxu0
      %v9593 = vadd.f32 %v9506, %v9592
      %9594 = vmatmul.bf16.gmra.mxu0 %v9478
      %v9595 = vpop.f32.mrf.mxu0
      %v9596 = vadd.f32 %v9506, %v9595
      %v9597 = vpop.f32.mrf.mxu0
      %v9598 = vadd.f32 %v9506, %v9597
      %9599 = vmatmul.bf16.gmra.mxu0 %v9479
      %v9600 = vpop.f32.mrf.mxu0
      %v9601 = vadd.f32 %v9506, %v9600
      %v9602 = vpop.f32.mrf.mxu0
      %v9603 = vadd.f32 %v9506, %v9602
      %9604 = vmatmul.bf16.gmra.mxu0 %v9480
      %v9605 = vpop.f32.mrf.mxu0
      %v9606 = vadd.f32 %v9506, %v9605
      %v9607 = vpop.f32.mrf.mxu0
      %v9608 = vadd.f32 %v9506, %v9607
      %9609 = vmatmul.bf16.gmra.mxu0 %v9481
      %v9610 = vpop.f32.mrf.mxu0
      %v9611 = vadd.f32 %v9506, %v9610
      %v9612 = vpop.f32.mrf.mxu0
      %v9613 = vadd.f32 %v9506, %v9612
      %9614 = vmatmul.bf16.gmra.mxu0 %v9482
      %v9615 = vpop.f32.mrf.mxu0
      %v9616 = vadd.f32 %v9506, %v9615
      %v9617 = vpop.f32.mrf.mxu0
      %v9618 = vadd.f32 %v9506, %v9617
      %9619 = vmatmul.bf16.gmra.mxu0 %v9483
      %v9620 = vpop.f32.mrf.mxu0
      %v9621 = vadd.f32 %v9506, %v9620
      %v9622 = vpop.f32.mrf.mxu0
      %v9623 = vadd.f32 %v9506, %v9622
      %9624 = vmatmul.bf16.gmra.mxu0 %v9484
      %v9625 = vpop.f32.mrf.mxu0
      %v9626 = vadd.f32 %v9506, %v9625
      %v9627 = vpop.f32.mrf.mxu0
      %v9628 = vadd.f32 %v9506, %v9627
      %9629 = vmatmul.bf16.gmra.mxu0 %v9485
      %v9630 = vpop.f32.mrf.mxu0
      %v9631 = vadd.f32 %v9506, %v9630
      %v9632 = vpop.f32.mrf.mxu0
      %v9633 = vadd.f32 %v9506, %v9632
      %9634 = vmatmul.bf16.gmra.mxu0 %v9486
      %v9635 = vpop.f32.mrf.mxu0
      %v9636 = vadd.f32 %v9506, %v9635
      %v9637 = vpop.f32.mrf.mxu0
      %v9638 = vadd.f32 %v9506, %v9637
      %9639 = vmatmul.bf16.gmra.mxu0 %v9487
      %v9640 = vpop.f32.mrf.mxu0
      %v9641 = vadd.f32 %v9506, %v9640
      %v9642 = vpop.f32.mrf.mxu0
      %v9643 = vadd.f32 %v9506, %v9642
      %9644 = vdwg.mxu0
      %v9645 = vadd.f32 %v7019, %v9566
      %v9646 = vadd.f32 %v7020, %v9568
      %v9647 = vadd.f32 %v7021, %v9571
      %v9648 = vadd.f32 %v7022, %v9573
      %v9649 = vadd.f32 %v7023, %v9576
      %v9650 = vadd.f32 %v7024, %v9578
      %v9651 = vadd.f32 %v7025, %v9581
      %v9652 = vadd.f32 %v7026, %v9583
      %v9653 = vadd.f32 %v7027, %v9586
      %v9654 = vadd.f32 %v7028, %v9588
      %v9655 = vadd.f32 %v7029, %v9591
      %v9656 = vadd.f32 %v7030, %v9593
      %v9657 = vadd.f32 %v7031, %v9596
      %v9658 = vadd.f32 %v7032, %v9598
      %v9659 = vadd.f32 %v7033, %v9601
      %v9660 = vadd.f32 %v7034, %v9603
      %v9661 = vadd.f32 %v7035, %v9606
      %v9662 = vadd.f32 %v7036, %v9608
      %v9663 = vadd.f32 %v7037, %v9611
      %v9664 = vadd.f32 %v7038, %v9613
      %v9665 = vadd.f32 %v7039, %v9616
      %v9666 = vadd.f32 %v7040, %v9618
      %v9667 = vadd.f32 %v7041, %v9621
      %v9668 = vadd.f32 %v7042, %v9623
      %v9669 = vadd.f32 %v7043, %v9626
      %v9670 = vadd.f32 %v7044, %v9628
      %v9671 = vadd.f32 %v7045, %v9631
      %v9672 = vadd.f32 %v7046, %v9633
      %v9673 = vadd.f32 %v7047, %v9636
      %v9674 = vadd.f32 %v7048, %v9638
      %v9675 = vadd.f32 %v7049, %v9641
      %v9676 = vadd.f32 %v7050, %v9643
      %9677 = vst.msk [vmem:[%s494] sm:$0xff] %vm528, %v9645
      %9678 = vst.msk [vmem:[%s494 + $0x8] sm:$0xff] %vm528, %v9646
      %9679 = vst.msk [vmem:[%s494 + $0x10] sm:$0xff] %vm528, %v9647
      %9680 = vst.msk [vmem:[%s494 + $0x18] sm:$0xff] %vm528, %v9648
      %9681 = vst.msk [vmem:[%s494 + $0x20] sm:$0xff] %vm528, %v9649
      %9682 = vst.msk [vmem:[%s494 + $0x28] sm:$0xff] %vm528, %v9650
      %9683 = vst.msk [vmem:[%s494 + $0x30] sm:$0xff] %vm528, %v9651
      %9684 = vst.msk [vmem:[%s494 + $0x38] sm:$0xff] %vm528, %v9652
      %9685 = vst.msk [vmem:[%s494 + $0x40] sm:$0xff] %vm528, %v9653
      %9686 = vst.msk [vmem:[%s494 + $0x48] sm:$0xff] %vm528, %v9654
      %9687 = vst.msk [vmem:[%s494 + $0x50] sm:$0xff] %vm528, %v9655
      %9688 = vst.msk [vmem:[%s494 + $0x58] sm:$0xff] %vm528, %v9656
      %9689 = vst.msk [vmem:[%s494 + $0x60] sm:$0xff] %vm528, %v9657
      %9690 = vst.msk [vmem:[%s494 + $0x68] sm:$0xff] %vm528, %v9658
      %9691 = vst.msk [vmem:[%s494 + $0x70] sm:$0xff] %vm528, %v9659
      %9692 = vst.msk [vmem:[%s494 + $0x78] sm:$0xff] %vm528, %v9660
      %9693 = vst.msk [vmem:[%s494 + $0x80] sm:$0xff] %vm528, %v9661
      %9694 = vst.msk [vmem:[%s494 + $0x88] sm:$0xff] %vm528, %v9662
      %9695 = vst.msk [vmem:[%s494 + $0x90] sm:$0xff] %vm528, %v9663
      %9696 = vst.msk [vmem:[%s494 + $0x98] sm:$0xff] %vm528, %v9664
      %9697 = vst.msk [vmem:[%s494 + $0xa0] sm:$0xff] %vm528, %v9665
      %9698 = vst.msk [vmem:[%s494 + $0xa8] sm:$0xff] %vm528, %v9666
      %9699 = vst.msk [vmem:[%s494 + $0xb0] sm:$0xff] %vm528, %v9667
      %9700 = vst.msk [vmem:[%s494 + $0xb8] sm:$0xff] %vm528, %v9668
      %9701 = vst.msk [vmem:[%s494 + $0xc0] sm:$0xff] %vm528, %v9669
      %9702 = vst.msk [vmem:[%s494 + $0xc8] sm:$0xff] %vm528, %v9670
      %9703 = vst.msk [vmem:[%s494 + $0xd0] sm:$0xff] %vm528, %v9671
      %9704 = vst.msk [vmem:[%s494 + $0xd8] sm:$0xff] %vm528, %v9672
      %9705 = vst.msk [vmem:[%s494 + $0xe0] sm:$0xff] %vm528, %v9673
      %9706 = vst.msk [vmem:[%s494 + $0xe8] sm:$0xff] %vm528, %v9674
      %9707 = vst.msk [vmem:[%s494 + $0xf0] sm:$0xff] %vm528, %v9675
      %9708 = vst.msk [vmem:[%s494 + $0xf8] sm:$0xff] %vm528, %v9676
      %p9709 = scmp.lt.s32.totalorder %s26, 1
      %s9710 = scalar_select %p9709, %s26, 1
      %s9711 = smul.addr %s9710, 32
      %s9712 = smul.addr %s9711, 8
      %s9713 = scalar_lea.vmem %s15, %s9712
      // Predicated region
      $region81: #{swin_block_forward.1} parent=79 // pred_check
        %p9714 = pneg %p364
      $region82: #{swin_block_forward.1} parent=79 // pred_check_branch
        %9716 = sbr.rel (%p9714) target = $region84
      $region83: #{swin_block_forward.1} parent=79 // pred_region
        _
      $region84: #{swin_block_forward.1} parent=79 // pred_fallthru
        _
    $region80: #{swin_block_forward.1} parent=5 // pred_fallthru
      _
    %p9717 = scmp.le.s32.totalorder 2, %s21
    // Predicated region
    $region85: #{swin_block_forward.1} parent=5 // pred_check
      %p9718 = pneg %p9717
    $region86: #{swin_block_forward.1} parent=5 // pred_check_branch
      %9720 = sbr.rel (%p9718) target = $region88
    $region87: #{swin_block_forward.1} parent=5 // pred_region
      %s9721 = ssub.s32 %s21, 2
      // Predicated region
      $region89: #{swin_block_forward.1} parent=87 // pred_check
        %p9722 = pneg %p370
      $region90: #{swin_block_forward.1} parent=87 // pred_check_branch
        %9724 = sbr.rel (%p9722) target = $region92
      $region91: #{swin_block_forward.1} parent=87 // pred_region
        %p9725 = scmp.lt.s32.totalorder %s27, 1
        %s9726 = scalar_select %p9725, %s27, 1
        %s9727 = smul.addr %s9726, 32
        %s9728 = smul.addr %s9727, 8
        %s9729 = scalar_lea.vmem %s15, %s9728
      $region92: #{swin_block_forward.1} parent=87 // pred_fallthru
        _
    $region88: #{swin_block_forward.1} parent=5 // pred_fallthru
      _
  $region6: #{swin_block_forward.1} parent=0 // loop_footer
    %s25 = sadd.s32 1, %s21
  $region7: #{swin_block_forward.1} parent=0 // loop_footer_branch
    %20 = sbr.rel target = $region3
  $region8: #{swin_block_forward.1} parent=0 // loop_exit
    _

</llo_original>
